<compile_context>
chip_gen: v6e
topology: v6e:2x2x1
jax: 0.10.0
libtpu: 0.0.40
codegen_flags: <defaults>
</compile_context>

<pallas_src>
import jax
import jax.numpy as jnp
from jax.experimental import pallas as pl
from jax.experimental.pallas import tpu as pltpu

_LANE = 128
_VMEM_LIMIT = 48 * 1024 * 1024     # <= v7x 64 MiB physical, well above v5e 16 MiB scoped default


def _round_up(x, m):
    return (x + m - 1) // m * m


def _largest_divisor_leq(n, cap):
    cap = max(1, min(n, cap))
    for d in range(cap, 0, -1):
        if n % d == 0:
            return d
    return 1


# ---------------- ConvTranspose2d (k=2, s=2) as a tiled MXU matmul ----------------

def _upconv_kernel(x_ref, w_ref, b_ref, o_ref):
    # x: (1, thu, w, Cin_p) bf16 ; w: (Cin_p, 4*Cp) bf16 ; b: (1, 4*Cp) f32
    thu, w, cin_p = x_ref.shape[1], x_ref.shape[2], x_ref.shape[3]
    x2 = x_ref[...].reshape(thu * w, cin_p)
    y = jnp.dot(x2, w_ref[...], preferred_element_type=jnp.float32) + b_ref[...]
    o_ref[...] = y.reshape(o_ref.shape).astype(o_ref.dtype)


def upconv2x2_matmul(fu_p, w_pack, b_pack):
    """ConvTranspose2d(k=2, s=2) core.  Output stays in packed (N, h, w, 4*Cp)
    layout (lanes ordered dy, dx, Cout); the caller interleaves."""
    N, h, w, cin_p = fu_p.shape
    four_cp = w_pack.shape[1]
    thu = _largest_divisor_leq(h, max(1, 2048 // max(w, 1)))
    return pl.pallas_call(
        _upconv_kernel,
        out_shape=jax.ShapeDtypeStruct((N, h, w, four_cp), jnp.bfloat16),
        grid=(N, h // thu),
        in_specs=[
            pl.BlockSpec((1, thu, w, cin_p), lambda n, i: (n, i, 0, 0)),
            pl.BlockSpec((cin_p, four_cp), lambda n, i: (0, 0)),
            pl.BlockSpec((1, four_cp), lambda n, i: (0, 0)),
        ],
        out_specs=pl.BlockSpec((1, thu, w, four_cp), lambda n, i: (n, i, 0, 0)),
        compiler_params=pltpu.CompilerParams(
            dimension_semantics=("parallel", "parallel"),
            vmem_limit_bytes=_VMEM_LIMIT),
    )(fu_p, w_pack, b_pack)


# ---------------- 3x3 replicate convs (im2col, single deep matmul) ----------------

def _band_with_halo(main, top, bot, th, W):
    # main: (1, th, W, Cp), top/bot: (1, 1, W, Cp) (already replicate-clamped rows)
    b = jnp.concatenate([top[0], main[0], bot[0]], axis=0)                 # (th+2, W, Cp)
    return jnp.concatenate([b[:, :1, :], b, b[:, W - 1:, :]], axis=1)      # (th+2, W+2, Cp)


def _im2col_parts(band, th, W):
    parts = []
    for dy in range(3):
        for dx in range(3):
            parts.append(band[dy:dy + th, dx:dx + W, :])
    return parts


def _conv1_kernel(up_ref, upt_ref, upb_ref, fd_ref, fdt_ref, fdb_ref,
                  w_ref, b_ref, o_ref):
    # Fused concat([up, from_down]) 3x3 replicate conv + ReLU on one (th x W) tile.
    # Single matmul with K = 18*Cp; no VMEM accumulator round-trips.
    th, W, Cp = o_ref.shape[1], o_ref.shape[2], o_ref.shape[3]
    bu = _band_with_halo(up_ref[...], upt_ref[...], upb_ref[...], th, W)
    bf = _band_with_halo(fd_ref[...], fdt_ref[...], fdb_ref[...], th, W)
    parts = _im2col_parts(bu, th, W) + _im2col_parts(bf, th, W)
    patch = jnp.concatenate(parts, axis=-1).reshape(th * W, 18 * Cp)
    acc = jnp.dot(patch, w_ref[...], preferred_element_type=jnp.float32)
    y = jnp.maximum(acc + b_ref[...], 0.0)
    o_ref[...] = y.reshape(1, th, W, Cp).astype(o_ref.dtype)


def _conv2_kernel(x_ref, xt_ref, xb_ref, w_ref, b_ref, o_ref, st_ref):
    # 3x3 replicate conv + ReLU (K = 9*Cp single matmul) + fused BatchNorm
    # partial statistics (per-tile sum / sum-of-squares, computed in f32).
    th, W, Cp = o_ref.shape[1], o_ref.shape[2], o_ref.shape[3]
    band = _band_with_halo(x_ref[...], xt_ref[...], xb_ref[...], th, W)
    patch = jnp.concatenate(_im2col_parts(band, th, W), axis=-1).reshape(th * W, 9 * Cp)
    acc = jnp.dot(patch, w_ref[...], preferred_element_type=jnp.float32)
    y = jnp.maximum(acc + b_ref[...], 0.0)                       # (th*W, Cp) f32
    o_ref[...] = y.reshape(1, th, W, Cp).astype(o_ref.dtype)     # bf16 store (half the traffic)
    s1 = jnp.sum(y, axis=0, keepdims=True)
    s2 = jnp.sum(y * y, axis=0, keepdims=True)
    st_ref[0, 0] = jnp.concatenate([s1, s2], axis=0)             # (2, Cp)


def _halo_specs(th, W, Cp, H):
    # Main tile + replicate-clamped single-row halo blocks (index_maps return
    # element row indices because the halo block size along H is 1).
    main = pl.BlockSpec((1, th, W, Cp), lambda n, h: (n, h, 0, 0))
    top = pl.BlockSpec((1, 1, W, Cp),
                       lambda n, h: (n, jnp.maximum(h * th - 1, 0), 0, 0))
    bot = pl.BlockSpec((1, 1, W, Cp),
                       lambda n, h: (n, jnp.minimum(h * th + th, H - 1), 0, 0))
    return main, top, bot


def conv1_concat_relu(up, fd, w_pack, b2d, th):
    N, H, W, Cp = up.shape
    main, top, bot = _halo_specs(th, W, Cp, H)
    return pl.pallas_call(
        _conv1_kernel,
        out_shape=jax.ShapeDtypeStruct((N, H, W, Cp), jnp.bfloat16),
        grid=(N, H // th),
        in_specs=[main, top, bot, main, top, bot,
                  pl.BlockSpec((18 * Cp, Cp), lambda n, h: (0, 0)),
                  pl.BlockSpec((1, Cp), lambda n, h: (0, 0))],
        out_specs=pl.BlockSpec((1, th, W, Cp), lambda n, h: (n, h, 0, 0)),
        compiler_params=pltpu.CompilerParams(
            dimension_semantics=("parallel", "parallel"),
            vmem_limit_bytes=_VMEM_LIMIT),
    )(up, up, up, fd, fd, fd, w_pack, b2d)


def conv2_relu_stats(x, w_pack, b2d, th):
    N, H, W, Cp = x.shape
    nH = H // th
    main, top, bot = _halo_specs(th, W, Cp, H)
    return pl.pallas_call(
        _conv2_kernel,
        out_shape=(jax.ShapeDtypeStruct((N, H, W, Cp), jnp.bfloat16),
                   jax.ShapeDtypeStruct((N, nH, 2, Cp), jnp.float32)),
        grid=(N, nH),
        in_specs=[main, top, bot,
                  pl.BlockSpec((9 * Cp, Cp), lambda n, h: (0, 0)),
                  pl.BlockSpec((1, Cp), lambda n, h: (0, 0))],
        out_specs=(pl.BlockSpec((1, th, W, Cp), lambda n, h: (n, h, 0, 0)),
                   pl.BlockSpec((1, 1, 2, Cp), lambda n, h: (n, h, 0, 0))),
        compiler_params=pltpu.CompilerParams(
            dimension_semantics=("parallel", "parallel"),
            vmem_limit_bytes=_VMEM_LIMIT),
    )(x, x, x, w_pack, b2d)


# ---------------- BatchNorm normalize pass ----------------

def _bn_apply_kernel(x_ref, ss_ref, o_ref):
    # x: (tr, Cp) bf16, ss: (2, Cp) f32 = [scale; shift]
    o_ref[...] = x_ref[...].astype(jnp.float32) * ss_ref[0:1, :] + ss_ref[1:2, :]


def bn_apply(x2d, ss):
    M, Cp = x2d.shape
    M8 = _round_up(M, 8)
    if M8 != M:
        x2d = jnp.pad(x2d, ((0, M8 - M), (0, 0)))
    tr = _largest_divisor_leq(M8, 2048)
    y = pl.pallas_call(
        _bn_apply_kernel,
        out_shape=jax.ShapeDtypeStruct((M8, Cp), jnp.float32),
        grid=(M8 // tr,),
        in_specs=[pl.BlockSpec((tr, Cp), lambda i: (i, 0)),
                  pl.BlockSpec((2, Cp), lambda i: (0, 0))],
        out_specs=pl.BlockSpec((tr, Cp), lambda i: (i, 0)),
        compiler_params=pltpu.CompilerParams(
            dimension_semantics=("parallel",),
            vmem_limit_bytes=_VMEM_LIMIT),
    )(x2d, ss)
    return y[:M]


# ---------------- weight packing & params ----------------

def _pack_conv3x3_w(groups, cp):
    """List of (Cout, Cin_g, 3, 3) groups -> (len*9*cp, cp) bf16, matching the
    im2col lane order [group, dy, dx, cin]."""
    packed = []
    for wg in groups:
        cout, cin = wg.shape[0], wg.shape[1]
        w = jnp.transpose(wg, (2, 3, 1, 0))                       # (3, 3, Cin, Cout)
        w = jnp.pad(w, ((0, 0), (0, 0), (0, cp - cin), (0, cp - cout)))
        packed.append(w.reshape(9 * cp, cp))
    return jnp.concatenate(packed, axis=0).astype(jnp.bfloat16)


def init_params(key, in_channels, out_channels):
    ks = jax.random.split(key, 6)
    p = {}
    # nn.ConvTranspose2d(in, out, kernel_size=2, stride=2): weight (Cin, Cout, 2, 2)
    p["up_w"] = 0.1 * jax.random.normal(ks[0], (in_channels, out_channels, 2, 2), jnp.float32)
    p["up_b"] = 0.1 * jax.random.normal(ks[1], (out_channels,), jnp.float32)
    # conv1 = Conv2d(2*out, out, 3, padding=1, padding_mode='replicate')
    p["c1_w"] = 0.1 * jax.random.normal(ks[2], (out_channels, 2 * out_channels, 3, 3), jnp.float32)
    p["c1_b"] = 0.1 * jax.random.normal(ks[3], (out_channels,), jnp.float32)
    # conv2 = Conv2d(out, out, 3, padding=1, padding_mode='replicate')
    p["c2_w"] = 0.1 * jax.random.normal(ks[4], (out_channels, out_channels, 3, 3), jnp.float32)
    p["c2_b"] = 0.1 * jax.random.normal(ks[5], (out_channels,), jnp.float32)
    # BatchNorm2d(out): default affine init
    p["bn_g"] = jnp.ones((out_channels,), jnp.float32)
    p["bn_b"] = jnp.zeros((out_channels,), jnp.float32)
    return p


# ---------------- forward ----------------

def upconv_forward(params, from_down_nchw, from_up_nchw):
    cin = params["up_w"].shape[0]
    cout = params["up_w"].shape[1]
    cin_p = _round_up(cin, _LANE)      # lane-dense K for the transpose-conv matmul
    cp = _round_up(cout, _LANE)        # lane-dense channel width for all conv stores

    # NCHW -> NHWC (channels on the lane axis)
    fd = jnp.transpose(from_down_nchw, (0, 2, 3, 1)).astype(jnp.float32)
    fu = jnp.transpose(from_up_nchw, (0, 2, 3, 1)).astype(jnp.float32)
    N, H, W, _ = fd.shape
    _, h, w, _ = fu.shape

    # --- ConvTranspose2d(k=2, s=2): tiled Pallas matmul (bf16 MXU, f32 acc) ---
    fu_p = jnp.pad(fu, ((0, 0), (0, 0), (0, 0), (0, cin_p - cin))).astype(jnp.bfloat16)
    wt = jnp.transpose(params["up_w"], (0, 2, 3, 1))               # (Cin, 2, 2, Cout)
    wt = jnp.pad(wt, ((0, cin_p - cin), (0, 0), (0, 0), (0, cp - cout)))
    wt = wt.reshape(cin_p, 4 * cp).astype(jnp.bfloat16)            # lanes = (dy, dx, Cout_p)
    bt = jnp.tile(jnp.pad(params["up_b"], (0, cp - cout)), 4).reshape(1, 4 * cp).astype(jnp.float32)
    y4 = upconv2x2_matmul(fu_p, wt, bt)                            # (N, h, w, 4*cp) bf16

    # 2x2 interleave (stride-2 scatter expressed as reshape/transpose).
    # TODO(synk): fold the interleave into the upconv kernel's store (needs a
    # lane->sublane relayout or strided stores inside the kernel).
    up = (y4.reshape(N, h, w, 2, 2, cp)
             .transpose(0, 1, 3, 2, 4, 5)
             .reshape(N, 2 * h, 2 * w, cp))

    # F.pad(..., 'replicate') to match the encoder spatial dims (usually a no-op)
    diffY = H - up.shape[1]
    diffX = W - up.shape[2]
    assert diffY >= 0 and diffX >= 0, "decoder output larger than encoder feature map"
    if diffY or diffX:
        up = jnp.pad(up,
                     ((0, 0),
                      (diffY // 2, diffY - diffY // 2),
                      (diffX // 2, diffX - diffX // 2),
                      (0, 0)),
                     mode="edge")

    fd_p = jnp.pad(fd, ((0, 0), (0, 0), (0, 0), (0, cp - cout))).astype(jnp.bfloat16)

    # H-tile: sized from a ~12 MiB per-step budget; the conv1 im2col patch
    # (bf16, K = 18*cp) dominates the per-row footprint.
    budget = 12 * 1024 * 1024
    per_row = W * cp * 52
    th = _largest_divisor_leq(H, max(1, budget // max(per_row, 1)))
    # TODO(synk): switch the conv grids to pl.cdiv(H, th) + last-tile masking so
    # awkward H (e.g. prime) does not force tiny divisor tiles.

    # --- conv1 (concat fused) + ReLU ---
    w1 = _pack_conv3x3_w([params["c1_w"][:, :cout], params["c1_w"][:, cout:]], cp)
    b1 = jnp.pad(params["c1_b"], (0, cp - cout)).reshape(1, cp).astype(jnp.float32)
    y1 = conv1_concat_relu(up, fd_p, w1, b1, th)                   # (N,H,W,cp) bf16

    # --- conv2 + ReLU, with fused BatchNorm statistics ---
    w2 = _pack_conv3x3_w([params["c2_w"]], cp)
    b2 = jnp.pad(params["c2_b"], (0, cp - cout)).reshape(1, cp).astype(jnp.float32)
    y2, stats = conv2_relu_stats(y1, w2, b2, th)                   # bf16, (N,nH,2,cp) f32

    # --- BatchNorm2d (train-mode batch stats, biased var, eps=1e-5) ---
    # TODO(synk): running_mean / running_var buffers are not updated (forward-only).
    cnt = float(N * H * W)
    tot = jnp.sum(stats, axis=(0, 1))                              # (2, cp)
    mean = tot[0] / cnt
    var = jnp.maximum(tot[1] / cnt - mean * mean, 0.0)
    gamma = jnp.pad(params["bn_g"], (0, cp - cout))
    beta = jnp.pad(params["bn_b"], (0, cp - cout))
    scale = gamma * jax.lax.rsqrt(var + 1e-5)
    shift = beta - mean * scale
    ss = jnp.stack([scale, shift], axis=0).astype(jnp.float32)     # (2, cp)
    yn = bn_apply(y2.reshape(N * H * W, cp), ss).reshape(N, H, W, cp)

    # drop channel padding, NHWC -> NCHW
    return jnp.transpose(yn[..., :cout], (0, 3, 1, 2))


if __name__ == "__main__":
    key = jax.random.PRNGKey(0)
    k_p, k_d, k_u = jax.random.split(key, 3)

    in_channels, out_channels = 8, 4
    N, H, W = 2, 16, 16

    params = init_params(k_p, in_channels, out_channels)
    # from_down: encoder features (N, out_channels, H, W)
    # from_up:   decoder features (N, in_channels, H//2, W//2)
    from_down = jax.random.normal(k_d, (N, out_channels, H, W), jnp.float32)
    from_up = jax.random.normal(k_u, (N, in_channels, H // 2, W // 2), jnp.float32)

    fwd = jax.jit(upconv_forward)
    out = jax.block_until_ready(fwd(params, from_down, from_up))

    assert out.shape == (N, out_channels, H, W), out.shape
    assert bool(jnp.all(jnp.isfinite(out)))
    print("KERNEL_OK")
</pallas_src>

<mosaic_0001>
module attributes {stable_mosaic.version = 11 : i64} {
  func.func @_upconv_kernel(%arg0: i32, %arg1: i32, %arg2: memref<1x8x8x128xbf16, #tpu.memory_space<vmem>>, %arg3: memref<128x512xbf16, #tpu.memory_space<vmem>>, %arg4: memref<1x512xf32, #tpu.memory_space<vmem>>, %arg5: memref<1x8x8x512xbf16, #tpu.memory_space<vmem>>) attributes {dimension_semantics = [#tpu.dimension_semantics<parallel>, #tpu.dimension_semantics<parallel>], iteration_bounds = array<i64: 2, 1>, scalar_prefetch = 0 : i64, scratch_operands = 0 : i64, tpu.core_type = #tpu.core_type<tc>, window_params = [{transform_indices = @transform_0, window_bounds = array<i64: 1, 8, 8, 128>}, {pipeline_mode = #tpu.pipeline_mode<synchronous>, transform_indices = @transform_1, window_bounds = array<i64: 128, 512>}, {pipeline_mode = #tpu.pipeline_mode<synchronous>, transform_indices = @transform_2, window_bounds = array<i64: 1, 512>}, {transform_indices = @transform_3, window_bounds = array<i64: 1, 8, 8, 512>}]} {
    %c0 = arith.constant 0 : index
    %c0_0 = arith.constant 0 : index
    %c0_1 = arith.constant 0 : index
    %c0_2 = arith.constant 0 : index
    %0 = vector.load %arg2[%c0, %c0_0, %c0_1, %c0_2] : memref<1x8x8x128xbf16, #tpu.memory_space<vmem>>, vector<1x8x8x128xbf16>
    %1 = vector.shape_cast %0 : vector<1x8x8x128xbf16> to vector<64x128xbf16>
    %c0_3 = arith.constant 0 : index
    %c0_4 = arith.constant 0 : index
    %2 = vector.load %arg3[%c0_3, %c0_4] : memref<128x512xbf16, #tpu.memory_space<vmem>>, vector<128x512xbf16>
    %cst = arith.constant dense<0.000000e+00> : vector<64x512xf32>
    %3 = tpu.matmul %1, %2, %cst {dimension_numbers = #tpu.dot_dimension_numbers<[1], [0], [0], [1], [0, 0, 1, 1], [], []>} : vector<64x128xbf16>, vector<128x512xbf16>, vector<64x512xf32> -> vector<64x512xf32>
    %c0_5 = arith.constant 0 : index
    %c0_6 = arith.constant 0 : index
    %4 = vector.load %arg4[%c0_5, %c0_6] : memref<1x512xf32, #tpu.memory_space<vmem>>, vector<1x512xf32>
    %5 = vector.broadcast %4 : vector<1x512xf32> to vector<64x512xf32>
    %6 = arith.addf %3, %5 : vector<64x512xf32>
    %7 = vector.shape_cast %6 : vector<64x512xf32> to vector<1x8x8x512xf32>
    %8 = arith.truncf %7 : vector<1x8x8x512xf32> to vector<1x8x8x512xbf16>
    %c0_7 = arith.constant 0 : index
    %c0_8 = arith.constant 0 : index
    %c0_9 = arith.constant 0 : index
    %c0_10 = arith.constant 0 : index
    %9 = vector.load %arg5[%c0_7, %c0_8, %c0_9, %c0_10] : memref<1x8x8x512xbf16, #tpu.memory_space<vmem>>, vector<1x8x8x512xbf16>
    tpu.vector_store %arg5[%c0_7, %c0_8, %c0_9, %c0_10], %8 {strides = array<i32>} : memref<1x8x8x512xbf16, #tpu.memory_space<vmem>>, vector<1x8x8x512xbf16>,
    return
  }
  func.func @transform_0(%arg0: i32, %arg1: i32) -> (i32, i32, i32, i32) {
    %c0_i32 = arith.constant 0 : i32
    %c0_i32_0 = arith.constant 0 : i32
    %c0_i32_1 = arith.constant 0 : i32
    return %arg0, %arg1, %c0_i32, %c0_i32_0 : i32, i32, i32, i32
  }
  func.func @transform_1(%arg0: i32, %arg1: i32) -> (i32, i32) {
    %c0_i32 = arith.constant 0 : i32
    %c0_i32_0 = arith.constant 0 : i32
    %c0_i32_1 = arith.constant 0 : i32
    return %c0_i32, %c0_i32_0 : i32, i32
  }
  func.func @transform_2(%arg0: i32, %arg1: i32) -> (i32, i32) {
    %c0_i32 = arith.constant 0 : i32
    %c0_i32_0 = arith.constant 0 : i32
    %c0_i32_1 = arith.constant 0 : i32
    return %c0_i32, %c0_i32_0 : i32, i32
  }
  func.func @transform_3(%arg0: i32, %arg1: i32) -> (i32, i32, i32, i32) {
    %c0_i32 = arith.constant 0 : i32
    %c0_i32_0 = arith.constant 0 : i32
    %c0_i32_1 = arith.constant 0 : i32
    return %arg0, %arg1, %c0_i32, %c0_i32_0 : i32, i32, i32, i32
  }
}

module attributes {stable_mosaic.version = 11 : i64} {
  func.func @_conv1_kernel(%arg0: i32, %arg1: i32, %arg2: memref<1x16x16x128xbf16, #tpu.memory_space<vmem>>, %arg3: memref<1x1x16x128xbf16, #tpu.memory_space<vmem>>, %arg4: memref<1x1x16x128xbf16, #tpu.memory_space<vmem>>, %arg5: memref<1x16x16x128xbf16, #tpu.memory_space<vmem>>, %arg6: memref<1x1x16x128xbf16, #tpu.memory_space<vmem>>, %arg7: memref<1x1x16x128xbf16, #tpu.memory_space<vmem>>, %arg8: memref<2304x128xbf16, #tpu.memory_space<vmem>>, %arg9: memref<1x128xf32, #tpu.memory_space<vmem>>, %arg10: memref<1x16x16x128xbf16, #tpu.memory_space<vmem>>) attributes {dimension_semantics = [#tpu.dimension_semantics<parallel>, #tpu.dimension_semantics<parallel>], iteration_bounds = array<i64: 2, 1>, scalar_prefetch = 0 : i64, scratch_operands = 0 : i64, tpu.core_type = #tpu.core_type<tc>, window_params = [{transform_indices = @transform_0, window_bounds = array<i64: 1, 16, 16, 128>}, {transform_indices = @transform_1, window_bounds = array<i64: 1, 1, 16, 128>}, {transform_indices = @transform_2, window_bounds = array<i64: 1, 1, 16, 128>}, {transform_indices = @transform_3, window_bounds = array<i64: 1, 16, 16, 128>}, {transform_indices = @transform_4, window_bounds = array<i64: 1, 1, 16, 128>}, {transform_indices = @transform_5, window_bounds = array<i64: 1, 1, 16, 128>}, {pipeline_mode = #tpu.pipeline_mode<synchronous>, transform_indices = @transform_6, window_bounds = array<i64: 2304, 128>}, {pipeline_mode = #tpu.pipeline_mode<synchronous>, transform_indices = @transform_7, window_bounds = array<i64: 1, 128>}, {transform_indices = @transform_8, window_bounds = array<i64: 1, 16, 16, 128>}]} {
    %c0 = arith.constant 0 : index
    %c0_0 = arith.constant 0 : index
    %c0_1 = arith.constant 0 : index
    %c0_2 = arith.constant 0 : index
    %0 = vector.load %arg2[%c0, %c0_0, %c0_1, %c0_2] : memref<1x16x16x128xbf16, #tpu.memory_space<vmem>>, vector<1x16x16x128xbf16>
    %c0_3 = arith.constant 0 : index
    %c0_4 = arith.constant 0 : index
    %c0_5 = arith.constant 0 : index
    %c0_6 = arith.constant 0 : index
    %1 = vector.load %arg3[%c0_3, %c0_4, %c0_5, %c0_6] : memref<1x1x16x128xbf16, #tpu.memory_space<vmem>>, vector<1x1x16x128xbf16>
    %c0_7 = arith.constant 0 : index
    %c0_8 = arith.constant 0 : index
    %c0_9 = arith.constant 0 : index
    %c0_10 = arith.constant 0 : index
    %2 = vector.load %arg4[%c0_7, %c0_8, %c0_9, %c0_10] : memref<1x1x16x128xbf16, #tpu.memory_space<vmem>>, vector<1x1x16x128xbf16>
    %3 = vector.shape_cast %1 : vector<1x1x16x128xbf16> to vector<1x16x128xbf16>
    %4 = vector.shape_cast %0 : vector<1x16x16x128xbf16> to vector<16x16x128xbf16>
    %5 = vector.shape_cast %2 : vector<1x1x16x128xbf16> to vector<1x16x128xbf16>
    %6 = tpu.concatenate %3, %4, %5 in 0 : vector<1x16x128xbf16>, vector<16x16x128xbf16>, vector<1x16x128xbf16> -> vector<18x16x128xbf16>
    %7 = vector.extract_strided_slice %6 {offsets = [0, 0, 0], sizes = [18, 1, 128], strides = [1, 1, 1]} : vector<18x16x128xbf16> to vector<18x1x128xbf16>
    %8 = vector.extract_strided_slice %6 {offsets = [0, 15, 0], sizes = [18, 1, 128], strides = [1, 1, 1]} : vector<18x16x128xbf16> to vector<18x1x128xbf16>
    %9 = tpu.concatenate %7, %6, %8 in 1 : vector<18x1x128xbf16>, vector<18x16x128xbf16>, vector<18x1x128xbf16> -> vector<18x18x128xbf16>
    %c0_11 = arith.constant 0 : index
    %c0_12 = arith.constant 0 : index
    %c0_13 = arith.constant 0 : index
    %c0_14 = arith.constant 0 : index
    %10 = vector.load %arg5[%c0_11, %c0_12, %c0_13, %c0_14] : memref<1x16x16x128xbf16, #tpu.memory_space<vmem>>, vector<1x16x16x128xbf16>
    %c0_15 = arith.constant 0 : index
    %c0_16 = arith.constant 0 : index
    %c0_17 = arith.constant 0 : index
    %c0_18 = arith.constant 0 : index
    %11 = vector.load %arg6[%c0_15, %c0_16, %c0_17, %c0_18] : memref<1x1x16x128xbf16, #tpu.memory_space<vmem>>, vector<1x1x16x128xbf16>
    %c0_19 = arith.constant 0 : index
    %c0_20 = arith.constant 0 : index
    %c0_21 = arith.constant 0 : index
    %c0_22 = arith.constant 0 : index
    %12 = vector.load %arg7[%c0_19, %c0_20, %c0_21, %c0_22] : memref<1x1x16x128xbf16, #tpu.memory_space<vmem>>, vector<1x1x16x128xbf16>
    %13 = vector.shape_cast %11 : vector<1x1x16x128xbf16> to vector<1x16x128xbf16>
    %14 = vector.shape_cast %10 : vector<1x16x16x128xbf16> to vector<16x16x128xbf16>
    %15 = vector.shape_cast %12 : vector<1x1x16x128xbf16> to vector<1x16x128xbf16>
    %16 = tpu.concatenate %13, %14, %15 in 0 : vector<1x16x128xbf16>, vector<16x16x128xbf16>, vector<1x16x128xbf16> -> vector<18x16x128xbf16>
    %17 = vector.extract_strided_slice %16 {offsets = [0, 0, 0], sizes = [18, 1, 128], strides = [1, 1, 1]} : vector<18x16x128xbf16> to vector<18x1x128xbf16>
    %18 = vector.extract_strided_slice %16 {offsets = [0, 15, 0], sizes = [18, 1, 128], strides = [1, 1, 1]} : vector<18x16x128xbf16> to vector<18x1x128xbf16>
    %19 = tpu.concatenate %17, %16, %18 in 1 : vector<18x1x128xbf16>, vector<18x16x128xbf16>, vector<18x1x128xbf16> -> vector<18x18x128xbf16>
    %20 = vector.extract_strided_slice %9 {offsets = [0, 0, 0], sizes = [16, 16, 128], strides = [1, 1, 1]} : vector<18x18x128xbf16> to vector<16x16x128xbf16>
    %21 = vector.extract_strided_slice %9 {offsets = [0, 1, 0], sizes = [16, 16, 128], strides = [1, 1, 1]} : vector<18x18x128xbf16> to vector<16x16x128xbf16>
    %22 = vector.extract_strided_slice %9 {offsets = [0, 2, 0], sizes = [16, 16, 128], strides = [1, 1, 1]} : vector<18x18x128xbf16> to vector<16x16x128xbf16>
    %23 = vector.extract_strided_slice %9 {offsets = [1, 0, 0], sizes = [16, 16, 128], strides = [1, 1, 1]} : vector<18x18x128xbf16> to vector<16x16x128xbf16>
    %24 = vector.extract_strided_slice %9 {offsets = [1, 1, 0], sizes = [16, 16, 128], strides = [1, 1, 1]} : vector<18x18x128xbf16> to vector<16x16x128xbf16>
    %25 = vector.extract_strided_slice %9 {offsets = [1, 2, 0], sizes = [16, 16, 128], strides = [1, 1, 1]} : vector<18x18x128xbf16> to vector<16x16x128xbf16>
    %26 = vector.extract_strided_slice %9 {offsets = [2, 0, 0], sizes = [16, 16, 128], strides = [1, 1, 1]} : vector<18x18x128xbf16> to vector<16x16x128xbf16>
    %27 = vector.extract_strided_slice %9 {offsets = [2, 1, 0], sizes = [16, 16, 128], strides = [1, 1, 1]} : vector<18x18x128xbf16> to vector<16x16x128xbf16>
    %28 = vector.extract_strided_slice %9 {offsets = [2, 2, 0], sizes = [16, 16, 128], strides = [1, 1, 1]} : vector<18x18x128xbf16> to vector<16x16x128xbf16>
    %29 = vector.extract_strided_slice %19 {offsets = [0, 0, 0], sizes = [16, 16, 128], strides = [1, 1, 1]} : vector<18x18x128xbf16> to vector<16x16x128xbf16>
    %30 = vector.extract_strided_slice %19 {offsets = [0, 1, 0], sizes = [16, 16, 128], strides = [1, 1, 1]} : vector<18x18x128xbf16> to vector<16x16x128xbf16>
    %31 = vector.extract_strided_slice %19 {offsets = [0, 2, 0], sizes = [16, 16, 128], strides = [1, 1, 1]} : vector<18x18x128xbf16> to vector<16x16x128xbf16>
    %32 = vector.extract_strided_slice %19 {offsets = [1, 0, 0], sizes = [16, 16, 128], strides = [1, 1, 1]} : vector<18x18x128xbf16> to vector<16x16x128xbf16>
    %33 = vector.extract_strided_slice %19 {offsets = [1, 1, 0], sizes = [16, 16, 128], strides = [1, 1, 1]} : vector<18x18x128xbf16> to vector<16x16x128xbf16>
    %34 = vector.extract_strided_slice %19 {offsets = [1, 2, 0], sizes = [16, 16, 128], strides = [1, 1, 1]} : vector<18x18x128xbf16> to vector<16x16x128xbf16>
    %35 = vector.extract_strided_slice %19 {offsets = [2, 0, 0], sizes = [16, 16, 128], strides = [1, 1, 1]} : vector<18x18x128xbf16> to vector<16x16x128xbf16>
    %36 = vector.extract_strided_slice %19 {offsets = [2, 1, 0], sizes = [16, 16, 128], strides = [1, 1, 1]} : vector<18x18x128xbf16> to vector<16x16x128xbf16>
    %37 = vector.extract_strided_slice %19 {offsets = [2, 2, 0], sizes = [16, 16, 128], strides = [1, 1, 1]} : vector<18x18x128xbf16> to vector<16x16x128xbf16>
    %38 = tpu.concatenate %20, %21, %22, %23, %24, %25, %26, %27, %28, %29, %30, %31, %32, %33, %34, %35 in 2 : vector<16x16x128xbf16>, vector<16x16x128xbf16>, vector<16x16x128xbf16>, vector<16x16x128xbf16>, vector<16x16x128xbf16>, vector<16x16x128xbf16>, vector<16x16x128xbf16>, vector<16x16x128xbf16>, vector<16x16x128xbf16>, vector<16x16x128xbf16>, vector<16x16x128xbf16>, vector<16x16x128xbf16>, vector<16x16x128xbf16>, vector<16x16x128xbf16>, vector<16x16x128xbf16>, vector<16x16x128xbf16> -> vector<16x16x2048xbf16>
    %39 = tpu.concatenate %36, %37 in 2 : vector<16x16x128xbf16>, vector<16x16x128xbf16> -> vector<16x16x256xbf16>
    %40 = tpu.concatenate %38, %39 in 2 : vector<16x16x2048xbf16>, vector<16x16x256xbf16> -> vector<16x16x2304xbf16>
    %41 = vector.shape_cast %40 : vector<16x16x2304xbf16> to vector<256x2304xbf16>
    %c0_23 = arith.constant 0 : index
    %c0_24 = arith.constant 0 : index
    %42 = vector.load %arg8[%c0_23, %c0_24] : memref<2304x128xbf16, #tpu.memory_space<vmem>>, vector<2304x128xbf16>
    %cst = arith.constant dense<0.000000e+00> : vector<256x128xf32>
    %43 = tpu.matmul %41, %42, %cst {dimension_numbers = #tpu.dot_dimension_numbers<[1], [0], [0], [1], [0, 0, 1, 1], [], []>} : vector<256x2304xbf16>, vector<2304x128xbf16>, vector<256x128xf32> -> vector<256x128xf32>
    %c0_25 = arith.constant 0 : index
    %c0_26 = arith.constant 0 : index
    %44 = vector.load %arg9[%c0_25, %c0_26] : memref<1x128xf32, #tpu.memory_space<vmem>>, vector<1x128xf32>
    %45 = vector.broadcast %44 : vector<1x128xf32> to vector<256x128xf32>
    %46 = arith.addf %43, %45 : vector<256x128xf32>
    %cst_27 = arith.constant 0.000000e+00 : f32
    %47 = vector.broadcast %cst_27 : f32 to vector<256x128xf32>
    %48 = arith.maximumf %46, %47 : vector<256x128xf32>
    %49 = vector.shape_cast %48 : vector<256x128xf32> to vector<1x16x16x128xf32>
    %50 = arith.truncf %49 : vector<1x16x16x128xf32> to vector<1x16x16x128xbf16>
    %c0_28 = arith.constant 0 : index
    %c0_29 = arith.constant 0 : index
    %c0_30 = arith.constant 0 : index
    %c0_31 = arith.constant 0 : index
    %51 = vector.load %arg10[%c0_28, %c0_29, %c0_30, %c0_31] : memref<1x16x16x128xbf16, #tpu.memory_space<vmem>>, vector<1x16x16x128xbf16>
    tpu.vector_store %arg10[%c0_28, %c0_29, %c0_30, %c0_31], %50 {strides = array<i32>} : memref<1x16x16x128xbf16, #tpu.memory_space<vmem>>, vector<1x16x16x128xbf16>,
    return
  }
  func.func @transform_0(%arg0: i32, %arg1: i32) -> (i32, i32, i32, i32) {
    %c0_i32 = arith.constant 0 : i32
    %c0_i32_0 = arith.constant 0 : i32
    %c0_i32_1 = arith.constant 0 : i32
    return %arg0, %arg1, %c0_i32, %c0_i32_0 : i32, i32, i32, i32
  }
  func.func @transform_1(%arg0: i32, %arg1: i32) -> (i32, i32, i32, i32) {
    %c16_i32 = arith.constant 16 : i32
    %0 = arith.muli %arg1, %c16_i32 : i32
    %c1_i32 = arith.constant 1 : i32
    %1 = arith.subi %0, %c1_i32 : i32
    %c0_i32 = arith.constant 0 : i32
    %2 = arith.maxsi %1, %c0_i32 : i32
    %c0_i32_0 = arith.constant 0 : i32
    %c0_i32_1 = arith.constant 0 : i32
    %c0_i32_2 = arith.constant 0 : i32
    return %arg0, %2, %c0_i32_0, %c0_i32_1 : i32, i32, i32, i32
  }
  func.func @transform_2(%arg0: i32, %arg1: i32) -> (i32, i32, i32, i32) {
    %c16_i32 = arith.constant 16 : i32
    %0 = arith.muli %arg1, %c16_i32 : i32
    %c16_i32_0 = arith.constant 16 : i32
    %1 = arith.addi %0, %c16_i32_0 : i32
    %c15_i32 = arith.constant 15 : i32
    %2 = arith.minsi %1, %c15_i32 : i32
    %c0_i32 = arith.constant 0 : i32
    %c0_i32_1 = arith.constant 0 : i32
    %c0_i32_2 = arith.constant 0 : i32
    return %arg0, %2, %c0_i32, %c0_i32_1 : i32, i32, i32, i32
  }
  func.func @transform_3(%arg0: i32, %arg1: i32) -> (i32, i32, i32, i32) {
    %c0_i32 = arith.constant 0 : i32
    %c0_i32_0 = arith.constant 0 : i32
    %c0_i32_1 = arith.constant 0 : i32
    return %arg0, %arg1, %c0_i32, %c0_i32_0 : i32, i32, i32, i32
  }
  func.func @transform_4(%arg0: i32, %arg1: i32) -> (i32, i32, i32, i32) {
    %c16_i32 = arith.constant 16 : i32
    %0 = arith.muli %arg1, %c16_i32 : i32
    %c1_i32 = arith.constant 1 : i32
    %1 = arith.subi %0, %c1_i32 : i32
    %c0_i32 = arith.constant 0 : i32
    %2 = arith.maxsi %1, %c0_i32 : i32
    %c0_i32_0 = arith.constant 0 : i32
    %c0_i32_1 = arith.constant 0 : i32
    %c0_i32_2 = arith.constant 0 : i32
    return %arg0, %2, %c0_i32_0, %c0_i32_1 : i32, i32, i32, i32
  }
  func.func @transform_5(%arg0: i32, %arg1: i32) -> (i32, i32, i32, i32) {
    %c16_i32 = arith.constant 16 : i32
    %0 = arith.muli %arg1, %c16_i32 : i32
    %c16_i32_0 = arith.constant 16 : i32
    %1 = arith.addi %0, %c16_i32_0 : i32
    %c15_i32 = arith.constant 15 : i32
    %2 = arith.minsi %1, %c15_i32 : i32
    %c0_i32 = arith.constant 0 : i32
    %c0_i32_1 = arith.constant 0 : i32
    %c0_i32_2 = arith.constant 0 : i32
    return %arg0, %2, %c0_i32, %c0_i32_1 : i32, i32, i32, i32
  }
  func.func @transform_6(%arg0: i32, %arg1: i32) -> (i32, i32) {
    %c0_i32 = arith.constant 0 : i32
    %c0_i32_0 = arith.constant 0 : i32
    %c0_i32_1 = arith.constant 0 : i32
    return %c0_i32, %c0_i32_0 : i32, i32
  }
  func.func @transform_7(%arg0: i32, %arg1: i32) -> (i32, i32) {
    %c0_i32 = arith.constant 0 : i32
    %c0_i32_0 = arith.constant 0 : i32
    %c0_i32_1 = arith.constant 0 : i32
    return %c0_i32, %c0_i32_0 : i32, i32
  }
  func.func @transform_8(%arg0: i32, %arg1: i32) -> (i32, i32, i32, i32) {
    %c0_i32 = arith.constant 0 : i32
    %c0_i32_0 = arith.constant 0 : i32
    %c0_i32_1 = arith.constant 0 : i32
    return %arg0, %arg1, %c0_i32, %c0_i32_0 : i32, i32, i32, i32
  }
}

module attributes {stable_mosaic.version = 11 : i64} {
  func.func @_conv2_kernel(%arg0: i32, %arg1: i32, %arg2: memref<1x16x16x128xbf16, #tpu.memory_space<vmem>>, %arg3: memref<1x1x16x128xbf16, #tpu.memory_space<vmem>>, %arg4: memref<1x1x16x128xbf16, #tpu.memory_space<vmem>>, %arg5: memref<1152x128xbf16, #tpu.memory_space<vmem>>, %arg6: memref<1x128xf32, #tpu.memory_space<vmem>>, %arg7: memref<1x16x16x128xbf16, #tpu.memory_space<vmem>>, %arg8: memref<1x1x2x128xf32, #tpu.memory_space<vmem>>) attributes {dimension_semantics = [#tpu.dimension_semantics<parallel>, #tpu.dimension_semantics<parallel>], iteration_bounds = array<i64: 2, 1>, scalar_prefetch = 0 : i64, scratch_operands = 0 : i64, tpu.core_type = #tpu.core_type<tc>, window_params = [{transform_indices = @transform_0, window_bounds = array<i64: 1, 16, 16, 128>}, {transform_indices = @transform_1, window_bounds = array<i64: 1, 1, 16, 128>}, {transform_indices = @transform_2, window_bounds = array<i64: 1, 1, 16, 128>}, {pipeline_mode = #tpu.pipeline_mode<synchronous>, transform_indices = @transform_3, window_bounds = array<i64: 1152, 128>}, {pipeline_mode = #tpu.pipeline_mode<synchronous>, transform_indices = @transform_4, window_bounds = array<i64: 1, 128>}, {transform_indices = @transform_5, window_bounds = array<i64: 1, 16, 16, 128>}, {transform_indices = @transform_6, window_bounds = array<i64: 1, 1, 2, 128>}]} {
    %c0 = arith.constant 0 : index
    %c0_0 = arith.constant 0 : index
    %c0_1 = arith.constant 0 : index
    %c0_2 = arith.constant 0 : index
    %0 = vector.load %arg2[%c0, %c0_0, %c0_1, %c0_2] : memref<1x16x16x128xbf16, #tpu.memory_space<vmem>>, vector<1x16x16x128xbf16>
    %c0_3 = arith.constant 0 : index
    %c0_4 = arith.constant 0 : index
    %c0_5 = arith.constant 0 : index
    %c0_6 = arith.constant 0 : index
    %1 = vector.load %arg3[%c0_3, %c0_4, %c0_5, %c0_6] : memref<1x1x16x128xbf16, #tpu.memory_space<vmem>>, vector<1x1x16x128xbf16>
    %c0_7 = arith.constant 0 : index
    %c0_8 = arith.constant 0 : index
    %c0_9 = arith.constant 0 : index
    %c0_10 = arith.constant 0 : index
    %2 = vector.load %arg4[%c0_7, %c0_8, %c0_9, %c0_10] : memref<1x1x16x128xbf16, #tpu.memory_space<vmem>>, vector<1x1x16x128xbf16>
    %3 = vector.shape_cast %1 : vector<1x1x16x128xbf16> to vector<1x16x128xbf16>
    %4 = vector.shape_cast %0 : vector<1x16x16x128xbf16> to vector<16x16x128xbf16>
    %5 = vector.shape_cast %2 : vector<1x1x16x128xbf16> to vector<1x16x128xbf16>
    %6 = tpu.concatenate %3, %4, %5 in 0 : vector<1x16x128xbf16>, vector<16x16x128xbf16>, vector<1x16x128xbf16> -> vector<18x16x128xbf16>
    %7 = vector.extract_strided_slice %6 {offsets = [0, 0, 0], sizes = [18, 1, 128], strides = [1, 1, 1]} : vector<18x16x128xbf16> to vector<18x1x128xbf16>
    %8 = vector.extract_strided_slice %6 {offsets = [0, 15, 0], sizes = [18, 1, 128], strides = [1, 1, 1]} : vector<18x16x128xbf16> to vector<18x1x128xbf16>
    %9 = tpu.concatenate %7, %6, %8 in 1 : vector<18x1x128xbf16>, vector<18x16x128xbf16>, vector<18x1x128xbf16> -> vector<18x18x128xbf16>
    %10 = vector.extract_strided_slice %9 {offsets = [0, 0, 0], sizes = [16, 16, 128], strides = [1, 1, 1]} : vector<18x18x128xbf16> to vector<16x16x128xbf16>
    %11 = vector.extract_strided_slice %9 {offsets = [0, 1, 0], sizes = [16, 16, 128], strides = [1, 1, 1]} : vector<18x18x128xbf16> to vector<16x16x128xbf16>
    %12 = vector.extract_strided_slice %9 {offsets = [0, 2, 0], sizes = [16, 16, 128], strides = [1, 1, 1]} : vector<18x18x128xbf16> to vector<16x16x128xbf16>
    %13 = vector.extract_strided_slice %9 {offsets = [1, 0, 0], sizes = [16, 16, 128], strides = [1, 1, 1]} : vector<18x18x128xbf16> to vector<16x16x128xbf16>
    %14 = vector.extract_strided_slice %9 {offsets = [1, 1, 0], sizes = [16, 16, 128], strides = [1, 1, 1]} : vector<18x18x128xbf16> to vector<16x16x128xbf16>
    %15 = vector.extract_strided_slice %9 {offsets = [1, 2, 0], sizes = [16, 16, 128], strides = [1, 1, 1]} : vector<18x18x128xbf16> to vector<16x16x128xbf16>
    %16 = vector.extract_strided_slice %9 {offsets = [2, 0, 0], sizes = [16, 16, 128], strides = [1, 1, 1]} : vector<18x18x128xbf16> to vector<16x16x128xbf16>
    %17 = vector.extract_strided_slice %9 {offsets = [2, 1, 0], sizes = [16, 16, 128], strides = [1, 1, 1]} : vector<18x18x128xbf16> to vector<16x16x128xbf16>
    %18 = vector.extract_strided_slice %9 {offsets = [2, 2, 0], sizes = [16, 16, 128], strides = [1, 1, 1]} : vector<18x18x128xbf16> to vector<16x16x128xbf16>
    %19 = tpu.concatenate %10, %11, %12, %13, %14, %15, %16, %17, %18 in 2 : vector<16x16x128xbf16>, vector<16x16x128xbf16>, vector<16x16x128xbf16>, vector<16x16x128xbf16>, vector<16x16x128xbf16>, vector<16x16x128xbf16>, vector<16x16x128xbf16>, vector<16x16x128xbf16>, vector<16x16x128xbf16> -> vector<16x16x1152xbf16>
    %20 = vector.shape_cast %19 : vector<16x16x1152xbf16> to vector<256x1152xbf16>
    %c0_11 = arith.constant 0 : index
    %c0_12 = arith.constant 0 : index
    %21 = vector.load %arg5[%c0_11, %c0_12] : memref<1152x128xbf16, #tpu.memory_space<vmem>>, vector<1152x128xbf16>
    %cst = arith.constant dense<0.000000e+00> : vector<256x128xf32>
    %22 = tpu.matmul %20, %21, %cst {dimension_numbers = #tpu.dot_dimension_numbers<[1], [0], [0], [1], [0, 0, 1, 1], [], []>} : vector<256x1152xbf16>, vector<1152x128xbf16>, vector<256x128xf32> -> vector<256x128xf32>
    %c0_13 = arith.constant 0 : index
    %c0_14 = arith.constant 0 : index
    %23 = vector.load %arg6[%c0_13, %c0_14] : memref<1x128xf32, #tpu.memory_space<vmem>>, vector<1x128xf32>
    %24 = vector.broadcast %23 : vector<1x128xf32> to vector<256x128xf32>
    %25 = arith.addf %22, %24 : vector<256x128xf32>
    %cst_15 = arith.constant 0.000000e+00 : f32
    %26 = vector.broadcast %cst_15 : f32 to vector<256x128xf32>
    %27 = arith.maximumf %25, %26 : vector<256x128xf32>
    %28 = vector.shape_cast %27 : vector<256x128xf32> to vector<1x16x16x128xf32>
    %29 = arith.truncf %28 : vector<1x16x16x128xf32> to vector<1x16x16x128xbf16>
    %c0_16 = arith.constant 0 : index
    %c0_17 = arith.constant 0 : index
    %c0_18 = arith.constant 0 : index
    %c0_19 = arith.constant 0 : index
    %30 = vector.load %arg7[%c0_16, %c0_17, %c0_18, %c0_19] : memref<1x16x16x128xbf16, #tpu.memory_space<vmem>>, vector<1x16x16x128xbf16>
    tpu.vector_store %arg7[%c0_16, %c0_17, %c0_18, %c0_19], %29 {strides = array<i32>} : memref<1x16x16x128xbf16, #tpu.memory_space<vmem>>, vector<1x16x16x128xbf16>,
    %cst_20 = arith.constant dense<0.000000e+00> : vector<128xf32>
    %31 = vector.multi_reduction <add>, %27, %cst_20 [0] : vector<256x128xf32> to vector<128xf32>
    %32 = vector.shape_cast %31 : vector<128xf32> to vector<1x128xf32>
    %33 = arith.mulf %27, %27 : vector<256x128xf32>
    %cst_21 = arith.constant dense<0.000000e+00> : vector<128xf32>
    %34 = vector.multi_reduction <add>, %33, %cst_21 [0] : vector<256x128xf32> to vector<128xf32>
    %35 = vector.shape_cast %34 : vector<128xf32> to vector<1x128xf32>
    %36 = tpu.concatenate %32, %35 in 0 : vector<1x128xf32>, vector<1x128xf32> -> vector<2x128xf32>
    %c0_22 = arith.constant 0 : index
    %c0_23 = arith.constant 0 : index
    %c0_24 = arith.constant 0 : index
    %c0_25 = arith.constant 0 : index
    %37 = vector.load %arg8[%c0_22, %c0_23, %c0_24, %c0_25] : memref<1x1x2x128xf32, #tpu.memory_space<vmem>>, vector<1x1x2x128xf32>
    %38 = vector.shape_cast %37 : vector<1x1x2x128xf32> to vector<2x128xf32>
    %39 = vector.shape_cast %36 : vector<2x128xf32> to vector<1x1x2x128xf32>
    tpu.vector_store %arg8[%c0_22, %c0_23, %c0_24, %c0_25], %39 {strides = array<i32>} : memref<1x1x2x128xf32, #tpu.memory_space<vmem>>, vector<1x1x2x128xf32>,
    return
  }
  func.func @transform_0(%arg0: i32, %arg1: i32) -> (i32, i32, i32, i32) {
    %c0_i32 = arith.constant 0 : i32
    %c0_i32_0 = arith.constant 0 : i32
    %c0_i32_1 = arith.constant 0 : i32
    return %arg0, %arg1, %c0_i32, %c0_i32_0 : i32, i32, i32, i32
  }
  func.func @transform_1(%arg0: i32, %arg1: i32) -> (i32, i32, i32, i32) {
    %c16_i32 = arith.constant 16 : i32
    %0 = arith.muli %arg1, %c16_i32 : i32
    %c1_i32 = arith.constant 1 : i32
    %1 = arith.subi %0, %c1_i32 : i32
    %c0_i32 = arith.constant 0 : i32
    %2 = arith.maxsi %1, %c0_i32 : i32
    %c0_i32_0 = arith.constant 0 : i32
    %c0_i32_1 = arith.constant 0 : i32
    %c0_i32_2 = arith.constant 0 : i32
    return %arg0, %2, %c0_i32_0, %c0_i32_1 : i32, i32, i32, i32
  }
  func.func @transform_2(%arg0: i32, %arg1: i32) -> (i32, i32, i32, i32) {
    %c16_i32 = arith.constant 16 : i32
    %0 = arith.muli %arg1, %c16_i32 : i32
    %c16_i32_0 = arith.constant 16 : i32
    %1 = arith.addi %0, %c16_i32_0 : i32
    %c15_i32 = arith.constant 15 : i32
    %2 = arith.minsi %1, %c15_i32 : i32
    %c0_i32 = arith.constant 0 : i32
    %c0_i32_1 = arith.constant 0 : i32
    %c0_i32_2 = arith.constant 0 : i32
    return %arg0, %2, %c0_i32, %c0_i32_1 : i32, i32, i32, i32
  }
  func.func @transform_3(%arg0: i32, %arg1: i32) -> (i32, i32) {
    %c0_i32 = arith.constant 0 : i32
    %c0_i32_0 = arith.constant 0 : i32
    %c0_i32_1 = arith.constant 0 : i32
    return %c0_i32, %c0_i32_0 : i32, i32
  }
  func.func @transform_4(%arg0: i32, %arg1: i32) -> (i32, i32) {
    %c0_i32 = arith.constant 0 : i32
    %c0_i32_0 = arith.constant 0 : i32
    %c0_i32_1 = arith.constant 0 : i32
    return %c0_i32, %c0_i32_0 : i32, i32
  }
  func.func @transform_5(%arg0: i32, %arg1: i32) -> (i32, i32, i32, i32) {
    %c0_i32 = arith.constant 0 : i32
    %c0_i32_0 = arith.constant 0 : i32
    %c0_i32_1 = arith.constant 0 : i32
    return %arg0, %arg1, %c0_i32, %c0_i32_0 : i32, i32, i32, i32
  }
  func.func @transform_6(%arg0: i32, %arg1: i32) -> (i32, i32, i32, i32) {
    %c0_i32 = arith.constant 0 : i32
    %c0_i32_0 = arith.constant 0 : i32
    %c0_i32_1 = arith.constant 0 : i32
    return %arg0, %arg1, %c0_i32, %c0_i32_0 : i32, i32, i32, i32
  }
}

module attributes {stable_mosaic.version = 11 : i64} {
  func.func @_bn_apply_kernel(%arg0: i32, %arg1: memref<512x128xbf16, #tpu.memory_space<vmem>>, %arg2: memref<2x128xf32, #tpu.memory_space<vmem>>, %arg3: memref<512x128xf32, #tpu.memory_space<vmem>>) attributes {dimension_semantics = [#tpu.dimension_semantics<parallel>], iteration_bounds = array<i64: 1>, scalar_prefetch = 0 : i64, scratch_operands = 0 : i64, tpu.core_type = #tpu.core_type<tc>, window_params = [{transform_indices = @transform_0, window_bounds = array<i64: 512, 128>}, {pipeline_mode = #tpu.pipeline_mode<synchronous>, transform_indices = @transform_1, window_bounds = array<i64: 2, 128>}, {transform_indices = @transform_2, window_bounds = array<i64: 512, 128>}]} {
    %c0 = arith.constant 0 : index
    %c0_0 = arith.constant 0 : index
    %0 = vector.load %arg1[%c0, %c0_0] : memref<512x128xbf16, #tpu.memory_space<vmem>>, vector<512x128xbf16>
    %1 = arith.extf %0 : vector<512x128xbf16> to vector<512x128xf32>
    %c0_1 = arith.constant 0 : index
    %c0_2 = arith.constant 0 : index
    %2 = vector.load %arg2[%c0_1, %c0_2] : memref<2x128xf32, #tpu.memory_space<vmem>>, vector<1x128xf32>
    %3 = vector.broadcast %2 : vector<1x128xf32> to vector<512x128xf32>
    %4 = arith.mulf %1, %3 : vector<512x128xf32>
    %c1 = arith.constant 1 : index
    %c0_3 = arith.constant 0 : index
    %5 = vector.load %arg2[%c1, %c0_3] : memref<2x128xf32, #tpu.memory_space<vmem>>, vector<1x128xf32>
    %6 = vector.broadcast %5 : vector<1x128xf32> to vector<512x128xf32>
    %7 = arith.addf %4, %6 : vector<512x128xf32>
    %c0_4 = arith.constant 0 : index
    %c0_5 = arith.constant 0 : index
    %8 = vector.load %arg3[%c0_4, %c0_5] : memref<512x128xf32, #tpu.memory_space<vmem>>, vector<512x128xf32>
    tpu.vector_store %arg3[%c0_4, %c0_5], %7 {strides = array<i32>} : memref<512x128xf32, #tpu.memory_space<vmem>>, vector<512x128xf32>,
    return
  }
  func.func @transform_0(%arg0: i32) -> (i32, i32) {
    %c0_i32 = arith.constant 0 : i32
    %c0_i32_0 = arith.constant 0 : i32
    return %arg0, %c0_i32 : i32, i32
  }
  func.func @transform_1(%arg0: i32) -> (i32, i32) {
    %c0_i32 = arith.constant 0 : i32
    %c0_i32_0 = arith.constant 0 : i32
    %c0_i32_1 = arith.constant 0 : i32
    return %c0_i32, %c0_i32_0 : i32, i32
  }
  func.func @transform_2(%arg0: i32) -> (i32, i32) {
    %c0_i32 = arith.constant 0 : i32
    %c0_i32_0 = arith.constant 0 : i32
    return %arg0, %c0_i32 : i32, i32
  }
}

</mosaic_0001>

<llo_original>
// kernel: tile.8
$region0: #{tile.8}
  #allocation0 [shape = 's32[1]{0}', space=sflag, size = 0x4, scoped, tag = 'scoped memory for tile.8']
  %s0 = inlined_call_operand.vmem [shape: f32[128], index: 0, kind: input, shape index: {}]
  %s1 = inlined_call_operand.vmem [shape: f32[4,128], index: 1, kind: output, shape index: {}]
  // Predicated region
  $region2: #{tile.8} parent=0 // pred_check
    _
  $region3: #{tile.8} parent=0 // pred_check_branch
    %3 = sbr.rel (0) target = $region5
  $region4: #{tile.8} parent=0 // pred_region
    _
  $region5: #{tile.8} parent=0 // pred_fallthru
    _
  %v4 = vld [vmem:[%s0] ss:$0 sm:$0xff]
  %5 = vst [vmem:[%s1] sm:$0xf] %v4

// kernel: upconv_forward.4
$region0: #{upconv_forward.4}
  #allocation0 [shape = 'u32[]', space=smem, size = 0x4, offset = 0x4, fixed_abs, tag = 'smem constant byte address 0x4 - core index']
  #allocation1 [shape = 'u32[144,128]{1,0:T(1,128)}', space=vmem, size = 0x12000, scoped, tag = 'internal scratch']
  %s0 = inlined_call_operand.vmem [shape: bf16[2,8,8,128], index: 0, kind: input, shape index: {}]
  %s1 = inlined_call_operand.vmem [shape: bf16[128,512], index: 1, kind: input, shape index: {}]
  %s2 = inlined_call_operand.vmem [shape: f32[1,512], index: 2, kind: input, shape index: {}]
  %s3 = inlined_call_operand.vmem [shape: bf16[2,8,8,512], index: 3, kind: output, shape index: {}]
  %s4 = sld [smem:[#allocation0]]
  $region45: #{upconv_forward.4} parent=0
    _
  %s6 = ssub.s32 1, %s4
  %s7 = scalar_select 0, %s6, %s4
  loop: start=0, step=1, limit=4
  $region2: #{upconv_forward.4} parent=0 // loop_pre_header
    _
  $region3: #{upconv_forward.4} parent=0 // loop_header
    %s9 = sphi 0, %s13
    %p10 = scmp.ge.s32.totalorder %s9, 4
    %s16 = sphi 0, %s28
    %s17 = sphi 0, %s24
    %s18 = sphi 0, %s16
    %s19 = sphi 0, %s17
    %s20 = sphi 0, %s18
    %s21 = sphi 0, %s19
    %s33 = sphi 0, %s35
    %s36 = sphi 0, %s33
    %s37 = sphi 0, %s36
    %s53 = sphi 0, %s37
    %s57 = sphi 0, %s57
    %s59 = sphi 0, %s57
    %s60 = sphi 0, %s59
    %s74 = sphi 0, %s60
    %s78 = sphi 0, %s78
    %s80 = sphi 0, %s78
    %s81 = sphi 0, %s80
    %s95 = sphi 0, %s81
    %s103 = sphi 0, %s105
    %s106 = sphi 0, %s103
    %s107 = sphi 0, %s106
    %s123 = sphi 0, %s107
  $region4: #{upconv_forward.4} parent=0 // loop_header_branch
    %12 = sbr.rel (%p10) target = $region8
  $region5: #{upconv_forward.4} parent=0 // loop_body
    %s14 = ssub.s32 %s9, 1
    %s15 = ssub.s32 %s9, 2
    %s22 = sadd.s32 1, %s17
    %p23 = scmp.ge.s32.totalorder %s22, 1
    %s24 = scalar_select %p23, 0, %s22
    %s25 = sadd.s32 1, %s16
    %s26 = scalar_select %p23, %s25, %s16
    %p27 = scmp.ge.s32.totalorder %s26, 2
    %s28 = scalar_select %p27, 0, %s26
    %s29 = ssub.s32 %s16, %s28
    %s30 = ssub.s32 %s17, %s24
    %s31 = sor.u32 %s29, %s30
    %p32 = scmp.eq.s32.totalorder %s31, 0
    %s34 = sadd.s32 %s33, 1
    %s35 = scalar_select %p32, %s33, %s34
    %p38 = pneg %p32
    %p39 = scmp.eq.s32.totalorder %s9, 1
    %p40 = por %p38, %p39
    %p41 = scmp.ne.s32.totalorder %s33, %s36
    %p42 = scmp.eq.s32.totalorder %s9, 0
    %p43 = por %p41, %p42
    %p44 = scmp.ne.s32.totalorder %s33, %s36
    %p45 = scmp.eq.s32.totalorder %s14, 1
    %p46 = por %p44, %p45
    %p47 = scmp.ne.s32.totalorder %s36, %s37
    %p48 = scmp.eq.s32.totalorder %s14, 0
    %p49 = por %p47, %p48
    %p50 = scmp.ne.s32.totalorder %s36, %s37
    %p51 = scmp.eq.s32.totalorder %s15, 1
    %p52 = por %p50, %p51
    %p54 = scmp.ne.s32.totalorder %s37, %s53
    %p55 = scmp.eq.s32.totalorder %s15, 0
    %p56 = por %p54, %p55
    %s58 = sadd.s32 %s57, 1
    %p61 = scmp.eq.s32.totalorder %s9, 1
    %p62 = scmp.ne.s32.totalorder %s57, %s59
    %p63 = scmp.eq.s32.totalorder %s9, 0
    %p64 = por %p62, %p63
    %p65 = scmp.ne.s32.totalorder %s57, %s59
    %p66 = scmp.eq.s32.totalorder %s14, 1
    %p67 = por %p65, %p66
    %p68 = scmp.ne.s32.totalorder %s59, %s60
    %p69 = scmp.eq.s32.totalorder %s14, 0
    %p70 = por %p68, %p69
    %p71 = scmp.ne.s32.totalorder %s59, %s60
    %p72 = scmp.eq.s32.totalorder %s15, 1
    %p73 = por %p71, %p72
    %p75 = scmp.ne.s32.totalorder %s60, %s74
    %p76 = scmp.eq.s32.totalorder %s15, 0
    %p77 = por %p75, %p76
    %s79 = sadd.s32 %s78, 1
    %p82 = scmp.eq.s32.totalorder %s9, 1
    %p83 = scmp.ne.s32.totalorder %s78, %s80
    %p84 = scmp.eq.s32.totalorder %s9, 0
    %p85 = por %p83, %p84
    %p86 = scmp.ne.s32.totalorder %s78, %s80
    %p87 = scmp.eq.s32.totalorder %s14, 1
    %p88 = por %p86, %p87
    %p89 = scmp.ne.s32.totalorder %s80, %s81
    %p90 = scmp.eq.s32.totalorder %s14, 0
    %p91 = por %p89, %p90
    %p92 = scmp.ne.s32.totalorder %s80, %s81
    %p93 = scmp.eq.s32.totalorder %s15, 1
    %p94 = por %p92, %p93
    %p96 = scmp.ne.s32.totalorder %s81, %s95
    %p97 = scmp.eq.s32.totalorder %s15, 0
    %p98 = por %p96, %p97
    %s99 = ssub.s32 %s16, %s28
    %s100 = ssub.s32 %s17, %s24
    %s101 = sor.u32 %s99, %s100
    %p102 = scmp.eq.s32.totalorder %s101, 0
    %s104 = sadd.s32 %s103, 1
    %s105 = scalar_select %p102, %s103, %s104
    %p108 = pneg %p102
    %p109 = scmp.eq.s32.totalorder %s9, 1
    %p110 = por %p108, %p109
    %p111 = scmp.ne.s32.totalorder %s103, %s106
    %p112 = scmp.eq.s32.totalorder %s9, 0
    %p113 = por %p111, %p112
    %p114 = scmp.ne.s32.totalorder %s103, %s106
    %p115 = scmp.eq.s32.totalorder %s14, 1
    %p116 = por %p114, %p115
    %p117 = scmp.ne.s32.totalorder %s106, %s107
    %p118 = scmp.eq.s32.totalorder %s14, 0
    %p119 = por %p117, %p118
    %p120 = scmp.ne.s32.totalorder %s106, %s107
    %p121 = scmp.eq.s32.totalorder %s15, 1
    %p122 = por %p120, %p121
    %p124 = scmp.ne.s32.totalorder %s107, %s123
    %p125 = scmp.eq.s32.totalorder %s15, 0
    %p126 = por %p124, %p125
    %p127 = scmp.le.s32.totalorder 1, %s9
    %p128 = scmp.lt.s32.totalorder %s9, 3
    %p129 = pnand %p127, %p128
    %p130 = pneg %p129
    // Predicated region
    $region9: #{upconv_forward.4} parent=5 // pred_check
      _
    $region10: #{upconv_forward.4} parent=5 // pred_check_branch
      %132 = sbr.rel (%p129) target = $region12
    $region11: #{upconv_forward.4} parent=5 // pred_region
      %s133 = ssub.s32 %s9, 1
      // Predicated region
      $region13: #{upconv_forward.4} parent=11 // pred_check
        %p134 = pneg %p70
      $region14: #{upconv_forward.4} parent=11 // pred_check_branch
        %136 = sbr.rel (%p134) target = $region16
      $region15: #{upconv_forward.4} parent=11 // pred_region
        _
      $region16: #{upconv_forward.4} parent=11 // pred_fallthru
        _
      // Predicated region
      $region17: #{upconv_forward.4} parent=11 // pred_check
        %p137 = pneg %p91
      $region18: #{upconv_forward.4} parent=11 // pred_check_branch
        %139 = sbr.rel (%p137) target = $region20
      $region19: #{upconv_forward.4} parent=11 // pred_region
        _
      $region20: #{upconv_forward.4} parent=11 // pred_fallthru
        _
    $region12: #{upconv_forward.4} parent=5 // pred_fallthru
      _
    %p140 = scmp.lt.s32.totalorder %s9, 2
    // Predicated region
    $region21: #{upconv_forward.4} parent=5 // pred_check
      %p141 = pneg %p140
    $region22: #{upconv_forward.4} parent=5 // pred_check_branch
      %143 = sbr.rel (%p141) target = $region24
    $region23: #{upconv_forward.4} parent=5 // pred_region
      // Predicated region
      $region25: #{upconv_forward.4} parent=23 // pred_check
        %p144 = pneg %p43
      $region26: #{upconv_forward.4} parent=23 // pred_check_branch
        %146 = sbr.rel (%p144) target = $region28
      $region27: #{upconv_forward.4} parent=23 // pred_region
        %s147 = smul.u32 8, %s17
        %p148 = scmp.lt.s32.totalorder %s16, 1
        %s149 = scalar_select %p148, %s16, 1
        %p150 = scmp.lt.s32.totalorder %s147, 7
        %s151 = scalar_select %p150, %s147, 7
        %s152 = smul.addr %s149, 8
        %s153 = sadd.s32 %s151, %s152
        %s154 = smul.addr %s153, 4
        %s155 = scalar_lea.vmem %s0, %s154
        %s156 = smul.u32 8, %s17
      $region28: #{upconv_forward.4} parent=23 // pred_fallthru
        _
    $region24: #{upconv_forward.4} parent=5 // pred_fallthru
      _
    %p157 = scmp.le.s32.totalorder 1, %s9
    %p158 = scmp.lt.s32.totalorder %s9, 3
    %p159 = pnand %p157, %p158
    %p160 = pneg %p159
    // Predicated region
    $region29: #{upconv_forward.4} parent=5 // pred_check
      _
    $region30: #{upconv_forward.4} parent=5 // pred_check_branch
      %162 = sbr.rel (%p159) target = $region32
    $region31: #{upconv_forward.4} parent=5 // pred_region
      %s163 = ssub.s32 %s9, 1
      %s164 = smul.u32 8, %s19
      %p165 = scmp.lt.s32.totalorder %s18, 1
      %s166 = scalar_select %p165, %s18, 1
      %p167 = scmp.lt.s32.totalorder %s164, 7
      %s168 = scalar_select %p167, %s164, 7
      %s169 = smul.addr %s166, 8
      %s170 = sadd.s32 %s168, %s169
      %s171 = smul.addr %s170, 4
      %s172 = scalar_lea.vmem %s0, %s171
      %p173 = pneg %p49
      %p174 = pneg %p46
      %p175 = pneg %p70
      %p176 = pneg %p67
      %p177 = pneg %p91
      %p178 = pneg %p88
      %p179 = pneg %p119
      %p180 = pneg %p116
      %s181 = smul.u32 8, %s19
      %p182 = scmp.lt.s32.totalorder %s18, 1
      %s183 = scalar_select %p182, %s18, 1
      %p184 = scmp.lt.s32.totalorder %s181, 7
      %s185 = scalar_select %p184, %s181, 7
      %s186 = smul.addr %s185, 4
      %s187 = smul.addr %s183, 32
      %s188 = sadd.s32 %s186, %s187
      %s189 = smul.addr %s188, 4
      %s190 = scalar_lea.vmem %s3, %s189
      %s191 = smul.u32 8, %s19
      %p192 = scmp.lt.s32.totalorder %s18, 1
      %s193 = scalar_select %p192, %s18, 1
      %p194 = scmp.lt.s32.totalorder %s191, 7
      %s195 = scalar_select %p194, %s191, 7
      %s196 = smul.addr %s193, 8
      %s197 = sadd.s32 %s195, %s196
      %s198 = smul.addr %s197, 4
      %s199 = scalar_lea.vmem %s0, %s198
      %s200 = smul.u32 8, %s19
      %s201 = smul.u32 8, %s19
      %p202 = scmp.lt.s32.totalorder %s18, 1
      %s203 = scalar_select %p202, %s18, 1
      %p204 = scmp.lt.s32.totalorder %s201, 7
      %s205 = scalar_select %p204, %s201, 7
      %s206 = smul.addr %s205, 4
      %s207 = smul.addr %s203, 32
      %s208 = sadd.s32 %s206, %s207
      %s209 = smul.addr %s208, 4
      %s210 = scalar_lea.vmem %s3, %s209
      %s211 = smul.u32 8, %s19
      %v213 = vld [vmem:[%s199] sm:$0xf]
      %v214 = vld [vmem:[%s199 + $0x4] sm:$0xf]
      %v215 = vld [vmem:[%s199 + $0x8] sm:$0xf]
      %v216 = vld [vmem:[%s199 + $0xc] sm:$0xf]
      %v217 = vld [vmem:[%s199 + $0x10] sm:$0xf]
      %v218 = vld [vmem:[%s199 + $0x14] sm:$0xf]
      %v219 = vld [vmem:[%s199 + $0x18] sm:$0xf]
      %v220 = vld [vmem:[%s199 + $0x1c] sm:$0xf]
      %v221 = vld [vmem:[%s1] sm:$0xff]
      %v222 = vld [vmem:[%s1 + $0x8] sm:$0xff]
      %v223 = vld [vmem:[%s1 + $0x10] sm:$0xff]
      %v224 = vld [vmem:[%s1 + $0x18] sm:$0xff]
      %v225 = vld [vmem:[%s1 + $0x20] sm:$0xff]
      %v226 = vld [vmem:[%s1 + $0x28] sm:$0xff]
      %v227 = vld [vmem:[%s1 + $0x30] sm:$0xff]
      %v228 = vld [vmem:[%s1 + $0x38] sm:$0xff]
      %v229 = vld [vmem:[%s1 + $0x40] sm:$0xff]
      %v230 = vld [vmem:[%s1 + $0x48] sm:$0xff]
      %v231 = vld [vmem:[%s1 + $0x50] sm:$0xff]
      %v232 = vld [vmem:[%s1 + $0x58] sm:$0xff]
      %v233 = vld [vmem:[%s1 + $0x60] sm:$0xff]
      %v234 = vld [vmem:[%s1 + $0x68] sm:$0xff]
      %v235 = vld [vmem:[%s1 + $0x70] sm:$0xff]
      %v236 = vld [vmem:[%s1 + $0x78] sm:$0xff]
      %v237 = vld [vmem:[%s1 + $0x80] sm:$0xff]
      %v238 = vld [vmem:[%s1 + $0x88] sm:$0xff]
      %v239 = vld [vmem:[%s1 + $0x90] sm:$0xff]
      %v240 = vld [vmem:[%s1 + $0x98] sm:$0xff]
      %v241 = vld [vmem:[%s1 + $0xa0] sm:$0xff]
      %v242 = vld [vmem:[%s1 + $0xa8] sm:$0xff]
      %v243 = vld [vmem:[%s1 + $0xb0] sm:$0xff]
      %v244 = vld [vmem:[%s1 + $0xb8] sm:$0xff]
      %v245 = vld [vmem:[%s1 + $0xc0] sm:$0xff]
      %v246 = vld [vmem:[%s1 + $0xc8] sm:$0xff]
      %v247 = vld [vmem:[%s1 + $0xd0] sm:$0xff]
      %v248 = vld [vmem:[%s1 + $0xd8] sm:$0xff]
      %v249 = vld [vmem:[%s1 + $0xe0] sm:$0xff]
      %v250 = vld [vmem:[%s1 + $0xe8] sm:$0xff]
      %v251 = vld [vmem:[%s1 + $0xf0] sm:$0xff]
      %v252 = vld [vmem:[%s1 + $0xf8] sm:$0xff]
      %v253 = vld [vmem:[%s2] sm:$0xf]
      %v255 = vlaneseq
      %v256 = vshrl.u32 %v255, 7
      %v257 = vsub.s32 0, %v256
      %v258 = vrot.slane %v253, %v257
      %v259 = vlaneseq
      %v260 = vshrl.u32 %v259, 7
      %v261 = vsub.s32 1, %v260
      %v262 = vrot.slane %v253, %v261
      %v263 = vlaneseq
      %v264 = vshrl.u32 %v263, 7
      %v265 = vsub.s32 2, %v264
      %v266 = vrot.slane %v253, %v265
      %v267 = vlaneseq
      %v268 = vshrl.u32 %v267, 7
      %v269 = vsub.s32 3, %v268
      %v270 = vrot.slane %v253, %v269
      %v283 = vunpack.c.l.b16 %v213
      %v284 = vunpack.c.l.b16 %v214
      %v285 = vunpack.c.l.b16 %v215
      %v286 = vunpack.c.l.b16 %v216
      %v287 = vunpack.c.l.b16 %v217
      %v288 = vunpack.c.l.b16 %v218
      %v289 = vunpack.c.l.b16 %v219
      %v290 = vunpack.c.l.b16 %v220
      %v291 = vpack.c.b16 %v284, %v283
      %v292 = vpack.c.b16 %v286, %v285
      %v293 = vpack.c.b16 %v288, %v287
      %v294 = vpack.c.b16 %v290, %v289
      %v331 = vunpack.c.l.b16 %v221
      %v332 = vunpack.c.h.b16 %v221
      %v333 = vunpack.c.l.b16 %v222
      %v334 = vunpack.c.h.b16 %v222
      %v335 = vunpack.c.l.b16 %v223
      %v336 = vunpack.c.h.b16 %v223
      %v337 = vunpack.c.l.b16 %v224
      %v338 = vunpack.c.h.b16 %v224
      %v339 = vunpack.c.l.b16 %v225
      %v340 = vunpack.c.h.b16 %v225
      %v341 = vunpack.c.l.b16 %v226
      %v342 = vunpack.c.h.b16 %v226
      %v343 = vunpack.c.l.b16 %v227
      %v344 = vunpack.c.h.b16 %v227
      %v345 = vunpack.c.l.b16 %v228
      %v346 = vunpack.c.h.b16 %v228
      %v347 = vunpack.c.l.b16 %v229
      %v348 = vunpack.c.h.b16 %v229
      %v349 = vunpack.c.l.b16 %v230
      %v350 = vunpack.c.h.b16 %v230
      %v351 = vunpack.c.l.b16 %v231
      %v352 = vunpack.c.h.b16 %v231
      %v353 = vunpack.c.l.b16 %v232
      %v354 = vunpack.c.h.b16 %v232
      %v355 = vunpack.c.l.b16 %v233
      %v356 = vunpack.c.h.b16 %v233
      %v357 = vunpack.c.l.b16 %v234
      %v358 = vunpack.c.h.b16 %v234
      %v359 = vunpack.c.l.b16 %v235
      %v360 = vunpack.c.h.b16 %v235
      %v361 = vunpack.c.l.b16 %v236
      %v362 = vunpack.c.h.b16 %v236
      %v363 = vunpack.c.l.b16 %v237
      %v364 = vunpack.c.h.b16 %v237
      %v365 = vunpack.c.l.b16 %v238
      %v366 = vunpack.c.h.b16 %v238
      %v367 = vunpack.c.l.b16 %v239
      %v368 = vunpack.c.h.b16 %v239
      %v369 = vunpack.c.l.b16 %v240
      %v370 = vunpack.c.h.b16 %v240
      %v371 = vunpack.c.l.b16 %v241
      %v372 = vunpack.c.h.b16 %v241
      %v373 = vunpack.c.l.b16 %v242
      %v374 = vunpack.c.h.b16 %v242
      %v375 = vunpack.c.l.b16 %v243
      %v376 = vunpack.c.h.b16 %v243
      %v377 = vunpack.c.l.b16 %v244
      %v378 = vunpack.c.h.b16 %v244
      %v379 = vunpack.c.l.b16 %v245
      %v380 = vunpack.c.h.b16 %v245
      %v381 = vunpack.c.l.b16 %v246
      %v382 = vunpack.c.h.b16 %v246
      %v383 = vunpack.c.l.b16 %v247
      %v384 = vunpack.c.h.b16 %v247
      %v385 = vunpack.c.l.b16 %v248
      %v386 = vunpack.c.h.b16 %v248
      %v387 = vunpack.c.l.b16 %v249
      %v388 = vunpack.c.h.b16 %v249
      %v389 = vunpack.c.l.b16 %v250
      %v390 = vunpack.c.h.b16 %v250
      %v391 = vunpack.c.l.b16 %v251
      %v392 = vunpack.c.h.b16 %v251
      %v393 = vunpack.c.l.b16 %v252
      %v394 = vunpack.c.h.b16 %v252
      %v395 = vpack.c.b16 %v335, %v331
      %v396 = vpack.c.b16 %v336, %v332
      %v397 = vpack.c.b16 %v337, %v333
      %v398 = vpack.c.b16 %v338, %v334
      %v399 = vpack.c.b16 %v343, %v339
      %v400 = vpack.c.b16 %v344, %v340
      %v401 = vpack.c.b16 %v345, %v341
      %v402 = vpack.c.b16 %v346, %v342
      %v403 = vpack.c.b16 %v351, %v347
      %v404 = vpack.c.b16 %v352, %v348
      %v405 = vpack.c.b16 %v353, %v349
      %v406 = vpack.c.b16 %v354, %v350
      %v407 = vpack.c.b16 %v359, %v355
      %v408 = vpack.c.b16 %v360, %v356
      %v409 = vpack.c.b16 %v361, %v357
      %v410 = vpack.c.b16 %v362, %v358
      %v411 = vpack.c.b16 %v367, %v363
      %v412 = vpack.c.b16 %v368, %v364
      %v413 = vpack.c.b16 %v369, %v365
      %v414 = vpack.c.b16 %v370, %v366
      %v415 = vpack.c.b16 %v375, %v371
      %v416 = vpack.c.b16 %v376, %v372
      %v417 = vpack.c.b16 %v377, %v373
      %v418 = vpack.c.b16 %v378, %v374
      %v419 = vpack.c.b16 %v383, %v379
      %v420 = vpack.c.b16 %v384, %v380
      %v421 = vpack.c.b16 %v385, %v381
      %v422 = vpack.c.b16 %v386, %v382
      %v423 = vpack.c.b16 %v391, %v387
      %v424 = vpack.c.b16 %v392, %v388
      %v425 = vpack.c.b16 %v393, %v389
      %v426 = vpack.c.b16 %v394, %v390
      %459 = vmatprep.subr.bf16.mxu0 %v424
      %460 = vmatpush1.bf16.msra.mxu0 %v423
      %461 = vmatprep.subr.bf16.mxu0 %v420
      %462 = vmatpush1.bf16.msra.mxu0 %v419
      %463 = vmatprep.subr.bf16.mxu0 %v416
      %464 = vmatpush1.bf16.msra.mxu0 %v415
      %465 = vmatprep.subr.bf16.mxu0 %v412
      %466 = vmatpush1.bf16.msra.mxu0 %v411
      %467 = vmatprep.subr.bf16.mxu0 %v408
      %468 = vmatpush1.bf16.msra.mxu0 %v407
      %469 = vmatprep.subr.bf16.mxu0 %v404
      %470 = vmatpush1.bf16.msra.mxu0 %v403
      %471 = vmatprep.subr.bf16.mxu0 %v400
      %472 = vmatpush1.bf16.msra.mxu0 %v399
      %473 = vmatprep.subr.bf16.mxu0 %v396
      %474 = vmatpush1.bf16.msra.mxu0 %v395
      %475 = vmatprep.subr.bf16.mxu0 0
      %476 = vmatpush2.bf16.msra.mxu0 0
      %477 = vmatprep.subr.bf16.mxu0 0
      %478 = vmatpush2.bf16.msra.mxu0 0
      %479 = vmatprep.subr.bf16.mxu0 0
      %480 = vmatpush2.bf16.msra.mxu0 0
      %481 = vmatprep.subr.bf16.mxu0 0
      %482 = vmatpush2.bf16.msra.mxu0 0
      %483 = vmatprep.subr.bf16.mxu0 0
      %484 = vmatpush2.bf16.msra.mxu0 0
      %485 = vmatprep.subr.bf16.mxu0 0
      %486 = vmatpush2.bf16.msra.mxu0 0
      %487 = vmatprep.subr.bf16.mxu0 0
      %488 = vmatpush2.bf16.msra.mxu0 0
      %489 = vmatprep.subr.bf16.mxu0 0
      %490 = vmatpush2.bf16.msra.mxu0 0
      %491 = vmatprep.mubr.bf16.mxu0 0
      %492 = vmatmul.mubr.bf16.gmra.mxu0 %v291
      %v493 = vpop.f32.mrf.mxu0
      %v494 = vadd.f32 %v258, %v493
      %v495 = vpop.f32.mrf.mxu0
      %v496 = vadd.f32 %v262, %v495
      %v497 = vpop.f32.mrf.mxu0
      %v498 = vadd.f32 %v258, %v497
      %v499 = vpop.f32.mrf.mxu0
      %v500 = vadd.f32 %v262, %v499
      %501 = vmatprep.mubr.bf16.mxu0 0
      %502 = vmatmul.mubr.bf16.gmra.mxu0 %v292
      %v503 = vpop.f32.mrf.mxu0
      %v504 = vadd.f32 %v258, %v503
      %v505 = vpop.f32.mrf.mxu0
      %v506 = vadd.f32 %v262, %v505
      %v507 = vpop.f32.mrf.mxu0
      %v508 = vadd.f32 %v258, %v507
      %v509 = vpop.f32.mrf.mxu0
      %v510 = vadd.f32 %v262, %v509
      %511 = vmatprep.mubr.bf16.mxu0 0
      %512 = vmatmul.mubr.bf16.gmra.mxu0 %v293
      %v513 = vpop.f32.mrf.mxu0
      %v514 = vadd.f32 %v258, %v513
      %v515 = vpop.f32.mrf.mxu0
      %v516 = vadd.f32 %v262, %v515
      %v517 = vpop.f32.mrf.mxu0
      %v518 = vadd.f32 %v258, %v517
      %v519 = vpop.f32.mrf.mxu0
      %v520 = vadd.f32 %v262, %v519
      %521 = vmatprep.mubr.bf16.mxu0 0
      %522 = vmatmul.mubr.bf16.gmra.mxu0 %v294
      %v523 = vpop.f32.mrf.mxu0
      %v524 = vadd.f32 %v258, %v523
      %v525 = vpop.f32.mrf.mxu0
      %v526 = vadd.f32 %v262, %v525
      %v527 = vpop.f32.mrf.mxu0
      %v528 = vadd.f32 %v258, %v527
      %v529 = vpop.f32.mrf.mxu0
      %v530 = vadd.f32 %v262, %v529
      %531 = vdwg.mxu0
      %532 = vmatprep.subr.bf16.mxu0 %v426
      %533 = vmatpush1.bf16.msra.mxu0 %v425
      %534 = vmatprep.subr.bf16.mxu0 %v422
      %535 = vmatpush1.bf16.msra.mxu0 %v421
      %536 = vmatprep.subr.bf16.mxu0 %v418
      %537 = vmatpush1.bf16.msra.mxu0 %v417
      %538 = vmatprep.subr.bf16.mxu0 %v414
      %539 = vmatpush1.bf16.msra.mxu0 %v413
      %540 = vmatprep.subr.bf16.mxu0 %v410
      %541 = vmatpush1.bf16.msra.mxu0 %v409
      %542 = vmatprep.subr.bf16.mxu0 %v406
      %543 = vmatpush1.bf16.msra.mxu0 %v405
      %544 = vmatprep.subr.bf16.mxu0 %v402
      %545 = vmatpush1.bf16.msra.mxu0 %v401
      %546 = vmatprep.subr.bf16.mxu0 %v398
      %547 = vmatpush1.bf16.msra.mxu0 %v397
      %548 = vmatprep.subr.bf16.mxu0 0
      %549 = vmatpush2.bf16.msra.mxu0 0
      %550 = vmatprep.subr.bf16.mxu0 0
      %551 = vmatpush2.bf16.msra.mxu0 0
      %552 = vmatprep.subr.bf16.mxu0 0
      %553 = vmatpush2.bf16.msra.mxu0 0
      %554 = vmatprep.subr.bf16.mxu0 0
      %555 = vmatpush2.bf16.msra.mxu0 0
      %556 = vmatprep.subr.bf16.mxu0 0
      %557 = vmatpush2.bf16.msra.mxu0 0
      %558 = vmatprep.subr.bf16.mxu0 0
      %559 = vmatpush2.bf16.msra.mxu0 0
      %560 = vmatprep.subr.bf16.mxu0 0
      %561 = vmatpush2.bf16.msra.mxu0 0
      %562 = vmatprep.subr.bf16.mxu0 0
      %563 = vmatpush2.bf16.msra.mxu0 0
      %564 = vmatprep.mubr.bf16.mxu0 0
      %565 = vmatmul.mubr.bf16.gmra.mxu0 %v291
      %v566 = vpop.f32.mrf.mxu0
      %v567 = vadd.f32 %v266, %v566
      %v568 = vpop.f32.mrf.mxu0
      %v569 = vadd.f32 %v270, %v568
      %v570 = vpop.f32.mrf.mxu0
      %v571 = vadd.f32 %v266, %v570
      %v572 = vpop.f32.mrf.mxu0
      %v573 = vadd.f32 %v270, %v572
      %574 = vmatprep.mubr.bf16.mxu0 0
      %575 = vmatmul.mubr.bf16.gmra.mxu0 %v292
      %v576 = vpop.f32.mrf.mxu0
      %v577 = vadd.f32 %v266, %v576
      %v578 = vpop.f32.mrf.mxu0
      %v579 = vadd.f32 %v270, %v578
      %v580 = vpop.f32.mrf.mxu0
      %v581 = vadd.f32 %v266, %v580
      %v582 = vpop.f32.mrf.mxu0
      %v583 = vadd.f32 %v270, %v582
      %584 = vmatprep.mubr.bf16.mxu0 0
      %585 = vmatmul.mubr.bf16.gmra.mxu0 %v293
      %v586 = vpop.f32.mrf.mxu0
      %v587 = vadd.f32 %v266, %v586
      %v588 = vpop.f32.mrf.mxu0
      %v589 = vadd.f32 %v270, %v588
      %v590 = vpop.f32.mrf.mxu0
      %v591 = vadd.f32 %v266, %v590
      %v592 = vpop.f32.mrf.mxu0
      %v593 = vadd.f32 %v270, %v592
      %594 = vmatprep.mubr.bf16.mxu0 0
      %595 = vmatmul.mubr.bf16.gmra.mxu0 %v294
      %v596 = vpop.f32.mrf.mxu0
      %v597 = vadd.f32 %v266, %v596
      %v598 = vpop.f32.mrf.mxu0
      %v599 = vadd.f32 %v270, %v598
      %v600 = vpop.f32.mrf.mxu0
      %v601 = vadd.f32 %v266, %v600
      %v602 = vpop.f32.mrf.mxu0
      %v603 = vadd.f32 %v270, %v602
      %604 = vdwg.mxu0
      %v605 = vpack.c.bf16 %v494, %v494
      %v606 = vpack.c.bf16 %v496, %v496
      %v607 = vpack.c.bf16 %v567, %v567
      %v608 = vpack.c.bf16 %v569, %v569
      %v609 = vpack.c.bf16 %v498, %v498
      %v610 = vpack.c.bf16 %v500, %v500
      %v611 = vpack.c.bf16 %v571, %v571
      %v612 = vpack.c.bf16 %v573, %v573
      %v613 = vpack.c.bf16 %v504, %v504
      %v614 = vpack.c.bf16 %v506, %v506
      %v615 = vpack.c.bf16 %v577, %v577
      %v616 = vpack.c.bf16 %v579, %v579
      %v617 = vpack.c.bf16 %v508, %v508
      %v618 = vpack.c.bf16 %v510, %v510
      %v619 = vpack.c.bf16 %v581, %v581
      %v620 = vpack.c.bf16 %v583, %v583
      %v621 = vpack.c.bf16 %v514, %v514
      %v622 = vpack.c.bf16 %v516, %v516
      %v623 = vpack.c.bf16 %v587, %v587
      %v624 = vpack.c.bf16 %v589, %v589
      %v625 = vpack.c.bf16 %v518, %v518
      %v626 = vpack.c.bf16 %v520, %v520
      %v627 = vpack.c.bf16 %v591, %v591
      %v628 = vpack.c.bf16 %v593, %v593
      %v629 = vpack.c.bf16 %v524, %v524
      %v630 = vpack.c.bf16 %v526, %v526
      %v631 = vpack.c.bf16 %v597, %v597
      %v632 = vpack.c.bf16 %v599, %v599
      %v633 = vpack.c.bf16 %v528, %v528
      %v634 = vpack.c.bf16 %v530, %v530
      %v635 = vpack.c.bf16 %v601, %v601
      %v636 = vpack.c.bf16 %v603, %v603
      %v669 = vunpack.c.l.b16 %v605
      %v670 = vunpack.c.l.b16 %v606
      %v671 = vunpack.c.l.b16 %v607
      %v672 = vunpack.c.l.b16 %v608
      %v673 = vunpack.c.l.b16 %v609
      %v674 = vunpack.c.l.b16 %v610
      %v675 = vunpack.c.l.b16 %v611
      %v676 = vunpack.c.l.b16 %v612
      %v677 = vunpack.c.l.b16 %v613
      %v678 = vunpack.c.l.b16 %v614
      %v679 = vunpack.c.l.b16 %v615
      %v680 = vunpack.c.l.b16 %v616
      %v681 = vunpack.c.l.b16 %v617
      %v682 = vunpack.c.l.b16 %v618
      %v683 = vunpack.c.l.b16 %v619
      %v684 = vunpack.c.l.b16 %v620
      %v685 = vunpack.c.l.b16 %v621
      %v686 = vunpack.c.l.b16 %v622
      %v687 = vunpack.c.l.b16 %v623
      %v688 = vunpack.c.l.b16 %v624
      %v689 = vunpack.c.l.b16 %v625
      %v690 = vunpack.c.l.b16 %v626
      %v691 = vunpack.c.l.b16 %v627
      %v692 = vunpack.c.l.b16 %v628
      %v693 = vunpack.c.l.b16 %v629
      %v694 = vunpack.c.l.b16 %v630
      %v695 = vunpack.c.l.b16 %v631
      %v696 = vunpack.c.l.b16 %v632
      %v697 = vunpack.c.l.b16 %v633
      %v698 = vunpack.c.l.b16 %v634
      %v699 = vunpack.c.l.b16 %v635
      %v700 = vunpack.c.l.b16 %v636
      %v701 = vpack.c.b16 %v670, %v669
      %v702 = vpack.c.b16 %v672, %v671
      %v703 = vpack.c.b16 %v674, %v673
      %v704 = vpack.c.b16 %v676, %v675
      %v705 = vpack.c.b16 %v678, %v677
      %v706 = vpack.c.b16 %v680, %v679
      %v707 = vpack.c.b16 %v682, %v681
      %v708 = vpack.c.b16 %v684, %v683
      %v709 = vpack.c.b16 %v686, %v685
      %v710 = vpack.c.b16 %v688, %v687
      %v711 = vpack.c.b16 %v690, %v689
      %v712 = vpack.c.b16 %v692, %v691
      %v713 = vpack.c.b16 %v694, %v693
      %v714 = vpack.c.b16 %v696, %v695
      %v715 = vpack.c.b16 %v698, %v697
      %v716 = vpack.c.b16 %v700, %v699
      %733 = vst [vmem:[%s210] sm:$0xff] %v701
      %734 = vst [vmem:[%s210 + $0x8] sm:$0xff] %v702
      %735 = vst [vmem:[%s210 + $0x10] sm:$0xff] %v703
      %736 = vst [vmem:[%s210 + $0x18] sm:$0xff] %v704
      %737 = vst [vmem:[%s210 + $0x20] sm:$0xff] %v705
      %738 = vst [vmem:[%s210 + $0x28] sm:$0xff] %v706
      %739 = vst [vmem:[%s210 + $0x30] sm:$0xff] %v707
      %740 = vst [vmem:[%s210 + $0x38] sm:$0xff] %v708
      %741 = vst [vmem:[%s210 + $0x40] sm:$0xff] %v709
      %742 = vst [vmem:[%s210 + $0x48] sm:$0xff] %v710
      %743 = vst [vmem:[%s210 + $0x50] sm:$0xff] %v711
      %744 = vst [vmem:[%s210 + $0x58] sm:$0xff] %v712
      %745 = vst [vmem:[%s210 + $0x60] sm:$0xff] %v713
      %746 = vst [vmem:[%s210 + $0x68] sm:$0xff] %v714
      %747 = vst [vmem:[%s210 + $0x70] sm:$0xff] %v715
      %748 = vst [vmem:[%s210 + $0x78] sm:$0xff] %v716
      %s749 = smul.u32 8, %s19
      %p750 = scmp.lt.s32.totalorder %s18, 1
      %s751 = scalar_select %p750, %s18, 1
      %p752 = scmp.lt.s32.totalorder %s749, 7
      %s753 = scalar_select %p752, %s749, 7
      %s754 = smul.addr %s753, 4
      %s755 = smul.addr %s751, 32
      %s756 = sadd.s32 %s754, %s755
      %s757 = smul.addr %s756, 4
      %s758 = scalar_lea.vmem %s3, %s757
      // Predicated region
      $region33: #{upconv_forward.4} parent=31 // pred_check
        %p759 = pneg %p116
      $region34: #{upconv_forward.4} parent=31 // pred_check_branch
        %761 = sbr.rel (%p759) target = $region36
      $region35: #{upconv_forward.4} parent=31 // pred_region
        %s762 = smul.u32 8, %s19
      $region36: #{upconv_forward.4} parent=31 // pred_fallthru
        _
    $region32: #{upconv_forward.4} parent=5 // pred_fallthru
      _
    %p763 = scmp.le.s32.totalorder 2, %s9
    // Predicated region
    $region37: #{upconv_forward.4} parent=5 // pred_check
      %p764 = pneg %p763
    $region38: #{upconv_forward.4} parent=5 // pred_check_branch
      %766 = sbr.rel (%p764) target = $region40
    $region39: #{upconv_forward.4} parent=5 // pred_region
      %s767 = ssub.s32 %s9, 2
      // Predicated region
      $region41: #{upconv_forward.4} parent=39 // pred_check
        %p768 = pneg %p122
      $region42: #{upconv_forward.4} parent=39 // pred_check_branch
        %770 = sbr.rel (%p768) target = $region44
      $region43: #{upconv_forward.4} parent=39 // pred_region
        %s771 = smul.u32 8, %s21
        %p772 = scmp.lt.s32.totalorder %s20, 1
        %s773 = scalar_select %p772, %s20, 1
        %p774 = scmp.lt.s32.totalorder %s771, 7
        %s775 = scalar_select %p774, %s771, 7
        %s776 = smul.addr %s775, 4
        %s777 = smul.addr %s773, 32
        %s778 = sadd.s32 %s776, %s777
        %s779 = smul.addr %s778, 4
        %s780 = scalar_lea.vmem %s3, %s779
      $region44: #{upconv_forward.4} parent=39 // pred_fallthru
        _
    $region40: #{upconv_forward.4} parent=5 // pred_fallthru
      _
  $region6: #{upconv_forward.4} parent=0 // loop_footer
    %s13 = sadd.s32 1, %s9
  $region7: #{upconv_forward.4} parent=0 // loop_footer_branch
    %8 = sbr.rel target = $region3
  $region8: #{upconv_forward.4} parent=0 // loop_exit
    _

// kernel: upconv_forward.7
$region0: #{upconv_forward.7}
  #allocation0 [shape = 'u32[]', space=smem, size = 0x4, offset = 0x4, fixed_abs, tag = 'smem constant byte address 0x4 - core index']
  #allocation1 [shape = 'u32[144,128]{1,0:T(1,128)}', space=vmem, size = 0x12000, scoped, tag = 'internal scratch']
  %s0 = inlined_call_operand.vmem [shape: bf16[512,128], index: 0, kind: input, shape index: {}]
  %s1 = inlined_call_operand.vmem [shape: f32[2,128], index: 1, kind: input, shape index: {}]
  %s2 = inlined_call_operand.vmem [shape: f32[512,128], index: 2, kind: output, shape index: {}]
  %s3 = sld [smem:[#allocation0]]
  $region18: #{upconv_forward.7} parent=0
    _
  %s5 = ssub.s32 1, %s3
  %s6 = scalar_select 0, %s5, %s3
  // Predicated region
  $region2: #{upconv_forward.7} parent=0 // pred_check
    _
  $region3: #{upconv_forward.7} parent=0 // pred_check_branch
    %8 = sbr.rel (0) target = $region5
  $region4: #{upconv_forward.7} parent=0 // pred_region
    _
  $region5: #{upconv_forward.7} parent=0 // pred_fallthru
    _
  // Predicated region
  $region6: #{upconv_forward.7} parent=0 // pred_check
    _
  $region7: #{upconv_forward.7} parent=0 // pred_check_branch
    %10 = sbr.rel (0) target = $region9
  $region8: #{upconv_forward.7} parent=0 // pred_region
    _
  $region9: #{upconv_forward.7} parent=0 // pred_fallthru
    _
  %v11 = vld [vmem:[%s0] sm:$0xf]
  %v12 = vld [vmem:[%s0 + $0x4] sm:$0xf]
  %v13 = vld [vmem:[%s0 + $0x8] sm:$0xf]
  %v14 = vld [vmem:[%s0 + $0xc] sm:$0xf]
  %v15 = vld [vmem:[%s0 + $0x10] sm:$0xf]
  %v16 = vld [vmem:[%s0 + $0x14] sm:$0xf]
  %v17 = vld [vmem:[%s0 + $0x18] sm:$0xf]
  %v18 = vld [vmem:[%s0 + $0x1c] sm:$0xf]
  %v19 = vld [vmem:[%s0 + $0x20] sm:$0xf]
  %v20 = vld [vmem:[%s0 + $0x24] sm:$0xf]
  %v21 = vld [vmem:[%s0 + $0x28] sm:$0xf]
  %v22 = vld [vmem:[%s0 + $0x2c] sm:$0xf]
  %v23 = vld [vmem:[%s0 + $0x30] sm:$0xf]
  %v24 = vld [vmem:[%s0 + $0x34] sm:$0xf]
  %v25 = vld [vmem:[%s0 + $0x38] sm:$0xf]
  %v26 = vld [vmem:[%s0 + $0x3c] sm:$0xf]
  %v27 = vld [vmem:[%s0 + $0x40] sm:$0xf]
  %v28 = vld [vmem:[%s0 + $0x44] sm:$0xf]
  %v29 = vld [vmem:[%s0 + $0x48] sm:$0xf]
  %v30 = vld [vmem:[%s0 + $0x4c] sm:$0xf]
  %v31 = vld [vmem:[%s0 + $0x50] sm:$0xf]
  %v32 = vld [vmem:[%s0 + $0x54] sm:$0xf]
  %v33 = vld [vmem:[%s0 + $0x58] sm:$0xf]
  %v34 = vld [vmem:[%s0 + $0x5c] sm:$0xf]
  %v35 = vld [vmem:[%s0 + $0x60] sm:$0xf]
  %v36 = vld [vmem:[%s0 + $0x64] sm:$0xf]
  %v37 = vld [vmem:[%s0 + $0x68] sm:$0xf]
  %v38 = vld [vmem:[%s0 + $0x6c] sm:$0xf]
  %v39 = vld [vmem:[%s0 + $0x70] sm:$0xf]
  %v40 = vld [vmem:[%s0 + $0x74] sm:$0xf]
  %v41 = vld [vmem:[%s0 + $0x78] sm:$0xf]
  %v42 = vld [vmem:[%s0 + $0x7c] sm:$0xf]
  %v43 = vld [vmem:[%s0 + $0x80] sm:$0xf]
  %v44 = vld [vmem:[%s0 + $0x84] sm:$0xf]
  %v45 = vld [vmem:[%s0 + $0x88] sm:$0xf]
  %v46 = vld [vmem:[%s0 + $0x8c] sm:$0xf]
  %v47 = vld [vmem:[%s0 + $0x90] sm:$0xf]
  %v48 = vld [vmem:[%s0 + $0x94] sm:$0xf]
  %v49 = vld [vmem:[%s0 + $0x98] sm:$0xf]
  %v50 = vld [vmem:[%s0 + $0x9c] sm:$0xf]
  %v51 = vld [vmem:[%s0 + $0xa0] sm:$0xf]
  %v52 = vld [vmem:[%s0 + $0xa4] sm:$0xf]
  %v53 = vld [vmem:[%s0 + $0xa8] sm:$0xf]
  %v54 = vld [vmem:[%s0 + $0xac] sm:$0xf]
  %v55 = vld [vmem:[%s0 + $0xb0] sm:$0xf]
  %v56 = vld [vmem:[%s0 + $0xb4] sm:$0xf]
  %v57 = vld [vmem:[%s0 + $0xb8] sm:$0xf]
  %v58 = vld [vmem:[%s0 + $0xbc] sm:$0xf]
  %v59 = vld [vmem:[%s0 + $0xc0] sm:$0xf]
  %v60 = vld [vmem:[%s0 + $0xc4] sm:$0xf]
  %v61 = vld [vmem:[%s0 + $0xc8] sm:$0xf]
  %v62 = vld [vmem:[%s0 + $0xcc] sm:$0xf]
  %v63 = vld [vmem:[%s0 + $0xd0] sm:$0xf]
  %v64 = vld [vmem:[%s0 + $0xd4] sm:$0xf]
  %v65 = vld [vmem:[%s0 + $0xd8] sm:$0xf]
  %v66 = vld [vmem:[%s0 + $0xdc] sm:$0xf]
  %v67 = vld [vmem:[%s0 + $0xe0] sm:$0xf]
  %v68 = vld [vmem:[%s0 + $0xe4] sm:$0xf]
  %v69 = vld [vmem:[%s0 + $0xe8] sm:$0xf]
  %v70 = vld [vmem:[%s0 + $0xec] sm:$0xf]
  %v71 = vld [vmem:[%s0 + $0xf0] sm:$0xf]
  %v72 = vld [vmem:[%s0 + $0xf4] sm:$0xf]
  %v73 = vld [vmem:[%s0 + $0xf8] sm:$0xf]
  %v74 = vld [vmem:[%s0 + $0xfc] sm:$0xf]
  %v75 = vunpack.c.l.bf16 %v11
  %v76 = vunpack.c.l.bf16 %v12
  %v77 = vunpack.c.l.bf16 %v13
  %v78 = vunpack.c.l.bf16 %v14
  %v79 = vunpack.c.l.bf16 %v15
  %v80 = vunpack.c.l.bf16 %v16
  %v81 = vunpack.c.l.bf16 %v17
  %v82 = vunpack.c.l.bf16 %v18
  %v83 = vunpack.c.l.bf16 %v19
  %v84 = vunpack.c.l.bf16 %v20
  %v85 = vunpack.c.l.bf16 %v21
  %v86 = vunpack.c.l.bf16 %v22
  %v87 = vunpack.c.l.bf16 %v23
  %v88 = vunpack.c.l.bf16 %v24
  %v89 = vunpack.c.l.bf16 %v25
  %v90 = vunpack.c.l.bf16 %v26
  %v91 = vunpack.c.l.bf16 %v27
  %v92 = vunpack.c.l.bf16 %v28
  %v93 = vunpack.c.l.bf16 %v29
  %v94 = vunpack.c.l.bf16 %v30
  %v95 = vunpack.c.l.bf16 %v31
  %v96 = vunpack.c.l.bf16 %v32
  %v97 = vunpack.c.l.bf16 %v33
  %v98 = vunpack.c.l.bf16 %v34
  %v99 = vunpack.c.l.bf16 %v35
  %v100 = vunpack.c.l.bf16 %v36
  %v101 = vunpack.c.l.bf16 %v37
  %v102 = vunpack.c.l.bf16 %v38
  %v103 = vunpack.c.l.bf16 %v39
  %v104 = vunpack.c.l.bf16 %v40
  %v105 = vunpack.c.l.bf16 %v41
  %v106 = vunpack.c.l.bf16 %v42
  %v107 = vunpack.c.l.bf16 %v43
  %v108 = vunpack.c.l.bf16 %v44
  %v109 = vunpack.c.l.bf16 %v45
  %v110 = vunpack.c.l.bf16 %v46
  %v111 = vunpack.c.l.bf16 %v47
  %v112 = vunpack.c.l.bf16 %v48
  %v113 = vunpack.c.l.bf16 %v49
  %v114 = vunpack.c.l.bf16 %v50
  %v115 = vunpack.c.l.bf16 %v51
  %v116 = vunpack.c.l.bf16 %v52
  %v117 = vunpack.c.l.bf16 %v53
  %v118 = vunpack.c.l.bf16 %v54
  %v119 = vunpack.c.l.bf16 %v55
  %v120 = vunpack.c.l.bf16 %v56
  %v121 = vunpack.c.l.bf16 %v57
  %v122 = vunpack.c.l.bf16 %v58
  %v123 = vunpack.c.l.bf16 %v59
  %v124 = vunpack.c.l.bf16 %v60
  %v125 = vunpack.c.l.bf16 %v61
  %v126 = vunpack.c.l.bf16 %v62
  %v127 = vunpack.c.l.bf16 %v63
  %v128 = vunpack.c.l.bf16 %v64
  %v129 = vunpack.c.l.bf16 %v65
  %v130 = vunpack.c.l.bf16 %v66
  %v131 = vunpack.c.l.bf16 %v67
  %v132 = vunpack.c.l.bf16 %v68
  %v133 = vunpack.c.l.bf16 %v69
  %v134 = vunpack.c.l.bf16 %v70
  %v135 = vunpack.c.l.bf16 %v71
  %v136 = vunpack.c.l.bf16 %v72
  %v137 = vunpack.c.l.bf16 %v73
  %v138 = vunpack.c.l.bf16 %v74
  %v139 = vld [vmem:[%s1] sm:$0x1]
  %v140 = vlaneseq
  %v141 = vshrl.u32 %v140, 7
  %v142 = vsub.s32 0, %v141
  %v143 = vrot.slane %v139, %v142
  %v144 = vmul.f32 %v75, %v143
  %v145 = vmul.f32 %v76, %v143
  %v146 = vmul.f32 %v77, %v143
  %v147 = vmul.f32 %v78, %v143
  %v148 = vmul.f32 %v79, %v143
  %v149 = vmul.f32 %v80, %v143
  %v150 = vmul.f32 %v81, %v143
  %v151 = vmul.f32 %v82, %v143
  %v152 = vmul.f32 %v83, %v143
  %v153 = vmul.f32 %v84, %v143
  %v154 = vmul.f32 %v85, %v143
  %v155 = vmul.f32 %v86, %v143
  %v156 = vmul.f32 %v87, %v143
  %v157 = vmul.f32 %v88, %v143
  %v158 = vmul.f32 %v89, %v143
  %v159 = vmul.f32 %v90, %v143
  %v160 = vmul.f32 %v91, %v143
  %v161 = vmul.f32 %v92, %v143
  %v162 = vmul.f32 %v93, %v143
  %v163 = vmul.f32 %v94, %v143
  %v164 = vmul.f32 %v95, %v143
  %v165 = vmul.f32 %v96, %v143
  %v166 = vmul.f32 %v97, %v143
  %v167 = vmul.f32 %v98, %v143
  %v168 = vmul.f32 %v99, %v143
  %v169 = vmul.f32 %v100, %v143
  %v170 = vmul.f32 %v101, %v143
  %v171 = vmul.f32 %v102, %v143
  %v172 = vmul.f32 %v103, %v143
  %v173 = vmul.f32 %v104, %v143
  %v174 = vmul.f32 %v105, %v143
  %v175 = vmul.f32 %v106, %v143
  %v176 = vmul.f32 %v107, %v143
  %v177 = vmul.f32 %v108, %v143
  %v178 = vmul.f32 %v109, %v143
  %v179 = vmul.f32 %v110, %v143
  %v180 = vmul.f32 %v111, %v143
  %v181 = vmul.f32 %v112, %v143
  %v182 = vmul.f32 %v113, %v143
  %v183 = vmul.f32 %v114, %v143
  %v184 = vmul.f32 %v115, %v143
  %v185 = vmul.f32 %v116, %v143
  %v186 = vmul.f32 %v117, %v143
  %v187 = vmul.f32 %v118, %v143
  %v188 = vmul.f32 %v119, %v143
  %v189 = vmul.f32 %v120, %v143
  %v190 = vmul.f32 %v121, %v143
  %v191 = vmul.f32 %v122, %v143
  %v192 = vmul.f32 %v123, %v143
  %v193 = vmul.f32 %v124, %v143
  %v194 = vmul.f32 %v125, %v143
  %v195 = vmul.f32 %v126, %v143
  %v196 = vmul.f32 %v127, %v143
  %v197 = vmul.f32 %v128, %v143
  %v198 = vmul.f32 %v129, %v143
  %v199 = vmul.f32 %v130, %v143
  %v200 = vmul.f32 %v131, %v143
  %v201 = vmul.f32 %v132, %v143
  %v202 = vmul.f32 %v133, %v143
  %v203 = vmul.f32 %v134, %v143
  %v204 = vmul.f32 %v135, %v143
  %v205 = vmul.f32 %v136, %v143
  %v206 = vmul.f32 %v137, %v143
  %v207 = vmul.f32 %v138, %v143
  %v208 = vld [vmem:[%s1 + $0x1] sm:$0x1]
  %v209 = vlaneseq
  %v210 = vshrl.u32 %v209, 7
  %v211 = vsub.s32 0, %v210
  %v212 = vrot.slane %v208, %v211
  %v213 = vadd.f32 %v144, %v212
  %v214 = vadd.f32 %v145, %v212
  %v215 = vadd.f32 %v146, %v212
  %v216 = vadd.f32 %v147, %v212
  %v217 = vadd.f32 %v148, %v212
  %v218 = vadd.f32 %v149, %v212
  %v219 = vadd.f32 %v150, %v212
  %v220 = vadd.f32 %v151, %v212
  %v221 = vadd.f32 %v152, %v212
  %v222 = vadd.f32 %v153, %v212
  %v223 = vadd.f32 %v154, %v212
  %v224 = vadd.f32 %v155, %v212
  %v225 = vadd.f32 %v156, %v212
  %v226 = vadd.f32 %v157, %v212
  %v227 = vadd.f32 %v158, %v212
  %v228 = vadd.f32 %v159, %v212
  %v229 = vadd.f32 %v160, %v212
  %v230 = vadd.f32 %v161, %v212
  %v231 = vadd.f32 %v162, %v212
  %v232 = vadd.f32 %v163, %v212
  %v233 = vadd.f32 %v164, %v212
  %v234 = vadd.f32 %v165, %v212
  %v235 = vadd.f32 %v166, %v212
  %v236 = vadd.f32 %v167, %v212
  %v237 = vadd.f32 %v168, %v212
  %v238 = vadd.f32 %v169, %v212
  %v239 = vadd.f32 %v170, %v212
  %v240 = vadd.f32 %v171, %v212
  %v241 = vadd.f32 %v172, %v212
  %v242 = vadd.f32 %v173, %v212
  %v243 = vadd.f32 %v174, %v212
  %v244 = vadd.f32 %v175, %v212
  %v245 = vadd.f32 %v176, %v212
  %v246 = vadd.f32 %v177, %v212
  %v247 = vadd.f32 %v178, %v212
  %v248 = vadd.f32 %v179, %v212
  %v249 = vadd.f32 %v180, %v212
  %v250 = vadd.f32 %v181, %v212
  %v251 = vadd.f32 %v182, %v212
  %v252 = vadd.f32 %v183, %v212
  %v253 = vadd.f32 %v184, %v212
  %v254 = vadd.f32 %v185, %v212
  %v255 = vadd.f32 %v186, %v212
  %v256 = vadd.f32 %v187, %v212
  %v257 = vadd.f32 %v188, %v212
  %v258 = vadd.f32 %v189, %v212
  %v259 = vadd.f32 %v190, %v212
  %v260 = vadd.f32 %v191, %v212
  %v261 = vadd.f32 %v192, %v212
  %v262 = vadd.f32 %v193, %v212
  %v263 = vadd.f32 %v194, %v212
  %v264 = vadd.f32 %v195, %v212
  %v265 = vadd.f32 %v196, %v212
  %v266 = vadd.f32 %v197, %v212
  %v267 = vadd.f32 %v198, %v212
  %v268 = vadd.f32 %v199, %v212
  %v269 = vadd.f32 %v200, %v212
  %v270 = vadd.f32 %v201, %v212
  %v271 = vadd.f32 %v202, %v212
  %v272 = vadd.f32 %v203, %v212
  %v273 = vadd.f32 %v204, %v212
  %v274 = vadd.f32 %v205, %v212
  %v275 = vadd.f32 %v206, %v212
  %v276 = vadd.f32 %v207, %v212
  %277 = vst [vmem:[%s2] sm:$0xff] %v213
  %278 = vst [vmem:[%s2 + $0x8] sm:$0xff] %v214
  %279 = vst [vmem:[%s2 + $0x10] sm:$0xff] %v215
  %280 = vst [vmem:[%s2 + $0x18] sm:$0xff] %v216
  %281 = vst [vmem:[%s2 + $0x20] sm:$0xff] %v217
  %282 = vst [vmem:[%s2 + $0x28] sm:$0xff] %v218
  %283 = vst [vmem:[%s2 + $0x30] sm:$0xff] %v219
  %284 = vst [vmem:[%s2 + $0x38] sm:$0xff] %v220
  %285 = vst [vmem:[%s2 + $0x40] sm:$0xff] %v221
  %286 = vst [vmem:[%s2 + $0x48] sm:$0xff] %v222
  %287 = vst [vmem:[%s2 + $0x50] sm:$0xff] %v223
  %288 = vst [vmem:[%s2 + $0x58] sm:$0xff] %v224
  %289 = vst [vmem:[%s2 + $0x60] sm:$0xff] %v225
  %290 = vst [vmem:[%s2 + $0x68] sm:$0xff] %v226
  %291 = vst [vmem:[%s2 + $0x70] sm:$0xff] %v227
  %292 = vst [vmem:[%s2 + $0x78] sm:$0xff] %v228
  %293 = vst [vmem:[%s2 + $0x80] sm:$0xff] %v229
  %294 = vst [vmem:[%s2 + $0x88] sm:$0xff] %v230
  %295 = vst [vmem:[%s2 + $0x90] sm:$0xff] %v231
  %296 = vst [vmem:[%s2 + $0x98] sm:$0xff] %v232
  %297 = vst [vmem:[%s2 + $0xa0] sm:$0xff] %v233
  %298 = vst [vmem:[%s2 + $0xa8] sm:$0xff] %v234
  %299 = vst [vmem:[%s2 + $0xb0] sm:$0xff] %v235
  %300 = vst [vmem:[%s2 + $0xb8] sm:$0xff] %v236
  %301 = vst [vmem:[%s2 + $0xc0] sm:$0xff] %v237
  %302 = vst [vmem:[%s2 + $0xc8] sm:$0xff] %v238
  %303 = vst [vmem:[%s2 + $0xd0] sm:$0xff] %v239
  %304 = vst [vmem:[%s2 + $0xd8] sm:$0xff] %v240
  %305 = vst [vmem:[%s2 + $0xe0] sm:$0xff] %v241
  %306 = vst [vmem:[%s2 + $0xe8] sm:$0xff] %v242
  %307 = vst [vmem:[%s2 + $0xf0] sm:$0xff] %v243
  %308 = vst [vmem:[%s2 + $0xf8] sm:$0xff] %v244
  %309 = vst [vmem:[%s2 + $0x100] sm:$0xff] %v245
  %310 = vst [vmem:[%s2 + $0x108] sm:$0xff] %v246
  %311 = vst [vmem:[%s2 + $0x110] sm:$0xff] %v247
  %312 = vst [vmem:[%s2 + $0x118] sm:$0xff] %v248
  %313 = vst [vmem:[%s2 + $0x120] sm:$0xff] %v249
  %314 = vst [vmem:[%s2 + $0x128] sm:$0xff] %v250
  %315 = vst [vmem:[%s2 + $0x130] sm:$0xff] %v251
  %316 = vst [vmem:[%s2 + $0x138] sm:$0xff] %v252
  %317 = vst [vmem:[%s2 + $0x140] sm:$0xff] %v253
  %318 = vst [vmem:[%s2 + $0x148] sm:$0xff] %v254
  %319 = vst [vmem:[%s2 + $0x150] sm:$0xff] %v255
  %320 = vst [vmem:[%s2 + $0x158] sm:$0xff] %v256
  %321 = vst [vmem:[%s2 + $0x160] sm:$0xff] %v257
  %322 = vst [vmem:[%s2 + $0x168] sm:$0xff] %v258
  %323 = vst [vmem:[%s2 + $0x170] sm:$0xff] %v259
  %324 = vst [vmem:[%s2 + $0x178] sm:$0xff] %v260
  %325 = vst [vmem:[%s2 + $0x180] sm:$0xff] %v261
  %326 = vst [vmem:[%s2 + $0x188] sm:$0xff] %v262
  %327 = vst [vmem:[%s2 + $0x190] sm:$0xff] %v263
  %328 = vst [vmem:[%s2 + $0x198] sm:$0xff] %v264
  %329 = vst [vmem:[%s2 + $0x1a0] sm:$0xff] %v265
  %330 = vst [vmem:[%s2 + $0x1a8] sm:$0xff] %v266
  %331 = vst [vmem:[%s2 + $0x1b0] sm:$0xff] %v267
  %332 = vst [vmem:[%s2 + $0x1b8] sm:$0xff] %v268
  %333 = vst [vmem:[%s2 + $0x1c0] sm:$0xff] %v269
  %334 = vst [vmem:[%s2 + $0x1c8] sm:$0xff] %v270
  %335 = vst [vmem:[%s2 + $0x1d0] sm:$0xff] %v271
  %336 = vst [vmem:[%s2 + $0x1d8] sm:$0xff] %v272
  %337 = vst [vmem:[%s2 + $0x1e0] sm:$0xff] %v273
  %338 = vst [vmem:[%s2 + $0x1e8] sm:$0xff] %v274
  %339 = vst [vmem:[%s2 + $0x1f0] sm:$0xff] %v275
  %340 = vst [vmem:[%s2 + $0x1f8] sm:$0xff] %v276
  // Predicated region
  $region10: #{upconv_forward.7} parent=0 // pred_check
    _
  $region11: #{upconv_forward.7} parent=0 // pred_check_branch
    %342 = sbr.rel (0) target = $region13
  $region12: #{upconv_forward.7} parent=0 // pred_region
    _
  $region13: #{upconv_forward.7} parent=0 // pred_fallthru
    _
  // Predicated region
  $region14: #{upconv_forward.7} parent=0 // pred_check
    _
  $region15: #{upconv_forward.7} parent=0 // pred_check_branch
    %344 = sbr.rel (0) target = $region17
  $region16: #{upconv_forward.7} parent=0 // pred_region
    _
  $region17: #{upconv_forward.7} parent=0 // pred_fallthru
    _

// kernel: upconv_forward.6
$region0: #{upconv_forward.6}
  #allocation0 [shape = 'u32[]', space=smem, size = 0x4, offset = 0x4, fixed_abs, tag = 'smem constant byte address 0x4 - core index']
  #allocation1 [shape = 'u32[144,128]{1,0:T(1,128)}', space=vmem, size = 0x12000, scoped, tag = 'internal scratch']
  %s0 = inlined_call_operand.vmem [shape: bf16[2,16,16,128], index: 0, kind: input, shape index: {}, may-alias: {0,1,2}]
  %s1 = inlined_call_operand.vmem [shape: bf16[2,16,16,128], index: 1, kind: input, shape index: {}, may-alias: {0,1,2}]
  %s2 = inlined_call_operand.vmem [shape: bf16[2,16,16,128], index: 2, kind: input, shape index: {}, may-alias: {0,1,2}]
  %s3 = inlined_call_operand.vmem [shape: bf16[1152,128], index: 3, kind: input, shape index: {}]
  %s4 = inlined_call_operand.vmem [shape: f32[1,128], index: 4, kind: input, shape index: {}]
  %s5 = inlined_call_operand.vmem [shape: bf16[2,16,16,128], index: 5, kind: output, shape index: {0}]
  %s6 = inlined_call_operand.vmem [shape: f32[2,1,2,128], index: 6, kind: output, shape index: {1}]
  %7 = xla_tuple %s5, %s6
  %s8 = sld [smem:[#allocation0]]
  $region61: #{upconv_forward.6} parent=0
    _
  %s10 = ssub.s32 1, %s8
  %s11 = scalar_select 0, %s10, %s8
  loop: start=0, step=1, limit=4
  $region2: #{upconv_forward.6} parent=0 // loop_pre_header
    _
  $region3: #{upconv_forward.6} parent=0 // loop_header
    %s13 = sphi 0, %s17
    %p14 = scmp.ge.s32.totalorder %s13, 4
    %s20 = sphi 0, %s32
    %s21 = sphi 0, %s28
    %s22 = sphi 0, %s20
    %s23 = sphi 0, %s21
    %s24 = sphi 0, %s22
    %s25 = sphi 0, %s23
    %s37 = sphi 0, %s39
    %s40 = sphi 0, %s37
    %s41 = sphi 0, %s40
    %s57 = sphi 0, %s41
    %s73 = sphi 0, %s75
    %s76 = sphi 0, %s73
    %s77 = sphi 0, %s76
    %s93 = sphi 0, %s77
    %s109 = sphi 0, %s111
    %s112 = sphi 0, %s109
    %s113 = sphi 0, %s112
    %s129 = sphi 0, %s113
    %s133 = sphi 0, %s133
    %s135 = sphi 0, %s133
    %s136 = sphi 0, %s135
    %s150 = sphi 0, %s136
    %s154 = sphi 0, %s154
    %s156 = sphi 0, %s154
    %s157 = sphi 0, %s156
    %s171 = sphi 0, %s157
    %s179 = sphi 0, %s181
    %s182 = sphi 0, %s179
    %s183 = sphi 0, %s182
    %s199 = sphi 0, %s183
    %s207 = sphi 0, %s209
    %s210 = sphi 0, %s207
    %s211 = sphi 0, %s210
    %s227 = sphi 0, %s211
  $region4: #{upconv_forward.6} parent=0 // loop_header_branch
    %16 = sbr.rel (%p14) target = $region8
  $region5: #{upconv_forward.6} parent=0 // loop_body
    %s18 = ssub.s32 %s13, 1
    %s19 = ssub.s32 %s13, 2
    %s26 = sadd.s32 1, %s21
    %p27 = scmp.ge.s32.totalorder %s26, 1
    %s28 = scalar_select %p27, 0, %s26
    %s29 = sadd.s32 1, %s20
    %s30 = scalar_select %p27, %s29, %s20
    %p31 = scmp.ge.s32.totalorder %s30, 2
    %s32 = scalar_select %p31, 0, %s30
    %s33 = ssub.s32 %s20, %s32
    %s34 = ssub.s32 %s21, %s28
    %s35 = sor.u32 %s33, %s34
    %p36 = scmp.eq.s32.totalorder %s35, 0
    %s38 = sadd.s32 %s37, 1
    %s39 = scalar_select %p36, %s37, %s38
    %p42 = pneg %p36
    %p43 = scmp.eq.s32.totalorder %s13, 1
    %p44 = por %p42, %p43
    %p45 = scmp.ne.s32.totalorder %s37, %s40
    %p46 = scmp.eq.s32.totalorder %s13, 0
    %p47 = por %p45, %p46
    %p48 = scmp.ne.s32.totalorder %s37, %s40
    %p49 = scmp.eq.s32.totalorder %s18, 1
    %p50 = por %p48, %p49
    %p51 = scmp.ne.s32.totalorder %s40, %s41
    %p52 = scmp.eq.s32.totalorder %s18, 0
    %p53 = por %p51, %p52
    %p54 = scmp.ne.s32.totalorder %s40, %s41
    %p55 = scmp.eq.s32.totalorder %s19, 1
    %p56 = por %p54, %p55
    %p58 = scmp.ne.s32.totalorder %s41, %s57
    %p59 = scmp.eq.s32.totalorder %s19, 0
    %p60 = por %p58, %p59
    %s61 = smul.u32 %s21, 16
    %s62 = ssub.s32 %s61, 1
    %p63 = scmp.gt.s32.totalorder %s62, 0
    %s64 = scalar_select %p63, %s62, 0
    %s65 = smul.u32 %s28, 16
    %s66 = ssub.s32 %s65, 1
    %p67 = scmp.gt.s32.totalorder %s66, 0
    %s68 = scalar_select %p67, %s66, 0
    %s69 = ssub.s32 %s20, %s32
    %s70 = ssub.s32 %s64, %s68
    %s71 = sor.u32 %s69, %s70
    %p72 = scmp.eq.s32.totalorder %s71, 0
    %s74 = sadd.s32 %s73, 1
    %s75 = scalar_select %p72, %s73, %s74
    %p78 = pneg %p72
    %p79 = scmp.eq.s32.totalorder %s13, 1
    %p80 = por %p78, %p79
    %p81 = scmp.ne.s32.totalorder %s73, %s76
    %p82 = scmp.eq.s32.totalorder %s13, 0
    %p83 = por %p81, %p82
    %p84 = scmp.ne.s32.totalorder %s73, %s76
    %p85 = scmp.eq.s32.totalorder %s18, 1
    %p86 = por %p84, %p85
    %p87 = scmp.ne.s32.totalorder %s76, %s77
    %p88 = scmp.eq.s32.totalorder %s18, 0
    %p89 = por %p87, %p88
    %p90 = scmp.ne.s32.totalorder %s76, %s77
    %p91 = scmp.eq.s32.totalorder %s19, 1
    %p92 = por %p90, %p91
    %p94 = scmp.ne.s32.totalorder %s77, %s93
    %p95 = scmp.eq.s32.totalorder %s19, 0
    %p96 = por %p94, %p95
    %s97 = smul.u32 %s21, 16
    %s98 = sadd.s32 %s97, 16
    %p99 = scmp.lt.s32.totalorder %s98, 15
    %s100 = scalar_select %p99, %s98, 15
    %s101 = smul.u32 %s28, 16
    %s102 = sadd.s32 %s101, 16
    %p103 = scmp.lt.s32.totalorder %s102, 15
    %s104 = scalar_select %p103, %s102, 15
    %s105 = ssub.s32 %s20, %s32
    %s106 = ssub.s32 %s100, %s104
    %s107 = sor.u32 %s105, %s106
    %p108 = scmp.eq.s32.totalorder %s107, 0
    %s110 = sadd.s32 %s109, 1
    %s111 = scalar_select %p108, %s109, %s110
    %p114 = pneg %p108
    %p115 = scmp.eq.s32.totalorder %s13, 1
    %p116 = por %p114, %p115
    %p117 = scmp.ne.s32.totalorder %s109, %s112
    %p118 = scmp.eq.s32.totalorder %s13, 0
    %p119 = por %p117, %p118
    %p120 = scmp.ne.s32.totalorder %s109, %s112
    %p121 = scmp.eq.s32.totalorder %s18, 1
    %p122 = por %p120, %p121
    %p123 = scmp.ne.s32.totalorder %s112, %s113
    %p124 = scmp.eq.s32.totalorder %s18, 0
    %p125 = por %p123, %p124
    %p126 = scmp.ne.s32.totalorder %s112, %s113
    %p127 = scmp.eq.s32.totalorder %s19, 1
    %p128 = por %p126, %p127
    %p130 = scmp.ne.s32.totalorder %s113, %s129
    %p131 = scmp.eq.s32.totalorder %s19, 0
    %p132 = por %p130, %p131
    %s134 = sadd.s32 %s133, 1
    %p137 = scmp.eq.s32.totalorder %s13, 1
    %p138 = scmp.ne.s32.totalorder %s133, %s135
    %p139 = scmp.eq.s32.totalorder %s13, 0
    %p140 = por %p138, %p139
    %p141 = scmp.ne.s32.totalorder %s133, %s135
    %p142 = scmp.eq.s32.totalorder %s18, 1
    %p143 = por %p141, %p142
    %p144 = scmp.ne.s32.totalorder %s135, %s136
    %p145 = scmp.eq.s32.totalorder %s18, 0
    %p146 = por %p144, %p145
    %p147 = scmp.ne.s32.totalorder %s135, %s136
    %p148 = scmp.eq.s32.totalorder %s19, 1
    %p149 = por %p147, %p148
    %p151 = scmp.ne.s32.totalorder %s136, %s150
    %p152 = scmp.eq.s32.totalorder %s19, 0
    %p153 = por %p151, %p152
    %s155 = sadd.s32 %s154, 1
    %p158 = scmp.eq.s32.totalorder %s13, 1
    %p159 = scmp.ne.s32.totalorder %s154, %s156
    %p160 = scmp.eq.s32.totalorder %s13, 0
    %p161 = por %p159, %p160
    %p162 = scmp.ne.s32.totalorder %s154, %s156
    %p163 = scmp.eq.s32.totalorder %s18, 1
    %p164 = por %p162, %p163
    %p165 = scmp.ne.s32.totalorder %s156, %s157
    %p166 = scmp.eq.s32.totalorder %s18, 0
    %p167 = por %p165, %p166
    %p168 = scmp.ne.s32.totalorder %s156, %s157
    %p169 = scmp.eq.s32.totalorder %s19, 1
    %p170 = por %p168, %p169
    %p172 = scmp.ne.s32.totalorder %s157, %s171
    %p173 = scmp.eq.s32.totalorder %s19, 0
    %p174 = por %p172, %p173
    %s175 = ssub.s32 %s20, %s32
    %s176 = ssub.s32 %s21, %s28
    %s177 = sor.u32 %s175, %s176
    %p178 = scmp.eq.s32.totalorder %s177, 0
    %s180 = sadd.s32 %s179, 1
    %s181 = scalar_select %p178, %s179, %s180
    %p184 = pneg %p178
    %p185 = scmp.eq.s32.totalorder %s13, 1
    %p186 = por %p184, %p185
    %p187 = scmp.ne.s32.totalorder %s179, %s182
    %p188 = scmp.eq.s32.totalorder %s13, 0
    %p189 = por %p187, %p188
    %p190 = scmp.ne.s32.totalorder %s179, %s182
    %p191 = scmp.eq.s32.totalorder %s18, 1
    %p192 = por %p190, %p191
    %p193 = scmp.ne.s32.totalorder %s182, %s183
    %p194 = scmp.eq.s32.totalorder %s18, 0
    %p195 = por %p193, %p194
    %p196 = scmp.ne.s32.totalorder %s182, %s183
    %p197 = scmp.eq.s32.totalorder %s19, 1
    %p198 = por %p196, %p197
    %p200 = scmp.ne.s32.totalorder %s183, %s199
    %p201 = scmp.eq.s32.totalorder %s19, 0
    %p202 = por %p200, %p201
    %s203 = ssub.s32 %s20, %s32
    %s204 = ssub.s32 %s21, %s28
    %s205 = sor.u32 %s203, %s204
    %p206 = scmp.eq.s32.totalorder %s205, 0
    %s208 = sadd.s32 %s207, 1
    %s209 = scalar_select %p206, %s207, %s208
    %p212 = pneg %p206
    %p213 = scmp.eq.s32.totalorder %s13, 1
    %p214 = por %p212, %p213
    %p215 = scmp.ne.s32.totalorder %s207, %s210
    %p216 = scmp.eq.s32.totalorder %s13, 0
    %p217 = por %p215, %p216
    %p218 = scmp.ne.s32.totalorder %s207, %s210
    %p219 = scmp.eq.s32.totalorder %s18, 1
    %p220 = por %p218, %p219
    %p221 = scmp.ne.s32.totalorder %s210, %s211
    %p222 = scmp.eq.s32.totalorder %s18, 0
    %p223 = por %p221, %p222
    %p224 = scmp.ne.s32.totalorder %s210, %s211
    %p225 = scmp.eq.s32.totalorder %s19, 1
    %p226 = por %p224, %p225
    %p228 = scmp.ne.s32.totalorder %s211, %s227
    %p229 = scmp.eq.s32.totalorder %s19, 0
    %p230 = por %p228, %p229
    %p231 = scmp.le.s32.totalorder 1, %s13
    %p232 = scmp.lt.s32.totalorder %s13, 3
    %p233 = pnand %p231, %p232
    %p234 = pneg %p233
    // Predicated region
    $region9: #{upconv_forward.6} parent=5 // pred_check
      _
    $region10: #{upconv_forward.6} parent=5 // pred_check_branch
      %236 = sbr.rel (%p233) target = $region12
    $region11: #{upconv_forward.6} parent=5 // pred_region
      %s237 = ssub.s32 %s13, 1
      // Predicated region
      $region13: #{upconv_forward.6} parent=11 // pred_check
        %p238 = pneg %p146
      $region14: #{upconv_forward.6} parent=11 // pred_check_branch
        %240 = sbr.rel (%p238) target = $region16
      $region15: #{upconv_forward.6} parent=11 // pred_region
        _
      $region16: #{upconv_forward.6} parent=11 // pred_fallthru
        _
      // Predicated region
      $region17: #{upconv_forward.6} parent=11 // pred_check
        %p241 = pneg %p167
      $region18: #{upconv_forward.6} parent=11 // pred_check_branch
        %243 = sbr.rel (%p241) target = $region20
      $region19: #{upconv_forward.6} parent=11 // pred_region
        _
      $region20: #{upconv_forward.6} parent=11 // pred_fallthru
        _
    $region12: #{upconv_forward.6} parent=5 // pred_fallthru
      _
    %p244 = scmp.lt.s32.totalorder %s13, 2
    // Predicated region
    $region21: #{upconv_forward.6} parent=5 // pred_check
      %p245 = pneg %p244
    $region22: #{upconv_forward.6} parent=5 // pred_check_branch
      %247 = sbr.rel (%p245) target = $region24
    $region23: #{upconv_forward.6} parent=5 // pred_region
      // Predicated region
      $region25: #{upconv_forward.6} parent=23 // pred_check
        %p248 = pneg %p47
      $region26: #{upconv_forward.6} parent=23 // pred_check_branch
        %250 = sbr.rel (%p248) target = $region28
      $region27: #{upconv_forward.6} parent=23 // pred_region
        %s251 = smul.u32 16, %s21
        %p252 = scmp.lt.s32.totalorder %s20, 1
        %s253 = scalar_select %p252, %s20, 1
        %p254 = scmp.lt.s32.totalorder %s251, 15
        %s255 = scalar_select %p254, %s251, 15
        %s256 = smul.addr %s255, 2
        %s257 = smul.addr %s253, 32
        %s258 = sadd.s32 %s256, %s257
        %s259 = smul.addr %s258, 4
        %s260 = scalar_lea.vmem %s0, %s259
        %s261 = smul.u32 16, %s21
      $region28: #{upconv_forward.6} parent=23 // pred_fallthru
        _
      // Predicated region
      $region29: #{upconv_forward.6} parent=23 // pred_check
        %p262 = pneg %p83
      $region30: #{upconv_forward.6} parent=23 // pred_check_branch
        %264 = sbr.rel (%p262) target = $region32
      $region31: #{upconv_forward.6} parent=23 // pred_region
        %s265 = smul.u32 %s21, 16
        %s266 = ssub.s32 %s265, 1
        %p267 = scmp.gt.s32.totalorder %s266, 0
        %s268 = scalar_select %p267, %s266, 0
        %p269 = scmp.lt.s32.totalorder %s20, 1
        %s270 = scalar_select %p269, %s20, 1
        %p271 = scmp.lt.s32.totalorder %s268, 15
        %s272 = scalar_select %p271, %s268, 15
        %s273 = smul.addr %s272, 2
        %s274 = smul.addr %s270, 32
        %s275 = sadd.s32 %s273, %s274
        %s276 = smul.addr %s275, 4
        %s277 = scalar_lea.vmem %s1, %s276
        %s278 = smul.u32 %s21, 16
        %s279 = ssub.s32 %s278, 1
        %p280 = scmp.gt.s32.totalorder %s279, 0
        %s281 = scalar_select %p280, %s279, 0
      $region32: #{upconv_forward.6} parent=23 // pred_fallthru
        _
      // Predicated region
      $region33: #{upconv_forward.6} parent=23 // pred_check
        %p282 = pneg %p119
      $region34: #{upconv_forward.6} parent=23 // pred_check_branch
        %284 = sbr.rel (%p282) target = $region36
      $region35: #{upconv_forward.6} parent=23 // pred_region
        %s285 = smul.u32 %s21, 16
        %s286 = sadd.s32 %s285, 16
        %p287 = scmp.lt.s32.totalorder %s286, 15
        %s288 = scalar_select %p287, %s286, 15
        %p289 = scmp.lt.s32.totalorder %s20, 1
        %s290 = scalar_select %p289, %s20, 1
        %p291 = scmp.lt.s32.totalorder %s288, 15
        %s292 = scalar_select %p291, %s288, 15
        %s293 = smul.addr %s292, 2
        %s294 = smul.addr %s290, 32
        %s295 = sadd.s32 %s293, %s294
        %s296 = smul.addr %s295, 4
        %s297 = scalar_lea.vmem %s2, %s296
        %s298 = smul.u32 %s21, 16
        %s299 = sadd.s32 %s298, 16
        %p300 = scmp.lt.s32.totalorder %s299, 15
        %s301 = scalar_select %p300, %s299, 15
      $region36: #{upconv_forward.6} parent=23 // pred_fallthru
        _
    $region24: #{upconv_forward.6} parent=5 // pred_fallthru
      _
    %p302 = scmp.le.s32.totalorder 1, %s13
    %p303 = scmp.lt.s32.totalorder %s13, 3
    %p304 = pnand %p302, %p303
    %p305 = pneg %p304
    // Predicated region
    $region37: #{upconv_forward.6} parent=5 // pred_check
      _
    $region38: #{upconv_forward.6} parent=5 // pred_check_branch
      %307 = sbr.rel (%p304) target = $region40
    $region39: #{upconv_forward.6} parent=5 // pred_region
      %s308 = ssub.s32 %s13, 1
      %s309 = smul.u32 16, %s23
      %p310 = scmp.lt.s32.totalorder %s22, 1
      %s311 = scalar_select %p310, %s22, 1
      %p312 = scmp.lt.s32.totalorder %s309, 15
      %s313 = scalar_select %p312, %s309, 15
      %s314 = smul.addr %s313, 2
      %s315 = smul.addr %s311, 32
      %s316 = sadd.s32 %s314, %s315
      %s317 = smul.addr %s316, 4
      %s318 = scalar_lea.vmem %s0, %s317
      %p319 = pneg %p53
      %p320 = pneg %p50
      %s321 = smul.u32 %s23, 16
      %s322 = ssub.s32 %s321, 1
      %p323 = scmp.gt.s32.totalorder %s322, 0
      %s324 = scalar_select %p323, %s322, 0
      %p325 = scmp.lt.s32.totalorder %s22, 1
      %s326 = scalar_select %p325, %s22, 1
      %p327 = scmp.lt.s32.totalorder %s324, 15
      %s328 = scalar_select %p327, %s324, 15
      %s329 = smul.addr %s328, 2
      %s330 = smul.addr %s326, 32
      %s331 = sadd.s32 %s329, %s330
      %s332 = smul.addr %s331, 4
      %s333 = scalar_lea.vmem %s1, %s332
      %p334 = pneg %p89
      %p335 = pneg %p86
      %s336 = smul.u32 %s23, 16
      %s337 = sadd.s32 %s336, 16
      %p338 = scmp.lt.s32.totalorder %s337, 15
      %s339 = scalar_select %p338, %s337, 15
      %p340 = scmp.lt.s32.totalorder %s22, 1
      %s341 = scalar_select %p340, %s22, 1
      %p342 = scmp.lt.s32.totalorder %s339, 15
      %s343 = scalar_select %p342, %s339, 15
      %s344 = smul.addr %s343, 2
      %s345 = smul.addr %s341, 32
      %s346 = sadd.s32 %s344, %s345
      %s347 = smul.addr %s346, 4
      %s348 = scalar_lea.vmem %s2, %s347
      %p349 = pneg %p125
      %p350 = pneg %p122
      %p351 = pneg %p146
      %p352 = pneg %p143
      %p353 = pneg %p167
      %p354 = pneg %p164
      %p355 = pneg %p195
      %p356 = pneg %p192
      %s357 = smul.u32 16, %s23
      %p358 = scmp.lt.s32.totalorder %s22, 1
      %s359 = scalar_select %p358, %s22, 1
      %p360 = scmp.lt.s32.totalorder %s357, 15
      %s361 = scalar_select %p360, %s357, 15
      %s362 = smul.addr %s361, 2
      %s363 = smul.addr %s359, 32
      %s364 = sadd.s32 %s362, %s363
      %s365 = smul.addr %s364, 4
      %s366 = scalar_lea.vmem %s5, %s365
      %p367 = pneg %p223
      %p368 = pneg %p220
      %p369 = scmp.lt.s32.totalorder %s22, 1
      %s370 = scalar_select %p369, %s22, 1
      %p371 = scmp.lt.s32.totalorder %s23, 0
      %s372 = scalar_select %p371, %s23, 0
      %s373 = sadd.s32 %s372, %s370
      %s374 = smul.addr %s373, 2
      %s375 = scalar_lea.vmem %s6, %s374
      %s376 = smul.u32 16, %s23
      %p377 = scmp.lt.s32.totalorder %s22, 1
      %s378 = scalar_select %p377, %s22, 1
      %p379 = scmp.lt.s32.totalorder %s376, 15
      %s380 = scalar_select %p379, %s376, 15
      %s381 = smul.addr %s380, 2
      %s382 = smul.addr %s378, 32
      %s383 = sadd.s32 %s381, %s382
      %s384 = smul.addr %s383, 4
      %s385 = scalar_lea.vmem %s0, %s384
      %s386 = smul.u32 16, %s23
      %s387 = smul.u32 %s23, 16
      %s388 = ssub.s32 %s387, 1
      %p389 = scmp.gt.s32.totalorder %s388, 0
      %s390 = scalar_select %p389, %s388, 0
      %p391 = scmp.lt.s32.totalorder %s22, 1
      %s392 = scalar_select %p391, %s22, 1
      %p393 = scmp.lt.s32.totalorder %s390, 15
      %s394 = scalar_select %p393, %s390, 15
      %s395 = smul.addr %s394, 2
      %s396 = smul.addr %s392, 32
      %s397 = sadd.s32 %s395, %s396
      %s398 = smul.addr %s397, 4
      %s399 = scalar_lea.vmem %s1, %s398
      %s400 = smul.u32 %s23, 16
      %s401 = ssub.s32 %s400, 1
      %p402 = scmp.gt.s32.totalorder %s401, 0
      %s403 = scalar_select %p402, %s401, 0
      %s404 = smul.u32 %s23, 16
      %s405 = sadd.s32 %s404, 16
      %p406 = scmp.lt.s32.totalorder %s405, 15
      %s407 = scalar_select %p406, %s405, 15
      %p408 = scmp.lt.s32.totalorder %s22, 1
      %s409 = scalar_select %p408, %s22, 1
      %p410 = scmp.lt.s32.totalorder %s407, 15
      %s411 = scalar_select %p410, %s407, 15
      %s412 = smul.addr %s411, 2
      %s413 = smul.addr %s409, 32
      %s414 = sadd.s32 %s412, %s413
      %s415 = smul.addr %s414, 4
      %s416 = scalar_lea.vmem %s2, %s415
      %s417 = smul.u32 %s23, 16
      %s418 = sadd.s32 %s417, 16
      %p419 = scmp.lt.s32.totalorder %s418, 15
      %s420 = scalar_select %p419, %s418, 15
      %s421 = smul.u32 16, %s23
      %p422 = scmp.lt.s32.totalorder %s22, 1
      %s423 = scalar_select %p422, %s22, 1
      %p424 = scmp.lt.s32.totalorder %s421, 15
      %s425 = scalar_select %p424, %s421, 15
      %s426 = smul.addr %s425, 2
      %s427 = smul.addr %s423, 32
      %s428 = sadd.s32 %s426, %s427
      %s429 = smul.addr %s428, 4
      %s430 = scalar_lea.vmem %s5, %s429
      %s431 = smul.u32 16, %s23
      %p432 = scmp.lt.s32.totalorder %s22, 1
      %s433 = scalar_select %p432, %s22, 1
      %p434 = scmp.lt.s32.totalorder %s23, 0
      %s435 = scalar_select %p434, %s23, 0
      %s436 = sadd.s32 %s435, %s433
      %s437 = smul.addr %s436, 2
      %s438 = scalar_lea.vmem %s6, %s437
      %v440 = vld [vmem:[%s385] sm:$0xf]
      %v441 = vld [vmem:[%s385 + $0x4] sm:$0xf]
      %v442 = vld [vmem:[%s385 + $0x8] sm:$0xf]
      %v443 = vld [vmem:[%s385 + $0xc] sm:$0xf]
      %v444 = vld [vmem:[%s385 + $0x10] sm:$0xf]
      %v445 = vld [vmem:[%s385 + $0x14] sm:$0xf]
      %v446 = vld [vmem:[%s385 + $0x18] sm:$0xf]
      %v447 = vld [vmem:[%s385 + $0x1c] sm:$0xf]
      %v448 = vld [vmem:[%s385 + $0x20] sm:$0xf]
      %v449 = vld [vmem:[%s385 + $0x24] sm:$0xf]
      %v450 = vld [vmem:[%s385 + $0x28] sm:$0xf]
      %v451 = vld [vmem:[%s385 + $0x2c] sm:$0xf]
      %v452 = vld [vmem:[%s385 + $0x30] sm:$0xf]
      %v453 = vld [vmem:[%s385 + $0x34] sm:$0xf]
      %v454 = vld [vmem:[%s385 + $0x38] sm:$0xf]
      %v455 = vld [vmem:[%s385 + $0x3c] sm:$0xf]
      %v456 = vld [vmem:[%s385 + $0x40] sm:$0xf]
      %v457 = vld [vmem:[%s385 + $0x44] sm:$0xf]
      %v458 = vld [vmem:[%s385 + $0x48] sm:$0xf]
      %v459 = vld [vmem:[%s385 + $0x4c] sm:$0xf]
      %v460 = vld [vmem:[%s385 + $0x50] sm:$0xf]
      %v461 = vld [vmem:[%s385 + $0x54] sm:$0xf]
      %v462 = vld [vmem:[%s385 + $0x58] sm:$0xf]
      %v463 = vld [vmem:[%s385 + $0x5c] sm:$0xf]
      %v464 = vld [vmem:[%s385 + $0x60] sm:$0xf]
      %v465 = vld [vmem:[%s385 + $0x64] sm:$0xf]
      %v466 = vld [vmem:[%s385 + $0x68] sm:$0xf]
      %v467 = vld [vmem:[%s385 + $0x6c] sm:$0xf]
      %v468 = vld [vmem:[%s385 + $0x70] sm:$0xf]
      %v469 = vld [vmem:[%s385 + $0x74] sm:$0xf]
      %v470 = vld [vmem:[%s385 + $0x78] sm:$0xf]
      %v471 = vld [vmem:[%s385 + $0x7c] sm:$0xf]
      %v472 = vld [vmem:[%s399] sm:$0xf]
      %v473 = vld [vmem:[%s399 + $0x4] sm:$0xf]
      %v474 = vld [vmem:[%s416] sm:$0xf]
      %v475 = vld [vmem:[%s416 + $0x4] sm:$0xf]
      %v512 = vunpack.c.l.b16 %v472
      %v513 = vunpack.c.l.b16 %v473
      %v514 = vunpack.c.l.b16 %v440
      %v515 = vunpack.c.l.b16 %v441
      %v516 = vunpack.c.l.b16 %v442
      %v517 = vunpack.c.l.b16 %v443
      %v518 = vunpack.c.l.b16 %v444
      %v519 = vunpack.c.l.b16 %v445
      %v520 = vunpack.c.l.b16 %v446
      %v521 = vunpack.c.l.b16 %v447
      %v522 = vunpack.c.l.b16 %v448
      %v523 = vunpack.c.l.b16 %v449
      %v524 = vunpack.c.l.b16 %v450
      %v525 = vunpack.c.l.b16 %v451
      %v526 = vunpack.c.l.b16 %v452
      %v527 = vunpack.c.l.b16 %v453
      %v528 = vunpack.c.l.b16 %v454
      %v529 = vunpack.c.l.b16 %v455
      %v530 = vunpack.c.l.b16 %v456
      %v531 = vunpack.c.l.b16 %v457
      %v532 = vunpack.c.l.b16 %v458
      %v533 = vunpack.c.l.b16 %v459
      %v534 = vunpack.c.l.b16 %v460
      %v535 = vunpack.c.l.b16 %v461
      %v536 = vunpack.c.l.b16 %v462
      %v537 = vunpack.c.l.b16 %v463
      %v538 = vunpack.c.l.b16 %v464
      %v539 = vunpack.c.l.b16 %v465
      %v540 = vunpack.c.l.b16 %v466
      %v541 = vunpack.c.l.b16 %v467
      %v542 = vunpack.c.l.b16 %v468
      %v543 = vunpack.c.l.b16 %v469
      %v544 = vunpack.c.l.b16 %v470
      %v545 = vunpack.c.l.b16 %v471
      %v546 = vunpack.c.l.b16 %v474
      %v547 = vunpack.c.l.b16 %v475
      %v548 = vpack.c.b16 %v513, %v512
      %v549 = vpack.c.b16 %v515, %v514
      %v550 = vpack.c.b16 %v517, %v516
      %v551 = vpack.c.b16 %v519, %v518
      %v552 = vpack.c.b16 %v521, %v520
      %v553 = vpack.c.b16 %v523, %v522
      %v554 = vpack.c.b16 %v525, %v524
      %v555 = vpack.c.b16 %v527, %v526
      %v556 = vpack.c.b16 %v529, %v528
      %v557 = vpack.c.b16 %v531, %v530
      %v558 = vpack.c.b16 %v533, %v532
      %v559 = vpack.c.b16 %v535, %v534
      %v560 = vpack.c.b16 %v537, %v536
      %v561 = vpack.c.b16 %v539, %v538
      %v562 = vpack.c.b16 %v541, %v540
      %v563 = vpack.c.b16 %v543, %v542
      %v564 = vpack.c.b16 %v545, %v544
      %v565 = vpack.c.b16 %v547, %v546
      %v567 = vshrl.u32 %v548, 16
      %v569 = vrot.slane %v567, 7
      %v570 = vshll.u32 %v548, 16
      %v572 = vor.u32 %v569, %v570
      %v574 = vshrl.u32 %v549, 16
      %v576 = vrot.slane %v574, 7
      %v577 = vshll.u32 %v549, 16
      %v579 = vor.u32 %v576, %v577
      %v581 = vshrl.u32 %v550, 16
      %v583 = vrot.slane %v581, 7
      %v584 = vshll.u32 %v550, 16
      %v586 = vor.u32 %v583, %v584
      %v588 = vshrl.u32 %v551, 16
      %v590 = vrot.slane %v588, 7
      %v591 = vshll.u32 %v551, 16
      %v593 = vor.u32 %v590, %v591
      %v595 = vshrl.u32 %v552, 16
      %v597 = vrot.slane %v595, 7
      %v598 = vshll.u32 %v552, 16
      %v600 = vor.u32 %v597, %v598
      %v602 = vshrl.u32 %v553, 16
      %v604 = vrot.slane %v602, 7
      %v605 = vshll.u32 %v553, 16
      %v607 = vor.u32 %v604, %v605
      %v609 = vshrl.u32 %v554, 16
      %v611 = vrot.slane %v609, 7
      %v612 = vshll.u32 %v554, 16
      %v614 = vor.u32 %v611, %v612
      %v616 = vshrl.u32 %v555, 16
      %v618 = vrot.slane %v616, 7
      %v619 = vshll.u32 %v555, 16
      %v621 = vor.u32 %v618, %v619
      %v623 = vshrl.u32 %v556, 16
      %v625 = vrot.slane %v623, 7
      %v626 = vshll.u32 %v556, 16
      %v628 = vor.u32 %v625, %v626
      %v630 = vshrl.u32 %v557, 16
      %v632 = vrot.slane %v630, 7
      %v633 = vshll.u32 %v557, 16
      %v635 = vor.u32 %v632, %v633
      %v637 = vshrl.u32 %v558, 16
      %v639 = vrot.slane %v637, 7
      %v640 = vshll.u32 %v558, 16
      %v642 = vor.u32 %v639, %v640
      %v644 = vshrl.u32 %v559, 16
      %v646 = vrot.slane %v644, 7
      %v647 = vshll.u32 %v559, 16
      %v649 = vor.u32 %v646, %v647
      %v651 = vshrl.u32 %v560, 16
      %v653 = vrot.slane %v651, 7
      %v654 = vshll.u32 %v560, 16
      %v656 = vor.u32 %v653, %v654
      %v658 = vshrl.u32 %v561, 16
      %v660 = vrot.slane %v658, 7
      %v661 = vshll.u32 %v561, 16
      %v663 = vor.u32 %v660, %v661
      %v665 = vshrl.u32 %v562, 16
      %v667 = vrot.slane %v665, 7
      %v668 = vshll.u32 %v562, 16
      %v670 = vor.u32 %v667, %v668
      %v672 = vshrl.u32 %v563, 16
      %v674 = vrot.slane %v672, 7
      %v675 = vshll.u32 %v563, 16
      %v677 = vor.u32 %v674, %v675
      %v679 = vshrl.u32 %v564, 16
      %v681 = vrot.slane %v679, 7
      %v682 = vshll.u32 %v564, 16
      %v684 = vor.u32 %v681, %v682
      %v686 = vshrl.u32 %v565, 16
      %v688 = vrot.slane %v686, 7
      %v689 = vshll.u32 %v565, 16
      %v691 = vor.u32 %v688, %v689
      %v728 = vpack.c.b16 %v513, %v513
      %v729 = vpack.c.b16 %v515, %v515
      %v730 = vpack.c.b16 %v517, %v517
      %v731 = vpack.c.b16 %v519, %v519
      %v732 = vpack.c.b16 %v521, %v521
      %v733 = vpack.c.b16 %v523, %v523
      %v734 = vpack.c.b16 %v525, %v525
      %v735 = vpack.c.b16 %v527, %v527
      %v736 = vpack.c.b16 %v529, %v529
      %v737 = vpack.c.b16 %v531, %v531
      %v738 = vpack.c.b16 %v533, %v533
      %v739 = vpack.c.b16 %v535, %v535
      %v740 = vpack.c.b16 %v537, %v537
      %v741 = vpack.c.b16 %v539, %v539
      %v742 = vpack.c.b16 %v541, %v541
      %v743 = vpack.c.b16 %v543, %v543
      %v744 = vpack.c.b16 %v545, %v545
      %v745 = vpack.c.b16 %v547, %v547
      %v746 = vrot.slane %v728, 3
      %v747 = vrot.slane %v729, 3
      %v748 = vrot.slane %v730, 3
      %v749 = vrot.slane %v731, 3
      %v750 = vrot.slane %v732, 3
      %v751 = vrot.slane %v733, 3
      %v752 = vrot.slane %v734, 3
      %v753 = vrot.slane %v735, 3
      %v754 = vrot.slane %v736, 3
      %v755 = vrot.slane %v737, 3
      %v756 = vrot.slane %v738, 3
      %v757 = vrot.slane %v739, 3
      %v758 = vrot.slane %v740, 3
      %v759 = vrot.slane %v741, 3
      %v760 = vrot.slane %v742, 3
      %v761 = vrot.slane %v743, 3
      %v762 = vrot.slane %v744, 3
      %v763 = vrot.slane %v745, 3
      %vm782 = vcmask 1040384
      %vm783 = vsmask.f32 256
      %vm784 = vmand %vm782, %vm783
      %v785 = vsel %vm784, %v472, %v572
      %v786 = vsel %vm784, %v440, %v579
      %v787 = vsel %vm784, %v442, %v586
      %v788 = vsel %vm784, %v444, %v593
      %v789 = vsel %vm784, %v446, %v600
      %v790 = vsel %vm784, %v448, %v607
      %v791 = vsel %vm784, %v450, %v614
      %v792 = vsel %vm784, %v452, %v621
      %v793 = vsel %vm784, %v454, %v628
      %v794 = vsel %vm784, %v456, %v635
      %v795 = vsel %vm784, %v458, %v642
      %v796 = vsel %vm784, %v460, %v649
      %v797 = vsel %vm784, %v462, %v656
      %v798 = vsel %vm784, %v464, %v663
      %v799 = vsel %vm784, %v466, %v670
      %v800 = vsel %vm784, %v468, %v677
      %v801 = vsel %vm784, %v470, %v684
      %v802 = vsel %vm784, %v474, %v691
      %v803 = vsel %vm784, %v569, %v746
      %v804 = vsel %vm784, %v576, %v747
      %v805 = vsel %vm784, %v583, %v748
      %v806 = vsel %vm784, %v590, %v749
      %v807 = vsel %vm784, %v597, %v750
      %v808 = vsel %vm784, %v604, %v751
      %v809 = vsel %vm784, %v611, %v752
      %v810 = vsel %vm784, %v618, %v753
      %v811 = vsel %vm784, %v625, %v754
      %v812 = vsel %vm784, %v632, %v755
      %v813 = vsel %vm784, %v639, %v756
      %v814 = vsel %vm784, %v646, %v757
      %v815 = vsel %vm784, %v653, %v758
      %v816 = vsel %vm784, %v660, %v759
      %v817 = vsel %vm784, %v667, %v760
      %v818 = vsel %vm784, %v674, %v761
      %v819 = vsel %vm784, %v681, %v762
      %v820 = vsel %vm784, %v688, %v763
      %vm821 = vsmask.f32 7424
      %v823 = vshrl.u32 %v785, 16
      %v825 = vshll.u32 %v785, 16
      %v827 = vrot.slane %v825, 1
      %v828 = vor.u32 %v823, %v827
      %v830 = vshll.u32 %v803, 16
      %v832 = vrot.slane %v830, 1
      %v833 = vsel %vm821, %v828, %v832
      %v835 = vshrl.u32 %v786, 16
      %v837 = vshll.u32 %v786, 16
      %v839 = vrot.slane %v837, 1
      %v840 = vor.u32 %v835, %v839
      %v842 = vshll.u32 %v804, 16
      %v844 = vrot.slane %v842, 1
      %v845 = vsel %vm821, %v840, %v844
      %v847 = vshrl.u32 %v787, 16
      %v849 = vshll.u32 %v787, 16
      %v851 = vrot.slane %v849, 1
      %v852 = vor.u32 %v847, %v851
      %v854 = vshll.u32 %v805, 16
      %v856 = vrot.slane %v854, 1
      %v857 = vsel %vm821, %v852, %v856
      %v859 = vshrl.u32 %v788, 16
      %v861 = vshll.u32 %v788, 16
      %v863 = vrot.slane %v861, 1
      %v864 = vor.u32 %v859, %v863
      %v866 = vshll.u32 %v806, 16
      %v868 = vrot.slane %v866, 1
      %v869 = vsel %vm821, %v864, %v868
      %v871 = vshrl.u32 %v789, 16
      %v873 = vshll.u32 %v789, 16
      %v875 = vrot.slane %v873, 1
      %v876 = vor.u32 %v871, %v875
      %v878 = vshll.u32 %v807, 16
      %v880 = vrot.slane %v878, 1
      %v881 = vsel %vm821, %v876, %v880
      %v883 = vshrl.u32 %v790, 16
      %v885 = vshll.u32 %v790, 16
      %v887 = vrot.slane %v885, 1
      %v888 = vor.u32 %v883, %v887
      %v890 = vshll.u32 %v808, 16
      %v892 = vrot.slane %v890, 1
      %v893 = vsel %vm821, %v888, %v892
      %v895 = vshrl.u32 %v791, 16
      %v897 = vshll.u32 %v791, 16
      %v899 = vrot.slane %v897, 1
      %v900 = vor.u32 %v895, %v899
      %v902 = vshll.u32 %v809, 16
      %v904 = vrot.slane %v902, 1
      %v905 = vsel %vm821, %v900, %v904
      %v907 = vshrl.u32 %v792, 16
      %v909 = vshll.u32 %v792, 16
      %v911 = vrot.slane %v909, 1
      %v912 = vor.u32 %v907, %v911
      %v914 = vshll.u32 %v810, 16
      %v916 = vrot.slane %v914, 1
      %v917 = vsel %vm821, %v912, %v916
      %v919 = vshrl.u32 %v793, 16
      %v921 = vshll.u32 %v793, 16
      %v923 = vrot.slane %v921, 1
      %v924 = vor.u32 %v919, %v923
      %v926 = vshll.u32 %v811, 16
      %v928 = vrot.slane %v926, 1
      %v929 = vsel %vm821, %v924, %v928
      %v931 = vshrl.u32 %v794, 16
      %v933 = vshll.u32 %v794, 16
      %v935 = vrot.slane %v933, 1
      %v936 = vor.u32 %v931, %v935
      %v938 = vshll.u32 %v812, 16
      %v940 = vrot.slane %v938, 1
      %v941 = vsel %vm821, %v936, %v940
      %v943 = vshrl.u32 %v795, 16
      %v945 = vshll.u32 %v795, 16
      %v947 = vrot.slane %v945, 1
      %v948 = vor.u32 %v943, %v947
      %v950 = vshll.u32 %v813, 16
      %v952 = vrot.slane %v950, 1
      %v953 = vsel %vm821, %v948, %v952
      %v955 = vshrl.u32 %v796, 16
      %v957 = vshll.u32 %v796, 16
      %v959 = vrot.slane %v957, 1
      %v960 = vor.u32 %v955, %v959
      %v962 = vshll.u32 %v814, 16
      %v964 = vrot.slane %v962, 1
      %v965 = vsel %vm821, %v960, %v964
      %v967 = vshrl.u32 %v797, 16
      %v969 = vshll.u32 %v797, 16
      %v971 = vrot.slane %v969, 1
      %v972 = vor.u32 %v967, %v971
      %v974 = vshll.u32 %v815, 16
      %v976 = vrot.slane %v974, 1
      %v977 = vsel %vm821, %v972, %v976
      %v979 = vshrl.u32 %v798, 16
      %v981 = vshll.u32 %v798, 16
      %v983 = vrot.slane %v981, 1
      %v984 = vor.u32 %v979, %v983
      %v986 = vshll.u32 %v816, 16
      %v988 = vrot.slane %v986, 1
      %v989 = vsel %vm821, %v984, %v988
      %v991 = vshrl.u32 %v799, 16
      %v993 = vshll.u32 %v799, 16
      %v995 = vrot.slane %v993, 1
      %v996 = vor.u32 %v991, %v995
      %v998 = vshll.u32 %v817, 16
      %v1000 = vrot.slane %v998, 1
      %v1001 = vsel %vm821, %v996, %v1000
      %v1003 = vshrl.u32 %v800, 16
      %v1005 = vshll.u32 %v800, 16
      %v1007 = vrot.slane %v1005, 1
      %v1008 = vor.u32 %v1003, %v1007
      %v1010 = vshll.u32 %v818, 16
      %v1012 = vrot.slane %v1010, 1
      %v1013 = vsel %vm821, %v1008, %v1012
      %vm1062 = vcmask 1046528
      %v1063 = vrot.slane %v785, 1
      %v1064 = vrot.slane %v803, 1
      %v1065 = vsel %vm1062, %v1063, %v1064
      %v1066 = vrot.slane %v786, 1
      %v1067 = vrot.slane %v804, 1
      %v1068 = vsel %vm1062, %v1066, %v1067
      %v1069 = vrot.slane %v787, 1
      %v1070 = vrot.slane %v805, 1
      %v1071 = vsel %vm1062, %v1069, %v1070
      %v1072 = vrot.slane %v788, 1
      %v1073 = vrot.slane %v806, 1
      %v1074 = vsel %vm1062, %v1072, %v1073
      %v1075 = vrot.slane %v789, 1
      %v1076 = vrot.slane %v807, 1
      %v1077 = vsel %vm1062, %v1075, %v1076
      %v1078 = vrot.slane %v790, 1
      %v1079 = vrot.slane %v808, 1
      %v1080 = vsel %vm1062, %v1078, %v1079
      %v1081 = vrot.slane %v791, 1
      %v1082 = vrot.slane %v809, 1
      %v1083 = vsel %vm1062, %v1081, %v1082
      %v1084 = vrot.slane %v792, 1
      %v1085 = vrot.slane %v810, 1
      %v1086 = vsel %vm1062, %v1084, %v1085
      %v1087 = vrot.slane %v793, 1
      %v1088 = vrot.slane %v811, 1
      %v1089 = vsel %vm1062, %v1087, %v1088
      %v1090 = vrot.slane %v794, 1
      %v1091 = vrot.slane %v812, 1
      %v1092 = vsel %vm1062, %v1090, %v1091
      %v1093 = vrot.slane %v795, 1
      %v1094 = vrot.slane %v813, 1
      %v1095 = vsel %vm1062, %v1093, %v1094
      %v1096 = vrot.slane %v796, 1
      %v1097 = vrot.slane %v814, 1
      %v1098 = vsel %vm1062, %v1096, %v1097
      %v1099 = vrot.slane %v797, 1
      %v1100 = vrot.slane %v815, 1
      %v1101 = vsel %vm1062, %v1099, %v1100
      %v1102 = vrot.slane %v798, 1
      %v1103 = vrot.slane %v816, 1
      %v1104 = vsel %vm1062, %v1102, %v1103
      %v1105 = vrot.slane %v799, 1
      %v1106 = vrot.slane %v817, 1
      %v1107 = vsel %vm1062, %v1105, %v1106
      %v1108 = vrot.slane %v800, 1
      %v1109 = vrot.slane %v818, 1
      %v1110 = vsel %vm1062, %v1108, %v1109
      %v1128 = vshrl.u32 %v801, 16
      %v1130 = vshll.u32 %v801, 16
      %v1132 = vrot.slane %v1130, 1
      %v1133 = vor.u32 %v1128, %v1132
      %v1135 = vshll.u32 %v819, 16
      %v1137 = vrot.slane %v1135, 1
      %v1138 = vsel %vm821, %v1133, %v1137
      %v1142 = vrot.slane %v801, 1
      %v1143 = vrot.slane %v819, 1
      %v1144 = vsel %vm1062, %v1142, %v1143
      %v1147 = vshrl.u32 %v802, 16
      %v1149 = vshll.u32 %v802, 16
      %v1151 = vrot.slane %v1149, 1
      %v1152 = vor.u32 %v1147, %v1151
      %v1154 = vshll.u32 %v820, 16
      %v1156 = vrot.slane %v1154, 1
      %v1157 = vsel %vm821, %v1152, %v1156
      %v1161 = vrot.slane %v802, 1
      %v1162 = vrot.slane %v820, 1
      %v1163 = vsel %vm1062, %v1161, %v1162
      %v1165 = vld [vmem:[%s3] sm:$0xf]
      %v1166 = vld [vmem:[%s3 + $0x4] sm:$0xf]
      %v1167 = vld [vmem:[%s3 + $0x8] sm:$0xf]
      %v1168 = vld [vmem:[%s3 + $0xc] sm:$0xf]
      %v1169 = vld [vmem:[%s3 + $0x10] sm:$0xf]
      %v1170 = vld [vmem:[%s3 + $0x14] sm:$0xf]
      %v1171 = vld [vmem:[%s3 + $0x18] sm:$0xf]
      %v1172 = vld [vmem:[%s3 + $0x1c] sm:$0xf]
      %v1173 = vld [vmem:[%s3 + $0x20] sm:$0xf]
      %v1174 = vld [vmem:[%s3 + $0x24] sm:$0xf]
      %v1175 = vld [vmem:[%s3 + $0x28] sm:$0xf]
      %v1176 = vld [vmem:[%s3 + $0x2c] sm:$0xf]
      %v1177 = vld [vmem:[%s3 + $0x30] sm:$0xf]
      %v1178 = vld [vmem:[%s3 + $0x34] sm:$0xf]
      %v1179 = vld [vmem:[%s3 + $0x38] sm:$0xf]
      %v1180 = vld [vmem:[%s3 + $0x3c] sm:$0xf]
      %v1181 = vld [vmem:[%s3 + $0x40] sm:$0xf]
      %v1182 = vld [vmem:[%s3 + $0x44] sm:$0xf]
      %v1183 = vld [vmem:[%s3 + $0x48] sm:$0xf]
      %v1184 = vld [vmem:[%s3 + $0x4c] sm:$0xf]
      %v1185 = vld [vmem:[%s3 + $0x50] sm:$0xf]
      %v1186 = vld [vmem:[%s3 + $0x54] sm:$0xf]
      %v1187 = vld [vmem:[%s3 + $0x58] sm:$0xf]
      %v1188 = vld [vmem:[%s3 + $0x5c] sm:$0xf]
      %v1189 = vld [vmem:[%s3 + $0x60] sm:$0xf]
      %v1190 = vld [vmem:[%s3 + $0x64] sm:$0xf]
      %v1191 = vld [vmem:[%s3 + $0x68] sm:$0xf]
      %v1192 = vld [vmem:[%s3 + $0x6c] sm:$0xf]
      %v1193 = vld [vmem:[%s3 + $0x70] sm:$0xf]
      %v1194 = vld [vmem:[%s3 + $0x74] sm:$0xf]
      %v1195 = vld [vmem:[%s3 + $0x78] sm:$0xf]
      %v1196 = vld [vmem:[%s3 + $0x7c] sm:$0xf]
      %v1197 = vld [vmem:[%s3 + $0x80] sm:$0xf]
      %v1198 = vld [vmem:[%s3 + $0x84] sm:$0xf]
      %v1199 = vld [vmem:[%s3 + $0x88] sm:$0xf]
      %v1200 = vld [vmem:[%s3 + $0x8c] sm:$0xf]
      %v1201 = vld [vmem:[%s3 + $0x90] sm:$0xf]
      %v1202 = vld [vmem:[%s3 + $0x94] sm:$0xf]
      %v1203 = vld [vmem:[%s3 + $0x98] sm:$0xf]
      %v1204 = vld [vmem:[%s3 + $0x9c] sm:$0xf]
      %v1205 = vld [vmem:[%s3 + $0xa0] sm:$0xf]
      %v1206 = vld [vmem:[%s3 + $0xa4] sm:$0xf]
      %v1207 = vld [vmem:[%s3 + $0xa8] sm:$0xf]
      %v1208 = vld [vmem:[%s3 + $0xac] sm:$0xf]
      %v1209 = vld [vmem:[%s3 + $0xb0] sm:$0xf]
      %v1210 = vld [vmem:[%s3 + $0xb4] sm:$0xf]
      %v1211 = vld [vmem:[%s3 + $0xb8] sm:$0xf]
      %v1212 = vld [vmem:[%s3 + $0xbc] sm:$0xf]
      %v1213 = vld [vmem:[%s3 + $0xc0] sm:$0xf]
      %v1214 = vld [vmem:[%s3 + $0xc4] sm:$0xf]
      %v1215 = vld [vmem:[%s3 + $0xc8] sm:$0xf]
      %v1216 = vld [vmem:[%s3 + $0xcc] sm:$0xf]
      %v1217 = vld [vmem:[%s3 + $0xd0] sm:$0xf]
      %v1218 = vld [vmem:[%s3 + $0xd4] sm:$0xf]
      %v1219 = vld [vmem:[%s3 + $0xd8] sm:$0xf]
      %v1220 = vld [vmem:[%s3 + $0xdc] sm:$0xf]
      %v1221 = vld [vmem:[%s3 + $0xe0] sm:$0xf]
      %v1222 = vld [vmem:[%s3 + $0xe4] sm:$0xf]
      %v1223 = vld [vmem:[%s3 + $0xe8] sm:$0xf]
      %v1224 = vld [vmem:[%s3 + $0xec] sm:$0xf]
      %v1225 = vld [vmem:[%s3 + $0xf0] sm:$0xf]
      %v1226 = vld [vmem:[%s3 + $0xf4] sm:$0xf]
      %v1227 = vld [vmem:[%s3 + $0xf8] sm:$0xf]
      %v1228 = vld [vmem:[%s3 + $0xfc] sm:$0xf]
      %v1229 = vld [vmem:[%s3 + $0x100] sm:$0xf]
      %v1230 = vld [vmem:[%s3 + $0x104] sm:$0xf]
      %v1231 = vld [vmem:[%s3 + $0x108] sm:$0xf]
      %v1232 = vld [vmem:[%s3 + $0x10c] sm:$0xf]
      %v1233 = vld [vmem:[%s3 + $0x110] sm:$0xf]
      %v1234 = vld [vmem:[%s3 + $0x114] sm:$0xf]
      %v1235 = vld [vmem:[%s3 + $0x118] sm:$0xf]
      %v1236 = vld [vmem:[%s3 + $0x11c] sm:$0xf]
      %v1237 = vld [vmem:[%s3 + $0x120] sm:$0xf]
      %v1238 = vld [vmem:[%s3 + $0x124] sm:$0xf]
      %v1239 = vld [vmem:[%s3 + $0x128] sm:$0xf]
      %v1240 = vld [vmem:[%s3 + $0x12c] sm:$0xf]
      %v1241 = vld [vmem:[%s3 + $0x130] sm:$0xf]
      %v1242 = vld [vmem:[%s3 + $0x134] sm:$0xf]
      %v1243 = vld [vmem:[%s3 + $0x138] sm:$0xf]
      %v1244 = vld [vmem:[%s3 + $0x13c] sm:$0xf]
      %v1245 = vld [vmem:[%s3 + $0x140] sm:$0xf]
      %v1246 = vld [vmem:[%s3 + $0x144] sm:$0xf]
      %v1247 = vld [vmem:[%s3 + $0x148] sm:$0xf]
      %v1248 = vld [vmem:[%s3 + $0x14c] sm:$0xf]
      %v1249 = vld [vmem:[%s3 + $0x150] sm:$0xf]
      %v1250 = vld [vmem:[%s3 + $0x154] sm:$0xf]
      %v1251 = vld [vmem:[%s3 + $0x158] sm:$0xf]
      %v1252 = vld [vmem:[%s3 + $0x15c] sm:$0xf]
      %v1253 = vld [vmem:[%s3 + $0x160] sm:$0xf]
      %v1254 = vld [vmem:[%s3 + $0x164] sm:$0xf]
      %v1255 = vld [vmem:[%s3 + $0x168] sm:$0xf]
      %v1256 = vld [vmem:[%s3 + $0x16c] sm:$0xf]
      %v1257 = vld [vmem:[%s3 + $0x170] sm:$0xf]
      %v1258 = vld [vmem:[%s3 + $0x174] sm:$0xf]
      %v1259 = vld [vmem:[%s3 + $0x178] sm:$0xf]
      %v1260 = vld [vmem:[%s3 + $0x17c] sm:$0xf]
      %v1261 = vld [vmem:[%s3 + $0x180] sm:$0xf]
      %v1262 = vld [vmem:[%s3 + $0x184] sm:$0xf]
      %v1263 = vld [vmem:[%s3 + $0x188] sm:$0xf]
      %v1264 = vld [vmem:[%s3 + $0x18c] sm:$0xf]
      %v1265 = vld [vmem:[%s3 + $0x190] sm:$0xf]
      %v1266 = vld [vmem:[%s3 + $0x194] sm:$0xf]
      %v1267 = vld [vmem:[%s3 + $0x198] sm:$0xf]
      %v1268 = vld [vmem:[%s3 + $0x19c] sm:$0xf]
      %v1269 = vld [vmem:[%s3 + $0x1a0] sm:$0xf]
      %v1270 = vld [vmem:[%s3 + $0x1a4] sm:$0xf]
      %v1271 = vld [vmem:[%s3 + $0x1a8] sm:$0xf]
      %v1272 = vld [vmem:[%s3 + $0x1ac] sm:$0xf]
      %v1273 = vld [vmem:[%s3 + $0x1b0] sm:$0xf]
      %v1274 = vld [vmem:[%s3 + $0x1b4] sm:$0xf]
      %v1275 = vld [vmem:[%s3 + $0x1b8] sm:$0xf]
      %v1276 = vld [vmem:[%s3 + $0x1bc] sm:$0xf]
      %v1277 = vld [vmem:[%s3 + $0x1c0] sm:$0xf]
      %v1278 = vld [vmem:[%s3 + $0x1c4] sm:$0xf]
      %v1279 = vld [vmem:[%s3 + $0x1c8] sm:$0xf]
      %v1280 = vld [vmem:[%s3 + $0x1cc] sm:$0xf]
      %v1281 = vld [vmem:[%s3 + $0x1d0] sm:$0xf]
      %v1282 = vld [vmem:[%s3 + $0x1d4] sm:$0xf]
      %v1283 = vld [vmem:[%s3 + $0x1d8] sm:$0xf]
      %v1284 = vld [vmem:[%s3 + $0x1dc] sm:$0xf]
      %v1285 = vld [vmem:[%s3 + $0x1e0] sm:$0xf]
      %v1286 = vld [vmem:[%s3 + $0x1e4] sm:$0xf]
      %v1287 = vld [vmem:[%s3 + $0x1e8] sm:$0xf]
      %v1288 = vld [vmem:[%s3 + $0x1ec] sm:$0xf]
      %v1289 = vld [vmem:[%s3 + $0x1f0] sm:$0xf]
      %v1290 = vld [vmem:[%s3 + $0x1f4] sm:$0xf]
      %v1291 = vld [vmem:[%s3 + $0x1f8] sm:$0xf]
      %v1292 = vld [vmem:[%s3 + $0x1fc] sm:$0xf]
      %v1293 = vld [vmem:[%s3 + $0x200] sm:$0xf]
      %v1294 = vld [vmem:[%s3 + $0x204] sm:$0xf]
      %v1295 = vld [vmem:[%s3 + $0x208] sm:$0xf]
      %v1296 = vld [vmem:[%s3 + $0x20c] sm:$0xf]
      %v1297 = vld [vmem:[%s3 + $0x210] sm:$0xf]
      %v1298 = vld [vmem:[%s3 + $0x214] sm:$0xf]
      %v1299 = vld [vmem:[%s3 + $0x218] sm:$0xf]
      %v1300 = vld [vmem:[%s3 + $0x21c] sm:$0xf]
      %v1301 = vld [vmem:[%s3 + $0x220] sm:$0xf]
      %v1302 = vld [vmem:[%s3 + $0x224] sm:$0xf]
      %v1303 = vld [vmem:[%s3 + $0x228] sm:$0xf]
      %v1304 = vld [vmem:[%s3 + $0x22c] sm:$0xf]
      %v1305 = vld [vmem:[%s3 + $0x230] sm:$0xf]
      %v1306 = vld [vmem:[%s3 + $0x234] sm:$0xf]
      %v1307 = vld [vmem:[%s3 + $0x238] sm:$0xf]
      %v1308 = vld [vmem:[%s3 + $0x23c] sm:$0xf]
      %v1309 = vld [vmem:[%s4] sm:$0x1]
      %v1311 = vlaneseq
      %v1312 = vshrl.u32 %v1311, 7
      %v1313 = vsub.s32 0, %v1312
      %v1314 = vrot.slane %v1309, %v1313
      %v1460 = vunpack.c.l.b16 %v1165
      %v1461 = vunpack.c.l.b16 %v1166
      %v1462 = vunpack.c.l.b16 %v1167
      %v1463 = vunpack.c.l.b16 %v1168
      %v1464 = vunpack.c.l.b16 %v1169
      %v1465 = vunpack.c.l.b16 %v1170
      %v1466 = vunpack.c.l.b16 %v1171
      %v1467 = vunpack.c.l.b16 %v1172
      %v1468 = vunpack.c.l.b16 %v1173
      %v1469 = vunpack.c.l.b16 %v1174
      %v1470 = vunpack.c.l.b16 %v1175
      %v1471 = vunpack.c.l.b16 %v1176
      %v1472 = vunpack.c.l.b16 %v1177
      %v1473 = vunpack.c.l.b16 %v1178
      %v1474 = vunpack.c.l.b16 %v1179
      %v1475 = vunpack.c.l.b16 %v1180
      %v1476 = vunpack.c.l.b16 %v1181
      %v1477 = vunpack.c.l.b16 %v1182
      %v1478 = vunpack.c.l.b16 %v1183
      %v1479 = vunpack.c.l.b16 %v1184
      %v1480 = vunpack.c.l.b16 %v1185
      %v1481 = vunpack.c.l.b16 %v1186
      %v1482 = vunpack.c.l.b16 %v1187
      %v1483 = vunpack.c.l.b16 %v1188
      %v1484 = vunpack.c.l.b16 %v1189
      %v1485 = vunpack.c.l.b16 %v1190
      %v1486 = vunpack.c.l.b16 %v1191
      %v1487 = vunpack.c.l.b16 %v1192
      %v1488 = vunpack.c.l.b16 %v1193
      %v1489 = vunpack.c.l.b16 %v1194
      %v1490 = vunpack.c.l.b16 %v1195
      %v1491 = vunpack.c.l.b16 %v1196
      %v1492 = vunpack.c.l.b16 %v1197
      %v1493 = vunpack.c.l.b16 %v1198
      %v1494 = vunpack.c.l.b16 %v1199
      %v1495 = vunpack.c.l.b16 %v1200
      %v1496 = vunpack.c.l.b16 %v1201
      %v1497 = vunpack.c.l.b16 %v1202
      %v1498 = vunpack.c.l.b16 %v1203
      %v1499 = vunpack.c.l.b16 %v1204
      %v1500 = vunpack.c.l.b16 %v1205
      %v1501 = vunpack.c.l.b16 %v1206
      %v1502 = vunpack.c.l.b16 %v1207
      %v1503 = vunpack.c.l.b16 %v1208
      %v1504 = vunpack.c.l.b16 %v1209
      %v1505 = vunpack.c.l.b16 %v1210
      %v1506 = vunpack.c.l.b16 %v1211
      %v1507 = vunpack.c.l.b16 %v1212
      %v1508 = vunpack.c.l.b16 %v1213
      %v1509 = vunpack.c.l.b16 %v1214
      %v1510 = vunpack.c.l.b16 %v1215
      %v1511 = vunpack.c.l.b16 %v1216
      %v1512 = vunpack.c.l.b16 %v1217
      %v1513 = vunpack.c.l.b16 %v1218
      %v1514 = vunpack.c.l.b16 %v1219
      %v1515 = vunpack.c.l.b16 %v1220
      %v1516 = vunpack.c.l.b16 %v1221
      %v1517 = vunpack.c.l.b16 %v1222
      %v1518 = vunpack.c.l.b16 %v1223
      %v1519 = vunpack.c.l.b16 %v1224
      %v1520 = vunpack.c.l.b16 %v1225
      %v1521 = vunpack.c.l.b16 %v1226
      %v1522 = vunpack.c.l.b16 %v1227
      %v1523 = vunpack.c.l.b16 %v1228
      %v1524 = vunpack.c.l.b16 %v1229
      %v1525 = vunpack.c.l.b16 %v1230
      %v1526 = vunpack.c.l.b16 %v1231
      %v1527 = vunpack.c.l.b16 %v1232
      %v1528 = vunpack.c.l.b16 %v1233
      %v1529 = vunpack.c.l.b16 %v1234
      %v1530 = vunpack.c.l.b16 %v1235
      %v1531 = vunpack.c.l.b16 %v1236
      %v1532 = vunpack.c.l.b16 %v1237
      %v1533 = vunpack.c.l.b16 %v1238
      %v1534 = vunpack.c.l.b16 %v1239
      %v1535 = vunpack.c.l.b16 %v1240
      %v1536 = vunpack.c.l.b16 %v1241
      %v1537 = vunpack.c.l.b16 %v1242
      %v1538 = vunpack.c.l.b16 %v1243
      %v1539 = vunpack.c.l.b16 %v1244
      %v1540 = vunpack.c.l.b16 %v1245
      %v1541 = vunpack.c.l.b16 %v1246
      %v1542 = vunpack.c.l.b16 %v1247
      %v1543 = vunpack.c.l.b16 %v1248
      %v1544 = vunpack.c.l.b16 %v1249
      %v1545 = vunpack.c.l.b16 %v1250
      %v1546 = vunpack.c.l.b16 %v1251
      %v1547 = vunpack.c.l.b16 %v1252
      %v1548 = vunpack.c.l.b16 %v1253
      %v1549 = vunpack.c.l.b16 %v1254
      %v1550 = vunpack.c.l.b16 %v1255
      %v1551 = vunpack.c.l.b16 %v1256
      %v1552 = vunpack.c.l.b16 %v1257
      %v1553 = vunpack.c.l.b16 %v1258
      %v1554 = vunpack.c.l.b16 %v1259
      %v1555 = vunpack.c.l.b16 %v1260
      %v1556 = vunpack.c.l.b16 %v1261
      %v1557 = vunpack.c.l.b16 %v1262
      %v1558 = vunpack.c.l.b16 %v1263
      %v1559 = vunpack.c.l.b16 %v1264
      %v1560 = vunpack.c.l.b16 %v1265
      %v1561 = vunpack.c.l.b16 %v1266
      %v1562 = vunpack.c.l.b16 %v1267
      %v1563 = vunpack.c.l.b16 %v1268
      %v1564 = vunpack.c.l.b16 %v1269
      %v1565 = vunpack.c.l.b16 %v1270
      %v1566 = vunpack.c.l.b16 %v1271
      %v1567 = vunpack.c.l.b16 %v1272
      %v1568 = vunpack.c.l.b16 %v1273
      %v1569 = vunpack.c.l.b16 %v1274
      %v1570 = vunpack.c.l.b16 %v1275
      %v1571 = vunpack.c.l.b16 %v1276
      %v1572 = vunpack.c.l.b16 %v1277
      %v1573 = vunpack.c.l.b16 %v1278
      %v1574 = vunpack.c.l.b16 %v1279
      %v1575 = vunpack.c.l.b16 %v1280
      %v1576 = vunpack.c.l.b16 %v1281
      %v1577 = vunpack.c.l.b16 %v1282
      %v1578 = vunpack.c.l.b16 %v1283
      %v1579 = vunpack.c.l.b16 %v1284
      %v1580 = vunpack.c.l.b16 %v1285
      %v1581 = vunpack.c.l.b16 %v1286
      %v1582 = vunpack.c.l.b16 %v1287
      %v1583 = vunpack.c.l.b16 %v1288
      %v1584 = vunpack.c.l.b16 %v1289
      %v1585 = vunpack.c.l.b16 %v1290
      %v1586 = vunpack.c.l.b16 %v1291
      %v1587 = vunpack.c.l.b16 %v1292
      %v1588 = vunpack.c.l.b16 %v1293
      %v1589 = vunpack.c.l.b16 %v1294
      %v1590 = vunpack.c.l.b16 %v1295
      %v1591 = vunpack.c.l.b16 %v1296
      %v1592 = vunpack.c.l.b16 %v1297
      %v1593 = vunpack.c.l.b16 %v1298
      %v1594 = vunpack.c.l.b16 %v1299
      %v1595 = vunpack.c.l.b16 %v1300
      %v1596 = vunpack.c.l.b16 %v1301
      %v1597 = vunpack.c.l.b16 %v1302
      %v1598 = vunpack.c.l.b16 %v1303
      %v1599 = vunpack.c.l.b16 %v1304
      %v1600 = vunpack.c.l.b16 %v1305
      %v1601 = vunpack.c.l.b16 %v1306
      %v1602 = vunpack.c.l.b16 %v1307
      %v1603 = vunpack.c.l.b16 %v1308
      %v1604 = vpack.c.b16 %v1461, %v1460
      %v1605 = vpack.c.b16 %v1463, %v1462
      %v1606 = vpack.c.b16 %v1465, %v1464
      %v1607 = vpack.c.b16 %v1467, %v1466
      %v1608 = vpack.c.b16 %v1469, %v1468
      %v1609 = vpack.c.b16 %v1471, %v1470
      %v1610 = vpack.c.b16 %v1473, %v1472
      %v1611 = vpack.c.b16 %v1475, %v1474
      %v1612 = vpack.c.b16 %v1477, %v1476
      %v1613 = vpack.c.b16 %v1479, %v1478
      %v1614 = vpack.c.b16 %v1481, %v1480
      %v1615 = vpack.c.b16 %v1483, %v1482
      %v1616 = vpack.c.b16 %v1485, %v1484
      %v1617 = vpack.c.b16 %v1487, %v1486
      %v1618 = vpack.c.b16 %v1489, %v1488
      %v1619 = vpack.c.b16 %v1491, %v1490
      %v1620 = vpack.c.b16 %v1493, %v1492
      %v1621 = vpack.c.b16 %v1495, %v1494
      %v1622 = vpack.c.b16 %v1497, %v1496
      %v1623 = vpack.c.b16 %v1499, %v1498
      %v1624 = vpack.c.b16 %v1501, %v1500
      %v1625 = vpack.c.b16 %v1503, %v1502
      %v1626 = vpack.c.b16 %v1505, %v1504
      %v1627 = vpack.c.b16 %v1507, %v1506
      %v1628 = vpack.c.b16 %v1509, %v1508
      %v1629 = vpack.c.b16 %v1511, %v1510
      %v1630 = vpack.c.b16 %v1513, %v1512
      %v1631 = vpack.c.b16 %v1515, %v1514
      %v1632 = vpack.c.b16 %v1517, %v1516
      %v1633 = vpack.c.b16 %v1519, %v1518
      %v1634 = vpack.c.b16 %v1521, %v1520
      %v1635 = vpack.c.b16 %v1523, %v1522
      %v1636 = vpack.c.b16 %v1525, %v1524
      %v1637 = vpack.c.b16 %v1527, %v1526
      %v1638 = vpack.c.b16 %v1529, %v1528
      %v1639 = vpack.c.b16 %v1531, %v1530
      %v1640 = vpack.c.b16 %v1533, %v1532
      %v1641 = vpack.c.b16 %v1535, %v1534
      %v1642 = vpack.c.b16 %v1537, %v1536
      %v1643 = vpack.c.b16 %v1539, %v1538
      %v1644 = vpack.c.b16 %v1541, %v1540
      %v1645 = vpack.c.b16 %v1543, %v1542
      %v1646 = vpack.c.b16 %v1545, %v1544
      %v1647 = vpack.c.b16 %v1547, %v1546
      %v1648 = vpack.c.b16 %v1549, %v1548
      %v1649 = vpack.c.b16 %v1551, %v1550
      %v1650 = vpack.c.b16 %v1553, %v1552
      %v1651 = vpack.c.b16 %v1555, %v1554
      %v1652 = vpack.c.b16 %v1557, %v1556
      %v1653 = vpack.c.b16 %v1559, %v1558
      %v1654 = vpack.c.b16 %v1561, %v1560
      %v1655 = vpack.c.b16 %v1563, %v1562
      %v1656 = vpack.c.b16 %v1565, %v1564
      %v1657 = vpack.c.b16 %v1567, %v1566
      %v1658 = vpack.c.b16 %v1569, %v1568
      %v1659 = vpack.c.b16 %v1571, %v1570
      %v1660 = vpack.c.b16 %v1573, %v1572
      %v1661 = vpack.c.b16 %v1575, %v1574
      %v1662 = vpack.c.b16 %v1577, %v1576
      %v1663 = vpack.c.b16 %v1579, %v1578
      %v1664 = vpack.c.b16 %v1581, %v1580
      %v1665 = vpack.c.b16 %v1583, %v1582
      %v1666 = vpack.c.b16 %v1585, %v1584
      %v1667 = vpack.c.b16 %v1587, %v1586
      %v1668 = vpack.c.b16 %v1589, %v1588
      %v1669 = vpack.c.b16 %v1591, %v1590
      %v1670 = vpack.c.b16 %v1593, %v1592
      %v1671 = vpack.c.b16 %v1595, %v1594
      %v1672 = vpack.c.b16 %v1597, %v1596
      %v1673 = vpack.c.b16 %v1599, %v1598
      %v1674 = vpack.c.b16 %v1601, %v1600
      %v1675 = vpack.c.b16 %v1603, %v1602
      %1748 = vmatprep.subr.bf16.mxu0 0
      %1749 = vmatpush1.bf16.msra.mxu0 %v1611
      %1750 = vmatprep.subr.bf16.mxu0 0
      %1751 = vmatpush1.bf16.msra.mxu0 %v1610
      %1752 = vmatprep.subr.bf16.mxu0 0
      %1753 = vmatpush1.bf16.msra.mxu0 %v1609
      %1754 = vmatprep.subr.bf16.mxu0 0
      %1755 = vmatpush1.bf16.msra.mxu0 %v1608
      %1756 = vmatprep.subr.bf16.mxu0 0
      %1757 = vmatpush1.bf16.msra.mxu0 %v1607
      %1758 = vmatprep.subr.bf16.mxu0 0
      %1759 = vmatpush1.bf16.msra.mxu0 %v1606
      %1760 = vmatprep.subr.bf16.mxu0 0
      %1761 = vmatpush1.bf16.msra.mxu0 %v1605
      %1762 = vmatprep.subr.bf16.mxu0 0
      %1763 = vmatpush1.bf16.msra.mxu0 %v1604
      %1764 = vmatprep.subr.bf16.mxu0 0
      %1765 = vmatpush2.bf16.msra.mxu0 %v1619
      %1766 = vmatprep.subr.bf16.mxu0 0
      %1767 = vmatpush2.bf16.msra.mxu0 %v1618
      %1768 = vmatprep.subr.bf16.mxu0 0
      %1769 = vmatpush2.bf16.msra.mxu0 %v1617
      %1770 = vmatprep.subr.bf16.mxu0 0
      %1771 = vmatpush2.bf16.msra.mxu0 %v1616
      %1772 = vmatprep.subr.bf16.mxu0 0
      %1773 = vmatpush2.bf16.msra.mxu0 %v1615
      %1774 = vmatprep.subr.bf16.mxu0 0
      %1775 = vmatpush2.bf16.msra.mxu0 %v1614
      %1776 = vmatprep.subr.bf16.mxu0 0
      %1777 = vmatpush2.bf16.msra.mxu0 %v1613
      %1778 = vmatprep.subr.bf16.mxu0 0
      %1779 = vmatpush2.bf16.msra.mxu0 %v1612
      %1780 = vmatprep.mubr.bf16.mxu0 %v833
      %1781 = vmatmul.mubr.bf16.gmra.mxu0 %v785
      %v1782 = vpop.f32.mrf.mxu0
      %v1783 = vadd.f32 %v1314, %v1782
      %v1784 = vpop.f32.mrf.mxu0
      %v1785 = vpop.f32.mrf.mxu0
      %v1786 = vadd.f32 %v1314, %v1785
      %v1787 = vpop.f32.mrf.mxu0
      %1788 = vmatprep.mubr.bf16.mxu0 %v845
      %1789 = vmatmul.mubr.bf16.gmra.mxu0 %v786
      %v1790 = vpop.f32.mrf.mxu0
      %v1791 = vadd.f32 %v1314, %v1790
      %v1792 = vpop.f32.mrf.mxu0
      %v1793 = vpop.f32.mrf.mxu0
      %v1794 = vadd.f32 %v1314, %v1793
      %v1795 = vpop.f32.mrf.mxu0
      %1796 = vmatprep.mubr.bf16.mxu0 %v857
      %1797 = vmatmul.mubr.bf16.gmra.mxu0 %v787
      %v1798 = vpop.f32.mrf.mxu0
      %v1799 = vadd.f32 %v1314, %v1798
      %v1800 = vpop.f32.mrf.mxu0
      %v1801 = vpop.f32.mrf.mxu0
      %v1802 = vadd.f32 %v1314, %v1801
      %v1803 = vpop.f32.mrf.mxu0
      %1804 = vmatprep.mubr.bf16.mxu0 %v869
      %1805 = vmatmul.mubr.bf16.gmra.mxu0 %v788
      %v1806 = vpop.f32.mrf.mxu0
      %v1807 = vadd.f32 %v1314, %v1806
      %v1808 = vpop.f32.mrf.mxu0
      %v1809 = vpop.f32.mrf.mxu0
      %v1810 = vadd.f32 %v1314, %v1809
      %v1811 = vpop.f32.mrf.mxu0
      %1812 = vmatprep.mubr.bf16.mxu0 %v881
      %1813 = vmatmul.mubr.bf16.gmra.mxu0 %v789
      %v1814 = vpop.f32.mrf.mxu0
      %v1815 = vadd.f32 %v1314, %v1814
      %v1816 = vpop.f32.mrf.mxu0
      %v1817 = vpop.f32.mrf.mxu0
      %v1818 = vadd.f32 %v1314, %v1817
      %v1819 = vpop.f32.mrf.mxu0
      %1820 = vmatprep.mubr.bf16.mxu0 %v893
      %1821 = vmatmul.mubr.bf16.gmra.mxu0 %v790
      %v1822 = vpop.f32.mrf.mxu0
      %v1823 = vadd.f32 %v1314, %v1822
      %v1824 = vpop.f32.mrf.mxu0
      %v1825 = vpop.f32.mrf.mxu0
      %v1826 = vadd.f32 %v1314, %v1825
      %v1827 = vpop.f32.mrf.mxu0
      %1828 = vmatprep.mubr.bf16.mxu0 %v905
      %1829 = vmatmul.mubr.bf16.gmra.mxu0 %v791
      %v1830 = vpop.f32.mrf.mxu0
      %v1831 = vadd.f32 %v1314, %v1830
      %v1832 = vpop.f32.mrf.mxu0
      %v1833 = vpop.f32.mrf.mxu0
      %v1834 = vadd.f32 %v1314, %v1833
      %v1835 = vpop.f32.mrf.mxu0
      %1836 = vmatprep.mubr.bf16.mxu0 %v917
      %1837 = vmatmul.mubr.bf16.gmra.mxu0 %v792
      %v1838 = vpop.f32.mrf.mxu0
      %v1839 = vadd.f32 %v1314, %v1838
      %v1840 = vpop.f32.mrf.mxu0
      %v1841 = vpop.f32.mrf.mxu0
      %v1842 = vadd.f32 %v1314, %v1841
      %v1843 = vpop.f32.mrf.mxu0
      %1844 = vmatprep.mubr.bf16.mxu0 %v929
      %1845 = vmatmul.mubr.bf16.gmra.mxu0 %v793
      %v1846 = vpop.f32.mrf.mxu0
      %v1847 = vadd.f32 %v1314, %v1846
      %v1848 = vpop.f32.mrf.mxu0
      %v1849 = vpop.f32.mrf.mxu0
      %v1850 = vadd.f32 %v1314, %v1849
      %v1851 = vpop.f32.mrf.mxu0
      %1852 = vmatprep.mubr.bf16.mxu0 %v941
      %1853 = vmatmul.mubr.bf16.gmra.mxu0 %v794
      %v1854 = vpop.f32.mrf.mxu0
      %v1855 = vadd.f32 %v1314, %v1854
      %v1856 = vpop.f32.mrf.mxu0
      %v1857 = vpop.f32.mrf.mxu0
      %v1858 = vadd.f32 %v1314, %v1857
      %v1859 = vpop.f32.mrf.mxu0
      %1860 = vmatprep.mubr.bf16.mxu0 %v953
      %1861 = vmatmul.mubr.bf16.gmra.mxu0 %v795
      %v1862 = vpop.f32.mrf.mxu0
      %v1863 = vadd.f32 %v1314, %v1862
      %v1864 = vpop.f32.mrf.mxu0
      %v1865 = vpop.f32.mrf.mxu0
      %v1866 = vadd.f32 %v1314, %v1865
      %v1867 = vpop.f32.mrf.mxu0
      %1868 = vmatprep.mubr.bf16.mxu0 %v965
      %1869 = vmatmul.mubr.bf16.gmra.mxu0 %v796
      %v1870 = vpop.f32.mrf.mxu0
      %v1871 = vadd.f32 %v1314, %v1870
      %v1872 = vpop.f32.mrf.mxu0
      %v1873 = vpop.f32.mrf.mxu0
      %v1874 = vadd.f32 %v1314, %v1873
      %v1875 = vpop.f32.mrf.mxu0
      %1876 = vmatprep.mubr.bf16.mxu0 %v977
      %1877 = vmatmul.mubr.bf16.gmra.mxu0 %v797
      %v1878 = vpop.f32.mrf.mxu0
      %v1879 = vadd.f32 %v1314, %v1878
      %v1880 = vpop.f32.mrf.mxu0
      %v1881 = vpop.f32.mrf.mxu0
      %v1882 = vadd.f32 %v1314, %v1881
      %v1883 = vpop.f32.mrf.mxu0
      %1884 = vmatprep.mubr.bf16.mxu0 %v989
      %1885 = vmatmul.mubr.bf16.gmra.mxu0 %v798
      %v1886 = vpop.f32.mrf.mxu0
      %v1887 = vadd.f32 %v1314, %v1886
      %v1888 = vpop.f32.mrf.mxu0
      %v1889 = vpop.f32.mrf.mxu0
      %v1890 = vadd.f32 %v1314, %v1889
      %v1891 = vpop.f32.mrf.mxu0
      %1892 = vmatprep.mubr.bf16.mxu0 %v1001
      %1893 = vmatmul.mubr.bf16.gmra.mxu0 %v799
      %v1894 = vpop.f32.mrf.mxu0
      %v1895 = vadd.f32 %v1314, %v1894
      %v1896 = vpop.f32.mrf.mxu0
      %v1897 = vpop.f32.mrf.mxu0
      %v1898 = vadd.f32 %v1314, %v1897
      %v1899 = vpop.f32.mrf.mxu0
      %1900 = vmatprep.mubr.bf16.mxu0 %v1013
      %1901 = vmatmul.mubr.bf16.gmra.mxu0 %v800
      %v1902 = vpop.f32.mrf.mxu0
      %v1903 = vadd.f32 %v1314, %v1902
      %v1904 = vpop.f32.mrf.mxu0
      %v1905 = vpop.f32.mrf.mxu0
      %v1906 = vadd.f32 %v1314, %v1905
      %v1907 = vpop.f32.mrf.mxu0
      %1908 = vdwg.mxu0
      %1909 = vmatprep.subr.bf16.mxu0 0
      %1910 = vmatpush1.bf16.msra.mxu0 %v1627
      %1911 = vmatprep.subr.bf16.mxu0 0
      %1912 = vmatpush1.bf16.msra.mxu0 %v1626
      %1913 = vmatprep.subr.bf16.mxu0 0
      %1914 = vmatpush1.bf16.msra.mxu0 %v1625
      %1915 = vmatprep.subr.bf16.mxu0 0
      %1916 = vmatpush1.bf16.msra.mxu0 %v1624
      %1917 = vmatprep.subr.bf16.mxu0 0
      %1918 = vmatpush1.bf16.msra.mxu0 %v1623
      %1919 = vmatprep.subr.bf16.mxu0 0
      %1920 = vmatpush1.bf16.msra.mxu0 %v1622
      %1921 = vmatprep.subr.bf16.mxu0 0
      %1922 = vmatpush1.bf16.msra.mxu0 %v1621
      %1923 = vmatprep.subr.bf16.mxu0 0
      %1924 = vmatpush1.bf16.msra.mxu0 %v1620
      %1925 = vmatprep.subr.bf16.mxu0 0
      %1926 = vmatpush2.bf16.msra.mxu0 %v1635
      %1927 = vmatprep.subr.bf16.mxu0 0
      %1928 = vmatpush2.bf16.msra.mxu0 %v1634
      %1929 = vmatprep.subr.bf16.mxu0 0
      %1930 = vmatpush2.bf16.msra.mxu0 %v1633
      %1931 = vmatprep.subr.bf16.mxu0 0
      %1932 = vmatpush2.bf16.msra.mxu0 %v1632
      %1933 = vmatprep.subr.bf16.mxu0 0
      %1934 = vmatpush2.bf16.msra.mxu0 %v1631
      %1935 = vmatprep.subr.bf16.mxu0 0
      %1936 = vmatpush2.bf16.msra.mxu0 %v1630
      %1937 = vmatprep.subr.bf16.mxu0 0
      %1938 = vmatpush2.bf16.msra.mxu0 %v1629
      %1939 = vmatprep.subr.bf16.mxu0 0
      %1940 = vmatpush2.bf16.msra.mxu0 %v1628
      %1941 = vmatprep.mubr.bf16.mxu0 %v786
      %1942 = vmatmul.mubr.bf16.gmra.mxu0 %v1065
      %v1943 = vpop.f32.mrf.mxu0
      %v1944 = vadd.f32 %v1783, %v1943
      %v1945 = vpop.f32.mrf.mxu0
      %v1946 = vpop.f32.mrf.mxu0
      %v1947 = vadd.f32 %v1786, %v1946
      %v1948 = vpop.f32.mrf.mxu0
      %1949 = vmatprep.mubr.bf16.mxu0 %v787
      %1950 = vmatmul.mubr.bf16.gmra.mxu0 %v1068
      %v1951 = vpop.f32.mrf.mxu0
      %v1952 = vadd.f32 %v1791, %v1951
      %v1953 = vpop.f32.mrf.mxu0
      %v1954 = vpop.f32.mrf.mxu0
      %v1955 = vadd.f32 %v1794, %v1954
      %v1956 = vpop.f32.mrf.mxu0
      %1957 = vmatprep.mubr.bf16.mxu0 %v788
      %1958 = vmatmul.mubr.bf16.gmra.mxu0 %v1071
      %v1959 = vpop.f32.mrf.mxu0
      %v1960 = vadd.f32 %v1799, %v1959
      %v1961 = vpop.f32.mrf.mxu0
      %v1962 = vpop.f32.mrf.mxu0
      %v1963 = vadd.f32 %v1802, %v1962
      %v1964 = vpop.f32.mrf.mxu0
      %1965 = vmatprep.mubr.bf16.mxu0 %v789
      %1966 = vmatmul.mubr.bf16.gmra.mxu0 %v1074
      %v1967 = vpop.f32.mrf.mxu0
      %v1968 = vadd.f32 %v1807, %v1967
      %v1969 = vpop.f32.mrf.mxu0
      %v1970 = vpop.f32.mrf.mxu0
      %v1971 = vadd.f32 %v1810, %v1970
      %v1972 = vpop.f32.mrf.mxu0
      %1973 = vmatprep.mubr.bf16.mxu0 %v790
      %1974 = vmatmul.mubr.bf16.gmra.mxu0 %v1077
      %v1975 = vpop.f32.mrf.mxu0
      %v1976 = vadd.f32 %v1815, %v1975
      %v1977 = vpop.f32.mrf.mxu0
      %v1978 = vpop.f32.mrf.mxu0
      %v1979 = vadd.f32 %v1818, %v1978
      %v1980 = vpop.f32.mrf.mxu0
      %1981 = vmatprep.mubr.bf16.mxu0 %v791
      %1982 = vmatmul.mubr.bf16.gmra.mxu0 %v1080
      %v1983 = vpop.f32.mrf.mxu0
      %v1984 = vadd.f32 %v1823, %v1983
      %v1985 = vpop.f32.mrf.mxu0
      %v1986 = vpop.f32.mrf.mxu0
      %v1987 = vadd.f32 %v1826, %v1986
      %v1988 = vpop.f32.mrf.mxu0
      %1989 = vmatprep.mubr.bf16.mxu0 %v792
      %1990 = vmatmul.mubr.bf16.gmra.mxu0 %v1083
      %v1991 = vpop.f32.mrf.mxu0
      %v1992 = vadd.f32 %v1831, %v1991
      %v1993 = vpop.f32.mrf.mxu0
      %v1994 = vpop.f32.mrf.mxu0
      %v1995 = vadd.f32 %v1834, %v1994
      %v1996 = vpop.f32.mrf.mxu0
      %1997 = vmatprep.mubr.bf16.mxu0 %v793
      %1998 = vmatmul.mubr.bf16.gmra.mxu0 %v1086
      %v1999 = vpop.f32.mrf.mxu0
      %v2000 = vadd.f32 %v1839, %v1999
      %v2001 = vpop.f32.mrf.mxu0
      %v2002 = vpop.f32.mrf.mxu0
      %v2003 = vadd.f32 %v1842, %v2002
      %v2004 = vpop.f32.mrf.mxu0
      %2005 = vmatprep.mubr.bf16.mxu0 %v794
      %2006 = vmatmul.mubr.bf16.gmra.mxu0 %v1089
      %v2007 = vpop.f32.mrf.mxu0
      %v2008 = vadd.f32 %v1847, %v2007
      %v2009 = vpop.f32.mrf.mxu0
      %v2010 = vpop.f32.mrf.mxu0
      %v2011 = vadd.f32 %v1850, %v2010
      %v2012 = vpop.f32.mrf.mxu0
      %2013 = vmatprep.mubr.bf16.mxu0 %v795
      %2014 = vmatmul.mubr.bf16.gmra.mxu0 %v1092
      %v2015 = vpop.f32.mrf.mxu0
      %v2016 = vadd.f32 %v1855, %v2015
      %v2017 = vpop.f32.mrf.mxu0
      %v2018 = vpop.f32.mrf.mxu0
      %v2019 = vadd.f32 %v1858, %v2018
      %v2020 = vpop.f32.mrf.mxu0
      %2021 = vmatprep.mubr.bf16.mxu0 %v796
      %2022 = vmatmul.mubr.bf16.gmra.mxu0 %v1095
      %v2023 = vpop.f32.mrf.mxu0
      %v2024 = vadd.f32 %v1863, %v2023
      %v2025 = vpop.f32.mrf.mxu0
      %v2026 = vpop.f32.mrf.mxu0
      %v2027 = vadd.f32 %v1866, %v2026
      %v2028 = vpop.f32.mrf.mxu0
      %2029 = vmatprep.mubr.bf16.mxu0 %v797
      %2030 = vmatmul.mubr.bf16.gmra.mxu0 %v1098
      %v2031 = vpop.f32.mrf.mxu0
      %v2032 = vadd.f32 %v1871, %v2031
      %v2033 = vpop.f32.mrf.mxu0
      %v2034 = vpop.f32.mrf.mxu0
      %v2035 = vadd.f32 %v1874, %v2034
      %v2036 = vpop.f32.mrf.mxu0
      %2037 = vmatprep.mubr.bf16.mxu0 %v798
      %2038 = vmatmul.mubr.bf16.gmra.mxu0 %v1101
      %v2039 = vpop.f32.mrf.mxu0
      %v2040 = vadd.f32 %v1879, %v2039
      %v2041 = vpop.f32.mrf.mxu0
      %v2042 = vpop.f32.mrf.mxu0
      %v2043 = vadd.f32 %v1882, %v2042
      %v2044 = vpop.f32.mrf.mxu0
      %2045 = vmatprep.mubr.bf16.mxu0 %v799
      %2046 = vmatmul.mubr.bf16.gmra.mxu0 %v1104
      %v2047 = vpop.f32.mrf.mxu0
      %v2048 = vadd.f32 %v1887, %v2047
      %v2049 = vpop.f32.mrf.mxu0
      %v2050 = vpop.f32.mrf.mxu0
      %v2051 = vadd.f32 %v1890, %v2050
      %v2052 = vpop.f32.mrf.mxu0
      %2053 = vmatprep.mubr.bf16.mxu0 %v800
      %2054 = vmatmul.mubr.bf16.gmra.mxu0 %v1107
      %v2055 = vpop.f32.mrf.mxu0
      %v2056 = vadd.f32 %v1895, %v2055
      %v2057 = vpop.f32.mrf.mxu0
      %v2058 = vpop.f32.mrf.mxu0
      %v2059 = vadd.f32 %v1898, %v2058
      %v2060 = vpop.f32.mrf.mxu0
      %2061 = vmatprep.mubr.bf16.mxu0 %v801
      %2062 = vmatmul.mubr.bf16.gmra.mxu0 %v1110
      %v2063 = vpop.f32.mrf.mxu0
      %v2064 = vadd.f32 %v1903, %v2063
      %v2065 = vpop.f32.mrf.mxu0
      %v2066 = vpop.f32.mrf.mxu0
      %v2067 = vadd.f32 %v1906, %v2066
      %v2068 = vpop.f32.mrf.mxu0
      %2069 = vdwg.mxu0
      %2070 = vmatprep.subr.bf16.mxu0 0
      %2071 = vmatpush1.bf16.msra.mxu0 %v1643
      %2072 = vmatprep.subr.bf16.mxu0 0
      %2073 = vmatpush1.bf16.msra.mxu0 %v1642
      %2074 = vmatprep.subr.bf16.mxu0 0
      %2075 = vmatpush1.bf16.msra.mxu0 %v1641
      %2076 = vmatprep.subr.bf16.mxu0 0
      %2077 = vmatpush1.bf16.msra.mxu0 %v1640
      %2078 = vmatprep.subr.bf16.mxu0 0
      %2079 = vmatpush1.bf16.msra.mxu0 %v1639
      %2080 = vmatprep.subr.bf16.mxu0 0
      %2081 = vmatpush1.bf16.msra.mxu0 %v1638
      %2082 = vmatprep.subr.bf16.mxu0 0
      %2083 = vmatpush1.bf16.msra.mxu0 %v1637
      %2084 = vmatprep.subr.bf16.mxu0 0
      %2085 = vmatpush1.bf16.msra.mxu0 %v1636
      %2086 = vmatprep.subr.bf16.mxu0 0
      %2087 = vmatpush2.bf16.msra.mxu0 %v1651
      %2088 = vmatprep.subr.bf16.mxu0 0
      %2089 = vmatpush2.bf16.msra.mxu0 %v1650
      %2090 = vmatprep.subr.bf16.mxu0 0
      %2091 = vmatpush2.bf16.msra.mxu0 %v1649
      %2092 = vmatprep.subr.bf16.mxu0 0
      %2093 = vmatpush2.bf16.msra.mxu0 %v1648
      %2094 = vmatprep.subr.bf16.mxu0 0
      %2095 = vmatpush2.bf16.msra.mxu0 %v1647
      %2096 = vmatprep.subr.bf16.mxu0 0
      %2097 = vmatpush2.bf16.msra.mxu0 %v1646
      %2098 = vmatprep.subr.bf16.mxu0 0
      %2099 = vmatpush2.bf16.msra.mxu0 %v1645
      %2100 = vmatprep.subr.bf16.mxu0 0
      %2101 = vmatpush2.bf16.msra.mxu0 %v1644
      %2102 = vmatprep.mubr.bf16.mxu0 %v1068
      %2103 = vmatmul.mubr.bf16.gmra.mxu0 %v845
      %v2104 = vpop.f32.mrf.mxu0
      %v2105 = vadd.f32 %v1944, %v2104
      %v2106 = vpop.f32.mrf.mxu0
      %v2107 = vpop.f32.mrf.mxu0
      %v2108 = vadd.f32 %v1947, %v2107
      %v2109 = vpop.f32.mrf.mxu0
      %2110 = vmatprep.mubr.bf16.mxu0 %v1071
      %2111 = vmatmul.mubr.bf16.gmra.mxu0 %v857
      %v2112 = vpop.f32.mrf.mxu0
      %v2113 = vadd.f32 %v1952, %v2112
      %v2114 = vpop.f32.mrf.mxu0
      %v2115 = vpop.f32.mrf.mxu0
      %v2116 = vadd.f32 %v1955, %v2115
      %v2117 = vpop.f32.mrf.mxu0
      %2118 = vmatprep.mubr.bf16.mxu0 %v1074
      %2119 = vmatmul.mubr.bf16.gmra.mxu0 %v869
      %v2120 = vpop.f32.mrf.mxu0
      %v2121 = vadd.f32 %v1960, %v2120
      %v2122 = vpop.f32.mrf.mxu0
      %v2123 = vpop.f32.mrf.mxu0
      %v2124 = vadd.f32 %v1963, %v2123
      %v2125 = vpop.f32.mrf.mxu0
      %2126 = vmatprep.mubr.bf16.mxu0 %v1077
      %2127 = vmatmul.mubr.bf16.gmra.mxu0 %v881
      %v2128 = vpop.f32.mrf.mxu0
      %v2129 = vadd.f32 %v1968, %v2128
      %v2130 = vpop.f32.mrf.mxu0
      %v2131 = vpop.f32.mrf.mxu0
      %v2132 = vadd.f32 %v1971, %v2131
      %v2133 = vpop.f32.mrf.mxu0
      %2134 = vmatprep.mubr.bf16.mxu0 %v1080
      %2135 = vmatmul.mubr.bf16.gmra.mxu0 %v893
      %v2136 = vpop.f32.mrf.mxu0
      %v2137 = vadd.f32 %v1976, %v2136
      %v2138 = vpop.f32.mrf.mxu0
      %v2139 = vpop.f32.mrf.mxu0
      %v2140 = vadd.f32 %v1979, %v2139
      %v2141 = vpop.f32.mrf.mxu0
      %2142 = vmatprep.mubr.bf16.mxu0 %v1083
      %2143 = vmatmul.mubr.bf16.gmra.mxu0 %v905
      %v2144 = vpop.f32.mrf.mxu0
      %v2145 = vadd.f32 %v1984, %v2144
      %v2146 = vpop.f32.mrf.mxu0
      %v2147 = vpop.f32.mrf.mxu0
      %v2148 = vadd.f32 %v1987, %v2147
      %v2149 = vpop.f32.mrf.mxu0
      %2150 = vmatprep.mubr.bf16.mxu0 %v1086
      %2151 = vmatmul.mubr.bf16.gmra.mxu0 %v917
      %v2152 = vpop.f32.mrf.mxu0
      %v2153 = vadd.f32 %v1992, %v2152
      %v2154 = vpop.f32.mrf.mxu0
      %v2155 = vpop.f32.mrf.mxu0
      %v2156 = vadd.f32 %v1995, %v2155
      %v2157 = vpop.f32.mrf.mxu0
      %2158 = vmatprep.mubr.bf16.mxu0 %v1089
      %2159 = vmatmul.mubr.bf16.gmra.mxu0 %v929
      %v2160 = vpop.f32.mrf.mxu0
      %v2161 = vadd.f32 %v2000, %v2160
      %v2162 = vpop.f32.mrf.mxu0
      %v2163 = vpop.f32.mrf.mxu0
      %v2164 = vadd.f32 %v2003, %v2163
      %v2165 = vpop.f32.mrf.mxu0
      %2166 = vmatprep.mubr.bf16.mxu0 %v1092
      %2167 = vmatmul.mubr.bf16.gmra.mxu0 %v941
      %v2168 = vpop.f32.mrf.mxu0
      %v2169 = vadd.f32 %v2008, %v2168
      %v2170 = vpop.f32.mrf.mxu0
      %v2171 = vpop.f32.mrf.mxu0
      %v2172 = vadd.f32 %v2011, %v2171
      %v2173 = vpop.f32.mrf.mxu0
      %2174 = vmatprep.mubr.bf16.mxu0 %v1095
      %2175 = vmatmul.mubr.bf16.gmra.mxu0 %v953
      %v2176 = vpop.f32.mrf.mxu0
      %v2177 = vadd.f32 %v2016, %v2176
      %v2178 = vpop.f32.mrf.mxu0
      %v2179 = vpop.f32.mrf.mxu0
      %v2180 = vadd.f32 %v2019, %v2179
      %v2181 = vpop.f32.mrf.mxu0
      %2182 = vmatprep.mubr.bf16.mxu0 %v1098
      %2183 = vmatmul.mubr.bf16.gmra.mxu0 %v965
      %v2184 = vpop.f32.mrf.mxu0
      %v2185 = vadd.f32 %v2024, %v2184
      %v2186 = vpop.f32.mrf.mxu0
      %v2187 = vpop.f32.mrf.mxu0
      %v2188 = vadd.f32 %v2027, %v2187
      %v2189 = vpop.f32.mrf.mxu0
      %2190 = vmatprep.mubr.bf16.mxu0 %v1101
      %2191 = vmatmul.mubr.bf16.gmra.mxu0 %v977
      %v2192 = vpop.f32.mrf.mxu0
      %v2193 = vadd.f32 %v2032, %v2192
      %v2194 = vpop.f32.mrf.mxu0
      %v2195 = vpop.f32.mrf.mxu0
      %v2196 = vadd.f32 %v2035, %v2195
      %v2197 = vpop.f32.mrf.mxu0
      %2198 = vmatprep.mubr.bf16.mxu0 %v1104
      %2199 = vmatmul.mubr.bf16.gmra.mxu0 %v989
      %v2200 = vpop.f32.mrf.mxu0
      %v2201 = vadd.f32 %v2040, %v2200
      %v2202 = vpop.f32.mrf.mxu0
      %v2203 = vpop.f32.mrf.mxu0
      %v2204 = vadd.f32 %v2043, %v2203
      %v2205 = vpop.f32.mrf.mxu0
      %2206 = vmatprep.mubr.bf16.mxu0 %v1107
      %2207 = vmatmul.mubr.bf16.gmra.mxu0 %v1001
      %v2208 = vpop.f32.mrf.mxu0
      %v2209 = vadd.f32 %v2048, %v2208
      %v2210 = vpop.f32.mrf.mxu0
      %v2211 = vpop.f32.mrf.mxu0
      %v2212 = vadd.f32 %v2051, %v2211
      %v2213 = vpop.f32.mrf.mxu0
      %2214 = vmatprep.mubr.bf16.mxu0 %v1110
      %2215 = vmatmul.mubr.bf16.gmra.mxu0 %v1013
      %v2216 = vpop.f32.mrf.mxu0
      %v2217 = vadd.f32 %v2056, %v2216
      %v2218 = vpop.f32.mrf.mxu0
      %v2219 = vpop.f32.mrf.mxu0
      %v2220 = vadd.f32 %v2059, %v2219
      %v2221 = vpop.f32.mrf.mxu0
      %2222 = vmatprep.mubr.bf16.mxu0 %v1144
      %2223 = vmatmul.mubr.bf16.gmra.mxu0 %v1138
      %v2224 = vpop.f32.mrf.mxu0
      %v2225 = vadd.f32 %v2064, %v2224
      %v2226 = vpop.f32.mrf.mxu0
      %v2227 = vpop.f32.mrf.mxu0
      %v2228 = vadd.f32 %v2067, %v2227
      %v2229 = vpop.f32.mrf.mxu0
      %2230 = vdwg.mxu0
      %2231 = vmatprep.subr.bf16.mxu0 0
      %2232 = vmatpush1.bf16.msra.mxu0 %v1659
      %2233 = vmatprep.subr.bf16.mxu0 0
      %2234 = vmatpush1.bf16.msra.mxu0 %v1658
      %2235 = vmatprep.subr.bf16.mxu0 0
      %2236 = vmatpush1.bf16.msra.mxu0 %v1657
      %2237 = vmatprep.subr.bf16.mxu0 0
      %2238 = vmatpush1.bf16.msra.mxu0 %v1656
      %2239 = vmatprep.subr.bf16.mxu0 0
      %2240 = vmatpush1.bf16.msra.mxu0 %v1655
      %2241 = vmatprep.subr.bf16.mxu0 0
      %2242 = vmatpush1.bf16.msra.mxu0 %v1654
      %2243 = vmatprep.subr.bf16.mxu0 0
      %2244 = vmatpush1.bf16.msra.mxu0 %v1653
      %2245 = vmatprep.subr.bf16.mxu0 0
      %2246 = vmatpush1.bf16.msra.mxu0 %v1652
      %2247 = vmatprep.subr.bf16.mxu0 0
      %2248 = vmatpush2.bf16.msra.mxu0 %v1667
      %2249 = vmatprep.subr.bf16.mxu0 0
      %2250 = vmatpush2.bf16.msra.mxu0 %v1666
      %2251 = vmatprep.subr.bf16.mxu0 0
      %2252 = vmatpush2.bf16.msra.mxu0 %v1665
      %2253 = vmatprep.subr.bf16.mxu0 0
      %2254 = vmatpush2.bf16.msra.mxu0 %v1664
      %2255 = vmatprep.subr.bf16.mxu0 0
      %2256 = vmatpush2.bf16.msra.mxu0 %v1663
      %2257 = vmatprep.subr.bf16.mxu0 0
      %2258 = vmatpush2.bf16.msra.mxu0 %v1662
      %2259 = vmatprep.subr.bf16.mxu0 0
      %2260 = vmatpush2.bf16.msra.mxu0 %v1661
      %2261 = vmatprep.subr.bf16.mxu0 0
      %2262 = vmatpush2.bf16.msra.mxu0 %v1660
      %2263 = vmatprep.mubr.bf16.mxu0 %v857
      %2264 = vmatmul.mubr.bf16.gmra.mxu0 %v787
      %v2265 = vpop.f32.mrf.mxu0
      %v2266 = vadd.f32 %v2105, %v2265
      %v2267 = vpop.f32.mrf.mxu0
      %v2268 = vpop.f32.mrf.mxu0
      %v2269 = vadd.f32 %v2108, %v2268
      %v2270 = vpop.f32.mrf.mxu0
      %2271 = vmatprep.mubr.bf16.mxu0 %v869
      %2272 = vmatmul.mubr.bf16.gmra.mxu0 %v788
      %v2273 = vpop.f32.mrf.mxu0
      %v2274 = vadd.f32 %v2113, %v2273
      %v2275 = vpop.f32.mrf.mxu0
      %v2276 = vpop.f32.mrf.mxu0
      %v2277 = vadd.f32 %v2116, %v2276
      %v2278 = vpop.f32.mrf.mxu0
      %2279 = vmatprep.mubr.bf16.mxu0 %v881
      %2280 = vmatmul.mubr.bf16.gmra.mxu0 %v789
      %v2281 = vpop.f32.mrf.mxu0
      %v2282 = vadd.f32 %v2121, %v2281
      %v2283 = vpop.f32.mrf.mxu0
      %v2284 = vpop.f32.mrf.mxu0
      %v2285 = vadd.f32 %v2124, %v2284
      %v2286 = vpop.f32.mrf.mxu0
      %2287 = vmatprep.mubr.bf16.mxu0 %v893
      %2288 = vmatmul.mubr.bf16.gmra.mxu0 %v790
      %v2289 = vpop.f32.mrf.mxu0
      %v2290 = vadd.f32 %v2129, %v2289
      %v2291 = vpop.f32.mrf.mxu0
      %v2292 = vpop.f32.mrf.mxu0
      %v2293 = vadd.f32 %v2132, %v2292
      %v2294 = vpop.f32.mrf.mxu0
      %2295 = vmatprep.mubr.bf16.mxu0 %v905
      %2296 = vmatmul.mubr.bf16.gmra.mxu0 %v791
      %v2297 = vpop.f32.mrf.mxu0
      %v2298 = vadd.f32 %v2137, %v2297
      %v2299 = vpop.f32.mrf.mxu0
      %v2300 = vpop.f32.mrf.mxu0
      %v2301 = vadd.f32 %v2140, %v2300
      %v2302 = vpop.f32.mrf.mxu0
      %2303 = vmatprep.mubr.bf16.mxu0 %v917
      %2304 = vmatmul.mubr.bf16.gmra.mxu0 %v792
      %v2305 = vpop.f32.mrf.mxu0
      %v2306 = vadd.f32 %v2145, %v2305
      %v2307 = vpop.f32.mrf.mxu0
      %v2308 = vpop.f32.mrf.mxu0
      %v2309 = vadd.f32 %v2148, %v2308
      %v2310 = vpop.f32.mrf.mxu0
      %2311 = vmatprep.mubr.bf16.mxu0 %v929
      %2312 = vmatmul.mubr.bf16.gmra.mxu0 %v793
      %v2313 = vpop.f32.mrf.mxu0
      %v2314 = vadd.f32 %v2153, %v2313
      %v2315 = vpop.f32.mrf.mxu0
      %v2316 = vpop.f32.mrf.mxu0
      %v2317 = vadd.f32 %v2156, %v2316
      %v2318 = vpop.f32.mrf.mxu0
      %2319 = vmatprep.mubr.bf16.mxu0 %v941
      %2320 = vmatmul.mubr.bf16.gmra.mxu0 %v794
      %v2321 = vpop.f32.mrf.mxu0
      %v2322 = vadd.f32 %v2161, %v2321
      %v2323 = vpop.f32.mrf.mxu0
      %v2324 = vpop.f32.mrf.mxu0
      %v2325 = vadd.f32 %v2164, %v2324
      %v2326 = vpop.f32.mrf.mxu0
      %2327 = vmatprep.mubr.bf16.mxu0 %v953
      %2328 = vmatmul.mubr.bf16.gmra.mxu0 %v795
      %v2329 = vpop.f32.mrf.mxu0
      %v2330 = vadd.f32 %v2169, %v2329
      %v2331 = vpop.f32.mrf.mxu0
      %v2332 = vpop.f32.mrf.mxu0
      %v2333 = vadd.f32 %v2172, %v2332
      %v2334 = vpop.f32.mrf.mxu0
      %2335 = vmatprep.mubr.bf16.mxu0 %v965
      %2336 = vmatmul.mubr.bf16.gmra.mxu0 %v796
      %v2337 = vpop.f32.mrf.mxu0
      %v2338 = vadd.f32 %v2177, %v2337
      %v2339 = vpop.f32.mrf.mxu0
      %v2340 = vpop.f32.mrf.mxu0
      %v2341 = vadd.f32 %v2180, %v2340
      %v2342 = vpop.f32.mrf.mxu0
      %2343 = vmatprep.mubr.bf16.mxu0 %v977
      %2344 = vmatmul.mubr.bf16.gmra.mxu0 %v797
      %v2345 = vpop.f32.mrf.mxu0
      %v2346 = vadd.f32 %v2185, %v2345
      %v2347 = vpop.f32.mrf.mxu0
      %v2348 = vpop.f32.mrf.mxu0
      %v2349 = vadd.f32 %v2188, %v2348
      %v2350 = vpop.f32.mrf.mxu0
      %2351 = vmatprep.mubr.bf16.mxu0 %v989
      %2352 = vmatmul.mubr.bf16.gmra.mxu0 %v798
      %v2353 = vpop.f32.mrf.mxu0
      %v2354 = vadd.f32 %v2193, %v2353
      %v2355 = vpop.f32.mrf.mxu0
      %v2356 = vpop.f32.mrf.mxu0
      %v2357 = vadd.f32 %v2196, %v2356
      %v2358 = vpop.f32.mrf.mxu0
      %2359 = vmatprep.mubr.bf16.mxu0 %v1001
      %2360 = vmatmul.mubr.bf16.gmra.mxu0 %v799
      %v2361 = vpop.f32.mrf.mxu0
      %v2362 = vadd.f32 %v2201, %v2361
      %v2363 = vpop.f32.mrf.mxu0
      %v2364 = vpop.f32.mrf.mxu0
      %v2365 = vadd.f32 %v2204, %v2364
      %v2366 = vpop.f32.mrf.mxu0
      %2367 = vmatprep.mubr.bf16.mxu0 %v1013
      %2368 = vmatmul.mubr.bf16.gmra.mxu0 %v800
      %v2369 = vpop.f32.mrf.mxu0
      %v2370 = vadd.f32 %v2209, %v2369
      %v2371 = vpop.f32.mrf.mxu0
      %v2372 = vpop.f32.mrf.mxu0
      %v2373 = vadd.f32 %v2212, %v2372
      %v2374 = vpop.f32.mrf.mxu0
      %2375 = vmatprep.mubr.bf16.mxu0 %v1138
      %2376 = vmatmul.mubr.bf16.gmra.mxu0 %v801
      %v2377 = vpop.f32.mrf.mxu0
      %v2378 = vadd.f32 %v2217, %v2377
      %v2379 = vpop.f32.mrf.mxu0
      %v2380 = vpop.f32.mrf.mxu0
      %v2381 = vadd.f32 %v2220, %v2380
      %v2382 = vpop.f32.mrf.mxu0
      %2383 = vmatprep.mubr.bf16.mxu0 %v1157
      %2384 = vmatmul.mubr.bf16.gmra.mxu0 %v802
      %v2385 = vpop.f32.mrf.mxu0
      %v2386 = vadd.f32 %v2225, %v2385
      %v2387 = vpop.f32.mrf.mxu0
      %v2388 = vpop.f32.mrf.mxu0
      %v2389 = vadd.f32 %v2228, %v2388
      %v2390 = vpop.f32.mrf.mxu0
      %2391 = vdwg.mxu0
      %2392 = vmatprep.subr.bf16.mxu0 0
      %2393 = vmatpush1.bf16.msra.mxu0 %v1675
      %2394 = vmatprep.subr.bf16.mxu0 0
      %2395 = vmatpush1.bf16.msra.mxu0 %v1674
      %2396 = vmatprep.subr.bf16.mxu0 0
      %2397 = vmatpush1.bf16.msra.mxu0 %v1673
      %2398 = vmatprep.subr.bf16.mxu0 0
      %2399 = vmatpush1.bf16.msra.mxu0 %v1672
      %2400 = vmatprep.subr.bf16.mxu0 0
      %2401 = vmatpush1.bf16.msra.mxu0 %v1671
      %2402 = vmatprep.subr.bf16.mxu0 0
      %2403 = vmatpush1.bf16.msra.mxu0 %v1670
      %2404 = vmatprep.subr.bf16.mxu0 0
      %2405 = vmatpush1.bf16.msra.mxu0 %v1669
      %2406 = vmatprep.subr.bf16.mxu0 0
      %2407 = vmatpush1.bf16.msra.mxu0 %v1668
      %2408 = vmatprep.subr.bf16.mxu0 0
      %2409 = vmatpush2.bf16.msra.mxu0 0
      %2410 = vmatprep.subr.bf16.mxu0 0
      %2411 = vmatpush2.bf16.msra.mxu0 0
      %2412 = vmatprep.subr.bf16.mxu0 0
      %2413 = vmatpush2.bf16.msra.mxu0 0
      %2414 = vmatprep.subr.bf16.mxu0 0
      %2415 = vmatpush2.bf16.msra.mxu0 0
      %2416 = vmatprep.subr.bf16.mxu0 0
      %2417 = vmatpush2.bf16.msra.mxu0 0
      %2418 = vmatprep.subr.bf16.mxu0 0
      %2419 = vmatpush2.bf16.msra.mxu0 0
      %2420 = vmatprep.subr.bf16.mxu0 0
      %2421 = vmatpush2.bf16.msra.mxu0 0
      %2422 = vmatprep.subr.bf16.mxu0 0
      %2423 = vmatpush2.bf16.msra.mxu0 0
      %2424 = vmatprep.mubr.bf16.mxu0 0
      %2425 = vmatmul.mubr.bf16.gmra.mxu0 %v1071
      %v2426 = vpop.f32.mrf.mxu0
      %v2427 = vadd.f32 %v2266, %v2426
      %v2428 = vpop.f32.mrf.mxu0
      %v2429 = vpop.f32.mrf.mxu0
      %v2430 = vadd.f32 %v2269, %v2429
      %v2431 = vpop.f32.mrf.mxu0
      %2432 = vmatprep.mubr.bf16.mxu0 0
      %2433 = vmatmul.mubr.bf16.gmra.mxu0 %v1074
      %v2434 = vpop.f32.mrf.mxu0
      %v2435 = vadd.f32 %v2274, %v2434
      %v2436 = vpop.f32.mrf.mxu0
      %v2437 = vpop.f32.mrf.mxu0
      %v2438 = vadd.f32 %v2277, %v2437
      %v2439 = vpop.f32.mrf.mxu0
      %2440 = vmatprep.mubr.bf16.mxu0 0
      %2441 = vmatmul.mubr.bf16.gmra.mxu0 %v1077
      %v2442 = vpop.f32.mrf.mxu0
      %v2443 = vadd.f32 %v2282, %v2442
      %v2444 = vpop.f32.mrf.mxu0
      %v2445 = vpop.f32.mrf.mxu0
      %v2446 = vadd.f32 %v2285, %v2445
      %v2447 = vpop.f32.mrf.mxu0
      %2448 = vmatprep.mubr.bf16.mxu0 0
      %2449 = vmatmul.mubr.bf16.gmra.mxu0 %v1080
      %v2450 = vpop.f32.mrf.mxu0
      %v2451 = vadd.f32 %v2290, %v2450
      %v2452 = vpop.f32.mrf.mxu0
      %v2453 = vpop.f32.mrf.mxu0
      %v2454 = vadd.f32 %v2293, %v2453
      %v2455 = vpop.f32.mrf.mxu0
      %2456 = vmatprep.mubr.bf16.mxu0 0
      %2457 = vmatmul.mubr.bf16.gmra.mxu0 %v1083
      %v2458 = vpop.f32.mrf.mxu0
      %v2459 = vadd.f32 %v2298, %v2458
      %v2460 = vpop.f32.mrf.mxu0
      %v2461 = vpop.f32.mrf.mxu0
      %v2462 = vadd.f32 %v2301, %v2461
      %v2463 = vpop.f32.mrf.mxu0
      %2464 = vmatprep.mubr.bf16.mxu0 0
      %2465 = vmatmul.mubr.bf16.gmra.mxu0 %v1086
      %v2466 = vpop.f32.mrf.mxu0
      %v2467 = vadd.f32 %v2306, %v2466
      %v2468 = vpop.f32.mrf.mxu0
      %v2469 = vpop.f32.mrf.mxu0
      %v2470 = vadd.f32 %v2309, %v2469
      %v2471 = vpop.f32.mrf.mxu0
      %2472 = vmatprep.mubr.bf16.mxu0 0
      %2473 = vmatmul.mubr.bf16.gmra.mxu0 %v1089
      %v2474 = vpop.f32.mrf.mxu0
      %v2475 = vadd.f32 %v2314, %v2474
      %v2476 = vpop.f32.mrf.mxu0
      %v2477 = vpop.f32.mrf.mxu0
      %v2478 = vadd.f32 %v2317, %v2477
      %v2479 = vpop.f32.mrf.mxu0
      %2480 = vmatprep.mubr.bf16.mxu0 0
      %2481 = vmatmul.mubr.bf16.gmra.mxu0 %v1092
      %v2482 = vpop.f32.mrf.mxu0
      %v2483 = vadd.f32 %v2322, %v2482
      %v2484 = vpop.f32.mrf.mxu0
      %v2485 = vpop.f32.mrf.mxu0
      %v2486 = vadd.f32 %v2325, %v2485
      %v2487 = vpop.f32.mrf.mxu0
      %2488 = vmatprep.mubr.bf16.mxu0 0
      %2489 = vmatmul.mubr.bf16.gmra.mxu0 %v1095
      %v2490 = vpop.f32.mrf.mxu0
      %v2491 = vadd.f32 %v2330, %v2490
      %v2492 = vpop.f32.mrf.mxu0
      %v2493 = vpop.f32.mrf.mxu0
      %v2494 = vadd.f32 %v2333, %v2493
      %v2495 = vpop.f32.mrf.mxu0
      %2496 = vmatprep.mubr.bf16.mxu0 0
      %2497 = vmatmul.mubr.bf16.gmra.mxu0 %v1098
      %v2498 = vpop.f32.mrf.mxu0
      %v2499 = vadd.f32 %v2338, %v2498
      %v2500 = vpop.f32.mrf.mxu0
      %v2501 = vpop.f32.mrf.mxu0
      %v2502 = vadd.f32 %v2341, %v2501
      %v2503 = vpop.f32.mrf.mxu0
      %2504 = vmatprep.mubr.bf16.mxu0 0
      %2505 = vmatmul.mubr.bf16.gmra.mxu0 %v1101
      %v2506 = vpop.f32.mrf.mxu0
      %v2507 = vadd.f32 %v2346, %v2506
      %v2508 = vpop.f32.mrf.mxu0
      %v2509 = vpop.f32.mrf.mxu0
      %v2510 = vadd.f32 %v2349, %v2509
      %v2511 = vpop.f32.mrf.mxu0
      %2512 = vmatprep.mubr.bf16.mxu0 0
      %2513 = vmatmul.mubr.bf16.gmra.mxu0 %v1104
      %v2514 = vpop.f32.mrf.mxu0
      %v2515 = vadd.f32 %v2354, %v2514
      %v2516 = vpop.f32.mrf.mxu0
      %v2517 = vpop.f32.mrf.mxu0
      %v2518 = vadd.f32 %v2357, %v2517
      %v2519 = vpop.f32.mrf.mxu0
      %2520 = vmatprep.mubr.bf16.mxu0 0
      %2521 = vmatmul.mubr.bf16.gmra.mxu0 %v1107
      %v2522 = vpop.f32.mrf.mxu0
      %v2523 = vadd.f32 %v2362, %v2522
      %v2524 = vpop.f32.mrf.mxu0
      %v2525 = vpop.f32.mrf.mxu0
      %v2526 = vadd.f32 %v2365, %v2525
      %v2527 = vpop.f32.mrf.mxu0
      %2528 = vmatprep.mubr.bf16.mxu0 0
      %2529 = vmatmul.mubr.bf16.gmra.mxu0 %v1110
      %v2530 = vpop.f32.mrf.mxu0
      %v2531 = vadd.f32 %v2370, %v2530
      %v2532 = vpop.f32.mrf.mxu0
      %v2533 = vpop.f32.mrf.mxu0
      %v2534 = vadd.f32 %v2373, %v2533
      %v2535 = vpop.f32.mrf.mxu0
      %2536 = vmatprep.mubr.bf16.mxu0 0
      %2537 = vmatmul.mubr.bf16.gmra.mxu0 %v1144
      %v2538 = vpop.f32.mrf.mxu0
      %v2539 = vadd.f32 %v2378, %v2538
      %v2540 = vpop.f32.mrf.mxu0
      %v2541 = vpop.f32.mrf.mxu0
      %v2542 = vadd.f32 %v2381, %v2541
      %v2543 = vpop.f32.mrf.mxu0
      %2544 = vmatprep.mubr.bf16.mxu0 0
      %2545 = vmatmul.mubr.bf16.gmra.mxu0 %v1163
      %v2546 = vpop.f32.mrf.mxu0
      %v2547 = vadd.f32 %v2386, %v2546
      %v2548 = vpop.f32.mrf.mxu0
      %v2549 = vpop.f32.mrf.mxu0
      %v2550 = vadd.f32 %v2389, %v2549
      %v2551 = vpop.f32.mrf.mxu0
      %2552 = vdwg.mxu0
      %v2553 = vmax.f32 %v2427, 0.0
      %v2554 = vmax.f32 %v2430, 0.0
      %v2555 = vmax.f32 %v2435, 0.0
      %v2556 = vmax.f32 %v2438, 0.0
      %v2557 = vmax.f32 %v2443, 0.0
      %v2558 = vmax.f32 %v2446, 0.0
      %v2559 = vmax.f32 %v2451, 0.0
      %v2560 = vmax.f32 %v2454, 0.0
      %v2561 = vmax.f32 %v2459, 0.0
      %v2562 = vmax.f32 %v2462, 0.0
      %v2563 = vmax.f32 %v2467, 0.0
      %v2564 = vmax.f32 %v2470, 0.0
      %v2565 = vmax.f32 %v2475, 0.0
      %v2566 = vmax.f32 %v2478, 0.0
      %v2567 = vmax.f32 %v2483, 0.0
      %v2568 = vmax.f32 %v2486, 0.0
      %v2569 = vmax.f32 %v2491, 0.0
      %v2570 = vmax.f32 %v2494, 0.0
      %v2571 = vmax.f32 %v2499, 0.0
      %v2572 = vmax.f32 %v2502, 0.0
      %v2573 = vmax.f32 %v2507, 0.0
      %v2574 = vmax.f32 %v2510, 0.0
      %v2575 = vmax.f32 %v2515, 0.0
      %v2576 = vmax.f32 %v2518, 0.0
      %v2577 = vmax.f32 %v2523, 0.0
      %v2578 = vmax.f32 %v2526, 0.0
      %v2579 = vmax.f32 %v2531, 0.0
      %v2580 = vmax.f32 %v2534, 0.0
      %v2581 = vmax.f32 %v2539, 0.0
      %v2582 = vmax.f32 %v2542, 0.0
      %v2583 = vmax.f32 %v2547, 0.0
      %v2584 = vmax.f32 %v2550, 0.0
      %v2585 = vpack.c.bf16 %v2554, %v2553
      %v2586 = vpack.c.bf16 %v2556, %v2555
      %v2587 = vpack.c.bf16 %v2558, %v2557
      %v2588 = vpack.c.bf16 %v2560, %v2559
      %v2589 = vpack.c.bf16 %v2562, %v2561
      %v2590 = vpack.c.bf16 %v2564, %v2563
      %v2591 = vpack.c.bf16 %v2566, %v2565
      %v2592 = vpack.c.bf16 %v2568, %v2567
      %v2593 = vpack.c.bf16 %v2570, %v2569
      %v2594 = vpack.c.bf16 %v2572, %v2571
      %v2595 = vpack.c.bf16 %v2574, %v2573
      %v2596 = vpack.c.bf16 %v2576, %v2575
      %v2597 = vpack.c.bf16 %v2578, %v2577
      %v2598 = vpack.c.bf16 %v2580, %v2579
      %v2599 = vpack.c.bf16 %v2582, %v2581
      %v2600 = vpack.c.bf16 %v2584, %v2583
      %v2617 = vunpack.c.l.b16 %v2585
      %v2618 = vunpack.c.h.b16 %v2585
      %v2619 = vunpack.c.l.b16 %v2586
      %v2620 = vunpack.c.h.b16 %v2586
      %v2621 = vunpack.c.l.b16 %v2587
      %v2622 = vunpack.c.h.b16 %v2587
      %v2623 = vunpack.c.l.b16 %v2588
      %v2624 = vunpack.c.h.b16 %v2588
      %v2625 = vunpack.c.l.b16 %v2589
      %v2626 = vunpack.c.h.b16 %v2589
      %v2627 = vunpack.c.l.b16 %v2590
      %v2628 = vunpack.c.h.b16 %v2590
      %v2629 = vunpack.c.l.b16 %v2591
      %v2630 = vunpack.c.h.b16 %v2591
      %v2631 = vunpack.c.l.b16 %v2592
      %v2632 = vunpack.c.h.b16 %v2592
      %v2633 = vunpack.c.l.b16 %v2593
      %v2634 = vunpack.c.h.b16 %v2593
      %v2635 = vunpack.c.l.b16 %v2594
      %v2636 = vunpack.c.h.b16 %v2594
      %v2637 = vunpack.c.l.b16 %v2595
      %v2638 = vunpack.c.h.b16 %v2595
      %v2639 = vunpack.c.l.b16 %v2596
      %v2640 = vunpack.c.h.b16 %v2596
      %v2641 = vunpack.c.l.b16 %v2597
      %v2642 = vunpack.c.h.b16 %v2597
      %v2643 = vunpack.c.l.b16 %v2598
      %v2644 = vunpack.c.h.b16 %v2598
      %v2645 = vunpack.c.l.b16 %v2599
      %v2646 = vunpack.c.h.b16 %v2599
      %v2647 = vunpack.c.l.b16 %v2600
      %v2648 = vunpack.c.h.b16 %v2600
      %v2649 = vpack.c.b16 %v2617, %v2617
      %v2650 = vpack.c.b16 %v2618, %v2618
      %v2651 = vpack.c.b16 %v2619, %v2619
      %v2652 = vpack.c.b16 %v2620, %v2620
      %v2653 = vpack.c.b16 %v2621, %v2621
      %v2654 = vpack.c.b16 %v2622, %v2622
      %v2655 = vpack.c.b16 %v2623, %v2623
      %v2656 = vpack.c.b16 %v2624, %v2624
      %v2657 = vpack.c.b16 %v2625, %v2625
      %v2658 = vpack.c.b16 %v2626, %v2626
      %v2659 = vpack.c.b16 %v2627, %v2627
      %v2660 = vpack.c.b16 %v2628, %v2628
      %v2661 = vpack.c.b16 %v2629, %v2629
      %v2662 = vpack.c.b16 %v2630, %v2630
      %v2663 = vpack.c.b16 %v2631, %v2631
      %v2664 = vpack.c.b16 %v2632, %v2632
      %v2665 = vpack.c.b16 %v2633, %v2633
      %v2666 = vpack.c.b16 %v2634, %v2634
      %v2667 = vpack.c.b16 %v2635, %v2635
      %v2668 = vpack.c.b16 %v2636, %v2636
      %v2669 = vpack.c.b16 %v2637, %v2637
      %v2670 = vpack.c.b16 %v2638, %v2638
      %v2671 = vpack.c.b16 %v2639, %v2639
      %v2672 = vpack.c.b16 %v2640, %v2640
      %v2673 = vpack.c.b16 %v2641, %v2641
      %v2674 = vpack.c.b16 %v2642, %v2642
      %v2675 = vpack.c.b16 %v2643, %v2643
      %v2676 = vpack.c.b16 %v2644, %v2644
      %v2677 = vpack.c.b16 %v2645, %v2645
      %v2678 = vpack.c.b16 %v2646, %v2646
      %v2679 = vpack.c.b16 %v2647, %v2647
      %v2680 = vpack.c.b16 %v2648, %v2648
      %2713 = vst [vmem:[%s430] sm:$0xf] %v2649
      %2714 = vst [vmem:[%s430 + $0x4] sm:$0xf] %v2650
      %2715 = vst [vmem:[%s430 + $0x8] sm:$0xf] %v2651
      %2716 = vst [vmem:[%s430 + $0xc] sm:$0xf] %v2652
      %2717 = vst [vmem:[%s430 + $0x10] sm:$0xf] %v2653
      %2718 = vst [vmem:[%s430 + $0x14] sm:$0xf] %v2654
      %2719 = vst [vmem:[%s430 + $0x18] sm:$0xf] %v2655
      %2720 = vst [vmem:[%s430 + $0x1c] sm:$0xf] %v2656
      %2721 = vst [vmem:[%s430 + $0x20] sm:$0xf] %v2657
      %2722 = vst [vmem:[%s430 + $0x24] sm:$0xf] %v2658
      %2723 = vst [vmem:[%s430 + $0x28] sm:$0xf] %v2659
      %2724 = vst [vmem:[%s430 + $0x2c] sm:$0xf] %v2660
      %2725 = vst [vmem:[%s430 + $0x30] sm:$0xf] %v2661
      %2726 = vst [vmem:[%s430 + $0x34] sm:$0xf] %v2662
      %2727 = vst [vmem:[%s430 + $0x38] sm:$0xf] %v2663
      %2728 = vst [vmem:[%s430 + $0x3c] sm:$0xf] %v2664
      %2729 = vst [vmem:[%s430 + $0x40] sm:$0xf] %v2665
      %2730 = vst [vmem:[%s430 + $0x44] sm:$0xf] %v2666
      %2731 = vst [vmem:[%s430 + $0x48] sm:$0xf] %v2667
      %2732 = vst [vmem:[%s430 + $0x4c] sm:$0xf] %v2668
      %2733 = vst [vmem:[%s430 + $0x50] sm:$0xf] %v2669
      %2734 = vst [vmem:[%s430 + $0x54] sm:$0xf] %v2670
      %2735 = vst [vmem:[%s430 + $0x58] sm:$0xf] %v2671
      %2736 = vst [vmem:[%s430 + $0x5c] sm:$0xf] %v2672
      %2737 = vst [vmem:[%s430 + $0x60] sm:$0xf] %v2673
      %2738 = vst [vmem:[%s430 + $0x64] sm:$0xf] %v2674
      %2739 = vst [vmem:[%s430 + $0x68] sm:$0xf] %v2675
      %2740 = vst [vmem:[%s430 + $0x6c] sm:$0xf] %v2676
      %2741 = vst [vmem:[%s430 + $0x70] sm:$0xf] %v2677
      %2742 = vst [vmem:[%s430 + $0x74] sm:$0xf] %v2678
      %2743 = vst [vmem:[%s430 + $0x78] sm:$0xf] %v2679
      %2744 = vst [vmem:[%s430 + $0x7c] sm:$0xf] %v2680
      %v2745 = vadd.f32 %v2553, %v2554
      %v2746 = vadd.f32 %v2745, %v2555
      %v2747 = vadd.f32 %v2746, %v2556
      %v2748 = vadd.f32 %v2747, %v2557
      %v2749 = vadd.f32 %v2748, %v2558
      %v2750 = vadd.f32 %v2749, %v2559
      %v2751 = vadd.f32 %v2750, %v2560
      %v2752 = vadd.f32 %v2751, %v2561
      %v2753 = vadd.f32 %v2752, %v2562
      %v2754 = vadd.f32 %v2753, %v2563
      %v2755 = vadd.f32 %v2754, %v2564
      %v2756 = vadd.f32 %v2755, %v2565
      %v2757 = vadd.f32 %v2756, %v2566
      %v2758 = vadd.f32 %v2757, %v2567
      %v2759 = vadd.f32 %v2758, %v2568
      %v2760 = vadd.f32 %v2759, %v2569
      %v2761 = vadd.f32 %v2760, %v2570
      %v2762 = vadd.f32 %v2761, %v2571
      %v2763 = vadd.f32 %v2762, %v2572
      %v2764 = vadd.f32 %v2763, %v2573
      %v2765 = vadd.f32 %v2764, %v2574
      %v2766 = vadd.f32 %v2765, %v2575
      %v2767 = vadd.f32 %v2766, %v2576
      %v2768 = vadd.f32 %v2767, %v2577
      %v2769 = vadd.f32 %v2768, %v2578
      %v2770 = vadd.f32 %v2769, %v2579
      %v2771 = vadd.f32 %v2770, %v2580
      %v2772 = vadd.f32 %v2771, %v2581
      %v2773 = vadd.f32 %v2772, %v2582
      %v2774 = vadd.f32 %v2773, %v2583
      %v2775 = vadd.f32 %v2774, %v2584
      %v2776 = vrot.slane %v2775, 4
      %v2777 = vadd.f32 %v2775, %v2776
      %v2778 = vrot.slane %v2777, 2
      %v2779 = vadd.f32 %v2777, %v2778
      %v2780 = vrot.slane %v2779, 1
      %v2781 = vadd.f32 %v2779, %v2780
      %v2782 = vmul.f32 %v2553, %v2553
      %v2783 = vmul.f32 %v2554, %v2554
      %v2784 = vmul.f32 %v2555, %v2555
      %v2785 = vmul.f32 %v2556, %v2556
      %v2786 = vmul.f32 %v2557, %v2557
      %v2787 = vmul.f32 %v2558, %v2558
      %v2788 = vmul.f32 %v2559, %v2559
      %v2789 = vmul.f32 %v2560, %v2560
      %v2790 = vmul.f32 %v2561, %v2561
      %v2791 = vmul.f32 %v2562, %v2562
      %v2792 = vmul.f32 %v2563, %v2563
      %v2793 = vmul.f32 %v2564, %v2564
      %v2794 = vmul.f32 %v2565, %v2565
      %v2795 = vmul.f32 %v2566, %v2566
      %v2796 = vmul.f32 %v2567, %v2567
      %v2797 = vmul.f32 %v2568, %v2568
      %v2798 = vmul.f32 %v2569, %v2569
      %v2799 = vmul.f32 %v2570, %v2570
      %v2800 = vmul.f32 %v2571, %v2571
      %v2801 = vmul.f32 %v2572, %v2572
      %v2802 = vmul.f32 %v2573, %v2573
      %v2803 = vmul.f32 %v2574, %v2574
      %v2804 = vmul.f32 %v2575, %v2575
      %v2805 = vmul.f32 %v2576, %v2576
      %v2806 = vmul.f32 %v2577, %v2577
      %v2807 = vmul.f32 %v2578, %v2578
      %v2808 = vmul.f32 %v2579, %v2579
      %v2809 = vmul.f32 %v2580, %v2580
      %v2810 = vmul.f32 %v2581, %v2581
      %v2811 = vmul.f32 %v2582, %v2582
      %v2812 = vmul.f32 %v2583, %v2583
      %v2813 = vmul.f32 %v2584, %v2584
      %v2814 = vadd.f32 %v2782, %v2783
      %v2815 = vadd.f32 %v2814, %v2784
      %v2816 = vadd.f32 %v2815, %v2785
      %v2817 = vadd.f32 %v2816, %v2786
      %v2818 = vadd.f32 %v2817, %v2787
      %v2819 = vadd.f32 %v2818, %v2788
      %v2820 = vadd.f32 %v2819, %v2789
      %v2821 = vadd.f32 %v2820, %v2790
      %v2822 = vadd.f32 %v2821, %v2791
      %v2823 = vadd.f32 %v2822, %v2792
      %v2824 = vadd.f32 %v2823, %v2793
      %v2825 = vadd.f32 %v2824, %v2794
      %v2826 = vadd.f32 %v2825, %v2795
      %v2827 = vadd.f32 %v2826, %v2796
      %v2828 = vadd.f32 %v2827, %v2797
      %v2829 = vadd.f32 %v2828, %v2798
      %v2830 = vadd.f32 %v2829, %v2799
      %v2831 = vadd.f32 %v2830, %v2800
      %v2832 = vadd.f32 %v2831, %v2801
      %v2833 = vadd.f32 %v2832, %v2802
      %v2834 = vadd.f32 %v2833, %v2803
      %v2835 = vadd.f32 %v2834, %v2804
      %v2836 = vadd.f32 %v2835, %v2805
      %v2837 = vadd.f32 %v2836, %v2806
      %v2838 = vadd.f32 %v2837, %v2807
      %v2839 = vadd.f32 %v2838, %v2808
      %v2840 = vadd.f32 %v2839, %v2809
      %v2841 = vadd.f32 %v2840, %v2810
      %v2842 = vadd.f32 %v2841, %v2811
      %v2843 = vadd.f32 %v2842, %v2812
      %v2844 = vadd.f32 %v2843, %v2813
      %v2845 = vrot.slane %v2844, 4
      %v2846 = vadd.f32 %v2844, %v2845
      %v2847 = vrot.slane %v2846, 2
      %v2848 = vadd.f32 %v2846, %v2847
      %v2849 = vrot.slane %v2848, 1
      %v2850 = vadd.f32 %v2848, %v2849
      %vm2851 = vcmask 1040384
      %v2852 = vsel %vm2851, %v2781, %v2850
      %2853 = vst [vmem:[%s438] sm:$0x3] %v2852
      %s2854 = smul.u32 16, %s23
      %p2855 = scmp.lt.s32.totalorder %s22, 1
      %s2856 = scalar_select %p2855, %s22, 1
      %p2857 = scmp.lt.s32.totalorder %s2854, 15
      %s2858 = scalar_select %p2857, %s2854, 15
      %s2859 = smul.addr %s2858, 2
      %s2860 = smul.addr %s2856, 32
      %s2861 = sadd.s32 %s2859, %s2860
      %s2862 = smul.addr %s2861, 4
      %s2863 = scalar_lea.vmem %s5, %s2862
      %p2864 = scmp.lt.s32.totalorder %s22, 1
      %s2865 = scalar_select %p2864, %s22, 1
      %p2866 = scmp.lt.s32.totalorder %s23, 0
      %s2867 = scalar_select %p2866, %s23, 0
      %s2868 = sadd.s32 %s2867, %s2865
      %s2869 = smul.addr %s2868, 2
      %s2870 = scalar_lea.vmem %s6, %s2869
      // Predicated region
      $region41: #{upconv_forward.6} parent=39 // pred_check
        %p2871 = pneg %p192
      $region42: #{upconv_forward.6} parent=39 // pred_check_branch
        %2873 = sbr.rel (%p2871) target = $region44
      $region43: #{upconv_forward.6} parent=39 // pred_region
        %s2874 = smul.u32 16, %s23
      $region44: #{upconv_forward.6} parent=39 // pred_fallthru
        _
      // Predicated region
      $region45: #{upconv_forward.6} parent=39 // pred_check
        %p2875 = pneg %p220
      $region46: #{upconv_forward.6} parent=39 // pred_check_branch
        %2877 = sbr.rel (%p2875) target = $region48
      $region47: #{upconv_forward.6} parent=39 // pred_region
        _
      $region48: #{upconv_forward.6} parent=39 // pred_fallthru
        _
    $region40: #{upconv_forward.6} parent=5 // pred_fallthru
      _
    %p2878 = scmp.le.s32.totalorder 2, %s13
    // Predicated region
    $region49: #{upconv_forward.6} parent=5 // pred_check
      %p2879 = pneg %p2878
    $region50: #{upconv_forward.6} parent=5 // pred_check_branch
      %2881 = sbr.rel (%p2879) target = $region52
    $region51: #{upconv_forward.6} parent=5 // pred_region
      %s2882 = ssub.s32 %s13, 2
      // Predicated region
      $region53: #{upconv_forward.6} parent=51 // pred_check
        %p2883 = pneg %p198
      $region54: #{upconv_forward.6} parent=51 // pred_check_branch
        %2885 = sbr.rel (%p2883) target = $region56
      $region55: #{upconv_forward.6} parent=51 // pred_region
        %s2886 = smul.u32 16, %s25
        %p2887 = scmp.lt.s32.totalorder %s24, 1
        %s2888 = scalar_select %p2887, %s24, 1
        %p2889 = scmp.lt.s32.totalorder %s2886, 15
        %s2890 = scalar_select %p2889, %s2886, 15
        %s2891 = smul.addr %s2890, 2
        %s2892 = smul.addr %s2888, 32
        %s2893 = sadd.s32 %s2891, %s2892
        %s2894 = smul.addr %s2893, 4
        %s2895 = scalar_lea.vmem %s5, %s2894
      $region56: #{upconv_forward.6} parent=51 // pred_fallthru
        _
      // Predicated region
      $region57: #{upconv_forward.6} parent=51 // pred_check
        %p2896 = pneg %p226
      $region58: #{upconv_forward.6} parent=51 // pred_check_branch
        %2898 = sbr.rel (%p2896) target = $region60
      $region59: #{upconv_forward.6} parent=51 // pred_region
        %p2899 = scmp.lt.s32.totalorder %s24, 1
        %s2900 = scalar_select %p2899, %s24, 1
        %p2901 = scmp.lt.s32.totalorder %s25, 0
        %s2902 = scalar_select %p2901, %s25, 0
        %s2903 = sadd.s32 %s2902, %s2900
        %s2904 = smul.addr %s2903, 2
        %s2905 = scalar_lea.vmem %s6, %s2904
      $region60: #{upconv_forward.6} parent=51 // pred_fallthru
        _
    $region52: #{upconv_forward.6} parent=5 // pred_fallthru
      _
  $region6: #{upconv_forward.6} parent=0 // loop_footer
    %s17 = sadd.s32 1, %s13
  $region7: #{upconv_forward.6} parent=0 // loop_footer_branch
    %12 = sbr.rel target = $region3
  $region8: #{upconv_forward.6} parent=0 // loop_exit
    _

// kernel: upconv_forward.5
$region0: #{upconv_forward.5}
  #allocation0 [shape = 'u32[]', space=smem, size = 0x4, offset = 0x4, fixed_abs, tag = 'smem constant byte address 0x4 - core index']
  #allocation1 [shape = 'u32[144,128]{1,0:T(1,128)}', space=vmem, size = 0x12000, scoped, tag = 'internal scratch']
  %s0 = inlined_call_operand.vmem [shape: bf16[2,16,16,128], index: 0, kind: input, shape index: {}, may-alias: {0,1,2}]
  %s1 = inlined_call_operand.vmem [shape: bf16[2,16,16,128], index: 1, kind: input, shape index: {}, may-alias: {0,1,2}]
  %s2 = inlined_call_operand.vmem [shape: bf16[2,16,16,128], index: 2, kind: input, shape index: {}, may-alias: {0,1,2}]
  %s3 = inlined_call_operand.vmem [shape: bf16[2,16,16,128], index: 3, kind: input, shape index: {}, may-alias: {3,4,5}]
  %s4 = inlined_call_operand.vmem [shape: bf16[2,16,16,128], index: 4, kind: input, shape index: {}, may-alias: {3,4,5}]
  %s5 = inlined_call_operand.vmem [shape: bf16[2,16,16,128], index: 5, kind: input, shape index: {}, may-alias: {3,4,5}]
  %s6 = inlined_call_operand.vmem [shape: bf16[2304,128], index: 6, kind: input, shape index: {}]
  %s7 = inlined_call_operand.vmem [shape: f32[1,128], index: 7, kind: input, shape index: {}]
  %s8 = inlined_call_operand.vmem [shape: bf16[2,16,16,128], index: 8, kind: output, shape index: {}]
  %s9 = sld [smem:[#allocation0]]
  $region65: #{upconv_forward.5} parent=0
    _
  %s11 = ssub.s32 1, %s9
  %s12 = scalar_select 0, %s11, %s9
  loop: start=0, step=1, limit=4
  $region2: #{upconv_forward.5} parent=0 // loop_pre_header
    _
  $region3: #{upconv_forward.5} parent=0 // loop_header
    %s14 = sphi 0, %s18
    %p15 = scmp.ge.s32.totalorder %s14, 4
    %s21 = sphi 0, %s33
    %s22 = sphi 0, %s29
    %s23 = sphi 0, %s21
    %s24 = sphi 0, %s22
    %s25 = sphi 0, %s23
    %s26 = sphi 0, %s24
    %s38 = sphi 0, %s40
    %s41 = sphi 0, %s38
    %s42 = sphi 0, %s41
    %s58 = sphi 0, %s42
    %s74 = sphi 0, %s76
    %s77 = sphi 0, %s74
    %s78 = sphi 0, %s77
    %s94 = sphi 0, %s78
    %s110 = sphi 0, %s112
    %s113 = sphi 0, %s110
    %s114 = sphi 0, %s113
    %s130 = sphi 0, %s114
    %s138 = sphi 0, %s140
    %s141 = sphi 0, %s138
    %s142 = sphi 0, %s141
    %s158 = sphi 0, %s142
    %s174 = sphi 0, %s176
    %s177 = sphi 0, %s174
    %s178 = sphi 0, %s177
    %s194 = sphi 0, %s178
    %s210 = sphi 0, %s212
    %s213 = sphi 0, %s210
    %s214 = sphi 0, %s213
    %s230 = sphi 0, %s214
    %s234 = sphi 0, %s234
    %s236 = sphi 0, %s234
    %s237 = sphi 0, %s236
    %s251 = sphi 0, %s237
    %s255 = sphi 0, %s255
    %s257 = sphi 0, %s255
    %s258 = sphi 0, %s257
    %s272 = sphi 0, %s258
    %s280 = sphi 0, %s282
    %s283 = sphi 0, %s280
    %s284 = sphi 0, %s283
    %s300 = sphi 0, %s284
  $region4: #{upconv_forward.5} parent=0 // loop_header_branch
    %17 = sbr.rel (%p15) target = $region8
  $region5: #{upconv_forward.5} parent=0 // loop_body
    %s19 = ssub.s32 %s14, 1
    %s20 = ssub.s32 %s14, 2
    %s27 = sadd.s32 1, %s22
    %p28 = scmp.ge.s32.totalorder %s27, 1
    %s29 = scalar_select %p28, 0, %s27
    %s30 = sadd.s32 1, %s21
    %s31 = scalar_select %p28, %s30, %s21
    %p32 = scmp.ge.s32.totalorder %s31, 2
    %s33 = scalar_select %p32, 0, %s31
    %s34 = ssub.s32 %s21, %s33
    %s35 = ssub.s32 %s22, %s29
    %s36 = sor.u32 %s34, %s35
    %p37 = scmp.eq.s32.totalorder %s36, 0
    %s39 = sadd.s32 %s38, 1
    %s40 = scalar_select %p37, %s38, %s39
    %p43 = pneg %p37
    %p44 = scmp.eq.s32.totalorder %s14, 1
    %p45 = por %p43, %p44
    %p46 = scmp.ne.s32.totalorder %s38, %s41
    %p47 = scmp.eq.s32.totalorder %s14, 0
    %p48 = por %p46, %p47
    %p49 = scmp.ne.s32.totalorder %s38, %s41
    %p50 = scmp.eq.s32.totalorder %s19, 1
    %p51 = por %p49, %p50
    %p52 = scmp.ne.s32.totalorder %s41, %s42
    %p53 = scmp.eq.s32.totalorder %s19, 0
    %p54 = por %p52, %p53
    %p55 = scmp.ne.s32.totalorder %s41, %s42
    %p56 = scmp.eq.s32.totalorder %s20, 1
    %p57 = por %p55, %p56
    %p59 = scmp.ne.s32.totalorder %s42, %s58
    %p60 = scmp.eq.s32.totalorder %s20, 0
    %p61 = por %p59, %p60
    %s62 = smul.u32 %s22, 16
    %s63 = ssub.s32 %s62, 1
    %p64 = scmp.gt.s32.totalorder %s63, 0
    %s65 = scalar_select %p64, %s63, 0
    %s66 = smul.u32 %s29, 16
    %s67 = ssub.s32 %s66, 1
    %p68 = scmp.gt.s32.totalorder %s67, 0
    %s69 = scalar_select %p68, %s67, 0
    %s70 = ssub.s32 %s21, %s33
    %s71 = ssub.s32 %s65, %s69
    %s72 = sor.u32 %s70, %s71
    %p73 = scmp.eq.s32.totalorder %s72, 0
    %s75 = sadd.s32 %s74, 1
    %s76 = scalar_select %p73, %s74, %s75
    %p79 = pneg %p73
    %p80 = scmp.eq.s32.totalorder %s14, 1
    %p81 = por %p79, %p80
    %p82 = scmp.ne.s32.totalorder %s74, %s77
    %p83 = scmp.eq.s32.totalorder %s14, 0
    %p84 = por %p82, %p83
    %p85 = scmp.ne.s32.totalorder %s74, %s77
    %p86 = scmp.eq.s32.totalorder %s19, 1
    %p87 = por %p85, %p86
    %p88 = scmp.ne.s32.totalorder %s77, %s78
    %p89 = scmp.eq.s32.totalorder %s19, 0
    %p90 = por %p88, %p89
    %p91 = scmp.ne.s32.totalorder %s77, %s78
    %p92 = scmp.eq.s32.totalorder %s20, 1
    %p93 = por %p91, %p92
    %p95 = scmp.ne.s32.totalorder %s78, %s94
    %p96 = scmp.eq.s32.totalorder %s20, 0
    %p97 = por %p95, %p96
    %s98 = smul.u32 %s22, 16
    %s99 = sadd.s32 %s98, 16
    %p100 = scmp.lt.s32.totalorder %s99, 15
    %s101 = scalar_select %p100, %s99, 15
    %s102 = smul.u32 %s29, 16
    %s103 = sadd.s32 %s102, 16
    %p104 = scmp.lt.s32.totalorder %s103, 15
    %s105 = scalar_select %p104, %s103, 15
    %s106 = ssub.s32 %s21, %s33
    %s107 = ssub.s32 %s101, %s105
    %s108 = sor.u32 %s106, %s107
    %p109 = scmp.eq.s32.totalorder %s108, 0
    %s111 = sadd.s32 %s110, 1
    %s112 = scalar_select %p109, %s110, %s111
    %p115 = pneg %p109
    %p116 = scmp.eq.s32.totalorder %s14, 1
    %p117 = por %p115, %p116
    %p118 = scmp.ne.s32.totalorder %s110, %s113
    %p119 = scmp.eq.s32.totalorder %s14, 0
    %p120 = por %p118, %p119
    %p121 = scmp.ne.s32.totalorder %s110, %s113
    %p122 = scmp.eq.s32.totalorder %s19, 1
    %p123 = por %p121, %p122
    %p124 = scmp.ne.s32.totalorder %s113, %s114
    %p125 = scmp.eq.s32.totalorder %s19, 0
    %p126 = por %p124, %p125
    %p127 = scmp.ne.s32.totalorder %s113, %s114
    %p128 = scmp.eq.s32.totalorder %s20, 1
    %p129 = por %p127, %p128
    %p131 = scmp.ne.s32.totalorder %s114, %s130
    %p132 = scmp.eq.s32.totalorder %s20, 0
    %p133 = por %p131, %p132
    %s134 = ssub.s32 %s21, %s33
    %s135 = ssub.s32 %s22, %s29
    %s136 = sor.u32 %s134, %s135
    %p137 = scmp.eq.s32.totalorder %s136, 0
    %s139 = sadd.s32 %s138, 1
    %s140 = scalar_select %p137, %s138, %s139
    %p143 = pneg %p137
    %p144 = scmp.eq.s32.totalorder %s14, 1
    %p145 = por %p143, %p144
    %p146 = scmp.ne.s32.totalorder %s138, %s141
    %p147 = scmp.eq.s32.totalorder %s14, 0
    %p148 = por %p146, %p147
    %p149 = scmp.ne.s32.totalorder %s138, %s141
    %p150 = scmp.eq.s32.totalorder %s19, 1
    %p151 = por %p149, %p150
    %p152 = scmp.ne.s32.totalorder %s141, %s142
    %p153 = scmp.eq.s32.totalorder %s19, 0
    %p154 = por %p152, %p153
    %p155 = scmp.ne.s32.totalorder %s141, %s142
    %p156 = scmp.eq.s32.totalorder %s20, 1
    %p157 = por %p155, %p156
    %p159 = scmp.ne.s32.totalorder %s142, %s158
    %p160 = scmp.eq.s32.totalorder %s20, 0
    %p161 = por %p159, %p160
    %s162 = smul.u32 %s22, 16
    %s163 = ssub.s32 %s162, 1
    %p164 = scmp.gt.s32.totalorder %s163, 0
    %s165 = scalar_select %p164, %s163, 0
    %s166 = smul.u32 %s29, 16
    %s167 = ssub.s32 %s166, 1
    %p168 = scmp.gt.s32.totalorder %s167, 0
    %s169 = scalar_select %p168, %s167, 0
    %s170 = ssub.s32 %s21, %s33
    %s171 = ssub.s32 %s165, %s169
    %s172 = sor.u32 %s170, %s171
    %p173 = scmp.eq.s32.totalorder %s172, 0
    %s175 = sadd.s32 %s174, 1
    %s176 = scalar_select %p173, %s174, %s175
    %p179 = pneg %p173
    %p180 = scmp.eq.s32.totalorder %s14, 1
    %p181 = por %p179, %p180
    %p182 = scmp.ne.s32.totalorder %s174, %s177
    %p183 = scmp.eq.s32.totalorder %s14, 0
    %p184 = por %p182, %p183
    %p185 = scmp.ne.s32.totalorder %s174, %s177
    %p186 = scmp.eq.s32.totalorder %s19, 1
    %p187 = por %p185, %p186
    %p188 = scmp.ne.s32.totalorder %s177, %s178
    %p189 = scmp.eq.s32.totalorder %s19, 0
    %p190 = por %p188, %p189
    %p191 = scmp.ne.s32.totalorder %s177, %s178
    %p192 = scmp.eq.s32.totalorder %s20, 1
    %p193 = por %p191, %p192
    %p195 = scmp.ne.s32.totalorder %s178, %s194
    %p196 = scmp.eq.s32.totalorder %s20, 0
    %p197 = por %p195, %p196
    %s198 = smul.u32 %s22, 16
    %s199 = sadd.s32 %s198, 16
    %p200 = scmp.lt.s32.totalorder %s199, 15
    %s201 = scalar_select %p200, %s199, 15
    %s202 = smul.u32 %s29, 16
    %s203 = sadd.s32 %s202, 16
    %p204 = scmp.lt.s32.totalorder %s203, 15
    %s205 = scalar_select %p204, %s203, 15
    %s206 = ssub.s32 %s21, %s33
    %s207 = ssub.s32 %s201, %s205
    %s208 = sor.u32 %s206, %s207
    %p209 = scmp.eq.s32.totalorder %s208, 0
    %s211 = sadd.s32 %s210, 1
    %s212 = scalar_select %p209, %s210, %s211
    %p215 = pneg %p209
    %p216 = scmp.eq.s32.totalorder %s14, 1
    %p217 = por %p215, %p216
    %p218 = scmp.ne.s32.totalorder %s210, %s213
    %p219 = scmp.eq.s32.totalorder %s14, 0
    %p220 = por %p218, %p219
    %p221 = scmp.ne.s32.totalorder %s210, %s213
    %p222 = scmp.eq.s32.totalorder %s19, 1
    %p223 = por %p221, %p222
    %p224 = scmp.ne.s32.totalorder %s213, %s214
    %p225 = scmp.eq.s32.totalorder %s19, 0
    %p226 = por %p224, %p225
    %p227 = scmp.ne.s32.totalorder %s213, %s214
    %p228 = scmp.eq.s32.totalorder %s20, 1
    %p229 = por %p227, %p228
    %p231 = scmp.ne.s32.totalorder %s214, %s230
    %p232 = scmp.eq.s32.totalorder %s20, 0
    %p233 = por %p231, %p232
    %s235 = sadd.s32 %s234, 1
    %p238 = scmp.eq.s32.totalorder %s14, 1
    %p239 = scmp.ne.s32.totalorder %s234, %s236
    %p240 = scmp.eq.s32.totalorder %s14, 0
    %p241 = por %p239, %p240
    %p242 = scmp.ne.s32.totalorder %s234, %s236
    %p243 = scmp.eq.s32.totalorder %s19, 1
    %p244 = por %p242, %p243
    %p245 = scmp.ne.s32.totalorder %s236, %s237
    %p246 = scmp.eq.s32.totalorder %s19, 0
    %p247 = por %p245, %p246
    %p248 = scmp.ne.s32.totalorder %s236, %s237
    %p249 = scmp.eq.s32.totalorder %s20, 1
    %p250 = por %p248, %p249
    %p252 = scmp.ne.s32.totalorder %s237, %s251
    %p253 = scmp.eq.s32.totalorder %s20, 0
    %p254 = por %p252, %p253
    %s256 = sadd.s32 %s255, 1
    %p259 = scmp.eq.s32.totalorder %s14, 1
    %p260 = scmp.ne.s32.totalorder %s255, %s257
    %p261 = scmp.eq.s32.totalorder %s14, 0
    %p262 = por %p260, %p261
    %p263 = scmp.ne.s32.totalorder %s255, %s257
    %p264 = scmp.eq.s32.totalorder %s19, 1
    %p265 = por %p263, %p264
    %p266 = scmp.ne.s32.totalorder %s257, %s258
    %p267 = scmp.eq.s32.totalorder %s19, 0
    %p268 = por %p266, %p267
    %p269 = scmp.ne.s32.totalorder %s257, %s258
    %p270 = scmp.eq.s32.totalorder %s20, 1
    %p271 = por %p269, %p270
    %p273 = scmp.ne.s32.totalorder %s258, %s272
    %p274 = scmp.eq.s32.totalorder %s20, 0
    %p275 = por %p273, %p274
    %s276 = ssub.s32 %s21, %s33
    %s277 = ssub.s32 %s22, %s29
    %s278 = sor.u32 %s276, %s277
    %p279 = scmp.eq.s32.totalorder %s278, 0
    %s281 = sadd.s32 %s280, 1
    %s282 = scalar_select %p279, %s280, %s281
    %p285 = pneg %p279
    %p286 = scmp.eq.s32.totalorder %s14, 1
    %p287 = por %p285, %p286
    %p288 = scmp.ne.s32.totalorder %s280, %s283
    %p289 = scmp.eq.s32.totalorder %s14, 0
    %p290 = por %p288, %p289
    %p291 = scmp.ne.s32.totalorder %s280, %s283
    %p292 = scmp.eq.s32.totalorder %s19, 1
    %p293 = por %p291, %p292
    %p294 = scmp.ne.s32.totalorder %s283, %s284
    %p295 = scmp.eq.s32.totalorder %s19, 0
    %p296 = por %p294, %p295
    %p297 = scmp.ne.s32.totalorder %s283, %s284
    %p298 = scmp.eq.s32.totalorder %s20, 1
    %p299 = por %p297, %p298
    %p301 = scmp.ne.s32.totalorder %s284, %s300
    %p302 = scmp.eq.s32.totalorder %s20, 0
    %p303 = por %p301, %p302
    %p304 = scmp.le.s32.totalorder 1, %s14
    %p305 = scmp.lt.s32.totalorder %s14, 3
    %p306 = pnand %p304, %p305
    %p307 = pneg %p306
    // Predicated region
    $region9: #{upconv_forward.5} parent=5 // pred_check
      _
    $region10: #{upconv_forward.5} parent=5 // pred_check_branch
      %309 = sbr.rel (%p306) target = $region12
    $region11: #{upconv_forward.5} parent=5 // pred_region
      %s310 = ssub.s32 %s14, 1
      // Predicated region
      $region13: #{upconv_forward.5} parent=11 // pred_check
        %p311 = pneg %p247
      $region14: #{upconv_forward.5} parent=11 // pred_check_branch
        %313 = sbr.rel (%p311) target = $region16
      $region15: #{upconv_forward.5} parent=11 // pred_region
        _
      $region16: #{upconv_forward.5} parent=11 // pred_fallthru
        _
      // Predicated region
      $region17: #{upconv_forward.5} parent=11 // pred_check
        %p314 = pneg %p268
      $region18: #{upconv_forward.5} parent=11 // pred_check_branch
        %316 = sbr.rel (%p314) target = $region20
      $region19: #{upconv_forward.5} parent=11 // pred_region
        _
      $region20: #{upconv_forward.5} parent=11 // pred_fallthru
        _
    $region12: #{upconv_forward.5} parent=5 // pred_fallthru
      _
    %p317 = scmp.lt.s32.totalorder %s14, 2
    // Predicated region
    $region21: #{upconv_forward.5} parent=5 // pred_check
      %p318 = pneg %p317
    $region22: #{upconv_forward.5} parent=5 // pred_check_branch
      %320 = sbr.rel (%p318) target = $region24
    $region23: #{upconv_forward.5} parent=5 // pred_region
      // Predicated region
      $region25: #{upconv_forward.5} parent=23 // pred_check
        %p321 = pneg %p48
      $region26: #{upconv_forward.5} parent=23 // pred_check_branch
        %323 = sbr.rel (%p321) target = $region28
      $region27: #{upconv_forward.5} parent=23 // pred_region
        %s324 = smul.u32 16, %s22
        %p325 = scmp.lt.s32.totalorder %s21, 1
        %s326 = scalar_select %p325, %s21, 1
        %p327 = scmp.lt.s32.totalorder %s324, 15
        %s328 = scalar_select %p327, %s324, 15
        %s329 = smul.addr %s328, 2
        %s330 = smul.addr %s326, 32
        %s331 = sadd.s32 %s329, %s330
        %s332 = smul.addr %s331, 4
        %s333 = scalar_lea.vmem %s0, %s332
        %s334 = smul.u32 16, %s22
      $region28: #{upconv_forward.5} parent=23 // pred_fallthru
        _
      // Predicated region
      $region29: #{upconv_forward.5} parent=23 // pred_check
        %p335 = pneg %p84
      $region30: #{upconv_forward.5} parent=23 // pred_check_branch
        %337 = sbr.rel (%p335) target = $region32
      $region31: #{upconv_forward.5} parent=23 // pred_region
        %s338 = smul.u32 %s22, 16
        %s339 = ssub.s32 %s338, 1
        %p340 = scmp.gt.s32.totalorder %s339, 0
        %s341 = scalar_select %p340, %s339, 0
        %p342 = scmp.lt.s32.totalorder %s21, 1
        %s343 = scalar_select %p342, %s21, 1
        %p344 = scmp.lt.s32.totalorder %s341, 15
        %s345 = scalar_select %p344, %s341, 15
        %s346 = smul.addr %s345, 2
        %s347 = smul.addr %s343, 32
        %s348 = sadd.s32 %s346, %s347
        %s349 = smul.addr %s348, 4
        %s350 = scalar_lea.vmem %s1, %s349
        %s351 = smul.u32 %s22, 16
        %s352 = ssub.s32 %s351, 1
        %p353 = scmp.gt.s32.totalorder %s352, 0
        %s354 = scalar_select %p353, %s352, 0
      $region32: #{upconv_forward.5} parent=23 // pred_fallthru
        _
      // Predicated region
      $region33: #{upconv_forward.5} parent=23 // pred_check
        %p355 = pneg %p120
      $region34: #{upconv_forward.5} parent=23 // pred_check_branch
        %357 = sbr.rel (%p355) target = $region36
      $region35: #{upconv_forward.5} parent=23 // pred_region
        %s358 = smul.u32 %s22, 16
        %s359 = sadd.s32 %s358, 16
        %p360 = scmp.lt.s32.totalorder %s359, 15
        %s361 = scalar_select %p360, %s359, 15
        %p362 = scmp.lt.s32.totalorder %s21, 1
        %s363 = scalar_select %p362, %s21, 1
        %p364 = scmp.lt.s32.totalorder %s361, 15
        %s365 = scalar_select %p364, %s361, 15
        %s366 = smul.addr %s365, 2
        %s367 = smul.addr %s363, 32
        %s368 = sadd.s32 %s366, %s367
        %s369 = smul.addr %s368, 4
        %s370 = scalar_lea.vmem %s2, %s369
        %s371 = smul.u32 %s22, 16
        %s372 = sadd.s32 %s371, 16
        %p373 = scmp.lt.s32.totalorder %s372, 15
        %s374 = scalar_select %p373, %s372, 15
      $region36: #{upconv_forward.5} parent=23 // pred_fallthru
        _
      // Predicated region
      $region37: #{upconv_forward.5} parent=23 // pred_check
        %p375 = pneg %p148
      $region38: #{upconv_forward.5} parent=23 // pred_check_branch
        %377 = sbr.rel (%p375) target = $region40
      $region39: #{upconv_forward.5} parent=23 // pred_region
        %s378 = smul.u32 16, %s22
        %p379 = scmp.lt.s32.totalorder %s21, 1
        %s380 = scalar_select %p379, %s21, 1
        %p381 = scmp.lt.s32.totalorder %s378, 15
        %s382 = scalar_select %p381, %s378, 15
        %s383 = smul.addr %s382, 2
        %s384 = smul.addr %s380, 32
        %s385 = sadd.s32 %s383, %s384
        %s386 = smul.addr %s385, 4
        %s387 = scalar_lea.vmem %s3, %s386
        %s388 = smul.u32 16, %s22
      $region40: #{upconv_forward.5} parent=23 // pred_fallthru
        _
      // Predicated region
      $region41: #{upconv_forward.5} parent=23 // pred_check
        %p389 = pneg %p184
      $region42: #{upconv_forward.5} parent=23 // pred_check_branch
        %391 = sbr.rel (%p389) target = $region44
      $region43: #{upconv_forward.5} parent=23 // pred_region
        %s392 = smul.u32 %s22, 16
        %s393 = ssub.s32 %s392, 1
        %p394 = scmp.gt.s32.totalorder %s393, 0
        %s395 = scalar_select %p394, %s393, 0
        %p396 = scmp.lt.s32.totalorder %s21, 1
        %s397 = scalar_select %p396, %s21, 1
        %p398 = scmp.lt.s32.totalorder %s395, 15
        %s399 = scalar_select %p398, %s395, 15
        %s400 = smul.addr %s399, 2
        %s401 = smul.addr %s397, 32
        %s402 = sadd.s32 %s400, %s401
        %s403 = smul.addr %s402, 4
        %s404 = scalar_lea.vmem %s4, %s403
        %s405 = smul.u32 %s22, 16
        %s406 = ssub.s32 %s405, 1
        %p407 = scmp.gt.s32.totalorder %s406, 0
        %s408 = scalar_select %p407, %s406, 0
      $region44: #{upconv_forward.5} parent=23 // pred_fallthru
        _
      // Predicated region
      $region45: #{upconv_forward.5} parent=23 // pred_check
        %p409 = pneg %p220
      $region46: #{upconv_forward.5} parent=23 // pred_check_branch
        %411 = sbr.rel (%p409) target = $region48
      $region47: #{upconv_forward.5} parent=23 // pred_region
        %s412 = smul.u32 %s22, 16
        %s413 = sadd.s32 %s412, 16
        %p414 = scmp.lt.s32.totalorder %s413, 15
        %s415 = scalar_select %p414, %s413, 15
        %p416 = scmp.lt.s32.totalorder %s21, 1
        %s417 = scalar_select %p416, %s21, 1
        %p418 = scmp.lt.s32.totalorder %s415, 15
        %s419 = scalar_select %p418, %s415, 15
        %s420 = smul.addr %s419, 2
        %s421 = smul.addr %s417, 32
        %s422 = sadd.s32 %s420, %s421
        %s423 = smul.addr %s422, 4
        %s424 = scalar_lea.vmem %s5, %s423
        %s425 = smul.u32 %s22, 16
        %s426 = sadd.s32 %s425, 16
        %p427 = scmp.lt.s32.totalorder %s426, 15
        %s428 = scalar_select %p427, %s426, 15
      $region48: #{upconv_forward.5} parent=23 // pred_fallthru
        _
    $region24: #{upconv_forward.5} parent=5 // pred_fallthru
      _
    %p429 = scmp.le.s32.totalorder 1, %s14
    %p430 = scmp.lt.s32.totalorder %s14, 3
    %p431 = pnand %p429, %p430
    %p432 = pneg %p431
    // Predicated region
    $region49: #{upconv_forward.5} parent=5 // pred_check
      _
    $region50: #{upconv_forward.5} parent=5 // pred_check_branch
      %434 = sbr.rel (%p431) target = $region52
    $region51: #{upconv_forward.5} parent=5 // pred_region
      %s435 = ssub.s32 %s14, 1
      %s436 = smul.u32 16, %s24
      %p437 = scmp.lt.s32.totalorder %s23, 1
      %s438 = scalar_select %p437, %s23, 1
      %p439 = scmp.lt.s32.totalorder %s436, 15
      %s440 = scalar_select %p439, %s436, 15
      %s441 = smul.addr %s440, 2
      %s442 = smul.addr %s438, 32
      %s443 = sadd.s32 %s441, %s442
      %s444 = smul.addr %s443, 4
      %s445 = scalar_lea.vmem %s0, %s444
      %p446 = pneg %p54
      %p447 = pneg %p51
      %s448 = smul.u32 %s24, 16
      %s449 = ssub.s32 %s448, 1
      %p450 = scmp.gt.s32.totalorder %s449, 0
      %s451 = scalar_select %p450, %s449, 0
      %p452 = scmp.lt.s32.totalorder %s23, 1
      %s453 = scalar_select %p452, %s23, 1
      %p454 = scmp.lt.s32.totalorder %s451, 15
      %s455 = scalar_select %p454, %s451, 15
      %s456 = smul.addr %s455, 2
      %s457 = smul.addr %s453, 32
      %s458 = sadd.s32 %s456, %s457
      %s459 = smul.addr %s458, 4
      %s460 = scalar_lea.vmem %s1, %s459
      %p461 = pneg %p90
      %p462 = pneg %p87
      %s463 = smul.u32 %s24, 16
      %s464 = sadd.s32 %s463, 16
      %p465 = scmp.lt.s32.totalorder %s464, 15
      %s466 = scalar_select %p465, %s464, 15
      %p467 = scmp.lt.s32.totalorder %s23, 1
      %s468 = scalar_select %p467, %s23, 1
      %p469 = scmp.lt.s32.totalorder %s466, 15
      %s470 = scalar_select %p469, %s466, 15
      %s471 = smul.addr %s470, 2
      %s472 = smul.addr %s468, 32
      %s473 = sadd.s32 %s471, %s472
      %s474 = smul.addr %s473, 4
      %s475 = scalar_lea.vmem %s2, %s474
      %p476 = pneg %p126
      %p477 = pneg %p123
      %s478 = smul.u32 16, %s24
      %p479 = scmp.lt.s32.totalorder %s23, 1
      %s480 = scalar_select %p479, %s23, 1
      %p481 = scmp.lt.s32.totalorder %s478, 15
      %s482 = scalar_select %p481, %s478, 15
      %s483 = smul.addr %s482, 2
      %s484 = smul.addr %s480, 32
      %s485 = sadd.s32 %s483, %s484
      %s486 = smul.addr %s485, 4
      %s487 = scalar_lea.vmem %s3, %s486
      %p488 = pneg %p154
      %p489 = pneg %p151
      %s490 = smul.u32 %s24, 16
      %s491 = ssub.s32 %s490, 1
      %p492 = scmp.gt.s32.totalorder %s491, 0
      %s493 = scalar_select %p492, %s491, 0
      %p494 = scmp.lt.s32.totalorder %s23, 1
      %s495 = scalar_select %p494, %s23, 1
      %p496 = scmp.lt.s32.totalorder %s493, 15
      %s497 = scalar_select %p496, %s493, 15
      %s498 = smul.addr %s497, 2
      %s499 = smul.addr %s495, 32
      %s500 = sadd.s32 %s498, %s499
      %s501 = smul.addr %s500, 4
      %s502 = scalar_lea.vmem %s4, %s501
      %p503 = pneg %p190
      %p504 = pneg %p187
      %s505 = smul.u32 %s24, 16
      %s506 = sadd.s32 %s505, 16
      %p507 = scmp.lt.s32.totalorder %s506, 15
      %s508 = scalar_select %p507, %s506, 15
      %p509 = scmp.lt.s32.totalorder %s23, 1
      %s510 = scalar_select %p509, %s23, 1
      %p511 = scmp.lt.s32.totalorder %s508, 15
      %s512 = scalar_select %p511, %s508, 15
      %s513 = smul.addr %s512, 2
      %s514 = smul.addr %s510, 32
      %s515 = sadd.s32 %s513, %s514
      %s516 = smul.addr %s515, 4
      %s517 = scalar_lea.vmem %s5, %s516
      %p518 = pneg %p226
      %p519 = pneg %p223
      %p520 = pneg %p247
      %p521 = pneg %p244
      %p522 = pneg %p268
      %p523 = pneg %p265
      %p524 = pneg %p296
      %p525 = pneg %p293
      %s526 = smul.u32 16, %s24
      %p527 = scmp.lt.s32.totalorder %s23, 1
      %s528 = scalar_select %p527, %s23, 1
      %p529 = scmp.lt.s32.totalorder %s526, 15
      %s530 = scalar_select %p529, %s526, 15
      %s531 = smul.addr %s530, 2
      %s532 = smul.addr %s528, 32
      %s533 = sadd.s32 %s531, %s532
      %s534 = smul.addr %s533, 4
      %s535 = scalar_lea.vmem %s8, %s534
      %s536 = smul.u32 16, %s24
      %p537 = scmp.lt.s32.totalorder %s23, 1
      %s538 = scalar_select %p537, %s23, 1
      %p539 = scmp.lt.s32.totalorder %s536, 15
      %s540 = scalar_select %p539, %s536, 15
      %s541 = smul.addr %s540, 2
      %s542 = smul.addr %s538, 32
      %s543 = sadd.s32 %s541, %s542
      %s544 = smul.addr %s543, 4
      %s545 = scalar_lea.vmem %s0, %s544
      %s546 = smul.u32 16, %s24
      %s547 = smul.u32 %s24, 16
      %s548 = ssub.s32 %s547, 1
      %p549 = scmp.gt.s32.totalorder %s548, 0
      %s550 = scalar_select %p549, %s548, 0
      %p551 = scmp.lt.s32.totalorder %s23, 1
      %s552 = scalar_select %p551, %s23, 1
      %p553 = scmp.lt.s32.totalorder %s550, 15
      %s554 = scalar_select %p553, %s550, 15
      %s555 = smul.addr %s554, 2
      %s556 = smul.addr %s552, 32
      %s557 = sadd.s32 %s555, %s556
      %s558 = smul.addr %s557, 4
      %s559 = scalar_lea.vmem %s1, %s558
      %s560 = smul.u32 %s24, 16
      %s561 = ssub.s32 %s560, 1
      %p562 = scmp.gt.s32.totalorder %s561, 0
      %s563 = scalar_select %p562, %s561, 0
      %s564 = smul.u32 %s24, 16
      %s565 = sadd.s32 %s564, 16
      %p566 = scmp.lt.s32.totalorder %s565, 15
      %s567 = scalar_select %p566, %s565, 15
      %p568 = scmp.lt.s32.totalorder %s23, 1
      %s569 = scalar_select %p568, %s23, 1
      %p570 = scmp.lt.s32.totalorder %s567, 15
      %s571 = scalar_select %p570, %s567, 15
      %s572 = smul.addr %s571, 2
      %s573 = smul.addr %s569, 32
      %s574 = sadd.s32 %s572, %s573
      %s575 = smul.addr %s574, 4
      %s576 = scalar_lea.vmem %s2, %s575
      %s577 = smul.u32 %s24, 16
      %s578 = sadd.s32 %s577, 16
      %p579 = scmp.lt.s32.totalorder %s578, 15
      %s580 = scalar_select %p579, %s578, 15
      %s581 = smul.u32 16, %s24
      %p582 = scmp.lt.s32.totalorder %s23, 1
      %s583 = scalar_select %p582, %s23, 1
      %p584 = scmp.lt.s32.totalorder %s581, 15
      %s585 = scalar_select %p584, %s581, 15
      %s586 = smul.addr %s585, 2
      %s587 = smul.addr %s583, 32
      %s588 = sadd.s32 %s586, %s587
      %s589 = smul.addr %s588, 4
      %s590 = scalar_lea.vmem %s3, %s589
      %s591 = smul.u32 16, %s24
      %s592 = smul.u32 %s24, 16
      %s593 = ssub.s32 %s592, 1
      %p594 = scmp.gt.s32.totalorder %s593, 0
      %s595 = scalar_select %p594, %s593, 0
      %p596 = scmp.lt.s32.totalorder %s23, 1
      %s597 = scalar_select %p596, %s23, 1
      %p598 = scmp.lt.s32.totalorder %s595, 15
      %s599 = scalar_select %p598, %s595, 15
      %s600 = smul.addr %s599, 2
      %s601 = smul.addr %s597, 32
      %s602 = sadd.s32 %s600, %s601
      %s603 = smul.addr %s602, 4
      %s604 = scalar_lea.vmem %s4, %s603
      %s605 = smul.u32 %s24, 16
      %s606 = ssub.s32 %s605, 1
      %p607 = scmp.gt.s32.totalorder %s606, 0
      %s608 = scalar_select %p607, %s606, 0
      %s609 = smul.u32 %s24, 16
      %s610 = sadd.s32 %s609, 16
      %p611 = scmp.lt.s32.totalorder %s610, 15
      %s612 = scalar_select %p611, %s610, 15
      %p613 = scmp.lt.s32.totalorder %s23, 1
      %s614 = scalar_select %p613, %s23, 1
      %p615 = scmp.lt.s32.totalorder %s612, 15
      %s616 = scalar_select %p615, %s612, 15
      %s617 = smul.addr %s616, 2
      %s618 = smul.addr %s614, 32
      %s619 = sadd.s32 %s617, %s618
      %s620 = smul.addr %s619, 4
      %s621 = scalar_lea.vmem %s5, %s620
      %s622 = smul.u32 %s24, 16
      %s623 = sadd.s32 %s622, 16
      %p624 = scmp.lt.s32.totalorder %s623, 15
      %s625 = scalar_select %p624, %s623, 15
      %s626 = smul.u32 16, %s24
      %p627 = scmp.lt.s32.totalorder %s23, 1
      %s628 = scalar_select %p627, %s23, 1
      %p629 = scmp.lt.s32.totalorder %s626, 15
      %s630 = scalar_select %p629, %s626, 15
      %s631 = smul.addr %s630, 2
      %s632 = smul.addr %s628, 32
      %s633 = sadd.s32 %s631, %s632
      %s634 = smul.addr %s633, 4
      %s635 = scalar_lea.vmem %s8, %s634
      %s636 = smul.u32 16, %s24
      %v638 = vld [vmem:[%s545] sm:$0xf]
      %v639 = vld [vmem:[%s545 + $0x4] sm:$0xf]
      %v640 = vld [vmem:[%s545 + $0x8] sm:$0xf]
      %v641 = vld [vmem:[%s545 + $0xc] sm:$0xf]
      %v642 = vld [vmem:[%s545 + $0x10] sm:$0xf]
      %v643 = vld [vmem:[%s545 + $0x14] sm:$0xf]
      %v644 = vld [vmem:[%s545 + $0x18] sm:$0xf]
      %v645 = vld [vmem:[%s545 + $0x1c] sm:$0xf]
      %v646 = vld [vmem:[%s545 + $0x20] sm:$0xf]
      %v647 = vld [vmem:[%s545 + $0x24] sm:$0xf]
      %v648 = vld [vmem:[%s545 + $0x28] sm:$0xf]
      %v649 = vld [vmem:[%s545 + $0x2c] sm:$0xf]
      %v650 = vld [vmem:[%s545 + $0x30] sm:$0xf]
      %v651 = vld [vmem:[%s545 + $0x34] sm:$0xf]
      %v652 = vld [vmem:[%s545 + $0x38] sm:$0xf]
      %v653 = vld [vmem:[%s545 + $0x3c] sm:$0xf]
      %v654 = vld [vmem:[%s545 + $0x40] sm:$0xf]
      %v655 = vld [vmem:[%s545 + $0x44] sm:$0xf]
      %v656 = vld [vmem:[%s545 + $0x48] sm:$0xf]
      %v657 = vld [vmem:[%s545 + $0x4c] sm:$0xf]
      %v658 = vld [vmem:[%s545 + $0x50] sm:$0xf]
      %v659 = vld [vmem:[%s545 + $0x54] sm:$0xf]
      %v660 = vld [vmem:[%s545 + $0x58] sm:$0xf]
      %v661 = vld [vmem:[%s545 + $0x5c] sm:$0xf]
      %v662 = vld [vmem:[%s545 + $0x60] sm:$0xf]
      %v663 = vld [vmem:[%s545 + $0x64] sm:$0xf]
      %v664 = vld [vmem:[%s545 + $0x68] sm:$0xf]
      %v665 = vld [vmem:[%s545 + $0x6c] sm:$0xf]
      %v666 = vld [vmem:[%s545 + $0x70] sm:$0xf]
      %v667 = vld [vmem:[%s545 + $0x74] sm:$0xf]
      %v668 = vld [vmem:[%s545 + $0x78] sm:$0xf]
      %v669 = vld [vmem:[%s545 + $0x7c] sm:$0xf]
      %v670 = vld [vmem:[%s559] sm:$0xf]
      %v671 = vld [vmem:[%s559 + $0x4] sm:$0xf]
      %v672 = vld [vmem:[%s576] sm:$0xf]
      %v673 = vld [vmem:[%s576 + $0x4] sm:$0xf]
      %v710 = vunpack.c.l.b16 %v670
      %v711 = vunpack.c.l.b16 %v671
      %v712 = vunpack.c.l.b16 %v638
      %v713 = vunpack.c.l.b16 %v639
      %v714 = vunpack.c.l.b16 %v640
      %v715 = vunpack.c.l.b16 %v641
      %v716 = vunpack.c.l.b16 %v642
      %v717 = vunpack.c.l.b16 %v643
      %v718 = vunpack.c.l.b16 %v644
      %v719 = vunpack.c.l.b16 %v645
      %v720 = vunpack.c.l.b16 %v646
      %v721 = vunpack.c.l.b16 %v647
      %v722 = vunpack.c.l.b16 %v648
      %v723 = vunpack.c.l.b16 %v649
      %v724 = vunpack.c.l.b16 %v650
      %v725 = vunpack.c.l.b16 %v651
      %v726 = vunpack.c.l.b16 %v652
      %v727 = vunpack.c.l.b16 %v653
      %v728 = vunpack.c.l.b16 %v654
      %v729 = vunpack.c.l.b16 %v655
      %v730 = vunpack.c.l.b16 %v656
      %v731 = vunpack.c.l.b16 %v657
      %v732 = vunpack.c.l.b16 %v658
      %v733 = vunpack.c.l.b16 %v659
      %v734 = vunpack.c.l.b16 %v660
      %v735 = vunpack.c.l.b16 %v661
      %v736 = vunpack.c.l.b16 %v662
      %v737 = vunpack.c.l.b16 %v663
      %v738 = vunpack.c.l.b16 %v664
      %v739 = vunpack.c.l.b16 %v665
      %v740 = vunpack.c.l.b16 %v666
      %v741 = vunpack.c.l.b16 %v667
      %v742 = vunpack.c.l.b16 %v668
      %v743 = vunpack.c.l.b16 %v669
      %v744 = vunpack.c.l.b16 %v672
      %v745 = vunpack.c.l.b16 %v673
      %v746 = vpack.c.b16 %v711, %v710
      %v747 = vpack.c.b16 %v713, %v712
      %v748 = vpack.c.b16 %v715, %v714
      %v749 = vpack.c.b16 %v717, %v716
      %v750 = vpack.c.b16 %v719, %v718
      %v751 = vpack.c.b16 %v721, %v720
      %v752 = vpack.c.b16 %v723, %v722
      %v753 = vpack.c.b16 %v725, %v724
      %v754 = vpack.c.b16 %v727, %v726
      %v755 = vpack.c.b16 %v729, %v728
      %v756 = vpack.c.b16 %v731, %v730
      %v757 = vpack.c.b16 %v733, %v732
      %v758 = vpack.c.b16 %v735, %v734
      %v759 = vpack.c.b16 %v737, %v736
      %v760 = vpack.c.b16 %v739, %v738
      %v761 = vpack.c.b16 %v741, %v740
      %v762 = vpack.c.b16 %v743, %v742
      %v763 = vpack.c.b16 %v745, %v744
      %v765 = vshrl.u32 %v746, 16
      %v767 = vrot.slane %v765, 7
      %v768 = vshll.u32 %v746, 16
      %v770 = vor.u32 %v767, %v768
      %v772 = vshrl.u32 %v747, 16
      %v774 = vrot.slane %v772, 7
      %v775 = vshll.u32 %v747, 16
      %v777 = vor.u32 %v774, %v775
      %v779 = vshrl.u32 %v748, 16
      %v781 = vrot.slane %v779, 7
      %v782 = vshll.u32 %v748, 16
      %v784 = vor.u32 %v781, %v782
      %v786 = vshrl.u32 %v749, 16
      %v788 = vrot.slane %v786, 7
      %v789 = vshll.u32 %v749, 16
      %v791 = vor.u32 %v788, %v789
      %v793 = vshrl.u32 %v750, 16
      %v795 = vrot.slane %v793, 7
      %v796 = vshll.u32 %v750, 16
      %v798 = vor.u32 %v795, %v796
      %v800 = vshrl.u32 %v751, 16
      %v802 = vrot.slane %v800, 7
      %v803 = vshll.u32 %v751, 16
      %v805 = vor.u32 %v802, %v803
      %v807 = vshrl.u32 %v752, 16
      %v809 = vrot.slane %v807, 7
      %v810 = vshll.u32 %v752, 16
      %v812 = vor.u32 %v809, %v810
      %v814 = vshrl.u32 %v753, 16
      %v816 = vrot.slane %v814, 7
      %v817 = vshll.u32 %v753, 16
      %v819 = vor.u32 %v816, %v817
      %v821 = vshrl.u32 %v754, 16
      %v823 = vrot.slane %v821, 7
      %v824 = vshll.u32 %v754, 16
      %v826 = vor.u32 %v823, %v824
      %v828 = vshrl.u32 %v755, 16
      %v830 = vrot.slane %v828, 7
      %v831 = vshll.u32 %v755, 16
      %v833 = vor.u32 %v830, %v831
      %v835 = vshrl.u32 %v756, 16
      %v837 = vrot.slane %v835, 7
      %v838 = vshll.u32 %v756, 16
      %v840 = vor.u32 %v837, %v838
      %v842 = vshrl.u32 %v757, 16
      %v844 = vrot.slane %v842, 7
      %v845 = vshll.u32 %v757, 16
      %v847 = vor.u32 %v844, %v845
      %v849 = vshrl.u32 %v758, 16
      %v851 = vrot.slane %v849, 7
      %v852 = vshll.u32 %v758, 16
      %v854 = vor.u32 %v851, %v852
      %v856 = vshrl.u32 %v759, 16
      %v858 = vrot.slane %v856, 7
      %v859 = vshll.u32 %v759, 16
      %v861 = vor.u32 %v858, %v859
      %v863 = vshrl.u32 %v760, 16
      %v865 = vrot.slane %v863, 7
      %v866 = vshll.u32 %v760, 16
      %v868 = vor.u32 %v865, %v866
      %v870 = vshrl.u32 %v761, 16
      %v872 = vrot.slane %v870, 7
      %v873 = vshll.u32 %v761, 16
      %v875 = vor.u32 %v872, %v873
      %v877 = vshrl.u32 %v762, 16
      %v879 = vrot.slane %v877, 7
      %v880 = vshll.u32 %v762, 16
      %v882 = vor.u32 %v879, %v880
      %v884 = vshrl.u32 %v763, 16
      %v886 = vrot.slane %v884, 7
      %v887 = vshll.u32 %v763, 16
      %v889 = vor.u32 %v886, %v887
      %v926 = vpack.c.b16 %v711, %v711
      %v927 = vpack.c.b16 %v713, %v713
      %v928 = vpack.c.b16 %v715, %v715
      %v929 = vpack.c.b16 %v717, %v717
      %v930 = vpack.c.b16 %v719, %v719
      %v931 = vpack.c.b16 %v721, %v721
      %v932 = vpack.c.b16 %v723, %v723
      %v933 = vpack.c.b16 %v725, %v725
      %v934 = vpack.c.b16 %v727, %v727
      %v935 = vpack.c.b16 %v729, %v729
      %v936 = vpack.c.b16 %v731, %v731
      %v937 = vpack.c.b16 %v733, %v733
      %v938 = vpack.c.b16 %v735, %v735
      %v939 = vpack.c.b16 %v737, %v737
      %v940 = vpack.c.b16 %v739, %v739
      %v941 = vpack.c.b16 %v741, %v741
      %v942 = vpack.c.b16 %v743, %v743
      %v943 = vpack.c.b16 %v745, %v745
      %v944 = vrot.slane %v926, 3
      %v945 = vrot.slane %v927, 3
      %v946 = vrot.slane %v928, 3
      %v947 = vrot.slane %v929, 3
      %v948 = vrot.slane %v930, 3
      %v949 = vrot.slane %v931, 3
      %v950 = vrot.slane %v932, 3
      %v951 = vrot.slane %v933, 3
      %v952 = vrot.slane %v934, 3
      %v953 = vrot.slane %v935, 3
      %v954 = vrot.slane %v936, 3
      %v955 = vrot.slane %v937, 3
      %v956 = vrot.slane %v938, 3
      %v957 = vrot.slane %v939, 3
      %v958 = vrot.slane %v940, 3
      %v959 = vrot.slane %v941, 3
      %v960 = vrot.slane %v942, 3
      %v961 = vrot.slane %v943, 3
      %vm980 = vcmask 1040384
      %vm981 = vsmask.f32 256
      %vm982 = vmand %vm980, %vm981
      %v983 = vsel %vm982, %v670, %v770
      %v984 = vsel %vm982, %v638, %v777
      %v985 = vsel %vm982, %v640, %v784
      %v986 = vsel %vm982, %v642, %v791
      %v987 = vsel %vm982, %v644, %v798
      %v988 = vsel %vm982, %v646, %v805
      %v989 = vsel %vm982, %v648, %v812
      %v990 = vsel %vm982, %v650, %v819
      %v991 = vsel %vm982, %v652, %v826
      %v992 = vsel %vm982, %v654, %v833
      %v993 = vsel %vm982, %v656, %v840
      %v994 = vsel %vm982, %v658, %v847
      %v995 = vsel %vm982, %v660, %v854
      %v996 = vsel %vm982, %v662, %v861
      %v997 = vsel %vm982, %v664, %v868
      %v998 = vsel %vm982, %v666, %v875
      %v999 = vsel %vm982, %v668, %v882
      %v1000 = vsel %vm982, %v672, %v889
      %v1001 = vsel %vm982, %v767, %v944
      %v1002 = vsel %vm982, %v774, %v945
      %v1003 = vsel %vm982, %v781, %v946
      %v1004 = vsel %vm982, %v788, %v947
      %v1005 = vsel %vm982, %v795, %v948
      %v1006 = vsel %vm982, %v802, %v949
      %v1007 = vsel %vm982, %v809, %v950
      %v1008 = vsel %vm982, %v816, %v951
      %v1009 = vsel %vm982, %v823, %v952
      %v1010 = vsel %vm982, %v830, %v953
      %v1011 = vsel %vm982, %v837, %v954
      %v1012 = vsel %vm982, %v844, %v955
      %v1013 = vsel %vm982, %v851, %v956
      %v1014 = vsel %vm982, %v858, %v957
      %v1015 = vsel %vm982, %v865, %v958
      %v1016 = vsel %vm982, %v872, %v959
      %v1017 = vsel %vm982, %v879, %v960
      %v1018 = vsel %vm982, %v886, %v961
      %v1019 = vld [vmem:[%s590] sm:$0xf]
      %v1020 = vld [vmem:[%s590 + $0x4] sm:$0xf]
      %v1021 = vld [vmem:[%s590 + $0x8] sm:$0xf]
      %v1022 = vld [vmem:[%s590 + $0xc] sm:$0xf]
      %v1023 = vld [vmem:[%s590 + $0x10] sm:$0xf]
      %v1024 = vld [vmem:[%s590 + $0x14] sm:$0xf]
      %v1025 = vld [vmem:[%s590 + $0x18] sm:$0xf]
      %v1026 = vld [vmem:[%s590 + $0x1c] sm:$0xf]
      %v1027 = vld [vmem:[%s590 + $0x20] sm:$0xf]
      %v1028 = vld [vmem:[%s590 + $0x24] sm:$0xf]
      %v1029 = vld [vmem:[%s590 + $0x28] sm:$0xf]
      %v1030 = vld [vmem:[%s590 + $0x2c] sm:$0xf]
      %v1031 = vld [vmem:[%s590 + $0x30] sm:$0xf]
      %v1032 = vld [vmem:[%s590 + $0x34] sm:$0xf]
      %v1033 = vld [vmem:[%s590 + $0x38] sm:$0xf]
      %v1034 = vld [vmem:[%s590 + $0x3c] sm:$0xf]
      %v1035 = vld [vmem:[%s590 + $0x40] sm:$0xf]
      %v1036 = vld [vmem:[%s590 + $0x44] sm:$0xf]
      %v1037 = vld [vmem:[%s590 + $0x48] sm:$0xf]
      %v1038 = vld [vmem:[%s590 + $0x4c] sm:$0xf]
      %v1039 = vld [vmem:[%s590 + $0x50] sm:$0xf]
      %v1040 = vld [vmem:[%s590 + $0x54] sm:$0xf]
      %v1041 = vld [vmem:[%s590 + $0x58] sm:$0xf]
      %v1042 = vld [vmem:[%s590 + $0x5c] sm:$0xf]
      %v1043 = vld [vmem:[%s590 + $0x60] sm:$0xf]
      %v1044 = vld [vmem:[%s590 + $0x64] sm:$0xf]
      %v1045 = vld [vmem:[%s590 + $0x68] sm:$0xf]
      %v1046 = vld [vmem:[%s590 + $0x6c] sm:$0xf]
      %v1047 = vld [vmem:[%s590 + $0x70] sm:$0xf]
      %v1048 = vld [vmem:[%s590 + $0x74] sm:$0xf]
      %v1049 = vld [vmem:[%s590 + $0x78] sm:$0xf]
      %v1050 = vld [vmem:[%s590 + $0x7c] sm:$0xf]
      %v1051 = vld [vmem:[%s604] sm:$0xf]
      %v1052 = vld [vmem:[%s604 + $0x4] sm:$0xf]
      %v1053 = vld [vmem:[%s621] sm:$0xf]
      %v1054 = vld [vmem:[%s621 + $0x4] sm:$0xf]
      %v1091 = vunpack.c.l.b16 %v1051
      %v1092 = vunpack.c.l.b16 %v1052
      %v1093 = vunpack.c.l.b16 %v1019
      %v1094 = vunpack.c.l.b16 %v1020
      %v1095 = vunpack.c.l.b16 %v1021
      %v1096 = vunpack.c.l.b16 %v1022
      %v1097 = vunpack.c.l.b16 %v1023
      %v1098 = vunpack.c.l.b16 %v1024
      %v1099 = vunpack.c.l.b16 %v1025
      %v1100 = vunpack.c.l.b16 %v1026
      %v1101 = vunpack.c.l.b16 %v1027
      %v1102 = vunpack.c.l.b16 %v1028
      %v1103 = vunpack.c.l.b16 %v1029
      %v1104 = vunpack.c.l.b16 %v1030
      %v1105 = vunpack.c.l.b16 %v1031
      %v1106 = vunpack.c.l.b16 %v1032
      %v1107 = vunpack.c.l.b16 %v1033
      %v1108 = vunpack.c.l.b16 %v1034
      %v1109 = vunpack.c.l.b16 %v1035
      %v1110 = vunpack.c.l.b16 %v1036
      %v1111 = vunpack.c.l.b16 %v1037
      %v1112 = vunpack.c.l.b16 %v1038
      %v1113 = vunpack.c.l.b16 %v1039
      %v1114 = vunpack.c.l.b16 %v1040
      %v1115 = vunpack.c.l.b16 %v1041
      %v1116 = vunpack.c.l.b16 %v1042
      %v1117 = vunpack.c.l.b16 %v1043
      %v1118 = vunpack.c.l.b16 %v1044
      %v1119 = vunpack.c.l.b16 %v1045
      %v1120 = vunpack.c.l.b16 %v1046
      %v1121 = vunpack.c.l.b16 %v1047
      %v1122 = vunpack.c.l.b16 %v1048
      %v1123 = vunpack.c.l.b16 %v1049
      %v1124 = vunpack.c.l.b16 %v1050
      %v1125 = vunpack.c.l.b16 %v1053
      %v1126 = vunpack.c.l.b16 %v1054
      %v1127 = vpack.c.b16 %v1092, %v1091
      %v1128 = vpack.c.b16 %v1094, %v1093
      %v1129 = vpack.c.b16 %v1096, %v1095
      %v1130 = vpack.c.b16 %v1098, %v1097
      %v1131 = vpack.c.b16 %v1100, %v1099
      %v1132 = vpack.c.b16 %v1102, %v1101
      %v1133 = vpack.c.b16 %v1104, %v1103
      %v1134 = vpack.c.b16 %v1106, %v1105
      %v1135 = vpack.c.b16 %v1108, %v1107
      %v1136 = vpack.c.b16 %v1110, %v1109
      %v1137 = vpack.c.b16 %v1112, %v1111
      %v1138 = vpack.c.b16 %v1114, %v1113
      %v1139 = vpack.c.b16 %v1116, %v1115
      %v1140 = vpack.c.b16 %v1118, %v1117
      %v1141 = vpack.c.b16 %v1120, %v1119
      %v1142 = vpack.c.b16 %v1122, %v1121
      %v1143 = vpack.c.b16 %v1124, %v1123
      %v1144 = vpack.c.b16 %v1126, %v1125
      %v1146 = vshrl.u32 %v1127, 16
      %v1148 = vrot.slane %v1146, 7
      %v1149 = vshll.u32 %v1127, 16
      %v1151 = vor.u32 %v1148, %v1149
      %v1153 = vshrl.u32 %v1128, 16
      %v1155 = vrot.slane %v1153, 7
      %v1156 = vshll.u32 %v1128, 16
      %v1158 = vor.u32 %v1155, %v1156
      %v1160 = vshrl.u32 %v1129, 16
      %v1162 = vrot.slane %v1160, 7
      %v1163 = vshll.u32 %v1129, 16
      %v1165 = vor.u32 %v1162, %v1163
      %v1167 = vshrl.u32 %v1130, 16
      %v1169 = vrot.slane %v1167, 7
      %v1170 = vshll.u32 %v1130, 16
      %v1172 = vor.u32 %v1169, %v1170
      %v1174 = vshrl.u32 %v1131, 16
      %v1176 = vrot.slane %v1174, 7
      %v1177 = vshll.u32 %v1131, 16
      %v1179 = vor.u32 %v1176, %v1177
      %v1181 = vshrl.u32 %v1132, 16
      %v1183 = vrot.slane %v1181, 7
      %v1184 = vshll.u32 %v1132, 16
      %v1186 = vor.u32 %v1183, %v1184
      %v1188 = vshrl.u32 %v1133, 16
      %v1190 = vrot.slane %v1188, 7
      %v1191 = vshll.u32 %v1133, 16
      %v1193 = vor.u32 %v1190, %v1191
      %v1195 = vshrl.u32 %v1134, 16
      %v1197 = vrot.slane %v1195, 7
      %v1198 = vshll.u32 %v1134, 16
      %v1200 = vor.u32 %v1197, %v1198
      %v1202 = vshrl.u32 %v1135, 16
      %v1204 = vrot.slane %v1202, 7
      %v1205 = vshll.u32 %v1135, 16
      %v1207 = vor.u32 %v1204, %v1205
      %v1209 = vshrl.u32 %v1136, 16
      %v1211 = vrot.slane %v1209, 7
      %v1212 = vshll.u32 %v1136, 16
      %v1214 = vor.u32 %v1211, %v1212
      %v1216 = vshrl.u32 %v1137, 16
      %v1218 = vrot.slane %v1216, 7
      %v1219 = vshll.u32 %v1137, 16
      %v1221 = vor.u32 %v1218, %v1219
      %v1223 = vshrl.u32 %v1138, 16
      %v1225 = vrot.slane %v1223, 7
      %v1226 = vshll.u32 %v1138, 16
      %v1228 = vor.u32 %v1225, %v1226
      %v1230 = vshrl.u32 %v1139, 16
      %v1232 = vrot.slane %v1230, 7
      %v1233 = vshll.u32 %v1139, 16
      %v1235 = vor.u32 %v1232, %v1233
      %v1237 = vshrl.u32 %v1140, 16
      %v1239 = vrot.slane %v1237, 7
      %v1240 = vshll.u32 %v1140, 16
      %v1242 = vor.u32 %v1239, %v1240
      %v1244 = vshrl.u32 %v1141, 16
      %v1246 = vrot.slane %v1244, 7
      %v1247 = vshll.u32 %v1141, 16
      %v1249 = vor.u32 %v1246, %v1247
      %v1251 = vshrl.u32 %v1142, 16
      %v1253 = vrot.slane %v1251, 7
      %v1254 = vshll.u32 %v1142, 16
      %v1256 = vor.u32 %v1253, %v1254
      %v1258 = vshrl.u32 %v1143, 16
      %v1260 = vrot.slane %v1258, 7
      %v1261 = vshll.u32 %v1143, 16
      %v1263 = vor.u32 %v1260, %v1261
      %v1265 = vshrl.u32 %v1144, 16
      %v1267 = vrot.slane %v1265, 7
      %v1268 = vshll.u32 %v1144, 16
      %v1270 = vor.u32 %v1267, %v1268
      %v1307 = vpack.c.b16 %v1092, %v1092
      %v1308 = vpack.c.b16 %v1094, %v1094
      %v1309 = vpack.c.b16 %v1096, %v1096
      %v1310 = vpack.c.b16 %v1098, %v1098
      %v1311 = vpack.c.b16 %v1100, %v1100
      %v1312 = vpack.c.b16 %v1102, %v1102
      %v1313 = vpack.c.b16 %v1104, %v1104
      %v1314 = vpack.c.b16 %v1106, %v1106
      %v1315 = vpack.c.b16 %v1108, %v1108
      %v1316 = vpack.c.b16 %v1110, %v1110
      %v1317 = vpack.c.b16 %v1112, %v1112
      %v1318 = vpack.c.b16 %v1114, %v1114
      %v1319 = vpack.c.b16 %v1116, %v1116
      %v1320 = vpack.c.b16 %v1118, %v1118
      %v1321 = vpack.c.b16 %v1120, %v1120
      %v1322 = vpack.c.b16 %v1122, %v1122
      %v1323 = vpack.c.b16 %v1124, %v1124
      %v1324 = vpack.c.b16 %v1126, %v1126
      %v1325 = vrot.slane %v1307, 3
      %v1326 = vrot.slane %v1308, 3
      %v1327 = vrot.slane %v1309, 3
      %v1328 = vrot.slane %v1310, 3
      %v1329 = vrot.slane %v1311, 3
      %v1330 = vrot.slane %v1312, 3
      %v1331 = vrot.slane %v1313, 3
      %v1332 = vrot.slane %v1314, 3
      %v1333 = vrot.slane %v1315, 3
      %v1334 = vrot.slane %v1316, 3
      %v1335 = vrot.slane %v1317, 3
      %v1336 = vrot.slane %v1318, 3
      %v1337 = vrot.slane %v1319, 3
      %v1338 = vrot.slane %v1320, 3
      %v1339 = vrot.slane %v1321, 3
      %v1340 = vrot.slane %v1322, 3
      %v1341 = vrot.slane %v1323, 3
      %v1342 = vrot.slane %v1324, 3
      %v1361 = vsel %vm982, %v1051, %v1151
      %v1362 = vsel %vm982, %v1019, %v1158
      %v1363 = vsel %vm982, %v1021, %v1165
      %v1364 = vsel %vm982, %v1023, %v1172
      %v1365 = vsel %vm982, %v1025, %v1179
      %v1366 = vsel %vm982, %v1027, %v1186
      %v1367 = vsel %vm982, %v1029, %v1193
      %v1368 = vsel %vm982, %v1031, %v1200
      %v1369 = vsel %vm982, %v1033, %v1207
      %v1370 = vsel %vm982, %v1035, %v1214
      %v1371 = vsel %vm982, %v1037, %v1221
      %v1372 = vsel %vm982, %v1039, %v1228
      %v1373 = vsel %vm982, %v1041, %v1235
      %v1374 = vsel %vm982, %v1043, %v1242
      %v1375 = vsel %vm982, %v1045, %v1249
      %v1376 = vsel %vm982, %v1047, %v1256
      %v1377 = vsel %vm982, %v1049, %v1263
      %v1378 = vsel %vm982, %v1053, %v1270
      %v1379 = vsel %vm982, %v1148, %v1325
      %v1380 = vsel %vm982, %v1155, %v1326
      %v1381 = vsel %vm982, %v1162, %v1327
      %v1382 = vsel %vm982, %v1169, %v1328
      %v1383 = vsel %vm982, %v1176, %v1329
      %v1384 = vsel %vm982, %v1183, %v1330
      %v1385 = vsel %vm982, %v1190, %v1331
      %v1386 = vsel %vm982, %v1197, %v1332
      %v1387 = vsel %vm982, %v1204, %v1333
      %v1388 = vsel %vm982, %v1211, %v1334
      %v1389 = vsel %vm982, %v1218, %v1335
      %v1390 = vsel %vm982, %v1225, %v1336
      %v1391 = vsel %vm982, %v1232, %v1337
      %v1392 = vsel %vm982, %v1239, %v1338
      %v1393 = vsel %vm982, %v1246, %v1339
      %v1394 = vsel %vm982, %v1253, %v1340
      %v1395 = vsel %vm982, %v1260, %v1341
      %v1396 = vsel %vm982, %v1267, %v1342
      %vm1397 = vsmask.f32 7424
      %v1399 = vshrl.u32 %v983, 16
      %v1401 = vshll.u32 %v983, 16
      %v1403 = vrot.slane %v1401, 1
      %v1404 = vor.u32 %v1399, %v1403
      %v1406 = vshll.u32 %v1001, 16
      %v1408 = vrot.slane %v1406, 1
      %v1409 = vsel %vm1397, %v1404, %v1408
      %v1411 = vshrl.u32 %v984, 16
      %v1413 = vshll.u32 %v984, 16
      %v1415 = vrot.slane %v1413, 1
      %v1416 = vor.u32 %v1411, %v1415
      %v1418 = vshll.u32 %v1002, 16
      %v1420 = vrot.slane %v1418, 1
      %v1421 = vsel %vm1397, %v1416, %v1420
      %v1423 = vshrl.u32 %v985, 16
      %v1425 = vshll.u32 %v985, 16
      %v1427 = vrot.slane %v1425, 1
      %v1428 = vor.u32 %v1423, %v1427
      %v1430 = vshll.u32 %v1003, 16
      %v1432 = vrot.slane %v1430, 1
      %v1433 = vsel %vm1397, %v1428, %v1432
      %v1435 = vshrl.u32 %v986, 16
      %v1437 = vshll.u32 %v986, 16
      %v1439 = vrot.slane %v1437, 1
      %v1440 = vor.u32 %v1435, %v1439
      %v1442 = vshll.u32 %v1004, 16
      %v1444 = vrot.slane %v1442, 1
      %v1445 = vsel %vm1397, %v1440, %v1444
      %v1447 = vshrl.u32 %v987, 16
      %v1449 = vshll.u32 %v987, 16
      %v1451 = vrot.slane %v1449, 1
      %v1452 = vor.u32 %v1447, %v1451
      %v1454 = vshll.u32 %v1005, 16
      %v1456 = vrot.slane %v1454, 1
      %v1457 = vsel %vm1397, %v1452, %v1456
      %v1459 = vshrl.u32 %v988, 16
      %v1461 = vshll.u32 %v988, 16
      %v1463 = vrot.slane %v1461, 1
      %v1464 = vor.u32 %v1459, %v1463
      %v1466 = vshll.u32 %v1006, 16
      %v1468 = vrot.slane %v1466, 1
      %v1469 = vsel %vm1397, %v1464, %v1468
      %v1471 = vshrl.u32 %v989, 16
      %v1473 = vshll.u32 %v989, 16
      %v1475 = vrot.slane %v1473, 1
      %v1476 = vor.u32 %v1471, %v1475
      %v1478 = vshll.u32 %v1007, 16
      %v1480 = vrot.slane %v1478, 1
      %v1481 = vsel %vm1397, %v1476, %v1480
      %v1483 = vshrl.u32 %v990, 16
      %v1485 = vshll.u32 %v990, 16
      %v1487 = vrot.slane %v1485, 1
      %v1488 = vor.u32 %v1483, %v1487
      %v1490 = vshll.u32 %v1008, 16
      %v1492 = vrot.slane %v1490, 1
      %v1493 = vsel %vm1397, %v1488, %v1492
      %v1495 = vshrl.u32 %v991, 16
      %v1497 = vshll.u32 %v991, 16
      %v1499 = vrot.slane %v1497, 1
      %v1500 = vor.u32 %v1495, %v1499
      %v1502 = vshll.u32 %v1009, 16
      %v1504 = vrot.slane %v1502, 1
      %v1505 = vsel %vm1397, %v1500, %v1504
      %v1507 = vshrl.u32 %v992, 16
      %v1509 = vshll.u32 %v992, 16
      %v1511 = vrot.slane %v1509, 1
      %v1512 = vor.u32 %v1507, %v1511
      %v1514 = vshll.u32 %v1010, 16
      %v1516 = vrot.slane %v1514, 1
      %v1517 = vsel %vm1397, %v1512, %v1516
      %v1519 = vshrl.u32 %v993, 16
      %v1521 = vshll.u32 %v993, 16
      %v1523 = vrot.slane %v1521, 1
      %v1524 = vor.u32 %v1519, %v1523
      %v1526 = vshll.u32 %v1011, 16
      %v1528 = vrot.slane %v1526, 1
      %v1529 = vsel %vm1397, %v1524, %v1528
      %v1531 = vshrl.u32 %v994, 16
      %v1533 = vshll.u32 %v994, 16
      %v1535 = vrot.slane %v1533, 1
      %v1536 = vor.u32 %v1531, %v1535
      %v1538 = vshll.u32 %v1012, 16
      %v1540 = vrot.slane %v1538, 1
      %v1541 = vsel %vm1397, %v1536, %v1540
      %v1543 = vshrl.u32 %v995, 16
      %v1545 = vshll.u32 %v995, 16
      %v1547 = vrot.slane %v1545, 1
      %v1548 = vor.u32 %v1543, %v1547
      %v1550 = vshll.u32 %v1013, 16
      %v1552 = vrot.slane %v1550, 1
      %v1553 = vsel %vm1397, %v1548, %v1552
      %v1555 = vshrl.u32 %v996, 16
      %v1557 = vshll.u32 %v996, 16
      %v1559 = vrot.slane %v1557, 1
      %v1560 = vor.u32 %v1555, %v1559
      %v1562 = vshll.u32 %v1014, 16
      %v1564 = vrot.slane %v1562, 1
      %v1565 = vsel %vm1397, %v1560, %v1564
      %v1567 = vshrl.u32 %v997, 16
      %v1569 = vshll.u32 %v997, 16
      %v1571 = vrot.slane %v1569, 1
      %v1572 = vor.u32 %v1567, %v1571
      %v1574 = vshll.u32 %v1015, 16
      %v1576 = vrot.slane %v1574, 1
      %v1577 = vsel %vm1397, %v1572, %v1576
      %v1579 = vshrl.u32 %v998, 16
      %v1581 = vshll.u32 %v998, 16
      %v1583 = vrot.slane %v1581, 1
      %v1584 = vor.u32 %v1579, %v1583
      %v1586 = vshll.u32 %v1016, 16
      %v1588 = vrot.slane %v1586, 1
      %v1589 = vsel %vm1397, %v1584, %v1588
      %vm1638 = vcmask 1046528
      %v1639 = vrot.slane %v983, 1
      %v1640 = vrot.slane %v1001, 1
      %v1641 = vsel %vm1638, %v1639, %v1640
      %v1642 = vrot.slane %v984, 1
      %v1643 = vrot.slane %v1002, 1
      %v1644 = vsel %vm1638, %v1642, %v1643
      %v1645 = vrot.slane %v985, 1
      %v1646 = vrot.slane %v1003, 1
      %v1647 = vsel %vm1638, %v1645, %v1646
      %v1648 = vrot.slane %v986, 1
      %v1649 = vrot.slane %v1004, 1
      %v1650 = vsel %vm1638, %v1648, %v1649
      %v1651 = vrot.slane %v987, 1
      %v1652 = vrot.slane %v1005, 1
      %v1653 = vsel %vm1638, %v1651, %v1652
      %v1654 = vrot.slane %v988, 1
      %v1655 = vrot.slane %v1006, 1
      %v1656 = vsel %vm1638, %v1654, %v1655
      %v1657 = vrot.slane %v989, 1
      %v1658 = vrot.slane %v1007, 1
      %v1659 = vsel %vm1638, %v1657, %v1658
      %v1660 = vrot.slane %v990, 1
      %v1661 = vrot.slane %v1008, 1
      %v1662 = vsel %vm1638, %v1660, %v1661
      %v1663 = vrot.slane %v991, 1
      %v1664 = vrot.slane %v1009, 1
      %v1665 = vsel %vm1638, %v1663, %v1664
      %v1666 = vrot.slane %v992, 1
      %v1667 = vrot.slane %v1010, 1
      %v1668 = vsel %vm1638, %v1666, %v1667
      %v1669 = vrot.slane %v993, 1
      %v1670 = vrot.slane %v1011, 1
      %v1671 = vsel %vm1638, %v1669, %v1670
      %v1672 = vrot.slane %v994, 1
      %v1673 = vrot.slane %v1012, 1
      %v1674 = vsel %vm1638, %v1672, %v1673
      %v1675 = vrot.slane %v995, 1
      %v1676 = vrot.slane %v1013, 1
      %v1677 = vsel %vm1638, %v1675, %v1676
      %v1678 = vrot.slane %v996, 1
      %v1679 = vrot.slane %v1014, 1
      %v1680 = vsel %vm1638, %v1678, %v1679
      %v1681 = vrot.slane %v997, 1
      %v1682 = vrot.slane %v1015, 1
      %v1683 = vsel %vm1638, %v1681, %v1682
      %v1684 = vrot.slane %v998, 1
      %v1685 = vrot.slane %v1016, 1
      %v1686 = vsel %vm1638, %v1684, %v1685
      %v1704 = vshrl.u32 %v999, 16
      %v1706 = vshll.u32 %v999, 16
      %v1708 = vrot.slane %v1706, 1
      %v1709 = vor.u32 %v1704, %v1708
      %v1711 = vshll.u32 %v1017, 16
      %v1713 = vrot.slane %v1711, 1
      %v1714 = vsel %vm1397, %v1709, %v1713
      %v1718 = vrot.slane %v999, 1
      %v1719 = vrot.slane %v1017, 1
      %v1720 = vsel %vm1638, %v1718, %v1719
      %v1723 = vshrl.u32 %v1000, 16
      %v1725 = vshll.u32 %v1000, 16
      %v1727 = vrot.slane %v1725, 1
      %v1728 = vor.u32 %v1723, %v1727
      %v1730 = vshll.u32 %v1018, 16
      %v1732 = vrot.slane %v1730, 1
      %v1733 = vsel %vm1397, %v1728, %v1732
      %v1737 = vrot.slane %v1000, 1
      %v1738 = vrot.slane %v1018, 1
      %v1739 = vsel %vm1638, %v1737, %v1738
      %v1742 = vshrl.u32 %v1361, 16
      %v1744 = vshll.u32 %v1361, 16
      %v1746 = vrot.slane %v1744, 1
      %v1747 = vor.u32 %v1742, %v1746
      %v1749 = vshll.u32 %v1379, 16
      %v1751 = vrot.slane %v1749, 1
      %v1752 = vsel %vm1397, %v1747, %v1751
      %v1754 = vshrl.u32 %v1362, 16
      %v1756 = vshll.u32 %v1362, 16
      %v1758 = vrot.slane %v1756, 1
      %v1759 = vor.u32 %v1754, %v1758
      %v1761 = vshll.u32 %v1380, 16
      %v1763 = vrot.slane %v1761, 1
      %v1764 = vsel %vm1397, %v1759, %v1763
      %v1766 = vshrl.u32 %v1363, 16
      %v1768 = vshll.u32 %v1363, 16
      %v1770 = vrot.slane %v1768, 1
      %v1771 = vor.u32 %v1766, %v1770
      %v1773 = vshll.u32 %v1381, 16
      %v1775 = vrot.slane %v1773, 1
      %v1776 = vsel %vm1397, %v1771, %v1775
      %v1778 = vshrl.u32 %v1364, 16
      %v1780 = vshll.u32 %v1364, 16
      %v1782 = vrot.slane %v1780, 1
      %v1783 = vor.u32 %v1778, %v1782
      %v1785 = vshll.u32 %v1382, 16
      %v1787 = vrot.slane %v1785, 1
      %v1788 = vsel %vm1397, %v1783, %v1787
      %v1790 = vshrl.u32 %v1365, 16
      %v1792 = vshll.u32 %v1365, 16
      %v1794 = vrot.slane %v1792, 1
      %v1795 = vor.u32 %v1790, %v1794
      %v1797 = vshll.u32 %v1383, 16
      %v1799 = vrot.slane %v1797, 1
      %v1800 = vsel %vm1397, %v1795, %v1799
      %v1802 = vshrl.u32 %v1366, 16
      %v1804 = vshll.u32 %v1366, 16
      %v1806 = vrot.slane %v1804, 1
      %v1807 = vor.u32 %v1802, %v1806
      %v1809 = vshll.u32 %v1384, 16
      %v1811 = vrot.slane %v1809, 1
      %v1812 = vsel %vm1397, %v1807, %v1811
      %v1814 = vshrl.u32 %v1367, 16
      %v1816 = vshll.u32 %v1367, 16
      %v1818 = vrot.slane %v1816, 1
      %v1819 = vor.u32 %v1814, %v1818
      %v1821 = vshll.u32 %v1385, 16
      %v1823 = vrot.slane %v1821, 1
      %v1824 = vsel %vm1397, %v1819, %v1823
      %v1826 = vshrl.u32 %v1368, 16
      %v1828 = vshll.u32 %v1368, 16
      %v1830 = vrot.slane %v1828, 1
      %v1831 = vor.u32 %v1826, %v1830
      %v1833 = vshll.u32 %v1386, 16
      %v1835 = vrot.slane %v1833, 1
      %v1836 = vsel %vm1397, %v1831, %v1835
      %v1838 = vshrl.u32 %v1369, 16
      %v1840 = vshll.u32 %v1369, 16
      %v1842 = vrot.slane %v1840, 1
      %v1843 = vor.u32 %v1838, %v1842
      %v1845 = vshll.u32 %v1387, 16
      %v1847 = vrot.slane %v1845, 1
      %v1848 = vsel %vm1397, %v1843, %v1847
      %v1850 = vshrl.u32 %v1370, 16
      %v1852 = vshll.u32 %v1370, 16
      %v1854 = vrot.slane %v1852, 1
      %v1855 = vor.u32 %v1850, %v1854
      %v1857 = vshll.u32 %v1388, 16
      %v1859 = vrot.slane %v1857, 1
      %v1860 = vsel %vm1397, %v1855, %v1859
      %v1862 = vshrl.u32 %v1371, 16
      %v1864 = vshll.u32 %v1371, 16
      %v1866 = vrot.slane %v1864, 1
      %v1867 = vor.u32 %v1862, %v1866
      %v1869 = vshll.u32 %v1389, 16
      %v1871 = vrot.slane %v1869, 1
      %v1872 = vsel %vm1397, %v1867, %v1871
      %v1874 = vshrl.u32 %v1372, 16
      %v1876 = vshll.u32 %v1372, 16
      %v1878 = vrot.slane %v1876, 1
      %v1879 = vor.u32 %v1874, %v1878
      %v1881 = vshll.u32 %v1390, 16
      %v1883 = vrot.slane %v1881, 1
      %v1884 = vsel %vm1397, %v1879, %v1883
      %v1886 = vshrl.u32 %v1373, 16
      %v1888 = vshll.u32 %v1373, 16
      %v1890 = vrot.slane %v1888, 1
      %v1891 = vor.u32 %v1886, %v1890
      %v1893 = vshll.u32 %v1391, 16
      %v1895 = vrot.slane %v1893, 1
      %v1896 = vsel %vm1397, %v1891, %v1895
      %v1898 = vshrl.u32 %v1374, 16
      %v1900 = vshll.u32 %v1374, 16
      %v1902 = vrot.slane %v1900, 1
      %v1903 = vor.u32 %v1898, %v1902
      %v1905 = vshll.u32 %v1392, 16
      %v1907 = vrot.slane %v1905, 1
      %v1908 = vsel %vm1397, %v1903, %v1907
      %v1910 = vshrl.u32 %v1375, 16
      %v1912 = vshll.u32 %v1375, 16
      %v1914 = vrot.slane %v1912, 1
      %v1915 = vor.u32 %v1910, %v1914
      %v1917 = vshll.u32 %v1393, 16
      %v1919 = vrot.slane %v1917, 1
      %v1920 = vsel %vm1397, %v1915, %v1919
      %v1922 = vshrl.u32 %v1376, 16
      %v1924 = vshll.u32 %v1376, 16
      %v1926 = vrot.slane %v1924, 1
      %v1927 = vor.u32 %v1922, %v1926
      %v1929 = vshll.u32 %v1394, 16
      %v1931 = vrot.slane %v1929, 1
      %v1932 = vsel %vm1397, %v1927, %v1931
      %v1981 = vrot.slane %v1361, 1
      %v1982 = vrot.slane %v1379, 1
      %v1983 = vsel %vm1638, %v1981, %v1982
      %v1984 = vrot.slane %v1362, 1
      %v1985 = vrot.slane %v1380, 1
      %v1986 = vsel %vm1638, %v1984, %v1985
      %v1987 = vrot.slane %v1363, 1
      %v1988 = vrot.slane %v1381, 1
      %v1989 = vsel %vm1638, %v1987, %v1988
      %v1990 = vrot.slane %v1364, 1
      %v1991 = vrot.slane %v1382, 1
      %v1992 = vsel %vm1638, %v1990, %v1991
      %v1993 = vrot.slane %v1365, 1
      %v1994 = vrot.slane %v1383, 1
      %v1995 = vsel %vm1638, %v1993, %v1994
      %v1996 = vrot.slane %v1366, 1
      %v1997 = vrot.slane %v1384, 1
      %v1998 = vsel %vm1638, %v1996, %v1997
      %v1999 = vrot.slane %v1367, 1
      %v2000 = vrot.slane %v1385, 1
      %v2001 = vsel %vm1638, %v1999, %v2000
      %v2002 = vrot.slane %v1368, 1
      %v2003 = vrot.slane %v1386, 1
      %v2004 = vsel %vm1638, %v2002, %v2003
      %v2005 = vrot.slane %v1369, 1
      %v2006 = vrot.slane %v1387, 1
      %v2007 = vsel %vm1638, %v2005, %v2006
      %v2008 = vrot.slane %v1370, 1
      %v2009 = vrot.slane %v1388, 1
      %v2010 = vsel %vm1638, %v2008, %v2009
      %v2011 = vrot.slane %v1371, 1
      %v2012 = vrot.slane %v1389, 1
      %v2013 = vsel %vm1638, %v2011, %v2012
      %v2014 = vrot.slane %v1372, 1
      %v2015 = vrot.slane %v1390, 1
      %v2016 = vsel %vm1638, %v2014, %v2015
      %v2017 = vrot.slane %v1373, 1
      %v2018 = vrot.slane %v1391, 1
      %v2019 = vsel %vm1638, %v2017, %v2018
      %v2020 = vrot.slane %v1374, 1
      %v2021 = vrot.slane %v1392, 1
      %v2022 = vsel %vm1638, %v2020, %v2021
      %v2023 = vrot.slane %v1375, 1
      %v2024 = vrot.slane %v1393, 1
      %v2025 = vsel %vm1638, %v2023, %v2024
      %v2026 = vrot.slane %v1376, 1
      %v2027 = vrot.slane %v1394, 1
      %v2028 = vsel %vm1638, %v2026, %v2027
      %v2046 = vshrl.u32 %v1377, 16
      %v2048 = vshll.u32 %v1377, 16
      %v2050 = vrot.slane %v2048, 1
      %v2051 = vor.u32 %v2046, %v2050
      %v2053 = vshll.u32 %v1395, 16
      %v2055 = vrot.slane %v2053, 1
      %v2056 = vsel %vm1397, %v2051, %v2055
      %v2060 = vrot.slane %v1377, 1
      %v2061 = vrot.slane %v1395, 1
      %v2062 = vsel %vm1638, %v2060, %v2061
      %v2064 = vshrl.u32 %v1381, 16
      %v2066 = vshrl.u32 %v1382, 16
      %v2068 = vshrl.u32 %v1383, 16
      %v2070 = vshrl.u32 %v1384, 16
      %v2072 = vshrl.u32 %v1385, 16
      %v2074 = vshrl.u32 %v1386, 16
      %v2076 = vshrl.u32 %v1387, 16
      %v2078 = vshrl.u32 %v1388, 16
      %v2080 = vshrl.u32 %v1389, 16
      %v2082 = vshrl.u32 %v1390, 16
      %v2084 = vshrl.u32 %v1391, 16
      %v2086 = vshrl.u32 %v1392, 16
      %v2088 = vshrl.u32 %v1393, 16
      %v2090 = vshrl.u32 %v1394, 16
      %v2092 = vshrl.u32 %v1395, 16
      %v2095 = vshrl.u32 %v1378, 16
      %v2097 = vshll.u32 %v1378, 16
      %v2099 = vrot.slane %v2097, 1
      %v2100 = vor.u32 %v2095, %v2099
      %v2102 = vshll.u32 %v1396, 16
      %v2104 = vrot.slane %v2102, 1
      %v2105 = vsel %vm1397, %v2100, %v2104
      %v2106 = vshrl.u32 %v1396, 16
      %v2109 = vshrl.u32 %v1776, 16
      %v2111 = vshll.u32 %v1776, 16
      %v2113 = vrot.slane %v2111, 1
      %v2114 = vor.u32 %v2109, %v2113
      %v2116 = vshll.u32 %v2064, 16
      %v2118 = vrot.slane %v2116, 1
      %v2119 = vsel %vm1397, %v2114, %v2118
      %v2121 = vshrl.u32 %v1788, 16
      %v2123 = vshll.u32 %v1788, 16
      %v2125 = vrot.slane %v2123, 1
      %v2126 = vor.u32 %v2121, %v2125
      %v2128 = vshll.u32 %v2066, 16
      %v2130 = vrot.slane %v2128, 1
      %v2131 = vsel %vm1397, %v2126, %v2130
      %v2133 = vshrl.u32 %v1800, 16
      %v2135 = vshll.u32 %v1800, 16
      %v2137 = vrot.slane %v2135, 1
      %v2138 = vor.u32 %v2133, %v2137
      %v2140 = vshll.u32 %v2068, 16
      %v2142 = vrot.slane %v2140, 1
      %v2143 = vsel %vm1397, %v2138, %v2142
      %v2145 = vshrl.u32 %v1812, 16
      %v2147 = vshll.u32 %v1812, 16
      %v2149 = vrot.slane %v2147, 1
      %v2150 = vor.u32 %v2145, %v2149
      %v2152 = vshll.u32 %v2070, 16
      %v2154 = vrot.slane %v2152, 1
      %v2155 = vsel %vm1397, %v2150, %v2154
      %v2157 = vshrl.u32 %v1824, 16
      %v2159 = vshll.u32 %v1824, 16
      %v2161 = vrot.slane %v2159, 1
      %v2162 = vor.u32 %v2157, %v2161
      %v2164 = vshll.u32 %v2072, 16
      %v2166 = vrot.slane %v2164, 1
      %v2167 = vsel %vm1397, %v2162, %v2166
      %v2169 = vshrl.u32 %v1836, 16
      %v2171 = vshll.u32 %v1836, 16
      %v2173 = vrot.slane %v2171, 1
      %v2174 = vor.u32 %v2169, %v2173
      %v2176 = vshll.u32 %v2074, 16
      %v2178 = vrot.slane %v2176, 1
      %v2179 = vsel %vm1397, %v2174, %v2178
      %v2181 = vshrl.u32 %v1848, 16
      %v2183 = vshll.u32 %v1848, 16
      %v2185 = vrot.slane %v2183, 1
      %v2186 = vor.u32 %v2181, %v2185
      %v2188 = vshll.u32 %v2076, 16
      %v2190 = vrot.slane %v2188, 1
      %v2191 = vsel %vm1397, %v2186, %v2190
      %v2193 = vshrl.u32 %v1860, 16
      %v2195 = vshll.u32 %v1860, 16
      %v2197 = vrot.slane %v2195, 1
      %v2198 = vor.u32 %v2193, %v2197
      %v2200 = vshll.u32 %v2078, 16
      %v2202 = vrot.slane %v2200, 1
      %v2203 = vsel %vm1397, %v2198, %v2202
      %v2205 = vshrl.u32 %v1872, 16
      %v2207 = vshll.u32 %v1872, 16
      %v2209 = vrot.slane %v2207, 1
      %v2210 = vor.u32 %v2205, %v2209
      %v2212 = vshll.u32 %v2080, 16
      %v2214 = vrot.slane %v2212, 1
      %v2215 = vsel %vm1397, %v2210, %v2214
      %v2217 = vshrl.u32 %v1884, 16
      %v2219 = vshll.u32 %v1884, 16
      %v2221 = vrot.slane %v2219, 1
      %v2222 = vor.u32 %v2217, %v2221
      %v2224 = vshll.u32 %v2082, 16
      %v2226 = vrot.slane %v2224, 1
      %v2227 = vsel %vm1397, %v2222, %v2226
      %v2229 = vshrl.u32 %v1896, 16
      %v2231 = vshll.u32 %v1896, 16
      %v2233 = vrot.slane %v2231, 1
      %v2234 = vor.u32 %v2229, %v2233
      %v2236 = vshll.u32 %v2084, 16
      %v2238 = vrot.slane %v2236, 1
      %v2239 = vsel %vm1397, %v2234, %v2238
      %v2241 = vshrl.u32 %v1908, 16
      %v2243 = vshll.u32 %v1908, 16
      %v2245 = vrot.slane %v2243, 1
      %v2246 = vor.u32 %v2241, %v2245
      %v2248 = vshll.u32 %v2086, 16
      %v2250 = vrot.slane %v2248, 1
      %v2251 = vsel %vm1397, %v2246, %v2250
      %v2253 = vshrl.u32 %v1920, 16
      %v2255 = vshll.u32 %v1920, 16
      %v2257 = vrot.slane %v2255, 1
      %v2258 = vor.u32 %v2253, %v2257
      %v2260 = vshll.u32 %v2088, 16
      %v2262 = vrot.slane %v2260, 1
      %v2263 = vsel %vm1397, %v2258, %v2262
      %v2265 = vshrl.u32 %v1932, 16
      %v2267 = vshll.u32 %v1932, 16
      %v2269 = vrot.slane %v2267, 1
      %v2270 = vor.u32 %v2265, %v2269
      %v2272 = vshll.u32 %v2090, 16
      %v2274 = vrot.slane %v2272, 1
      %v2275 = vsel %vm1397, %v2270, %v2274
      %v2277 = vshrl.u32 %v2056, 16
      %v2279 = vshll.u32 %v2056, 16
      %v2281 = vrot.slane %v2279, 1
      %v2282 = vor.u32 %v2277, %v2281
      %v2284 = vshll.u32 %v2092, 16
      %v2286 = vrot.slane %v2284, 1
      %v2287 = vsel %vm1397, %v2282, %v2286
      %v2289 = vshrl.u32 %v2105, 16
      %v2291 = vshll.u32 %v2105, 16
      %v2293 = vrot.slane %v2291, 1
      %v2294 = vor.u32 %v2289, %v2293
      %v2296 = vshll.u32 %v2106, 16
      %v2298 = vrot.slane %v2296, 1
      %v2299 = vsel %vm1397, %v2294, %v2298
      %v2317 = vld [vmem:[%s6] sm:$0xf]
      %v2318 = vld [vmem:[%s6 + $0x4] sm:$0xf]
      %v2319 = vld [vmem:[%s6 + $0x8] sm:$0xf]
      %v2320 = vld [vmem:[%s6 + $0xc] sm:$0xf]
      %v2321 = vld [vmem:[%s6 + $0x10] sm:$0xf]
      %v2322 = vld [vmem:[%s6 + $0x14] sm:$0xf]
      %v2323 = vld [vmem:[%s6 + $0x18] sm:$0xf]
      %v2324 = vld [vmem:[%s6 + $0x1c] sm:$0xf]
      %v2325 = vld [vmem:[%s6 + $0x20] sm:$0xf]
      %v2326 = vld [vmem:[%s6 + $0x24] sm:$0xf]
      %v2327 = vld [vmem:[%s6 + $0x28] sm:$0xf]
      %v2328 = vld [vmem:[%s6 + $0x2c] sm:$0xf]
      %v2329 = vld [vmem:[%s6 + $0x30] sm:$0xf]
      %v2330 = vld [vmem:[%s6 + $0x34] sm:$0xf]
      %v2331 = vld [vmem:[%s6 + $0x38] sm:$0xf]
      %v2332 = vld [vmem:[%s6 + $0x3c] sm:$0xf]
      %v2333 = vld [vmem:[%s6 + $0x40] sm:$0xf]
      %v2334 = vld [vmem:[%s6 + $0x44] sm:$0xf]
      %v2335 = vld [vmem:[%s6 + $0x48] sm:$0xf]
      %v2336 = vld [vmem:[%s6 + $0x4c] sm:$0xf]
      %v2337 = vld [vmem:[%s6 + $0x50] sm:$0xf]
      %v2338 = vld [vmem:[%s6 + $0x54] sm:$0xf]
      %v2339 = vld [vmem:[%s6 + $0x58] sm:$0xf]
      %v2340 = vld [vmem:[%s6 + $0x5c] sm:$0xf]
      %v2341 = vld [vmem:[%s6 + $0x60] sm:$0xf]
      %v2342 = vld [vmem:[%s6 + $0x64] sm:$0xf]
      %v2343 = vld [vmem:[%s6 + $0x68] sm:$0xf]
      %v2344 = vld [vmem:[%s6 + $0x6c] sm:$0xf]
      %v2345 = vld [vmem:[%s6 + $0x70] sm:$0xf]
      %v2346 = vld [vmem:[%s6 + $0x74] sm:$0xf]
      %v2347 = vld [vmem:[%s6 + $0x78] sm:$0xf]
      %v2348 = vld [vmem:[%s6 + $0x7c] sm:$0xf]
      %v2349 = vld [vmem:[%s6 + $0x80] sm:$0xf]
      %v2350 = vld [vmem:[%s6 + $0x84] sm:$0xf]
      %v2351 = vld [vmem:[%s6 + $0x88] sm:$0xf]
      %v2352 = vld [vmem:[%s6 + $0x8c] sm:$0xf]
      %v2353 = vld [vmem:[%s6 + $0x90] sm:$0xf]
      %v2354 = vld [vmem:[%s6 + $0x94] sm:$0xf]
      %v2355 = vld [vmem:[%s6 + $0x98] sm:$0xf]
      %v2356 = vld [vmem:[%s6 + $0x9c] sm:$0xf]
      %v2357 = vld [vmem:[%s6 + $0xa0] sm:$0xf]
      %v2358 = vld [vmem:[%s6 + $0xa4] sm:$0xf]
      %v2359 = vld [vmem:[%s6 + $0xa8] sm:$0xf]
      %v2360 = vld [vmem:[%s6 + $0xac] sm:$0xf]
      %v2361 = vld [vmem:[%s6 + $0xb0] sm:$0xf]
      %v2362 = vld [vmem:[%s6 + $0xb4] sm:$0xf]
      %v2363 = vld [vmem:[%s6 + $0xb8] sm:$0xf]
      %v2364 = vld [vmem:[%s6 + $0xbc] sm:$0xf]
      %v2365 = vld [vmem:[%s6 + $0xc0] sm:$0xf]
      %v2366 = vld [vmem:[%s6 + $0xc4] sm:$0xf]
      %v2367 = vld [vmem:[%s6 + $0xc8] sm:$0xf]
      %v2368 = vld [vmem:[%s6 + $0xcc] sm:$0xf]
      %v2369 = vld [vmem:[%s6 + $0xd0] sm:$0xf]
      %v2370 = vld [vmem:[%s6 + $0xd4] sm:$0xf]
      %v2371 = vld [vmem:[%s6 + $0xd8] sm:$0xf]
      %v2372 = vld [vmem:[%s6 + $0xdc] sm:$0xf]
      %v2373 = vld [vmem:[%s6 + $0xe0] sm:$0xf]
      %v2374 = vld [vmem:[%s6 + $0xe4] sm:$0xf]
      %v2375 = vld [vmem:[%s6 + $0xe8] sm:$0xf]
      %v2376 = vld [vmem:[%s6 + $0xec] sm:$0xf]
      %v2377 = vld [vmem:[%s6 + $0xf0] sm:$0xf]
      %v2378 = vld [vmem:[%s6 + $0xf4] sm:$0xf]
      %v2379 = vld [vmem:[%s6 + $0xf8] sm:$0xf]
      %v2380 = vld [vmem:[%s6 + $0xfc] sm:$0xf]
      %v2381 = vld [vmem:[%s6 + $0x100] sm:$0xf]
      %v2382 = vld [vmem:[%s6 + $0x104] sm:$0xf]
      %v2383 = vld [vmem:[%s6 + $0x108] sm:$0xf]
      %v2384 = vld [vmem:[%s6 + $0x10c] sm:$0xf]
      %v2385 = vld [vmem:[%s6 + $0x110] sm:$0xf]
      %v2386 = vld [vmem:[%s6 + $0x114] sm:$0xf]
      %v2387 = vld [vmem:[%s6 + $0x118] sm:$0xf]
      %v2388 = vld [vmem:[%s6 + $0x11c] sm:$0xf]
      %v2389 = vld [vmem:[%s6 + $0x120] sm:$0xf]
      %v2390 = vld [vmem:[%s6 + $0x124] sm:$0xf]
      %v2391 = vld [vmem:[%s6 + $0x128] sm:$0xf]
      %v2392 = vld [vmem:[%s6 + $0x12c] sm:$0xf]
      %v2393 = vld [vmem:[%s6 + $0x130] sm:$0xf]
      %v2394 = vld [vmem:[%s6 + $0x134] sm:$0xf]
      %v2395 = vld [vmem:[%s6 + $0x138] sm:$0xf]
      %v2396 = vld [vmem:[%s6 + $0x13c] sm:$0xf]
      %v2397 = vld [vmem:[%s6 + $0x140] sm:$0xf]
      %v2398 = vld [vmem:[%s6 + $0x144] sm:$0xf]
      %v2399 = vld [vmem:[%s6 + $0x148] sm:$0xf]
      %v2400 = vld [vmem:[%s6 + $0x14c] sm:$0xf]
      %v2401 = vld [vmem:[%s6 + $0x150] sm:$0xf]
      %v2402 = vld [vmem:[%s6 + $0x154] sm:$0xf]
      %v2403 = vld [vmem:[%s6 + $0x158] sm:$0xf]
      %v2404 = vld [vmem:[%s6 + $0x15c] sm:$0xf]
      %v2405 = vld [vmem:[%s6 + $0x160] sm:$0xf]
      %v2406 = vld [vmem:[%s6 + $0x164] sm:$0xf]
      %v2407 = vld [vmem:[%s6 + $0x168] sm:$0xf]
      %v2408 = vld [vmem:[%s6 + $0x16c] sm:$0xf]
      %v2409 = vld [vmem:[%s6 + $0x170] sm:$0xf]
      %v2410 = vld [vmem:[%s6 + $0x174] sm:$0xf]
      %v2411 = vld [vmem:[%s6 + $0x178] sm:$0xf]
      %v2412 = vld [vmem:[%s6 + $0x17c] sm:$0xf]
      %v2413 = vld [vmem:[%s6 + $0x180] sm:$0xf]
      %v2414 = vld [vmem:[%s6 + $0x184] sm:$0xf]
      %v2415 = vld [vmem:[%s6 + $0x188] sm:$0xf]
      %v2416 = vld [vmem:[%s6 + $0x18c] sm:$0xf]
      %v2417 = vld [vmem:[%s6 + $0x190] sm:$0xf]
      %v2418 = vld [vmem:[%s6 + $0x194] sm:$0xf]
      %v2419 = vld [vmem:[%s6 + $0x198] sm:$0xf]
      %v2420 = vld [vmem:[%s6 + $0x19c] sm:$0xf]
      %v2421 = vld [vmem:[%s6 + $0x1a0] sm:$0xf]
      %v2422 = vld [vmem:[%s6 + $0x1a4] sm:$0xf]
      %v2423 = vld [vmem:[%s6 + $0x1a8] sm:$0xf]
      %v2424 = vld [vmem:[%s6 + $0x1ac] sm:$0xf]
      %v2425 = vld [vmem:[%s6 + $0x1b0] sm:$0xf]
      %v2426 = vld [vmem:[%s6 + $0x1b4] sm:$0xf]
      %v2427 = vld [vmem:[%s6 + $0x1b8] sm:$0xf]
      %v2428 = vld [vmem:[%s6 + $0x1bc] sm:$0xf]
      %v2429 = vld [vmem:[%s6 + $0x1c0] sm:$0xf]
      %v2430 = vld [vmem:[%s6 + $0x1c4] sm:$0xf]
      %v2431 = vld [vmem:[%s6 + $0x1c8] sm:$0xf]
      %v2432 = vld [vmem:[%s6 + $0x1cc] sm:$0xf]
      %v2433 = vld [vmem:[%s6 + $0x1d0] sm:$0xf]
      %v2434 = vld [vmem:[%s6 + $0x1d4] sm:$0xf]
      %v2435 = vld [vmem:[%s6 + $0x1d8] sm:$0xf]
      %v2436 = vld [vmem:[%s6 + $0x1dc] sm:$0xf]
      %v2437 = vld [vmem:[%s6 + $0x1e0] sm:$0xf]
      %v2438 = vld [vmem:[%s6 + $0x1e4] sm:$0xf]
      %v2439 = vld [vmem:[%s6 + $0x1e8] sm:$0xf]
      %v2440 = vld [vmem:[%s6 + $0x1ec] sm:$0xf]
      %v2441 = vld [vmem:[%s6 + $0x1f0] sm:$0xf]
      %v2442 = vld [vmem:[%s6 + $0x1f4] sm:$0xf]
      %v2443 = vld [vmem:[%s6 + $0x1f8] sm:$0xf]
      %v2444 = vld [vmem:[%s6 + $0x1fc] sm:$0xf]
      %v2445 = vld [vmem:[%s6 + $0x200] sm:$0xf]
      %v2446 = vld [vmem:[%s6 + $0x204] sm:$0xf]
      %v2447 = vld [vmem:[%s6 + $0x208] sm:$0xf]
      %v2448 = vld [vmem:[%s6 + $0x20c] sm:$0xf]
      %v2449 = vld [vmem:[%s6 + $0x210] sm:$0xf]
      %v2450 = vld [vmem:[%s6 + $0x214] sm:$0xf]
      %v2451 = vld [vmem:[%s6 + $0x218] sm:$0xf]
      %v2452 = vld [vmem:[%s6 + $0x21c] sm:$0xf]
      %v2453 = vld [vmem:[%s6 + $0x220] sm:$0xf]
      %v2454 = vld [vmem:[%s6 + $0x224] sm:$0xf]
      %v2455 = vld [vmem:[%s6 + $0x228] sm:$0xf]
      %v2456 = vld [vmem:[%s6 + $0x22c] sm:$0xf]
      %v2457 = vld [vmem:[%s6 + $0x230] sm:$0xf]
      %v2458 = vld [vmem:[%s6 + $0x234] sm:$0xf]
      %v2459 = vld [vmem:[%s6 + $0x238] sm:$0xf]
      %v2460 = vld [vmem:[%s6 + $0x23c] sm:$0xf]
      %v2461 = vld [vmem:[%s6 + $0x240] sm:$0xf]
      %v2462 = vld [vmem:[%s6 + $0x244] sm:$0xf]
      %v2463 = vld [vmem:[%s6 + $0x248] sm:$0xf]
      %v2464 = vld [vmem:[%s6 + $0x24c] sm:$0xf]
      %v2465 = vld [vmem:[%s6 + $0x250] sm:$0xf]
      %v2466 = vld [vmem:[%s6 + $0x254] sm:$0xf]
      %v2467 = vld [vmem:[%s6 + $0x258] sm:$0xf]
      %v2468 = vld [vmem:[%s6 + $0x25c] sm:$0xf]
      %v2469 = vld [vmem:[%s6 + $0x260] sm:$0xf]
      %v2470 = vld [vmem:[%s6 + $0x264] sm:$0xf]
      %v2471 = vld [vmem:[%s6 + $0x268] sm:$0xf]
      %v2472 = vld [vmem:[%s6 + $0x26c] sm:$0xf]
      %v2473 = vld [vmem:[%s6 + $0x270] sm:$0xf]
      %v2474 = vld [vmem:[%s6 + $0x274] sm:$0xf]
      %v2475 = vld [vmem:[%s6 + $0x278] sm:$0xf]
      %v2476 = vld [vmem:[%s6 + $0x27c] sm:$0xf]
      %v2477 = vld [vmem:[%s6 + $0x280] sm:$0xf]
      %v2478 = vld [vmem:[%s6 + $0x284] sm:$0xf]
      %v2479 = vld [vmem:[%s6 + $0x288] sm:$0xf]
      %v2480 = vld [vmem:[%s6 + $0x28c] sm:$0xf]
      %v2481 = vld [vmem:[%s6 + $0x290] sm:$0xf]
      %v2482 = vld [vmem:[%s6 + $0x294] sm:$0xf]
      %v2483 = vld [vmem:[%s6 + $0x298] sm:$0xf]
      %v2484 = vld [vmem:[%s6 + $0x29c] sm:$0xf]
      %v2485 = vld [vmem:[%s6 + $0x2a0] sm:$0xf]
      %v2486 = vld [vmem:[%s6 + $0x2a4] sm:$0xf]
      %v2487 = vld [vmem:[%s6 + $0x2a8] sm:$0xf]
      %v2488 = vld [vmem:[%s6 + $0x2ac] sm:$0xf]
      %v2489 = vld [vmem:[%s6 + $0x2b0] sm:$0xf]
      %v2490 = vld [vmem:[%s6 + $0x2b4] sm:$0xf]
      %v2491 = vld [vmem:[%s6 + $0x2b8] sm:$0xf]
      %v2492 = vld [vmem:[%s6 + $0x2bc] sm:$0xf]
      %v2493 = vld [vmem:[%s6 + $0x2c0] sm:$0xf]
      %v2494 = vld [vmem:[%s6 + $0x2c4] sm:$0xf]
      %v2495 = vld [vmem:[%s6 + $0x2c8] sm:$0xf]
      %v2496 = vld [vmem:[%s6 + $0x2cc] sm:$0xf]
      %v2497 = vld [vmem:[%s6 + $0x2d0] sm:$0xf]
      %v2498 = vld [vmem:[%s6 + $0x2d4] sm:$0xf]
      %v2499 = vld [vmem:[%s6 + $0x2d8] sm:$0xf]
      %v2500 = vld [vmem:[%s6 + $0x2dc] sm:$0xf]
      %v2501 = vld [vmem:[%s6 + $0x2e0] sm:$0xf]
      %v2502 = vld [vmem:[%s6 + $0x2e4] sm:$0xf]
      %v2503 = vld [vmem:[%s6 + $0x2e8] sm:$0xf]
      %v2504 = vld [vmem:[%s6 + $0x2ec] sm:$0xf]
      %v2505 = vld [vmem:[%s6 + $0x2f0] sm:$0xf]
      %v2506 = vld [vmem:[%s6 + $0x2f4] sm:$0xf]
      %v2507 = vld [vmem:[%s6 + $0x2f8] sm:$0xf]
      %v2508 = vld [vmem:[%s6 + $0x2fc] sm:$0xf]
      %v2509 = vld [vmem:[%s6 + $0x300] sm:$0xf]
      %v2510 = vld [vmem:[%s6 + $0x304] sm:$0xf]
      %v2511 = vld [vmem:[%s6 + $0x308] sm:$0xf]
      %v2512 = vld [vmem:[%s6 + $0x30c] sm:$0xf]
      %v2513 = vld [vmem:[%s6 + $0x310] sm:$0xf]
      %v2514 = vld [vmem:[%s6 + $0x314] sm:$0xf]
      %v2515 = vld [vmem:[%s6 + $0x318] sm:$0xf]
      %v2516 = vld [vmem:[%s6 + $0x31c] sm:$0xf]
      %v2517 = vld [vmem:[%s6 + $0x320] sm:$0xf]
      %v2518 = vld [vmem:[%s6 + $0x324] sm:$0xf]
      %v2519 = vld [vmem:[%s6 + $0x328] sm:$0xf]
      %v2520 = vld [vmem:[%s6 + $0x32c] sm:$0xf]
      %v2521 = vld [vmem:[%s6 + $0x330] sm:$0xf]
      %v2522 = vld [vmem:[%s6 + $0x334] sm:$0xf]
      %v2523 = vld [vmem:[%s6 + $0x338] sm:$0xf]
      %v2524 = vld [vmem:[%s6 + $0x33c] sm:$0xf]
      %v2525 = vld [vmem:[%s6 + $0x340] sm:$0xf]
      %v2526 = vld [vmem:[%s6 + $0x344] sm:$0xf]
      %v2527 = vld [vmem:[%s6 + $0x348] sm:$0xf]
      %v2528 = vld [vmem:[%s6 + $0x34c] sm:$0xf]
      %v2529 = vld [vmem:[%s6 + $0x350] sm:$0xf]
      %v2530 = vld [vmem:[%s6 + $0x354] sm:$0xf]
      %v2531 = vld [vmem:[%s6 + $0x358] sm:$0xf]
      %v2532 = vld [vmem:[%s6 + $0x35c] sm:$0xf]
      %v2533 = vld [vmem:[%s6 + $0x360] sm:$0xf]
      %v2534 = vld [vmem:[%s6 + $0x364] sm:$0xf]
      %v2535 = vld [vmem:[%s6 + $0x368] sm:$0xf]
      %v2536 = vld [vmem:[%s6 + $0x36c] sm:$0xf]
      %v2537 = vld [vmem:[%s6 + $0x370] sm:$0xf]
      %v2538 = vld [vmem:[%s6 + $0x374] sm:$0xf]
      %v2539 = vld [vmem:[%s6 + $0x378] sm:$0xf]
      %v2540 = vld [vmem:[%s6 + $0x37c] sm:$0xf]
      %v2541 = vld [vmem:[%s6 + $0x380] sm:$0xf]
      %v2542 = vld [vmem:[%s6 + $0x384] sm:$0xf]
      %v2543 = vld [vmem:[%s6 + $0x388] sm:$0xf]
      %v2544 = vld [vmem:[%s6 + $0x38c] sm:$0xf]
      %v2545 = vld [vmem:[%s6 + $0x390] sm:$0xf]
      %v2546 = vld [vmem:[%s6 + $0x394] sm:$0xf]
      %v2547 = vld [vmem:[%s6 + $0x398] sm:$0xf]
      %v2548 = vld [vmem:[%s6 + $0x39c] sm:$0xf]
      %v2549 = vld [vmem:[%s6 + $0x3a0] sm:$0xf]
      %v2550 = vld [vmem:[%s6 + $0x3a4] sm:$0xf]
      %v2551 = vld [vmem:[%s6 + $0x3a8] sm:$0xf]
      %v2552 = vld [vmem:[%s6 + $0x3ac] sm:$0xf]
      %v2553 = vld [vmem:[%s6 + $0x3b0] sm:$0xf]
      %v2554 = vld [vmem:[%s6 + $0x3b4] sm:$0xf]
      %v2555 = vld [vmem:[%s6 + $0x3b8] sm:$0xf]
      %v2556 = vld [vmem:[%s6 + $0x3bc] sm:$0xf]
      %v2557 = vld [vmem:[%s6 + $0x3c0] sm:$0xf]
      %v2558 = vld [vmem:[%s6 + $0x3c4] sm:$0xf]
      %v2559 = vld [vmem:[%s6 + $0x3c8] sm:$0xf]
      %v2560 = vld [vmem:[%s6 + $0x3cc] sm:$0xf]
      %v2561 = vld [vmem:[%s6 + $0x3d0] sm:$0xf]
      %v2562 = vld [vmem:[%s6 + $0x3d4] sm:$0xf]
      %v2563 = vld [vmem:[%s6 + $0x3d8] sm:$0xf]
      %v2564 = vld [vmem:[%s6 + $0x3dc] sm:$0xf]
      %v2565 = vld [vmem:[%s6 + $0x3e0] sm:$0xf]
      %v2566 = vld [vmem:[%s6 + $0x3e4] sm:$0xf]
      %v2567 = vld [vmem:[%s6 + $0x3e8] sm:$0xf]
      %v2568 = vld [vmem:[%s6 + $0x3ec] sm:$0xf]
      %v2569 = vld [vmem:[%s6 + $0x3f0] sm:$0xf]
      %v2570 = vld [vmem:[%s6 + $0x3f4] sm:$0xf]
      %v2571 = vld [vmem:[%s6 + $0x3f8] sm:$0xf]
      %v2572 = vld [vmem:[%s6 + $0x3fc] sm:$0xf]
      %v2573 = vld [vmem:[%s6 + $0x400] sm:$0xf]
      %v2574 = vld [vmem:[%s6 + $0x404] sm:$0xf]
      %v2575 = vld [vmem:[%s6 + $0x408] sm:$0xf]
      %v2576 = vld [vmem:[%s6 + $0x40c] sm:$0xf]
      %v2577 = vld [vmem:[%s6 + $0x410] sm:$0xf]
      %v2578 = vld [vmem:[%s6 + $0x414] sm:$0xf]
      %v2579 = vld [vmem:[%s6 + $0x418] sm:$0xf]
      %v2580 = vld [vmem:[%s6 + $0x41c] sm:$0xf]
      %v2581 = vld [vmem:[%s6 + $0x420] sm:$0xf]
      %v2582 = vld [vmem:[%s6 + $0x424] sm:$0xf]
      %v2583 = vld [vmem:[%s6 + $0x428] sm:$0xf]
      %v2584 = vld [vmem:[%s6 + $0x42c] sm:$0xf]
      %v2585 = vld [vmem:[%s6 + $0x430] sm:$0xf]
      %v2586 = vld [vmem:[%s6 + $0x434] sm:$0xf]
      %v2587 = vld [vmem:[%s6 + $0x438] sm:$0xf]
      %v2588 = vld [vmem:[%s6 + $0x43c] sm:$0xf]
      %v2589 = vld [vmem:[%s6 + $0x440] sm:$0xf]
      %v2590 = vld [vmem:[%s6 + $0x444] sm:$0xf]
      %v2591 = vld [vmem:[%s6 + $0x448] sm:$0xf]
      %v2592 = vld [vmem:[%s6 + $0x44c] sm:$0xf]
      %v2593 = vld [vmem:[%s6 + $0x450] sm:$0xf]
      %v2594 = vld [vmem:[%s6 + $0x454] sm:$0xf]
      %v2595 = vld [vmem:[%s6 + $0x458] sm:$0xf]
      %v2596 = vld [vmem:[%s6 + $0x45c] sm:$0xf]
      %v2597 = vld [vmem:[%s6 + $0x460] sm:$0xf]
      %v2598 = vld [vmem:[%s6 + $0x464] sm:$0xf]
      %v2599 = vld [vmem:[%s6 + $0x468] sm:$0xf]
      %v2600 = vld [vmem:[%s6 + $0x46c] sm:$0xf]
      %v2601 = vld [vmem:[%s6 + $0x470] sm:$0xf]
      %v2602 = vld [vmem:[%s6 + $0x474] sm:$0xf]
      %v2603 = vld [vmem:[%s6 + $0x478] sm:$0xf]
      %v2604 = vld [vmem:[%s6 + $0x47c] sm:$0xf]
      %v2605 = vld [vmem:[%s7] sm:$0x1]
      %v2607 = vlaneseq
      %v2608 = vshrl.u32 %v2607, 7
      %v2609 = vsub.s32 0, %v2608
      %v2610 = vrot.slane %v2605, %v2609
      %v2900 = vunpack.c.l.b16 %v2317
      %v2901 = vunpack.c.l.b16 %v2318
      %v2902 = vunpack.c.l.b16 %v2319
      %v2903 = vunpack.c.l.b16 %v2320
      %v2904 = vunpack.c.l.b16 %v2321
      %v2905 = vunpack.c.l.b16 %v2322
      %v2906 = vunpack.c.l.b16 %v2323
      %v2907 = vunpack.c.l.b16 %v2324
      %v2908 = vunpack.c.l.b16 %v2325
      %v2909 = vunpack.c.l.b16 %v2326
      %v2910 = vunpack.c.l.b16 %v2327
      %v2911 = vunpack.c.l.b16 %v2328
      %v2912 = vunpack.c.l.b16 %v2329
      %v2913 = vunpack.c.l.b16 %v2330
      %v2914 = vunpack.c.l.b16 %v2331
      %v2915 = vunpack.c.l.b16 %v2332
      %v2916 = vunpack.c.l.b16 %v2333
      %v2917 = vunpack.c.l.b16 %v2334
      %v2918 = vunpack.c.l.b16 %v2335
      %v2919 = vunpack.c.l.b16 %v2336
      %v2920 = vunpack.c.l.b16 %v2337
      %v2921 = vunpack.c.l.b16 %v2338
      %v2922 = vunpack.c.l.b16 %v2339
      %v2923 = vunpack.c.l.b16 %v2340
      %v2924 = vunpack.c.l.b16 %v2341
      %v2925 = vunpack.c.l.b16 %v2342
      %v2926 = vunpack.c.l.b16 %v2343
      %v2927 = vunpack.c.l.b16 %v2344
      %v2928 = vunpack.c.l.b16 %v2345
      %v2929 = vunpack.c.l.b16 %v2346
      %v2930 = vunpack.c.l.b16 %v2347
      %v2931 = vunpack.c.l.b16 %v2348
      %v2932 = vunpack.c.l.b16 %v2349
      %v2933 = vunpack.c.l.b16 %v2350
      %v2934 = vunpack.c.l.b16 %v2351
      %v2935 = vunpack.c.l.b16 %v2352
      %v2936 = vunpack.c.l.b16 %v2353
      %v2937 = vunpack.c.l.b16 %v2354
      %v2938 = vunpack.c.l.b16 %v2355
      %v2939 = vunpack.c.l.b16 %v2356
      %v2940 = vunpack.c.l.b16 %v2357
      %v2941 = vunpack.c.l.b16 %v2358
      %v2942 = vunpack.c.l.b16 %v2359
      %v2943 = vunpack.c.l.b16 %v2360
      %v2944 = vunpack.c.l.b16 %v2361
      %v2945 = vunpack.c.l.b16 %v2362
      %v2946 = vunpack.c.l.b16 %v2363
      %v2947 = vunpack.c.l.b16 %v2364
      %v2948 = vunpack.c.l.b16 %v2365
      %v2949 = vunpack.c.l.b16 %v2366
      %v2950 = vunpack.c.l.b16 %v2367
      %v2951 = vunpack.c.l.b16 %v2368
      %v2952 = vunpack.c.l.b16 %v2369
      %v2953 = vunpack.c.l.b16 %v2370
      %v2954 = vunpack.c.l.b16 %v2371
      %v2955 = vunpack.c.l.b16 %v2372
      %v2956 = vunpack.c.l.b16 %v2373
      %v2957 = vunpack.c.l.b16 %v2374
      %v2958 = vunpack.c.l.b16 %v2375
      %v2959 = vunpack.c.l.b16 %v2376
      %v2960 = vunpack.c.l.b16 %v2377
      %v2961 = vunpack.c.l.b16 %v2378
      %v2962 = vunpack.c.l.b16 %v2379
      %v2963 = vunpack.c.l.b16 %v2380
      %v2964 = vunpack.c.l.b16 %v2381
      %v2965 = vunpack.c.l.b16 %v2382
      %v2966 = vunpack.c.l.b16 %v2383
      %v2967 = vunpack.c.l.b16 %v2384
      %v2968 = vunpack.c.l.b16 %v2385
      %v2969 = vunpack.c.l.b16 %v2386
      %v2970 = vunpack.c.l.b16 %v2387
      %v2971 = vunpack.c.l.b16 %v2388
      %v2972 = vunpack.c.l.b16 %v2389
      %v2973 = vunpack.c.l.b16 %v2390
      %v2974 = vunpack.c.l.b16 %v2391
      %v2975 = vunpack.c.l.b16 %v2392
      %v2976 = vunpack.c.l.b16 %v2393
      %v2977 = vunpack.c.l.b16 %v2394
      %v2978 = vunpack.c.l.b16 %v2395
      %v2979 = vunpack.c.l.b16 %v2396
      %v2980 = vunpack.c.l.b16 %v2397
      %v2981 = vunpack.c.l.b16 %v2398
      %v2982 = vunpack.c.l.b16 %v2399
      %v2983 = vunpack.c.l.b16 %v2400
      %v2984 = vunpack.c.l.b16 %v2401
      %v2985 = vunpack.c.l.b16 %v2402
      %v2986 = vunpack.c.l.b16 %v2403
      %v2987 = vunpack.c.l.b16 %v2404
      %v2988 = vunpack.c.l.b16 %v2405
      %v2989 = vunpack.c.l.b16 %v2406
      %v2990 = vunpack.c.l.b16 %v2407
      %v2991 = vunpack.c.l.b16 %v2408
      %v2992 = vunpack.c.l.b16 %v2409
      %v2993 = vunpack.c.l.b16 %v2410
      %v2994 = vunpack.c.l.b16 %v2411
      %v2995 = vunpack.c.l.b16 %v2412
      %v2996 = vunpack.c.l.b16 %v2413
      %v2997 = vunpack.c.l.b16 %v2414
      %v2998 = vunpack.c.l.b16 %v2415
      %v2999 = vunpack.c.l.b16 %v2416
      %v3000 = vunpack.c.l.b16 %v2417
      %v3001 = vunpack.c.l.b16 %v2418
      %v3002 = vunpack.c.l.b16 %v2419
      %v3003 = vunpack.c.l.b16 %v2420
      %v3004 = vunpack.c.l.b16 %v2421
      %v3005 = vunpack.c.l.b16 %v2422
      %v3006 = vunpack.c.l.b16 %v2423
      %v3007 = vunpack.c.l.b16 %v2424
      %v3008 = vunpack.c.l.b16 %v2425
      %v3009 = vunpack.c.l.b16 %v2426
      %v3010 = vunpack.c.l.b16 %v2427
      %v3011 = vunpack.c.l.b16 %v2428
      %v3012 = vunpack.c.l.b16 %v2429
      %v3013 = vunpack.c.l.b16 %v2430
      %v3014 = vunpack.c.l.b16 %v2431
      %v3015 = vunpack.c.l.b16 %v2432
      %v3016 = vunpack.c.l.b16 %v2433
      %v3017 = vunpack.c.l.b16 %v2434
      %v3018 = vunpack.c.l.b16 %v2435
      %v3019 = vunpack.c.l.b16 %v2436
      %v3020 = vunpack.c.l.b16 %v2437
      %v3021 = vunpack.c.l.b16 %v2438
      %v3022 = vunpack.c.l.b16 %v2439
      %v3023 = vunpack.c.l.b16 %v2440
      %v3024 = vunpack.c.l.b16 %v2441
      %v3025 = vunpack.c.l.b16 %v2442
      %v3026 = vunpack.c.l.b16 %v2443
      %v3027 = vunpack.c.l.b16 %v2444
      %v3028 = vunpack.c.l.b16 %v2445
      %v3029 = vunpack.c.l.b16 %v2446
      %v3030 = vunpack.c.l.b16 %v2447
      %v3031 = vunpack.c.l.b16 %v2448
      %v3032 = vunpack.c.l.b16 %v2449
      %v3033 = vunpack.c.l.b16 %v2450
      %v3034 = vunpack.c.l.b16 %v2451
      %v3035 = vunpack.c.l.b16 %v2452
      %v3036 = vunpack.c.l.b16 %v2453
      %v3037 = vunpack.c.l.b16 %v2454
      %v3038 = vunpack.c.l.b16 %v2455
      %v3039 = vunpack.c.l.b16 %v2456
      %v3040 = vunpack.c.l.b16 %v2457
      %v3041 = vunpack.c.l.b16 %v2458
      %v3042 = vunpack.c.l.b16 %v2459
      %v3043 = vunpack.c.l.b16 %v2460
      %v3044 = vunpack.c.l.b16 %v2461
      %v3045 = vunpack.c.l.b16 %v2462
      %v3046 = vunpack.c.l.b16 %v2463
      %v3047 = vunpack.c.l.b16 %v2464
      %v3048 = vunpack.c.l.b16 %v2465
      %v3049 = vunpack.c.l.b16 %v2466
      %v3050 = vunpack.c.l.b16 %v2467
      %v3051 = vunpack.c.l.b16 %v2468
      %v3052 = vunpack.c.l.b16 %v2469
      %v3053 = vunpack.c.l.b16 %v2470
      %v3054 = vunpack.c.l.b16 %v2471
      %v3055 = vunpack.c.l.b16 %v2472
      %v3056 = vunpack.c.l.b16 %v2473
      %v3057 = vunpack.c.l.b16 %v2474
      %v3058 = vunpack.c.l.b16 %v2475
      %v3059 = vunpack.c.l.b16 %v2476
      %v3060 = vunpack.c.l.b16 %v2477
      %v3061 = vunpack.c.l.b16 %v2478
      %v3062 = vunpack.c.l.b16 %v2479
      %v3063 = vunpack.c.l.b16 %v2480
      %v3064 = vunpack.c.l.b16 %v2481
      %v3065 = vunpack.c.l.b16 %v2482
      %v3066 = vunpack.c.l.b16 %v2483
      %v3067 = vunpack.c.l.b16 %v2484
      %v3068 = vunpack.c.l.b16 %v2485
      %v3069 = vunpack.c.l.b16 %v2486
      %v3070 = vunpack.c.l.b16 %v2487
      %v3071 = vunpack.c.l.b16 %v2488
      %v3072 = vunpack.c.l.b16 %v2489
      %v3073 = vunpack.c.l.b16 %v2490
      %v3074 = vunpack.c.l.b16 %v2491
      %v3075 = vunpack.c.l.b16 %v2492
      %v3076 = vunpack.c.l.b16 %v2493
      %v3077 = vunpack.c.l.b16 %v2494
      %v3078 = vunpack.c.l.b16 %v2495
      %v3079 = vunpack.c.l.b16 %v2496
      %v3080 = vunpack.c.l.b16 %v2497
      %v3081 = vunpack.c.l.b16 %v2498
      %v3082 = vunpack.c.l.b16 %v2499
      %v3083 = vunpack.c.l.b16 %v2500
      %v3084 = vunpack.c.l.b16 %v2501
      %v3085 = vunpack.c.l.b16 %v2502
      %v3086 = vunpack.c.l.b16 %v2503
      %v3087 = vunpack.c.l.b16 %v2504
      %v3088 = vunpack.c.l.b16 %v2505
      %v3089 = vunpack.c.l.b16 %v2506
      %v3090 = vunpack.c.l.b16 %v2507
      %v3091 = vunpack.c.l.b16 %v2508
      %v3092 = vunpack.c.l.b16 %v2509
      %v3093 = vunpack.c.l.b16 %v2510
      %v3094 = vunpack.c.l.b16 %v2511
      %v3095 = vunpack.c.l.b16 %v2512
      %v3096 = vunpack.c.l.b16 %v2513
      %v3097 = vunpack.c.l.b16 %v2514
      %v3098 = vunpack.c.l.b16 %v2515
      %v3099 = vunpack.c.l.b16 %v2516
      %v3100 = vunpack.c.l.b16 %v2517
      %v3101 = vunpack.c.l.b16 %v2518
      %v3102 = vunpack.c.l.b16 %v2519
      %v3103 = vunpack.c.l.b16 %v2520
      %v3104 = vunpack.c.l.b16 %v2521
      %v3105 = vunpack.c.l.b16 %v2522
      %v3106 = vunpack.c.l.b16 %v2523
      %v3107 = vunpack.c.l.b16 %v2524
      %v3108 = vunpack.c.l.b16 %v2525
      %v3109 = vunpack.c.l.b16 %v2526
      %v3110 = vunpack.c.l.b16 %v2527
      %v3111 = vunpack.c.l.b16 %v2528
      %v3112 = vunpack.c.l.b16 %v2529
      %v3113 = vunpack.c.l.b16 %v2530
      %v3114 = vunpack.c.l.b16 %v2531
      %v3115 = vunpack.c.l.b16 %v2532
      %v3116 = vunpack.c.l.b16 %v2533
      %v3117 = vunpack.c.l.b16 %v2534
      %v3118 = vunpack.c.l.b16 %v2535
      %v3119 = vunpack.c.l.b16 %v2536
      %v3120 = vunpack.c.l.b16 %v2537
      %v3121 = vunpack.c.l.b16 %v2538
      %v3122 = vunpack.c.l.b16 %v2539
      %v3123 = vunpack.c.l.b16 %v2540
      %v3124 = vunpack.c.l.b16 %v2541
      %v3125 = vunpack.c.l.b16 %v2542
      %v3126 = vunpack.c.l.b16 %v2543
      %v3127 = vunpack.c.l.b16 %v2544
      %v3128 = vunpack.c.l.b16 %v2545
      %v3129 = vunpack.c.l.b16 %v2546
      %v3130 = vunpack.c.l.b16 %v2547
      %v3131 = vunpack.c.l.b16 %v2548
      %v3132 = vunpack.c.l.b16 %v2549
      %v3133 = vunpack.c.l.b16 %v2550
      %v3134 = vunpack.c.l.b16 %v2551
      %v3135 = vunpack.c.l.b16 %v2552
      %v3136 = vunpack.c.l.b16 %v2553
      %v3137 = vunpack.c.l.b16 %v2554
      %v3138 = vunpack.c.l.b16 %v2555
      %v3139 = vunpack.c.l.b16 %v2556
      %v3140 = vunpack.c.l.b16 %v2557
      %v3141 = vunpack.c.l.b16 %v2558
      %v3142 = vunpack.c.l.b16 %v2559
      %v3143 = vunpack.c.l.b16 %v2560
      %v3144 = vunpack.c.l.b16 %v2561
      %v3145 = vunpack.c.l.b16 %v2562
      %v3146 = vunpack.c.l.b16 %v2563
      %v3147 = vunpack.c.l.b16 %v2564
      %v3148 = vunpack.c.l.b16 %v2565
      %v3149 = vunpack.c.l.b16 %v2566
      %v3150 = vunpack.c.l.b16 %v2567
      %v3151 = vunpack.c.l.b16 %v2568
      %v3152 = vunpack.c.l.b16 %v2569
      %v3153 = vunpack.c.l.b16 %v2570
      %v3154 = vunpack.c.l.b16 %v2571
      %v3155 = vunpack.c.l.b16 %v2572
      %v3156 = vunpack.c.l.b16 %v2573
      %v3157 = vunpack.c.l.b16 %v2574
      %v3158 = vunpack.c.l.b16 %v2575
      %v3159 = vunpack.c.l.b16 %v2576
      %v3160 = vunpack.c.l.b16 %v2577
      %v3161 = vunpack.c.l.b16 %v2578
      %v3162 = vunpack.c.l.b16 %v2579
      %v3163 = vunpack.c.l.b16 %v2580
      %v3164 = vunpack.c.l.b16 %v2581
      %v3165 = vunpack.c.l.b16 %v2582
      %v3166 = vunpack.c.l.b16 %v2583
      %v3167 = vunpack.c.l.b16 %v2584
      %v3168 = vunpack.c.l.b16 %v2585
      %v3169 = vunpack.c.l.b16 %v2586
      %v3170 = vunpack.c.l.b16 %v2587
      %v3171 = vunpack.c.l.b16 %v2588
      %v3172 = vunpack.c.l.b16 %v2589
      %v3173 = vunpack.c.l.b16 %v2590
      %v3174 = vunpack.c.l.b16 %v2591
      %v3175 = vunpack.c.l.b16 %v2592
      %v3176 = vunpack.c.l.b16 %v2593
      %v3177 = vunpack.c.l.b16 %v2594
      %v3178 = vunpack.c.l.b16 %v2595
      %v3179 = vunpack.c.l.b16 %v2596
      %v3180 = vunpack.c.l.b16 %v2597
      %v3181 = vunpack.c.l.b16 %v2598
      %v3182 = vunpack.c.l.b16 %v2599
      %v3183 = vunpack.c.l.b16 %v2600
      %v3184 = vunpack.c.l.b16 %v2601
      %v3185 = vunpack.c.l.b16 %v2602
      %v3186 = vunpack.c.l.b16 %v2603
      %v3187 = vunpack.c.l.b16 %v2604
      %v3188 = vpack.c.b16 %v2901, %v2900
      %v3189 = vpack.c.b16 %v2903, %v2902
      %v3190 = vpack.c.b16 %v2905, %v2904
      %v3191 = vpack.c.b16 %v2907, %v2906
      %v3192 = vpack.c.b16 %v2909, %v2908
      %v3193 = vpack.c.b16 %v2911, %v2910
      %v3194 = vpack.c.b16 %v2913, %v2912
      %v3195 = vpack.c.b16 %v2915, %v2914
      %v3196 = vpack.c.b16 %v2917, %v2916
      %v3197 = vpack.c.b16 %v2919, %v2918
      %v3198 = vpack.c.b16 %v2921, %v2920
      %v3199 = vpack.c.b16 %v2923, %v2922
      %v3200 = vpack.c.b16 %v2925, %v2924
      %v3201 = vpack.c.b16 %v2927, %v2926
      %v3202 = vpack.c.b16 %v2929, %v2928
      %v3203 = vpack.c.b16 %v2931, %v2930
      %v3204 = vpack.c.b16 %v2933, %v2932
      %v3205 = vpack.c.b16 %v2935, %v2934
      %v3206 = vpack.c.b16 %v2937, %v2936
      %v3207 = vpack.c.b16 %v2939, %v2938
      %v3208 = vpack.c.b16 %v2941, %v2940
      %v3209 = vpack.c.b16 %v2943, %v2942
      %v3210 = vpack.c.b16 %v2945, %v2944
      %v3211 = vpack.c.b16 %v2947, %v2946
      %v3212 = vpack.c.b16 %v2949, %v2948
      %v3213 = vpack.c.b16 %v2951, %v2950
      %v3214 = vpack.c.b16 %v2953, %v2952
      %v3215 = vpack.c.b16 %v2955, %v2954
      %v3216 = vpack.c.b16 %v2957, %v2956
      %v3217 = vpack.c.b16 %v2959, %v2958
      %v3218 = vpack.c.b16 %v2961, %v2960
      %v3219 = vpack.c.b16 %v2963, %v2962
      %v3220 = vpack.c.b16 %v2965, %v2964
      %v3221 = vpack.c.b16 %v2967, %v2966
      %v3222 = vpack.c.b16 %v2969, %v2968
      %v3223 = vpack.c.b16 %v2971, %v2970
      %v3224 = vpack.c.b16 %v2973, %v2972
      %v3225 = vpack.c.b16 %v2975, %v2974
      %v3226 = vpack.c.b16 %v2977, %v2976
      %v3227 = vpack.c.b16 %v2979, %v2978
      %v3228 = vpack.c.b16 %v2981, %v2980
      %v3229 = vpack.c.b16 %v2983, %v2982
      %v3230 = vpack.c.b16 %v2985, %v2984
      %v3231 = vpack.c.b16 %v2987, %v2986
      %v3232 = vpack.c.b16 %v2989, %v2988
      %v3233 = vpack.c.b16 %v2991, %v2990
      %v3234 = vpack.c.b16 %v2993, %v2992
      %v3235 = vpack.c.b16 %v2995, %v2994
      %v3236 = vpack.c.b16 %v2997, %v2996
      %v3237 = vpack.c.b16 %v2999, %v2998
      %v3238 = vpack.c.b16 %v3001, %v3000
      %v3239 = vpack.c.b16 %v3003, %v3002
      %v3240 = vpack.c.b16 %v3005, %v3004
      %v3241 = vpack.c.b16 %v3007, %v3006
      %v3242 = vpack.c.b16 %v3009, %v3008
      %v3243 = vpack.c.b16 %v3011, %v3010
      %v3244 = vpack.c.b16 %v3013, %v3012
      %v3245 = vpack.c.b16 %v3015, %v3014
      %v3246 = vpack.c.b16 %v3017, %v3016
      %v3247 = vpack.c.b16 %v3019, %v3018
      %v3248 = vpack.c.b16 %v3021, %v3020
      %v3249 = vpack.c.b16 %v3023, %v3022
      %v3250 = vpack.c.b16 %v3025, %v3024
      %v3251 = vpack.c.b16 %v3027, %v3026
      %v3252 = vpack.c.b16 %v3029, %v3028
      %v3253 = vpack.c.b16 %v3031, %v3030
      %v3254 = vpack.c.b16 %v3033, %v3032
      %v3255 = vpack.c.b16 %v3035, %v3034
      %v3256 = vpack.c.b16 %v3037, %v3036
      %v3257 = vpack.c.b16 %v3039, %v3038
      %v3258 = vpack.c.b16 %v3041, %v3040
      %v3259 = vpack.c.b16 %v3043, %v3042
      %v3260 = vpack.c.b16 %v3045, %v3044
      %v3261 = vpack.c.b16 %v3047, %v3046
      %v3262 = vpack.c.b16 %v3049, %v3048
      %v3263 = vpack.c.b16 %v3051, %v3050
      %v3264 = vpack.c.b16 %v3053, %v3052
      %v3265 = vpack.c.b16 %v3055, %v3054
      %v3266 = vpack.c.b16 %v3057, %v3056
      %v3267 = vpack.c.b16 %v3059, %v3058
      %v3268 = vpack.c.b16 %v3061, %v3060
      %v3269 = vpack.c.b16 %v3063, %v3062
      %v3270 = vpack.c.b16 %v3065, %v3064
      %v3271 = vpack.c.b16 %v3067, %v3066
      %v3272 = vpack.c.b16 %v3069, %v3068
      %v3273 = vpack.c.b16 %v3071, %v3070
      %v3274 = vpack.c.b16 %v3073, %v3072
      %v3275 = vpack.c.b16 %v3075, %v3074
      %v3276 = vpack.c.b16 %v3077, %v3076
      %v3277 = vpack.c.b16 %v3079, %v3078
      %v3278 = vpack.c.b16 %v3081, %v3080
      %v3279 = vpack.c.b16 %v3083, %v3082
      %v3280 = vpack.c.b16 %v3085, %v3084
      %v3281 = vpack.c.b16 %v3087, %v3086
      %v3282 = vpack.c.b16 %v3089, %v3088
      %v3283 = vpack.c.b16 %v3091, %v3090
      %v3284 = vpack.c.b16 %v3093, %v3092
      %v3285 = vpack.c.b16 %v3095, %v3094
      %v3286 = vpack.c.b16 %v3097, %v3096
      %v3287 = vpack.c.b16 %v3099, %v3098
      %v3288 = vpack.c.b16 %v3101, %v3100
      %v3289 = vpack.c.b16 %v3103, %v3102
      %v3290 = vpack.c.b16 %v3105, %v3104
      %v3291 = vpack.c.b16 %v3107, %v3106
      %v3292 = vpack.c.b16 %v3109, %v3108
      %v3293 = vpack.c.b16 %v3111, %v3110
      %v3294 = vpack.c.b16 %v3113, %v3112
      %v3295 = vpack.c.b16 %v3115, %v3114
      %v3296 = vpack.c.b16 %v3117, %v3116
      %v3297 = vpack.c.b16 %v3119, %v3118
      %v3298 = vpack.c.b16 %v3121, %v3120
      %v3299 = vpack.c.b16 %v3123, %v3122
      %v3300 = vpack.c.b16 %v3125, %v3124
      %v3301 = vpack.c.b16 %v3127, %v3126
      %v3302 = vpack.c.b16 %v3129, %v3128
      %v3303 = vpack.c.b16 %v3131, %v3130
      %v3304 = vpack.c.b16 %v3133, %v3132
      %v3305 = vpack.c.b16 %v3135, %v3134
      %v3306 = vpack.c.b16 %v3137, %v3136
      %v3307 = vpack.c.b16 %v3139, %v3138
      %v3308 = vpack.c.b16 %v3141, %v3140
      %v3309 = vpack.c.b16 %v3143, %v3142
      %v3310 = vpack.c.b16 %v3145, %v3144
      %v3311 = vpack.c.b16 %v3147, %v3146
      %v3312 = vpack.c.b16 %v3149, %v3148
      %v3313 = vpack.c.b16 %v3151, %v3150
      %v3314 = vpack.c.b16 %v3153, %v3152
      %v3315 = vpack.c.b16 %v3155, %v3154
      %v3316 = vpack.c.b16 %v3157, %v3156
      %v3317 = vpack.c.b16 %v3159, %v3158
      %v3318 = vpack.c.b16 %v3161, %v3160
      %v3319 = vpack.c.b16 %v3163, %v3162
      %v3320 = vpack.c.b16 %v3165, %v3164
      %v3321 = vpack.c.b16 %v3167, %v3166
      %v3322 = vpack.c.b16 %v3169, %v3168
      %v3323 = vpack.c.b16 %v3171, %v3170
      %v3324 = vpack.c.b16 %v3173, %v3172
      %v3325 = vpack.c.b16 %v3175, %v3174
      %v3326 = vpack.c.b16 %v3177, %v3176
      %v3327 = vpack.c.b16 %v3179, %v3178
      %v3328 = vpack.c.b16 %v3181, %v3180
      %v3329 = vpack.c.b16 %v3183, %v3182
      %v3330 = vpack.c.b16 %v3185, %v3184
      %v3331 = vpack.c.b16 %v3187, %v3186
      %3476 = vmatprep.subr.bf16.mxu0 0
      %3477 = vmatpush1.bf16.msra.mxu0 %v3195
      %3478 = vmatprep.subr.bf16.mxu0 0
      %3479 = vmatpush1.bf16.msra.mxu0 %v3194
      %3480 = vmatprep.subr.bf16.mxu0 0
      %3481 = vmatpush1.bf16.msra.mxu0 %v3193
      %3482 = vmatprep.subr.bf16.mxu0 0
      %3483 = vmatpush1.bf16.msra.mxu0 %v3192
      %3484 = vmatprep.subr.bf16.mxu0 0
      %3485 = vmatpush1.bf16.msra.mxu0 %v3191
      %3486 = vmatprep.subr.bf16.mxu0 0
      %3487 = vmatpush1.bf16.msra.mxu0 %v3190
      %3488 = vmatprep.subr.bf16.mxu0 0
      %3489 = vmatpush1.bf16.msra.mxu0 %v3189
      %3490 = vmatprep.subr.bf16.mxu0 0
      %3491 = vmatpush1.bf16.msra.mxu0 %v3188
      %3492 = vmatprep.subr.bf16.mxu0 0
      %3493 = vmatpush2.bf16.msra.mxu0 %v3203
      %3494 = vmatprep.subr.bf16.mxu0 0
      %3495 = vmatpush2.bf16.msra.mxu0 %v3202
      %3496 = vmatprep.subr.bf16.mxu0 0
      %3497 = vmatpush2.bf16.msra.mxu0 %v3201
      %3498 = vmatprep.subr.bf16.mxu0 0
      %3499 = vmatpush2.bf16.msra.mxu0 %v3200
      %3500 = vmatprep.subr.bf16.mxu0 0
      %3501 = vmatpush2.bf16.msra.mxu0 %v3199
      %3502 = vmatprep.subr.bf16.mxu0 0
      %3503 = vmatpush2.bf16.msra.mxu0 %v3198
      %3504 = vmatprep.subr.bf16.mxu0 0
      %3505 = vmatpush2.bf16.msra.mxu0 %v3197
      %3506 = vmatprep.subr.bf16.mxu0 0
      %3507 = vmatpush2.bf16.msra.mxu0 %v3196
      %3508 = vmatprep.mubr.bf16.mxu0 %v1409
      %3509 = vmatmul.mubr.bf16.gmra.mxu0 %v983
      %v3510 = vpop.f32.mrf.mxu0
      %v3511 = vadd.f32 %v2610, %v3510
      %v3512 = vpop.f32.mrf.mxu0
      %v3513 = vpop.f32.mrf.mxu0
      %v3514 = vadd.f32 %v2610, %v3513
      %v3515 = vpop.f32.mrf.mxu0
      %3516 = vmatprep.mubr.bf16.mxu0 %v1421
      %3517 = vmatmul.mubr.bf16.gmra.mxu0 %v984
      %v3518 = vpop.f32.mrf.mxu0
      %v3519 = vadd.f32 %v2610, %v3518
      %v3520 = vpop.f32.mrf.mxu0
      %v3521 = vpop.f32.mrf.mxu0
      %v3522 = vadd.f32 %v2610, %v3521
      %v3523 = vpop.f32.mrf.mxu0
      %3524 = vmatprep.mubr.bf16.mxu0 %v1433
      %3525 = vmatmul.mubr.bf16.gmra.mxu0 %v985
      %v3526 = vpop.f32.mrf.mxu0
      %v3527 = vadd.f32 %v2610, %v3526
      %v3528 = vpop.f32.mrf.mxu0
      %v3529 = vpop.f32.mrf.mxu0
      %v3530 = vadd.f32 %v2610, %v3529
      %v3531 = vpop.f32.mrf.mxu0
      %3532 = vmatprep.mubr.bf16.mxu0 %v1445
      %3533 = vmatmul.mubr.bf16.gmra.mxu0 %v986
      %v3534 = vpop.f32.mrf.mxu0
      %v3535 = vadd.f32 %v2610, %v3534
      %v3536 = vpop.f32.mrf.mxu0
      %v3537 = vpop.f32.mrf.mxu0
      %v3538 = vadd.f32 %v2610, %v3537
      %v3539 = vpop.f32.mrf.mxu0
      %3540 = vmatprep.mubr.bf16.mxu0 %v1457
      %3541 = vmatmul.mubr.bf16.gmra.mxu0 %v987
      %v3542 = vpop.f32.mrf.mxu0
      %v3543 = vadd.f32 %v2610, %v3542
      %v3544 = vpop.f32.mrf.mxu0
      %v3545 = vpop.f32.mrf.mxu0
      %v3546 = vadd.f32 %v2610, %v3545
      %v3547 = vpop.f32.mrf.mxu0
      %3548 = vmatprep.mubr.bf16.mxu0 %v1469
      %3549 = vmatmul.mubr.bf16.gmra.mxu0 %v988
      %v3550 = vpop.f32.mrf.mxu0
      %v3551 = vadd.f32 %v2610, %v3550
      %v3552 = vpop.f32.mrf.mxu0
      %v3553 = vpop.f32.mrf.mxu0
      %v3554 = vadd.f32 %v2610, %v3553
      %v3555 = vpop.f32.mrf.mxu0
      %3556 = vmatprep.mubr.bf16.mxu0 %v1481
      %3557 = vmatmul.mubr.bf16.gmra.mxu0 %v989
      %v3558 = vpop.f32.mrf.mxu0
      %v3559 = vadd.f32 %v2610, %v3558
      %v3560 = vpop.f32.mrf.mxu0
      %v3561 = vpop.f32.mrf.mxu0
      %v3562 = vadd.f32 %v2610, %v3561
      %v3563 = vpop.f32.mrf.mxu0
      %3564 = vmatprep.mubr.bf16.mxu0 %v1493
      %3565 = vmatmul.mubr.bf16.gmra.mxu0 %v990
      %v3566 = vpop.f32.mrf.mxu0
      %v3567 = vadd.f32 %v2610, %v3566
      %v3568 = vpop.f32.mrf.mxu0
      %v3569 = vpop.f32.mrf.mxu0
      %v3570 = vadd.f32 %v2610, %v3569
      %v3571 = vpop.f32.mrf.mxu0
      %3572 = vmatprep.mubr.bf16.mxu0 %v1505
      %3573 = vmatmul.mubr.bf16.gmra.mxu0 %v991
      %v3574 = vpop.f32.mrf.mxu0
      %v3575 = vadd.f32 %v2610, %v3574
      %v3576 = vpop.f32.mrf.mxu0
      %v3577 = vpop.f32.mrf.mxu0
      %v3578 = vadd.f32 %v2610, %v3577
      %v3579 = vpop.f32.mrf.mxu0
      %3580 = vmatprep.mubr.bf16.mxu0 %v1517
      %3581 = vmatmul.mubr.bf16.gmra.mxu0 %v992
      %v3582 = vpop.f32.mrf.mxu0
      %v3583 = vadd.f32 %v2610, %v3582
      %v3584 = vpop.f32.mrf.mxu0
      %v3585 = vpop.f32.mrf.mxu0
      %v3586 = vadd.f32 %v2610, %v3585
      %v3587 = vpop.f32.mrf.mxu0
      %3588 = vmatprep.mubr.bf16.mxu0 %v1529
      %3589 = vmatmul.mubr.bf16.gmra.mxu0 %v993
      %v3590 = vpop.f32.mrf.mxu0
      %v3591 = vadd.f32 %v2610, %v3590
      %v3592 = vpop.f32.mrf.mxu0
      %v3593 = vpop.f32.mrf.mxu0
      %v3594 = vadd.f32 %v2610, %v3593
      %v3595 = vpop.f32.mrf.mxu0
      %3596 = vmatprep.mubr.bf16.mxu0 %v1541
      %3597 = vmatmul.mubr.bf16.gmra.mxu0 %v994
      %v3598 = vpop.f32.mrf.mxu0
      %v3599 = vadd.f32 %v2610, %v3598
      %v3600 = vpop.f32.mrf.mxu0
      %v3601 = vpop.f32.mrf.mxu0
      %v3602 = vadd.f32 %v2610, %v3601
      %v3603 = vpop.f32.mrf.mxu0
      %3604 = vmatprep.mubr.bf16.mxu0 %v1553
      %3605 = vmatmul.mubr.bf16.gmra.mxu0 %v995
      %v3606 = vpop.f32.mrf.mxu0
      %v3607 = vadd.f32 %v2610, %v3606
      %v3608 = vpop.f32.mrf.mxu0
      %v3609 = vpop.f32.mrf.mxu0
      %v3610 = vadd.f32 %v2610, %v3609
      %v3611 = vpop.f32.mrf.mxu0
      %3612 = vmatprep.mubr.bf16.mxu0 %v1565
      %3613 = vmatmul.mubr.bf16.gmra.mxu0 %v996
      %v3614 = vpop.f32.mrf.mxu0
      %v3615 = vadd.f32 %v2610, %v3614
      %v3616 = vpop.f32.mrf.mxu0
      %v3617 = vpop.f32.mrf.mxu0
      %v3618 = vadd.f32 %v2610, %v3617
      %v3619 = vpop.f32.mrf.mxu0
      %3620 = vmatprep.mubr.bf16.mxu0 %v1577
      %3621 = vmatmul.mubr.bf16.gmra.mxu0 %v997
      %v3622 = vpop.f32.mrf.mxu0
      %v3623 = vadd.f32 %v2610, %v3622
      %v3624 = vpop.f32.mrf.mxu0
      %v3625 = vpop.f32.mrf.mxu0
      %v3626 = vadd.f32 %v2610, %v3625
      %v3627 = vpop.f32.mrf.mxu0
      %3628 = vmatprep.mubr.bf16.mxu0 %v1589
      %3629 = vmatmul.mubr.bf16.gmra.mxu0 %v998
      %v3630 = vpop.f32.mrf.mxu0
      %v3631 = vadd.f32 %v2610, %v3630
      %v3632 = vpop.f32.mrf.mxu0
      %v3633 = vpop.f32.mrf.mxu0
      %v3634 = vadd.f32 %v2610, %v3633
      %v3635 = vpop.f32.mrf.mxu0
      %3636 = vdwg.mxu0
      %3637 = vmatprep.subr.bf16.mxu0 0
      %3638 = vmatpush1.bf16.msra.mxu0 %v3211
      %3639 = vmatprep.subr.bf16.mxu0 0
      %3640 = vmatpush1.bf16.msra.mxu0 %v3210
      %3641 = vmatprep.subr.bf16.mxu0 0
      %3642 = vmatpush1.bf16.msra.mxu0 %v3209
      %3643 = vmatprep.subr.bf16.mxu0 0
      %3644 = vmatpush1.bf16.msra.mxu0 %v3208
      %3645 = vmatprep.subr.bf16.mxu0 0
      %3646 = vmatpush1.bf16.msra.mxu0 %v3207
      %3647 = vmatprep.subr.bf16.mxu0 0
      %3648 = vmatpush1.bf16.msra.mxu0 %v3206
      %3649 = vmatprep.subr.bf16.mxu0 0
      %3650 = vmatpush1.bf16.msra.mxu0 %v3205
      %3651 = vmatprep.subr.bf16.mxu0 0
      %3652 = vmatpush1.bf16.msra.mxu0 %v3204
      %3653 = vmatprep.subr.bf16.mxu0 0
      %3654 = vmatpush2.bf16.msra.mxu0 %v3219
      %3655 = vmatprep.subr.bf16.mxu0 0
      %3656 = vmatpush2.bf16.msra.mxu0 %v3218
      %3657 = vmatprep.subr.bf16.mxu0 0
      %3658 = vmatpush2.bf16.msra.mxu0 %v3217
      %3659 = vmatprep.subr.bf16.mxu0 0
      %3660 = vmatpush2.bf16.msra.mxu0 %v3216
      %3661 = vmatprep.subr.bf16.mxu0 0
      %3662 = vmatpush2.bf16.msra.mxu0 %v3215
      %3663 = vmatprep.subr.bf16.mxu0 0
      %3664 = vmatpush2.bf16.msra.mxu0 %v3214
      %3665 = vmatprep.subr.bf16.mxu0 0
      %3666 = vmatpush2.bf16.msra.mxu0 %v3213
      %3667 = vmatprep.subr.bf16.mxu0 0
      %3668 = vmatpush2.bf16.msra.mxu0 %v3212
      %3669 = vmatprep.mubr.bf16.mxu0 %v984
      %3670 = vmatmul.mubr.bf16.gmra.mxu0 %v1641
      %v3671 = vpop.f32.mrf.mxu0
      %v3672 = vadd.f32 %v3511, %v3671
      %v3673 = vpop.f32.mrf.mxu0
      %v3674 = vpop.f32.mrf.mxu0
      %v3675 = vadd.f32 %v3514, %v3674
      %v3676 = vpop.f32.mrf.mxu0
      %3677 = vmatprep.mubr.bf16.mxu0 %v985
      %3678 = vmatmul.mubr.bf16.gmra.mxu0 %v1644
      %v3679 = vpop.f32.mrf.mxu0
      %v3680 = vadd.f32 %v3519, %v3679
      %v3681 = vpop.f32.mrf.mxu0
      %v3682 = vpop.f32.mrf.mxu0
      %v3683 = vadd.f32 %v3522, %v3682
      %v3684 = vpop.f32.mrf.mxu0
      %3685 = vmatprep.mubr.bf16.mxu0 %v986
      %3686 = vmatmul.mubr.bf16.gmra.mxu0 %v1647
      %v3687 = vpop.f32.mrf.mxu0
      %v3688 = vadd.f32 %v3527, %v3687
      %v3689 = vpop.f32.mrf.mxu0
      %v3690 = vpop.f32.mrf.mxu0
      %v3691 = vadd.f32 %v3530, %v3690
      %v3692 = vpop.f32.mrf.mxu0
      %3693 = vmatprep.mubr.bf16.mxu0 %v987
      %3694 = vmatmul.mubr.bf16.gmra.mxu0 %v1650
      %v3695 = vpop.f32.mrf.mxu0
      %v3696 = vadd.f32 %v3535, %v3695
      %v3697 = vpop.f32.mrf.mxu0
      %v3698 = vpop.f32.mrf.mxu0
      %v3699 = vadd.f32 %v3538, %v3698
      %v3700 = vpop.f32.mrf.mxu0
      %3701 = vmatprep.mubr.bf16.mxu0 %v988
      %3702 = vmatmul.mubr.bf16.gmra.mxu0 %v1653
      %v3703 = vpop.f32.mrf.mxu0
      %v3704 = vadd.f32 %v3543, %v3703
      %v3705 = vpop.f32.mrf.mxu0
      %v3706 = vpop.f32.mrf.mxu0
      %v3707 = vadd.f32 %v3546, %v3706
      %v3708 = vpop.f32.mrf.mxu0
      %3709 = vmatprep.mubr.bf16.mxu0 %v989
      %3710 = vmatmul.mubr.bf16.gmra.mxu0 %v1656
      %v3711 = vpop.f32.mrf.mxu0
      %v3712 = vadd.f32 %v3551, %v3711
      %v3713 = vpop.f32.mrf.mxu0
      %v3714 = vpop.f32.mrf.mxu0
      %v3715 = vadd.f32 %v3554, %v3714
      %v3716 = vpop.f32.mrf.mxu0
      %3717 = vmatprep.mubr.bf16.mxu0 %v990
      %3718 = vmatmul.mubr.bf16.gmra.mxu0 %v1659
      %v3719 = vpop.f32.mrf.mxu0
      %v3720 = vadd.f32 %v3559, %v3719
      %v3721 = vpop.f32.mrf.mxu0
      %v3722 = vpop.f32.mrf.mxu0
      %v3723 = vadd.f32 %v3562, %v3722
      %v3724 = vpop.f32.mrf.mxu0
      %3725 = vmatprep.mubr.bf16.mxu0 %v991
      %3726 = vmatmul.mubr.bf16.gmra.mxu0 %v1662
      %v3727 = vpop.f32.mrf.mxu0
      %v3728 = vadd.f32 %v3567, %v3727
      %v3729 = vpop.f32.mrf.mxu0
      %v3730 = vpop.f32.mrf.mxu0
      %v3731 = vadd.f32 %v3570, %v3730
      %v3732 = vpop.f32.mrf.mxu0
      %3733 = vmatprep.mubr.bf16.mxu0 %v992
      %3734 = vmatmul.mubr.bf16.gmra.mxu0 %v1665
      %v3735 = vpop.f32.mrf.mxu0
      %v3736 = vadd.f32 %v3575, %v3735
      %v3737 = vpop.f32.mrf.mxu0
      %v3738 = vpop.f32.mrf.mxu0
      %v3739 = vadd.f32 %v3578, %v3738
      %v3740 = vpop.f32.mrf.mxu0
      %3741 = vmatprep.mubr.bf16.mxu0 %v993
      %3742 = vmatmul.mubr.bf16.gmra.mxu0 %v1668
      %v3743 = vpop.f32.mrf.mxu0
      %v3744 = vadd.f32 %v3583, %v3743
      %v3745 = vpop.f32.mrf.mxu0
      %v3746 = vpop.f32.mrf.mxu0
      %v3747 = vadd.f32 %v3586, %v3746
      %v3748 = vpop.f32.mrf.mxu0
      %3749 = vmatprep.mubr.bf16.mxu0 %v994
      %3750 = vmatmul.mubr.bf16.gmra.mxu0 %v1671
      %v3751 = vpop.f32.mrf.mxu0
      %v3752 = vadd.f32 %v3591, %v3751
      %v3753 = vpop.f32.mrf.mxu0
      %v3754 = vpop.f32.mrf.mxu0
      %v3755 = vadd.f32 %v3594, %v3754
      %v3756 = vpop.f32.mrf.mxu0
      %3757 = vmatprep.mubr.bf16.mxu0 %v995
      %3758 = vmatmul.mubr.bf16.gmra.mxu0 %v1674
      %v3759 = vpop.f32.mrf.mxu0
      %v3760 = vadd.f32 %v3599, %v3759
      %v3761 = vpop.f32.mrf.mxu0
      %v3762 = vpop.f32.mrf.mxu0
      %v3763 = vadd.f32 %v3602, %v3762
      %v3764 = vpop.f32.mrf.mxu0
      %3765 = vmatprep.mubr.bf16.mxu0 %v996
      %3766 = vmatmul.mubr.bf16.gmra.mxu0 %v1677
      %v3767 = vpop.f32.mrf.mxu0
      %v3768 = vadd.f32 %v3607, %v3767
      %v3769 = vpop.f32.mrf.mxu0
      %v3770 = vpop.f32.mrf.mxu0
      %v3771 = vadd.f32 %v3610, %v3770
      %v3772 = vpop.f32.mrf.mxu0
      %3773 = vmatprep.mubr.bf16.mxu0 %v997
      %3774 = vmatmul.mubr.bf16.gmra.mxu0 %v1680
      %v3775 = vpop.f32.mrf.mxu0
      %v3776 = vadd.f32 %v3615, %v3775
      %v3777 = vpop.f32.mrf.mxu0
      %v3778 = vpop.f32.mrf.mxu0
      %v3779 = vadd.f32 %v3618, %v3778
      %v3780 = vpop.f32.mrf.mxu0
      %3781 = vmatprep.mubr.bf16.mxu0 %v998
      %3782 = vmatmul.mubr.bf16.gmra.mxu0 %v1683
      %v3783 = vpop.f32.mrf.mxu0
      %v3784 = vadd.f32 %v3623, %v3783
      %v3785 = vpop.f32.mrf.mxu0
      %v3786 = vpop.f32.mrf.mxu0
      %v3787 = vadd.f32 %v3626, %v3786
      %v3788 = vpop.f32.mrf.mxu0
      %3789 = vmatprep.mubr.bf16.mxu0 %v999
      %3790 = vmatmul.mubr.bf16.gmra.mxu0 %v1686
      %v3791 = vpop.f32.mrf.mxu0
      %v3792 = vadd.f32 %v3631, %v3791
      %v3793 = vpop.f32.mrf.mxu0
      %v3794 = vpop.f32.mrf.mxu0
      %v3795 = vadd.f32 %v3634, %v3794
      %v3796 = vpop.f32.mrf.mxu0
      %3797 = vdwg.mxu0
      %3798 = vmatprep.subr.bf16.mxu0 0
      %3799 = vmatpush1.bf16.msra.mxu0 %v3227
      %3800 = vmatprep.subr.bf16.mxu0 0
      %3801 = vmatpush1.bf16.msra.mxu0 %v3226
      %3802 = vmatprep.subr.bf16.mxu0 0
      %3803 = vmatpush1.bf16.msra.mxu0 %v3225
      %3804 = vmatprep.subr.bf16.mxu0 0
      %3805 = vmatpush1.bf16.msra.mxu0 %v3224
      %3806 = vmatprep.subr.bf16.mxu0 0
      %3807 = vmatpush1.bf16.msra.mxu0 %v3223
      %3808 = vmatprep.subr.bf16.mxu0 0
      %3809 = vmatpush1.bf16.msra.mxu0 %v3222
      %3810 = vmatprep.subr.bf16.mxu0 0
      %3811 = vmatpush1.bf16.msra.mxu0 %v3221
      %3812 = vmatprep.subr.bf16.mxu0 0
      %3813 = vmatpush1.bf16.msra.mxu0 %v3220
      %3814 = vmatprep.subr.bf16.mxu0 0
      %3815 = vmatpush2.bf16.msra.mxu0 %v3235
      %3816 = vmatprep.subr.bf16.mxu0 0
      %3817 = vmatpush2.bf16.msra.mxu0 %v3234
      %3818 = vmatprep.subr.bf16.mxu0 0
      %3819 = vmatpush2.bf16.msra.mxu0 %v3233
      %3820 = vmatprep.subr.bf16.mxu0 0
      %3821 = vmatpush2.bf16.msra.mxu0 %v3232
      %3822 = vmatprep.subr.bf16.mxu0 0
      %3823 = vmatpush2.bf16.msra.mxu0 %v3231
      %3824 = vmatprep.subr.bf16.mxu0 0
      %3825 = vmatpush2.bf16.msra.mxu0 %v3230
      %3826 = vmatprep.subr.bf16.mxu0 0
      %3827 = vmatpush2.bf16.msra.mxu0 %v3229
      %3828 = vmatprep.subr.bf16.mxu0 0
      %3829 = vmatpush2.bf16.msra.mxu0 %v3228
      %3830 = vmatprep.mubr.bf16.mxu0 %v1644
      %3831 = vmatmul.mubr.bf16.gmra.mxu0 %v1421
      %v3832 = vpop.f32.mrf.mxu0
      %v3833 = vadd.f32 %v3672, %v3832
      %v3834 = vpop.f32.mrf.mxu0
      %v3835 = vpop.f32.mrf.mxu0
      %v3836 = vadd.f32 %v3675, %v3835
      %v3837 = vpop.f32.mrf.mxu0
      %3838 = vmatprep.mubr.bf16.mxu0 %v1647
      %3839 = vmatmul.mubr.bf16.gmra.mxu0 %v1433
      %v3840 = vpop.f32.mrf.mxu0
      %v3841 = vadd.f32 %v3680, %v3840
      %v3842 = vpop.f32.mrf.mxu0
      %v3843 = vpop.f32.mrf.mxu0
      %v3844 = vadd.f32 %v3683, %v3843
      %v3845 = vpop.f32.mrf.mxu0
      %3846 = vmatprep.mubr.bf16.mxu0 %v1650
      %3847 = vmatmul.mubr.bf16.gmra.mxu0 %v1445
      %v3848 = vpop.f32.mrf.mxu0
      %v3849 = vadd.f32 %v3688, %v3848
      %v3850 = vpop.f32.mrf.mxu0
      %v3851 = vpop.f32.mrf.mxu0
      %v3852 = vadd.f32 %v3691, %v3851
      %v3853 = vpop.f32.mrf.mxu0
      %3854 = vmatprep.mubr.bf16.mxu0 %v1653
      %3855 = vmatmul.mubr.bf16.gmra.mxu0 %v1457
      %v3856 = vpop.f32.mrf.mxu0
      %v3857 = vadd.f32 %v3696, %v3856
      %v3858 = vpop.f32.mrf.mxu0
      %v3859 = vpop.f32.mrf.mxu0
      %v3860 = vadd.f32 %v3699, %v3859
      %v3861 = vpop.f32.mrf.mxu0
      %3862 = vmatprep.mubr.bf16.mxu0 %v1656
      %3863 = vmatmul.mubr.bf16.gmra.mxu0 %v1469
      %v3864 = vpop.f32.mrf.mxu0
      %v3865 = vadd.f32 %v3704, %v3864
      %v3866 = vpop.f32.mrf.mxu0
      %v3867 = vpop.f32.mrf.mxu0
      %v3868 = vadd.f32 %v3707, %v3867
      %v3869 = vpop.f32.mrf.mxu0
      %3870 = vmatprep.mubr.bf16.mxu0 %v1659
      %3871 = vmatmul.mubr.bf16.gmra.mxu0 %v1481
      %v3872 = vpop.f32.mrf.mxu0
      %v3873 = vadd.f32 %v3712, %v3872
      %v3874 = vpop.f32.mrf.mxu0
      %v3875 = vpop.f32.mrf.mxu0
      %v3876 = vadd.f32 %v3715, %v3875
      %v3877 = vpop.f32.mrf.mxu0
      %3878 = vmatprep.mubr.bf16.mxu0 %v1662
      %3879 = vmatmul.mubr.bf16.gmra.mxu0 %v1493
      %v3880 = vpop.f32.mrf.mxu0
      %v3881 = vadd.f32 %v3720, %v3880
      %v3882 = vpop.f32.mrf.mxu0
      %v3883 = vpop.f32.mrf.mxu0
      %v3884 = vadd.f32 %v3723, %v3883
      %v3885 = vpop.f32.mrf.mxu0
      %3886 = vmatprep.mubr.bf16.mxu0 %v1665
      %3887 = vmatmul.mubr.bf16.gmra.mxu0 %v1505
      %v3888 = vpop.f32.mrf.mxu0
      %v3889 = vadd.f32 %v3728, %v3888
      %v3890 = vpop.f32.mrf.mxu0
      %v3891 = vpop.f32.mrf.mxu0
      %v3892 = vadd.f32 %v3731, %v3891
      %v3893 = vpop.f32.mrf.mxu0
      %3894 = vmatprep.mubr.bf16.mxu0 %v1668
      %3895 = vmatmul.mubr.bf16.gmra.mxu0 %v1517
      %v3896 = vpop.f32.mrf.mxu0
      %v3897 = vadd.f32 %v3736, %v3896
      %v3898 = vpop.f32.mrf.mxu0
      %v3899 = vpop.f32.mrf.mxu0
      %v3900 = vadd.f32 %v3739, %v3899
      %v3901 = vpop.f32.mrf.mxu0
      %3902 = vmatprep.mubr.bf16.mxu0 %v1671
      %3903 = vmatmul.mubr.bf16.gmra.mxu0 %v1529
      %v3904 = vpop.f32.mrf.mxu0
      %v3905 = vadd.f32 %v3744, %v3904
      %v3906 = vpop.f32.mrf.mxu0
      %v3907 = vpop.f32.mrf.mxu0
      %v3908 = vadd.f32 %v3747, %v3907
      %v3909 = vpop.f32.mrf.mxu0
      %3910 = vmatprep.mubr.bf16.mxu0 %v1674
      %3911 = vmatmul.mubr.bf16.gmra.mxu0 %v1541
      %v3912 = vpop.f32.mrf.mxu0
      %v3913 = vadd.f32 %v3752, %v3912
      %v3914 = vpop.f32.mrf.mxu0
      %v3915 = vpop.f32.mrf.mxu0
      %v3916 = vadd.f32 %v3755, %v3915
      %v3917 = vpop.f32.mrf.mxu0
      %3918 = vmatprep.mubr.bf16.mxu0 %v1677
      %3919 = vmatmul.mubr.bf16.gmra.mxu0 %v1553
      %v3920 = vpop.f32.mrf.mxu0
      %v3921 = vadd.f32 %v3760, %v3920
      %v3922 = vpop.f32.mrf.mxu0
      %v3923 = vpop.f32.mrf.mxu0
      %v3924 = vadd.f32 %v3763, %v3923
      %v3925 = vpop.f32.mrf.mxu0
      %3926 = vmatprep.mubr.bf16.mxu0 %v1680
      %3927 = vmatmul.mubr.bf16.gmra.mxu0 %v1565
      %v3928 = vpop.f32.mrf.mxu0
      %v3929 = vadd.f32 %v3768, %v3928
      %v3930 = vpop.f32.mrf.mxu0
      %v3931 = vpop.f32.mrf.mxu0
      %v3932 = vadd.f32 %v3771, %v3931
      %v3933 = vpop.f32.mrf.mxu0
      %3934 = vmatprep.mubr.bf16.mxu0 %v1683
      %3935 = vmatmul.mubr.bf16.gmra.mxu0 %v1577
      %v3936 = vpop.f32.mrf.mxu0
      %v3937 = vadd.f32 %v3776, %v3936
      %v3938 = vpop.f32.mrf.mxu0
      %v3939 = vpop.f32.mrf.mxu0
      %v3940 = vadd.f32 %v3779, %v3939
      %v3941 = vpop.f32.mrf.mxu0
      %3942 = vmatprep.mubr.bf16.mxu0 %v1686
      %3943 = vmatmul.mubr.bf16.gmra.mxu0 %v1589
      %v3944 = vpop.f32.mrf.mxu0
      %v3945 = vadd.f32 %v3784, %v3944
      %v3946 = vpop.f32.mrf.mxu0
      %v3947 = vpop.f32.mrf.mxu0
      %v3948 = vadd.f32 %v3787, %v3947
      %v3949 = vpop.f32.mrf.mxu0
      %3950 = vmatprep.mubr.bf16.mxu0 %v1720
      %3951 = vmatmul.mubr.bf16.gmra.mxu0 %v1714
      %v3952 = vpop.f32.mrf.mxu0
      %v3953 = vadd.f32 %v3792, %v3952
      %v3954 = vpop.f32.mrf.mxu0
      %v3955 = vpop.f32.mrf.mxu0
      %v3956 = vadd.f32 %v3795, %v3955
      %v3957 = vpop.f32.mrf.mxu0
      %3958 = vdwg.mxu0
      %3959 = vmatprep.subr.bf16.mxu0 0
      %3960 = vmatpush1.bf16.msra.mxu0 %v3243
      %3961 = vmatprep.subr.bf16.mxu0 0
      %3962 = vmatpush1.bf16.msra.mxu0 %v3242
      %3963 = vmatprep.subr.bf16.mxu0 0
      %3964 = vmatpush1.bf16.msra.mxu0 %v3241
      %3965 = vmatprep.subr.bf16.mxu0 0
      %3966 = vmatpush1.bf16.msra.mxu0 %v3240
      %3967 = vmatprep.subr.bf16.mxu0 0
      %3968 = vmatpush1.bf16.msra.mxu0 %v3239
      %3969 = vmatprep.subr.bf16.mxu0 0
      %3970 = vmatpush1.bf16.msra.mxu0 %v3238
      %3971 = vmatprep.subr.bf16.mxu0 0
      %3972 = vmatpush1.bf16.msra.mxu0 %v3237
      %3973 = vmatprep.subr.bf16.mxu0 0
      %3974 = vmatpush1.bf16.msra.mxu0 %v3236
      %3975 = vmatprep.subr.bf16.mxu0 0
      %3976 = vmatpush2.bf16.msra.mxu0 %v3251
      %3977 = vmatprep.subr.bf16.mxu0 0
      %3978 = vmatpush2.bf16.msra.mxu0 %v3250
      %3979 = vmatprep.subr.bf16.mxu0 0
      %3980 = vmatpush2.bf16.msra.mxu0 %v3249
      %3981 = vmatprep.subr.bf16.mxu0 0
      %3982 = vmatpush2.bf16.msra.mxu0 %v3248
      %3983 = vmatprep.subr.bf16.mxu0 0
      %3984 = vmatpush2.bf16.msra.mxu0 %v3247
      %3985 = vmatprep.subr.bf16.mxu0 0
      %3986 = vmatpush2.bf16.msra.mxu0 %v3246
      %3987 = vmatprep.subr.bf16.mxu0 0
      %3988 = vmatpush2.bf16.msra.mxu0 %v3245
      %3989 = vmatprep.subr.bf16.mxu0 0
      %3990 = vmatpush2.bf16.msra.mxu0 %v3244
      %3991 = vmatprep.mubr.bf16.mxu0 %v1433
      %3992 = vmatmul.mubr.bf16.gmra.mxu0 %v985
      %v3993 = vpop.f32.mrf.mxu0
      %v3994 = vadd.f32 %v3833, %v3993
      %v3995 = vpop.f32.mrf.mxu0
      %v3996 = vpop.f32.mrf.mxu0
      %v3997 = vadd.f32 %v3836, %v3996
      %v3998 = vpop.f32.mrf.mxu0
      %3999 = vmatprep.mubr.bf16.mxu0 %v1445
      %4000 = vmatmul.mubr.bf16.gmra.mxu0 %v986
      %v4001 = vpop.f32.mrf.mxu0
      %v4002 = vadd.f32 %v3841, %v4001
      %v4003 = vpop.f32.mrf.mxu0
      %v4004 = vpop.f32.mrf.mxu0
      %v4005 = vadd.f32 %v3844, %v4004
      %v4006 = vpop.f32.mrf.mxu0
      %4007 = vmatprep.mubr.bf16.mxu0 %v1457
      %4008 = vmatmul.mubr.bf16.gmra.mxu0 %v987
      %v4009 = vpop.f32.mrf.mxu0
      %v4010 = vadd.f32 %v3849, %v4009
      %v4011 = vpop.f32.mrf.mxu0
      %v4012 = vpop.f32.mrf.mxu0
      %v4013 = vadd.f32 %v3852, %v4012
      %v4014 = vpop.f32.mrf.mxu0
      %4015 = vmatprep.mubr.bf16.mxu0 %v1469
      %4016 = vmatmul.mubr.bf16.gmra.mxu0 %v988
      %v4017 = vpop.f32.mrf.mxu0
      %v4018 = vadd.f32 %v3857, %v4017
      %v4019 = vpop.f32.mrf.mxu0
      %v4020 = vpop.f32.mrf.mxu0
      %v4021 = vadd.f32 %v3860, %v4020
      %v4022 = vpop.f32.mrf.mxu0
      %4023 = vmatprep.mubr.bf16.mxu0 %v1481
      %4024 = vmatmul.mubr.bf16.gmra.mxu0 %v989
      %v4025 = vpop.f32.mrf.mxu0
      %v4026 = vadd.f32 %v3865, %v4025
      %v4027 = vpop.f32.mrf.mxu0
      %v4028 = vpop.f32.mrf.mxu0
      %v4029 = vadd.f32 %v3868, %v4028
      %v4030 = vpop.f32.mrf.mxu0
      %4031 = vmatprep.mubr.bf16.mxu0 %v1493
      %4032 = vmatmul.mubr.bf16.gmra.mxu0 %v990
      %v4033 = vpop.f32.mrf.mxu0
      %v4034 = vadd.f32 %v3873, %v4033
      %v4035 = vpop.f32.mrf.mxu0
      %v4036 = vpop.f32.mrf.mxu0
      %v4037 = vadd.f32 %v3876, %v4036
      %v4038 = vpop.f32.mrf.mxu0
      %4039 = vmatprep.mubr.bf16.mxu0 %v1505
      %4040 = vmatmul.mubr.bf16.gmra.mxu0 %v991
      %v4041 = vpop.f32.mrf.mxu0
      %v4042 = vadd.f32 %v3881, %v4041
      %v4043 = vpop.f32.mrf.mxu0
      %v4044 = vpop.f32.mrf.mxu0
      %v4045 = vadd.f32 %v3884, %v4044
      %v4046 = vpop.f32.mrf.mxu0
      %4047 = vmatprep.mubr.bf16.mxu0 %v1517
      %4048 = vmatmul.mubr.bf16.gmra.mxu0 %v992
      %v4049 = vpop.f32.mrf.mxu0
      %v4050 = vadd.f32 %v3889, %v4049
      %v4051 = vpop.f32.mrf.mxu0
      %v4052 = vpop.f32.mrf.mxu0
      %v4053 = vadd.f32 %v3892, %v4052
      %v4054 = vpop.f32.mrf.mxu0
      %4055 = vmatprep.mubr.bf16.mxu0 %v1529
      %4056 = vmatmul.mubr.bf16.gmra.mxu0 %v993
      %v4057 = vpop.f32.mrf.mxu0
      %v4058 = vadd.f32 %v3897, %v4057
      %v4059 = vpop.f32.mrf.mxu0
      %v4060 = vpop.f32.mrf.mxu0
      %v4061 = vadd.f32 %v3900, %v4060
      %v4062 = vpop.f32.mrf.mxu0
      %4063 = vmatprep.mubr.bf16.mxu0 %v1541
      %4064 = vmatmul.mubr.bf16.gmra.mxu0 %v994
      %v4065 = vpop.f32.mrf.mxu0
      %v4066 = vadd.f32 %v3905, %v4065
      %v4067 = vpop.f32.mrf.mxu0
      %v4068 = vpop.f32.mrf.mxu0
      %v4069 = vadd.f32 %v3908, %v4068
      %v4070 = vpop.f32.mrf.mxu0
      %4071 = vmatprep.mubr.bf16.mxu0 %v1553
      %4072 = vmatmul.mubr.bf16.gmra.mxu0 %v995
      %v4073 = vpop.f32.mrf.mxu0
      %v4074 = vadd.f32 %v3913, %v4073
      %v4075 = vpop.f32.mrf.mxu0
      %v4076 = vpop.f32.mrf.mxu0
      %v4077 = vadd.f32 %v3916, %v4076
      %v4078 = vpop.f32.mrf.mxu0
      %4079 = vmatprep.mubr.bf16.mxu0 %v1565
      %4080 = vmatmul.mubr.bf16.gmra.mxu0 %v996
      %v4081 = vpop.f32.mrf.mxu0
      %v4082 = vadd.f32 %v3921, %v4081
      %v4083 = vpop.f32.mrf.mxu0
      %v4084 = vpop.f32.mrf.mxu0
      %v4085 = vadd.f32 %v3924, %v4084
      %v4086 = vpop.f32.mrf.mxu0
      %4087 = vmatprep.mubr.bf16.mxu0 %v1577
      %4088 = vmatmul.mubr.bf16.gmra.mxu0 %v997
      %v4089 = vpop.f32.mrf.mxu0
      %v4090 = vadd.f32 %v3929, %v4089
      %v4091 = vpop.f32.mrf.mxu0
      %v4092 = vpop.f32.mrf.mxu0
      %v4093 = vadd.f32 %v3932, %v4092
      %v4094 = vpop.f32.mrf.mxu0
      %4095 = vmatprep.mubr.bf16.mxu0 %v1589
      %4096 = vmatmul.mubr.bf16.gmra.mxu0 %v998
      %v4097 = vpop.f32.mrf.mxu0
      %v4098 = vadd.f32 %v3937, %v4097
      %v4099 = vpop.f32.mrf.mxu0
      %v4100 = vpop.f32.mrf.mxu0
      %v4101 = vadd.f32 %v3940, %v4100
      %v4102 = vpop.f32.mrf.mxu0
      %4103 = vmatprep.mubr.bf16.mxu0 %v1714
      %4104 = vmatmul.mubr.bf16.gmra.mxu0 %v999
      %v4105 = vpop.f32.mrf.mxu0
      %v4106 = vadd.f32 %v3945, %v4105
      %v4107 = vpop.f32.mrf.mxu0
      %v4108 = vpop.f32.mrf.mxu0
      %v4109 = vadd.f32 %v3948, %v4108
      %v4110 = vpop.f32.mrf.mxu0
      %4111 = vmatprep.mubr.bf16.mxu0 %v1733
      %4112 = vmatmul.mubr.bf16.gmra.mxu0 %v1000
      %v4113 = vpop.f32.mrf.mxu0
      %v4114 = vadd.f32 %v3953, %v4113
      %v4115 = vpop.f32.mrf.mxu0
      %v4116 = vpop.f32.mrf.mxu0
      %v4117 = vadd.f32 %v3956, %v4116
      %v4118 = vpop.f32.mrf.mxu0
      %4119 = vdwg.mxu0
      %4120 = vmatprep.subr.bf16.mxu0 0
      %4121 = vmatpush1.bf16.msra.mxu0 %v3259
      %4122 = vmatprep.subr.bf16.mxu0 0
      %4123 = vmatpush1.bf16.msra.mxu0 %v3258
      %4124 = vmatprep.subr.bf16.mxu0 0
      %4125 = vmatpush1.bf16.msra.mxu0 %v3257
      %4126 = vmatprep.subr.bf16.mxu0 0
      %4127 = vmatpush1.bf16.msra.mxu0 %v3256
      %4128 = vmatprep.subr.bf16.mxu0 0
      %4129 = vmatpush1.bf16.msra.mxu0 %v3255
      %4130 = vmatprep.subr.bf16.mxu0 0
      %4131 = vmatpush1.bf16.msra.mxu0 %v3254
      %4132 = vmatprep.subr.bf16.mxu0 0
      %4133 = vmatpush1.bf16.msra.mxu0 %v3253
      %4134 = vmatprep.subr.bf16.mxu0 0
      %4135 = vmatpush1.bf16.msra.mxu0 %v3252
      %4136 = vmatprep.subr.bf16.mxu0 0
      %4137 = vmatpush2.bf16.msra.mxu0 %v3267
      %4138 = vmatprep.subr.bf16.mxu0 0
      %4139 = vmatpush2.bf16.msra.mxu0 %v3266
      %4140 = vmatprep.subr.bf16.mxu0 0
      %4141 = vmatpush2.bf16.msra.mxu0 %v3265
      %4142 = vmatprep.subr.bf16.mxu0 0
      %4143 = vmatpush2.bf16.msra.mxu0 %v3264
      %4144 = vmatprep.subr.bf16.mxu0 0
      %4145 = vmatpush2.bf16.msra.mxu0 %v3263
      %4146 = vmatprep.subr.bf16.mxu0 0
      %4147 = vmatpush2.bf16.msra.mxu0 %v3262
      %4148 = vmatprep.subr.bf16.mxu0 0
      %4149 = vmatpush2.bf16.msra.mxu0 %v3261
      %4150 = vmatprep.subr.bf16.mxu0 0
      %4151 = vmatpush2.bf16.msra.mxu0 %v3260
      %4152 = vmatprep.mubr.bf16.mxu0 %v1361
      %4153 = vmatmul.mubr.bf16.gmra.mxu0 %v1647
      %v4154 = vpop.f32.mrf.mxu0
      %v4155 = vadd.f32 %v3994, %v4154
      %v4156 = vpop.f32.mrf.mxu0
      %v4157 = vpop.f32.mrf.mxu0
      %v4158 = vadd.f32 %v3997, %v4157
      %v4159 = vpop.f32.mrf.mxu0
      %4160 = vmatprep.mubr.bf16.mxu0 %v1362
      %4161 = vmatmul.mubr.bf16.gmra.mxu0 %v1650
      %v4162 = vpop.f32.mrf.mxu0
      %v4163 = vadd.f32 %v4002, %v4162
      %v4164 = vpop.f32.mrf.mxu0
      %v4165 = vpop.f32.mrf.mxu0
      %v4166 = vadd.f32 %v4005, %v4165
      %v4167 = vpop.f32.mrf.mxu0
      %4168 = vmatprep.mubr.bf16.mxu0 %v1363
      %4169 = vmatmul.mubr.bf16.gmra.mxu0 %v1653
      %v4170 = vpop.f32.mrf.mxu0
      %v4171 = vadd.f32 %v4010, %v4170
      %v4172 = vpop.f32.mrf.mxu0
      %v4173 = vpop.f32.mrf.mxu0
      %v4174 = vadd.f32 %v4013, %v4173
      %v4175 = vpop.f32.mrf.mxu0
      %4176 = vmatprep.mubr.bf16.mxu0 %v1364
      %4177 = vmatmul.mubr.bf16.gmra.mxu0 %v1656
      %v4178 = vpop.f32.mrf.mxu0
      %v4179 = vadd.f32 %v4018, %v4178
      %v4180 = vpop.f32.mrf.mxu0
      %v4181 = vpop.f32.mrf.mxu0
      %v4182 = vadd.f32 %v4021, %v4181
      %v4183 = vpop.f32.mrf.mxu0
      %4184 = vmatprep.mubr.bf16.mxu0 %v1365
      %4185 = vmatmul.mubr.bf16.gmra.mxu0 %v1659
      %v4186 = vpop.f32.mrf.mxu0
      %v4187 = vadd.f32 %v4026, %v4186
      %v4188 = vpop.f32.mrf.mxu0
      %v4189 = vpop.f32.mrf.mxu0
      %v4190 = vadd.f32 %v4029, %v4189
      %v4191 = vpop.f32.mrf.mxu0
      %4192 = vmatprep.mubr.bf16.mxu0 %v1366
      %4193 = vmatmul.mubr.bf16.gmra.mxu0 %v1662
      %v4194 = vpop.f32.mrf.mxu0
      %v4195 = vadd.f32 %v4034, %v4194
      %v4196 = vpop.f32.mrf.mxu0
      %v4197 = vpop.f32.mrf.mxu0
      %v4198 = vadd.f32 %v4037, %v4197
      %v4199 = vpop.f32.mrf.mxu0
      %4200 = vmatprep.mubr.bf16.mxu0 %v1367
      %4201 = vmatmul.mubr.bf16.gmra.mxu0 %v1665
      %v4202 = vpop.f32.mrf.mxu0
      %v4203 = vadd.f32 %v4042, %v4202
      %v4204 = vpop.f32.mrf.mxu0
      %v4205 = vpop.f32.mrf.mxu0
      %v4206 = vadd.f32 %v4045, %v4205
      %v4207 = vpop.f32.mrf.mxu0
      %4208 = vmatprep.mubr.bf16.mxu0 %v1368
      %4209 = vmatmul.mubr.bf16.gmra.mxu0 %v1668
      %v4210 = vpop.f32.mrf.mxu0
      %v4211 = vadd.f32 %v4050, %v4210
      %v4212 = vpop.f32.mrf.mxu0
      %v4213 = vpop.f32.mrf.mxu0
      %v4214 = vadd.f32 %v4053, %v4213
      %v4215 = vpop.f32.mrf.mxu0
      %4216 = vmatprep.mubr.bf16.mxu0 %v1369
      %4217 = vmatmul.mubr.bf16.gmra.mxu0 %v1671
      %v4218 = vpop.f32.mrf.mxu0
      %v4219 = vadd.f32 %v4058, %v4218
      %v4220 = vpop.f32.mrf.mxu0
      %v4221 = vpop.f32.mrf.mxu0
      %v4222 = vadd.f32 %v4061, %v4221
      %v4223 = vpop.f32.mrf.mxu0
      %4224 = vmatprep.mubr.bf16.mxu0 %v1370
      %4225 = vmatmul.mubr.bf16.gmra.mxu0 %v1674
      %v4226 = vpop.f32.mrf.mxu0
      %v4227 = vadd.f32 %v4066, %v4226
      %v4228 = vpop.f32.mrf.mxu0
      %v4229 = vpop.f32.mrf.mxu0
      %v4230 = vadd.f32 %v4069, %v4229
      %v4231 = vpop.f32.mrf.mxu0
      %4232 = vmatprep.mubr.bf16.mxu0 %v1371
      %4233 = vmatmul.mubr.bf16.gmra.mxu0 %v1677
      %v4234 = vpop.f32.mrf.mxu0
      %v4235 = vadd.f32 %v4074, %v4234
      %v4236 = vpop.f32.mrf.mxu0
      %v4237 = vpop.f32.mrf.mxu0
      %v4238 = vadd.f32 %v4077, %v4237
      %v4239 = vpop.f32.mrf.mxu0
      %4240 = vmatprep.mubr.bf16.mxu0 %v1372
      %4241 = vmatmul.mubr.bf16.gmra.mxu0 %v1680
      %v4242 = vpop.f32.mrf.mxu0
      %v4243 = vadd.f32 %v4082, %v4242
      %v4244 = vpop.f32.mrf.mxu0
      %v4245 = vpop.f32.mrf.mxu0
      %v4246 = vadd.f32 %v4085, %v4245
      %v4247 = vpop.f32.mrf.mxu0
      %4248 = vmatprep.mubr.bf16.mxu0 %v1373
      %4249 = vmatmul.mubr.bf16.gmra.mxu0 %v1683
      %v4250 = vpop.f32.mrf.mxu0
      %v4251 = vadd.f32 %v4090, %v4250
      %v4252 = vpop.f32.mrf.mxu0
      %v4253 = vpop.f32.mrf.mxu0
      %v4254 = vadd.f32 %v4093, %v4253
      %v4255 = vpop.f32.mrf.mxu0
      %4256 = vmatprep.mubr.bf16.mxu0 %v1374
      %4257 = vmatmul.mubr.bf16.gmra.mxu0 %v1686
      %v4258 = vpop.f32.mrf.mxu0
      %v4259 = vadd.f32 %v4098, %v4258
      %v4260 = vpop.f32.mrf.mxu0
      %v4261 = vpop.f32.mrf.mxu0
      %v4262 = vadd.f32 %v4101, %v4261
      %v4263 = vpop.f32.mrf.mxu0
      %4264 = vmatprep.mubr.bf16.mxu0 %v1375
      %4265 = vmatmul.mubr.bf16.gmra.mxu0 %v1720
      %v4266 = vpop.f32.mrf.mxu0
      %v4267 = vadd.f32 %v4106, %v4266
      %v4268 = vpop.f32.mrf.mxu0
      %v4269 = vpop.f32.mrf.mxu0
      %v4270 = vadd.f32 %v4109, %v4269
      %v4271 = vpop.f32.mrf.mxu0
      %4272 = vmatprep.mubr.bf16.mxu0 %v1376
      %4273 = vmatmul.mubr.bf16.gmra.mxu0 %v1739
      %v4274 = vpop.f32.mrf.mxu0
      %v4275 = vadd.f32 %v4114, %v4274
      %v4276 = vpop.f32.mrf.mxu0
      %v4277 = vpop.f32.mrf.mxu0
      %v4278 = vadd.f32 %v4117, %v4277
      %v4279 = vpop.f32.mrf.mxu0
      %4280 = vdwg.mxu0
      %4281 = vmatprep.subr.bf16.mxu0 0
      %4282 = vmatpush1.bf16.msra.mxu0 %v3275
      %4283 = vmatprep.subr.bf16.mxu0 0
      %4284 = vmatpush1.bf16.msra.mxu0 %v3274
      %4285 = vmatprep.subr.bf16.mxu0 0
      %4286 = vmatpush1.bf16.msra.mxu0 %v3273
      %4287 = vmatprep.subr.bf16.mxu0 0
      %4288 = vmatpush1.bf16.msra.mxu0 %v3272
      %4289 = vmatprep.subr.bf16.mxu0 0
      %4290 = vmatpush1.bf16.msra.mxu0 %v3271
      %4291 = vmatprep.subr.bf16.mxu0 0
      %4292 = vmatpush1.bf16.msra.mxu0 %v3270
      %4293 = vmatprep.subr.bf16.mxu0 0
      %4294 = vmatpush1.bf16.msra.mxu0 %v3269
      %4295 = vmatprep.subr.bf16.mxu0 0
      %4296 = vmatpush1.bf16.msra.mxu0 %v3268
      %4297 = vmatprep.subr.bf16.mxu0 0
      %4298 = vmatpush2.bf16.msra.mxu0 %v3283
      %4299 = vmatprep.subr.bf16.mxu0 0
      %4300 = vmatpush2.bf16.msra.mxu0 %v3282
      %4301 = vmatprep.subr.bf16.mxu0 0
      %4302 = vmatpush2.bf16.msra.mxu0 %v3281
      %4303 = vmatprep.subr.bf16.mxu0 0
      %4304 = vmatpush2.bf16.msra.mxu0 %v3280
      %4305 = vmatprep.subr.bf16.mxu0 0
      %4306 = vmatpush2.bf16.msra.mxu0 %v3279
      %4307 = vmatprep.subr.bf16.mxu0 0
      %4308 = vmatpush2.bf16.msra.mxu0 %v3278
      %4309 = vmatprep.subr.bf16.mxu0 0
      %4310 = vmatpush2.bf16.msra.mxu0 %v3277
      %4311 = vmatprep.subr.bf16.mxu0 0
      %4312 = vmatpush2.bf16.msra.mxu0 %v3276
      %4313 = vmatprep.mubr.bf16.mxu0 %v1983
      %4314 = vmatmul.mubr.bf16.gmra.mxu0 %v1752
      %v4315 = vpop.f32.mrf.mxu0
      %v4316 = vadd.f32 %v4155, %v4315
      %v4317 = vpop.f32.mrf.mxu0
      %v4318 = vpop.f32.mrf.mxu0
      %v4319 = vadd.f32 %v4158, %v4318
      %v4320 = vpop.f32.mrf.mxu0
      %4321 = vmatprep.mubr.bf16.mxu0 %v1986
      %4322 = vmatmul.mubr.bf16.gmra.mxu0 %v1764
      %v4323 = vpop.f32.mrf.mxu0
      %v4324 = vadd.f32 %v4163, %v4323
      %v4325 = vpop.f32.mrf.mxu0
      %v4326 = vpop.f32.mrf.mxu0
      %v4327 = vadd.f32 %v4166, %v4326
      %v4328 = vpop.f32.mrf.mxu0
      %4329 = vmatprep.mubr.bf16.mxu0 %v1989
      %4330 = vmatmul.mubr.bf16.gmra.mxu0 %v1776
      %v4331 = vpop.f32.mrf.mxu0
      %v4332 = vadd.f32 %v4171, %v4331
      %v4333 = vpop.f32.mrf.mxu0
      %v4334 = vpop.f32.mrf.mxu0
      %v4335 = vadd.f32 %v4174, %v4334
      %v4336 = vpop.f32.mrf.mxu0
      %4337 = vmatprep.mubr.bf16.mxu0 %v1992
      %4338 = vmatmul.mubr.bf16.gmra.mxu0 %v1788
      %v4339 = vpop.f32.mrf.mxu0
      %v4340 = vadd.f32 %v4179, %v4339
      %v4341 = vpop.f32.mrf.mxu0
      %v4342 = vpop.f32.mrf.mxu0
      %v4343 = vadd.f32 %v4182, %v4342
      %v4344 = vpop.f32.mrf.mxu0
      %4345 = vmatprep.mubr.bf16.mxu0 %v1995
      %4346 = vmatmul.mubr.bf16.gmra.mxu0 %v1800
      %v4347 = vpop.f32.mrf.mxu0
      %v4348 = vadd.f32 %v4187, %v4347
      %v4349 = vpop.f32.mrf.mxu0
      %v4350 = vpop.f32.mrf.mxu0
      %v4351 = vadd.f32 %v4190, %v4350
      %v4352 = vpop.f32.mrf.mxu0
      %4353 = vmatprep.mubr.bf16.mxu0 %v1998
      %4354 = vmatmul.mubr.bf16.gmra.mxu0 %v1812
      %v4355 = vpop.f32.mrf.mxu0
      %v4356 = vadd.f32 %v4195, %v4355
      %v4357 = vpop.f32.mrf.mxu0
      %v4358 = vpop.f32.mrf.mxu0
      %v4359 = vadd.f32 %v4198, %v4358
      %v4360 = vpop.f32.mrf.mxu0
      %4361 = vmatprep.mubr.bf16.mxu0 %v2001
      %4362 = vmatmul.mubr.bf16.gmra.mxu0 %v1824
      %v4363 = vpop.f32.mrf.mxu0
      %v4364 = vadd.f32 %v4203, %v4363
      %v4365 = vpop.f32.mrf.mxu0
      %v4366 = vpop.f32.mrf.mxu0
      %v4367 = vadd.f32 %v4206, %v4366
      %v4368 = vpop.f32.mrf.mxu0
      %4369 = vmatprep.mubr.bf16.mxu0 %v2004
      %4370 = vmatmul.mubr.bf16.gmra.mxu0 %v1836
      %v4371 = vpop.f32.mrf.mxu0
      %v4372 = vadd.f32 %v4211, %v4371
      %v4373 = vpop.f32.mrf.mxu0
      %v4374 = vpop.f32.mrf.mxu0
      %v4375 = vadd.f32 %v4214, %v4374
      %v4376 = vpop.f32.mrf.mxu0
      %4377 = vmatprep.mubr.bf16.mxu0 %v2007
      %4378 = vmatmul.mubr.bf16.gmra.mxu0 %v1848
      %v4379 = vpop.f32.mrf.mxu0
      %v4380 = vadd.f32 %v4219, %v4379
      %v4381 = vpop.f32.mrf.mxu0
      %v4382 = vpop.f32.mrf.mxu0
      %v4383 = vadd.f32 %v4222, %v4382
      %v4384 = vpop.f32.mrf.mxu0
      %4385 = vmatprep.mubr.bf16.mxu0 %v2010
      %4386 = vmatmul.mubr.bf16.gmra.mxu0 %v1860
      %v4387 = vpop.f32.mrf.mxu0
      %v4388 = vadd.f32 %v4227, %v4387
      %v4389 = vpop.f32.mrf.mxu0
      %v4390 = vpop.f32.mrf.mxu0
      %v4391 = vadd.f32 %v4230, %v4390
      %v4392 = vpop.f32.mrf.mxu0
      %4393 = vmatprep.mubr.bf16.mxu0 %v2013
      %4394 = vmatmul.mubr.bf16.gmra.mxu0 %v1872
      %v4395 = vpop.f32.mrf.mxu0
      %v4396 = vadd.f32 %v4235, %v4395
      %v4397 = vpop.f32.mrf.mxu0
      %v4398 = vpop.f32.mrf.mxu0
      %v4399 = vadd.f32 %v4238, %v4398
      %v4400 = vpop.f32.mrf.mxu0
      %4401 = vmatprep.mubr.bf16.mxu0 %v2016
      %4402 = vmatmul.mubr.bf16.gmra.mxu0 %v1884
      %v4403 = vpop.f32.mrf.mxu0
      %v4404 = vadd.f32 %v4243, %v4403
      %v4405 = vpop.f32.mrf.mxu0
      %v4406 = vpop.f32.mrf.mxu0
      %v4407 = vadd.f32 %v4246, %v4406
      %v4408 = vpop.f32.mrf.mxu0
      %4409 = vmatprep.mubr.bf16.mxu0 %v2019
      %4410 = vmatmul.mubr.bf16.gmra.mxu0 %v1896
      %v4411 = vpop.f32.mrf.mxu0
      %v4412 = vadd.f32 %v4251, %v4411
      %v4413 = vpop.f32.mrf.mxu0
      %v4414 = vpop.f32.mrf.mxu0
      %v4415 = vadd.f32 %v4254, %v4414
      %v4416 = vpop.f32.mrf.mxu0
      %4417 = vmatprep.mubr.bf16.mxu0 %v2022
      %4418 = vmatmul.mubr.bf16.gmra.mxu0 %v1908
      %v4419 = vpop.f32.mrf.mxu0
      %v4420 = vadd.f32 %v4259, %v4419
      %v4421 = vpop.f32.mrf.mxu0
      %v4422 = vpop.f32.mrf.mxu0
      %v4423 = vadd.f32 %v4262, %v4422
      %v4424 = vpop.f32.mrf.mxu0
      %4425 = vmatprep.mubr.bf16.mxu0 %v2025
      %4426 = vmatmul.mubr.bf16.gmra.mxu0 %v1920
      %v4427 = vpop.f32.mrf.mxu0
      %v4428 = vadd.f32 %v4267, %v4427
      %v4429 = vpop.f32.mrf.mxu0
      %v4430 = vpop.f32.mrf.mxu0
      %v4431 = vadd.f32 %v4270, %v4430
      %v4432 = vpop.f32.mrf.mxu0
      %4433 = vmatprep.mubr.bf16.mxu0 %v2028
      %4434 = vmatmul.mubr.bf16.gmra.mxu0 %v1932
      %v4435 = vpop.f32.mrf.mxu0
      %v4436 = vadd.f32 %v4275, %v4435
      %v4437 = vpop.f32.mrf.mxu0
      %v4438 = vpop.f32.mrf.mxu0
      %v4439 = vadd.f32 %v4278, %v4438
      %v4440 = vpop.f32.mrf.mxu0
      %4441 = vdwg.mxu0
      %4442 = vmatprep.subr.bf16.mxu0 0
      %4443 = vmatpush1.bf16.msra.mxu0 %v3291
      %4444 = vmatprep.subr.bf16.mxu0 0
      %4445 = vmatpush1.bf16.msra.mxu0 %v3290
      %4446 = vmatprep.subr.bf16.mxu0 0
      %4447 = vmatpush1.bf16.msra.mxu0 %v3289
      %4448 = vmatprep.subr.bf16.mxu0 0
      %4449 = vmatpush1.bf16.msra.mxu0 %v3288
      %4450 = vmatprep.subr.bf16.mxu0 0
      %4451 = vmatpush1.bf16.msra.mxu0 %v3287
      %4452 = vmatprep.subr.bf16.mxu0 0
      %4453 = vmatpush1.bf16.msra.mxu0 %v3286
      %4454 = vmatprep.subr.bf16.mxu0 0
      %4455 = vmatpush1.bf16.msra.mxu0 %v3285
      %4456 = vmatprep.subr.bf16.mxu0 0
      %4457 = vmatpush1.bf16.msra.mxu0 %v3284
      %4458 = vmatprep.subr.bf16.mxu0 0
      %4459 = vmatpush2.bf16.msra.mxu0 %v3299
      %4460 = vmatprep.subr.bf16.mxu0 0
      %4461 = vmatpush2.bf16.msra.mxu0 %v3298
      %4462 = vmatprep.subr.bf16.mxu0 0
      %4463 = vmatpush2.bf16.msra.mxu0 %v3297
      %4464 = vmatprep.subr.bf16.mxu0 0
      %4465 = vmatpush2.bf16.msra.mxu0 %v3296
      %4466 = vmatprep.subr.bf16.mxu0 0
      %4467 = vmatpush2.bf16.msra.mxu0 %v3295
      %4468 = vmatprep.subr.bf16.mxu0 0
      %4469 = vmatpush2.bf16.msra.mxu0 %v3294
      %4470 = vmatprep.subr.bf16.mxu0 0
      %4471 = vmatpush2.bf16.msra.mxu0 %v3293
      %4472 = vmatprep.subr.bf16.mxu0 0
      %4473 = vmatpush2.bf16.msra.mxu0 %v3292
      %4474 = vmatprep.mubr.bf16.mxu0 %v1764
      %4475 = vmatmul.mubr.bf16.gmra.mxu0 %v1362
      %v4476 = vpop.f32.mrf.mxu0
      %v4477 = vadd.f32 %v4316, %v4476
      %v4478 = vpop.f32.mrf.mxu0
      %v4479 = vpop.f32.mrf.mxu0
      %v4480 = vadd.f32 %v4319, %v4479
      %v4481 = vpop.f32.mrf.mxu0
      %4482 = vmatprep.mubr.bf16.mxu0 %v1776
      %4483 = vmatmul.mubr.bf16.gmra.mxu0 %v1363
      %v4484 = vpop.f32.mrf.mxu0
      %v4485 = vadd.f32 %v4324, %v4484
      %v4486 = vpop.f32.mrf.mxu0
      %v4487 = vpop.f32.mrf.mxu0
      %v4488 = vadd.f32 %v4327, %v4487
      %v4489 = vpop.f32.mrf.mxu0
      %4490 = vmatprep.mubr.bf16.mxu0 %v1788
      %4491 = vmatmul.mubr.bf16.gmra.mxu0 %v1364
      %v4492 = vpop.f32.mrf.mxu0
      %v4493 = vadd.f32 %v4332, %v4492
      %v4494 = vpop.f32.mrf.mxu0
      %v4495 = vpop.f32.mrf.mxu0
      %v4496 = vadd.f32 %v4335, %v4495
      %v4497 = vpop.f32.mrf.mxu0
      %4498 = vmatprep.mubr.bf16.mxu0 %v1800
      %4499 = vmatmul.mubr.bf16.gmra.mxu0 %v1365
      %v4500 = vpop.f32.mrf.mxu0
      %v4501 = vadd.f32 %v4340, %v4500
      %v4502 = vpop.f32.mrf.mxu0
      %v4503 = vpop.f32.mrf.mxu0
      %v4504 = vadd.f32 %v4343, %v4503
      %v4505 = vpop.f32.mrf.mxu0
      %4506 = vmatprep.mubr.bf16.mxu0 %v1812
      %4507 = vmatmul.mubr.bf16.gmra.mxu0 %v1366
      %v4508 = vpop.f32.mrf.mxu0
      %v4509 = vadd.f32 %v4348, %v4508
      %v4510 = vpop.f32.mrf.mxu0
      %v4511 = vpop.f32.mrf.mxu0
      %v4512 = vadd.f32 %v4351, %v4511
      %v4513 = vpop.f32.mrf.mxu0
      %4514 = vmatprep.mubr.bf16.mxu0 %v1824
      %4515 = vmatmul.mubr.bf16.gmra.mxu0 %v1367
      %v4516 = vpop.f32.mrf.mxu0
      %v4517 = vadd.f32 %v4356, %v4516
      %v4518 = vpop.f32.mrf.mxu0
      %v4519 = vpop.f32.mrf.mxu0
      %v4520 = vadd.f32 %v4359, %v4519
      %v4521 = vpop.f32.mrf.mxu0
      %4522 = vmatprep.mubr.bf16.mxu0 %v1836
      %4523 = vmatmul.mubr.bf16.gmra.mxu0 %v1368
      %v4524 = vpop.f32.mrf.mxu0
      %v4525 = vadd.f32 %v4364, %v4524
      %v4526 = vpop.f32.mrf.mxu0
      %v4527 = vpop.f32.mrf.mxu0
      %v4528 = vadd.f32 %v4367, %v4527
      %v4529 = vpop.f32.mrf.mxu0
      %4530 = vmatprep.mubr.bf16.mxu0 %v1848
      %4531 = vmatmul.mubr.bf16.gmra.mxu0 %v1369
      %v4532 = vpop.f32.mrf.mxu0
      %v4533 = vadd.f32 %v4372, %v4532
      %v4534 = vpop.f32.mrf.mxu0
      %v4535 = vpop.f32.mrf.mxu0
      %v4536 = vadd.f32 %v4375, %v4535
      %v4537 = vpop.f32.mrf.mxu0
      %4538 = vmatprep.mubr.bf16.mxu0 %v1860
      %4539 = vmatmul.mubr.bf16.gmra.mxu0 %v1370
      %v4540 = vpop.f32.mrf.mxu0
      %v4541 = vadd.f32 %v4380, %v4540
      %v4542 = vpop.f32.mrf.mxu0
      %v4543 = vpop.f32.mrf.mxu0
      %v4544 = vadd.f32 %v4383, %v4543
      %v4545 = vpop.f32.mrf.mxu0
      %4546 = vmatprep.mubr.bf16.mxu0 %v1872
      %4547 = vmatmul.mubr.bf16.gmra.mxu0 %v1371
      %v4548 = vpop.f32.mrf.mxu0
      %v4549 = vadd.f32 %v4388, %v4548
      %v4550 = vpop.f32.mrf.mxu0
      %v4551 = vpop.f32.mrf.mxu0
      %v4552 = vadd.f32 %v4391, %v4551
      %v4553 = vpop.f32.mrf.mxu0
      %4554 = vmatprep.mubr.bf16.mxu0 %v1884
      %4555 = vmatmul.mubr.bf16.gmra.mxu0 %v1372
      %v4556 = vpop.f32.mrf.mxu0
      %v4557 = vadd.f32 %v4396, %v4556
      %v4558 = vpop.f32.mrf.mxu0
      %v4559 = vpop.f32.mrf.mxu0
      %v4560 = vadd.f32 %v4399, %v4559
      %v4561 = vpop.f32.mrf.mxu0
      %4562 = vmatprep.mubr.bf16.mxu0 %v1896
      %4563 = vmatmul.mubr.bf16.gmra.mxu0 %v1373
      %v4564 = vpop.f32.mrf.mxu0
      %v4565 = vadd.f32 %v4404, %v4564
      %v4566 = vpop.f32.mrf.mxu0
      %v4567 = vpop.f32.mrf.mxu0
      %v4568 = vadd.f32 %v4407, %v4567
      %v4569 = vpop.f32.mrf.mxu0
      %4570 = vmatprep.mubr.bf16.mxu0 %v1908
      %4571 = vmatmul.mubr.bf16.gmra.mxu0 %v1374
      %v4572 = vpop.f32.mrf.mxu0
      %v4573 = vadd.f32 %v4412, %v4572
      %v4574 = vpop.f32.mrf.mxu0
      %v4575 = vpop.f32.mrf.mxu0
      %v4576 = vadd.f32 %v4415, %v4575
      %v4577 = vpop.f32.mrf.mxu0
      %4578 = vmatprep.mubr.bf16.mxu0 %v1920
      %4579 = vmatmul.mubr.bf16.gmra.mxu0 %v1375
      %v4580 = vpop.f32.mrf.mxu0
      %v4581 = vadd.f32 %v4420, %v4580
      %v4582 = vpop.f32.mrf.mxu0
      %v4583 = vpop.f32.mrf.mxu0
      %v4584 = vadd.f32 %v4423, %v4583
      %v4585 = vpop.f32.mrf.mxu0
      %4586 = vmatprep.mubr.bf16.mxu0 %v1932
      %4587 = vmatmul.mubr.bf16.gmra.mxu0 %v1376
      %v4588 = vpop.f32.mrf.mxu0
      %v4589 = vadd.f32 %v4428, %v4588
      %v4590 = vpop.f32.mrf.mxu0
      %v4591 = vpop.f32.mrf.mxu0
      %v4592 = vadd.f32 %v4431, %v4591
      %v4593 = vpop.f32.mrf.mxu0
      %4594 = vmatprep.mubr.bf16.mxu0 %v2056
      %4595 = vmatmul.mubr.bf16.gmra.mxu0 %v1377
      %v4596 = vpop.f32.mrf.mxu0
      %v4597 = vadd.f32 %v4436, %v4596
      %v4598 = vpop.f32.mrf.mxu0
      %v4599 = vpop.f32.mrf.mxu0
      %v4600 = vadd.f32 %v4439, %v4599
      %v4601 = vpop.f32.mrf.mxu0
      %4602 = vdwg.mxu0
      %4603 = vmatprep.subr.bf16.mxu0 0
      %4604 = vmatpush1.bf16.msra.mxu0 %v3307
      %4605 = vmatprep.subr.bf16.mxu0 0
      %4606 = vmatpush1.bf16.msra.mxu0 %v3306
      %4607 = vmatprep.subr.bf16.mxu0 0
      %4608 = vmatpush1.bf16.msra.mxu0 %v3305
      %4609 = vmatprep.subr.bf16.mxu0 0
      %4610 = vmatpush1.bf16.msra.mxu0 %v3304
      %4611 = vmatprep.subr.bf16.mxu0 0
      %4612 = vmatpush1.bf16.msra.mxu0 %v3303
      %4613 = vmatprep.subr.bf16.mxu0 0
      %4614 = vmatpush1.bf16.msra.mxu0 %v3302
      %4615 = vmatprep.subr.bf16.mxu0 0
      %4616 = vmatpush1.bf16.msra.mxu0 %v3301
      %4617 = vmatprep.subr.bf16.mxu0 0
      %4618 = vmatpush1.bf16.msra.mxu0 %v3300
      %4619 = vmatprep.subr.bf16.mxu0 0
      %4620 = vmatpush2.bf16.msra.mxu0 %v3315
      %4621 = vmatprep.subr.bf16.mxu0 0
      %4622 = vmatpush2.bf16.msra.mxu0 %v3314
      %4623 = vmatprep.subr.bf16.mxu0 0
      %4624 = vmatpush2.bf16.msra.mxu0 %v3313
      %4625 = vmatprep.subr.bf16.mxu0 0
      %4626 = vmatpush2.bf16.msra.mxu0 %v3312
      %4627 = vmatprep.subr.bf16.mxu0 0
      %4628 = vmatpush2.bf16.msra.mxu0 %v3311
      %4629 = vmatprep.subr.bf16.mxu0 0
      %4630 = vmatpush2.bf16.msra.mxu0 %v3310
      %4631 = vmatprep.subr.bf16.mxu0 0
      %4632 = vmatpush2.bf16.msra.mxu0 %v3309
      %4633 = vmatprep.subr.bf16.mxu0 0
      %4634 = vmatpush2.bf16.msra.mxu0 %v3308
      %4635 = vmatprep.mubr.bf16.mxu0 %v1363
      %4636 = vmatmul.mubr.bf16.gmra.mxu0 %v1986
      %v4637 = vpop.f32.mrf.mxu0
      %v4638 = vadd.f32 %v4477, %v4637
      %v4639 = vpop.f32.mrf.mxu0
      %v4640 = vpop.f32.mrf.mxu0
      %v4641 = vadd.f32 %v4480, %v4640
      %v4642 = vpop.f32.mrf.mxu0
      %4643 = vmatprep.mubr.bf16.mxu0 %v1364
      %4644 = vmatmul.mubr.bf16.gmra.mxu0 %v1989
      %v4645 = vpop.f32.mrf.mxu0
      %v4646 = vadd.f32 %v4485, %v4645
      %v4647 = vpop.f32.mrf.mxu0
      %v4648 = vpop.f32.mrf.mxu0
      %v4649 = vadd.f32 %v4488, %v4648
      %v4650 = vpop.f32.mrf.mxu0
      %4651 = vmatprep.mubr.bf16.mxu0 %v1365
      %4652 = vmatmul.mubr.bf16.gmra.mxu0 %v1992
      %v4653 = vpop.f32.mrf.mxu0
      %v4654 = vadd.f32 %v4493, %v4653
      %v4655 = vpop.f32.mrf.mxu0
      %v4656 = vpop.f32.mrf.mxu0
      %v4657 = vadd.f32 %v4496, %v4656
      %v4658 = vpop.f32.mrf.mxu0
      %4659 = vmatprep.mubr.bf16.mxu0 %v1366
      %4660 = vmatmul.mubr.bf16.gmra.mxu0 %v1995
      %v4661 = vpop.f32.mrf.mxu0
      %v4662 = vadd.f32 %v4501, %v4661
      %v4663 = vpop.f32.mrf.mxu0
      %v4664 = vpop.f32.mrf.mxu0
      %v4665 = vadd.f32 %v4504, %v4664
      %v4666 = vpop.f32.mrf.mxu0
      %4667 = vmatprep.mubr.bf16.mxu0 %v1367
      %4668 = vmatmul.mubr.bf16.gmra.mxu0 %v1998
      %v4669 = vpop.f32.mrf.mxu0
      %v4670 = vadd.f32 %v4509, %v4669
      %v4671 = vpop.f32.mrf.mxu0
      %v4672 = vpop.f32.mrf.mxu0
      %v4673 = vadd.f32 %v4512, %v4672
      %v4674 = vpop.f32.mrf.mxu0
      %4675 = vmatprep.mubr.bf16.mxu0 %v1368
      %4676 = vmatmul.mubr.bf16.gmra.mxu0 %v2001
      %v4677 = vpop.f32.mrf.mxu0
      %v4678 = vadd.f32 %v4517, %v4677
      %v4679 = vpop.f32.mrf.mxu0
      %v4680 = vpop.f32.mrf.mxu0
      %v4681 = vadd.f32 %v4520, %v4680
      %v4682 = vpop.f32.mrf.mxu0
      %4683 = vmatprep.mubr.bf16.mxu0 %v1369
      %4684 = vmatmul.mubr.bf16.gmra.mxu0 %v2004
      %v4685 = vpop.f32.mrf.mxu0
      %v4686 = vadd.f32 %v4525, %v4685
      %v4687 = vpop.f32.mrf.mxu0
      %v4688 = vpop.f32.mrf.mxu0
      %v4689 = vadd.f32 %v4528, %v4688
      %v4690 = vpop.f32.mrf.mxu0
      %4691 = vmatprep.mubr.bf16.mxu0 %v1370
      %4692 = vmatmul.mubr.bf16.gmra.mxu0 %v2007
      %v4693 = vpop.f32.mrf.mxu0
      %v4694 = vadd.f32 %v4533, %v4693
      %v4695 = vpop.f32.mrf.mxu0
      %v4696 = vpop.f32.mrf.mxu0
      %v4697 = vadd.f32 %v4536, %v4696
      %v4698 = vpop.f32.mrf.mxu0
      %4699 = vmatprep.mubr.bf16.mxu0 %v1371
      %4700 = vmatmul.mubr.bf16.gmra.mxu0 %v2010
      %v4701 = vpop.f32.mrf.mxu0
      %v4702 = vadd.f32 %v4541, %v4701
      %v4703 = vpop.f32.mrf.mxu0
      %v4704 = vpop.f32.mrf.mxu0
      %v4705 = vadd.f32 %v4544, %v4704
      %v4706 = vpop.f32.mrf.mxu0
      %4707 = vmatprep.mubr.bf16.mxu0 %v1372
      %4708 = vmatmul.mubr.bf16.gmra.mxu0 %v2013
      %v4709 = vpop.f32.mrf.mxu0
      %v4710 = vadd.f32 %v4549, %v4709
      %v4711 = vpop.f32.mrf.mxu0
      %v4712 = vpop.f32.mrf.mxu0
      %v4713 = vadd.f32 %v4552, %v4712
      %v4714 = vpop.f32.mrf.mxu0
      %4715 = vmatprep.mubr.bf16.mxu0 %v1373
      %4716 = vmatmul.mubr.bf16.gmra.mxu0 %v2016
      %v4717 = vpop.f32.mrf.mxu0
      %v4718 = vadd.f32 %v4557, %v4717
      %v4719 = vpop.f32.mrf.mxu0
      %v4720 = vpop.f32.mrf.mxu0
      %v4721 = vadd.f32 %v4560, %v4720
      %v4722 = vpop.f32.mrf.mxu0
      %4723 = vmatprep.mubr.bf16.mxu0 %v1374
      %4724 = vmatmul.mubr.bf16.gmra.mxu0 %v2019
      %v4725 = vpop.f32.mrf.mxu0
      %v4726 = vadd.f32 %v4565, %v4725
      %v4727 = vpop.f32.mrf.mxu0
      %v4728 = vpop.f32.mrf.mxu0
      %v4729 = vadd.f32 %v4568, %v4728
      %v4730 = vpop.f32.mrf.mxu0
      %4731 = vmatprep.mubr.bf16.mxu0 %v1375
      %4732 = vmatmul.mubr.bf16.gmra.mxu0 %v2022
      %v4733 = vpop.f32.mrf.mxu0
      %v4734 = vadd.f32 %v4573, %v4733
      %v4735 = vpop.f32.mrf.mxu0
      %v4736 = vpop.f32.mrf.mxu0
      %v4737 = vadd.f32 %v4576, %v4736
      %v4738 = vpop.f32.mrf.mxu0
      %4739 = vmatprep.mubr.bf16.mxu0 %v1376
      %4740 = vmatmul.mubr.bf16.gmra.mxu0 %v2025
      %v4741 = vpop.f32.mrf.mxu0
      %v4742 = vadd.f32 %v4581, %v4741
      %v4743 = vpop.f32.mrf.mxu0
      %v4744 = vpop.f32.mrf.mxu0
      %v4745 = vadd.f32 %v4584, %v4744
      %v4746 = vpop.f32.mrf.mxu0
      %4747 = vmatprep.mubr.bf16.mxu0 %v1377
      %4748 = vmatmul.mubr.bf16.gmra.mxu0 %v2028
      %v4749 = vpop.f32.mrf.mxu0
      %v4750 = vadd.f32 %v4589, %v4749
      %v4751 = vpop.f32.mrf.mxu0
      %v4752 = vpop.f32.mrf.mxu0
      %v4753 = vadd.f32 %v4592, %v4752
      %v4754 = vpop.f32.mrf.mxu0
      %4755 = vmatprep.mubr.bf16.mxu0 %v1378
      %4756 = vmatmul.mubr.bf16.gmra.mxu0 %v2062
      %v4757 = vpop.f32.mrf.mxu0
      %v4758 = vadd.f32 %v4597, %v4757
      %v4759 = vpop.f32.mrf.mxu0
      %v4760 = vpop.f32.mrf.mxu0
      %v4761 = vadd.f32 %v4600, %v4760
      %v4762 = vpop.f32.mrf.mxu0
      %4763 = vdwg.mxu0
      %4764 = vmatprep.subr.bf16.mxu0 0
      %4765 = vmatpush1.bf16.msra.mxu0 %v3323
      %4766 = vmatprep.subr.bf16.mxu0 0
      %4767 = vmatpush1.bf16.msra.mxu0 %v3322
      %4768 = vmatprep.subr.bf16.mxu0 0
      %4769 = vmatpush1.bf16.msra.mxu0 %v3321
      %4770 = vmatprep.subr.bf16.mxu0 0
      %4771 = vmatpush1.bf16.msra.mxu0 %v3320
      %4772 = vmatprep.subr.bf16.mxu0 0
      %4773 = vmatpush1.bf16.msra.mxu0 %v3319
      %4774 = vmatprep.subr.bf16.mxu0 0
      %4775 = vmatpush1.bf16.msra.mxu0 %v3318
      %4776 = vmatprep.subr.bf16.mxu0 0
      %4777 = vmatpush1.bf16.msra.mxu0 %v3317
      %4778 = vmatprep.subr.bf16.mxu0 0
      %4779 = vmatpush1.bf16.msra.mxu0 %v3316
      %4780 = vmatprep.subr.bf16.mxu0 0
      %4781 = vmatpush2.bf16.msra.mxu0 %v3331
      %4782 = vmatprep.subr.bf16.mxu0 0
      %4783 = vmatpush2.bf16.msra.mxu0 %v3330
      %4784 = vmatprep.subr.bf16.mxu0 0
      %4785 = vmatpush2.bf16.msra.mxu0 %v3329
      %4786 = vmatprep.subr.bf16.mxu0 0
      %4787 = vmatpush2.bf16.msra.mxu0 %v3328
      %4788 = vmatprep.subr.bf16.mxu0 0
      %4789 = vmatpush2.bf16.msra.mxu0 %v3327
      %4790 = vmatprep.subr.bf16.mxu0 0
      %4791 = vmatpush2.bf16.msra.mxu0 %v3326
      %4792 = vmatprep.subr.bf16.mxu0 0
      %4793 = vmatpush2.bf16.msra.mxu0 %v3325
      %4794 = vmatprep.subr.bf16.mxu0 0
      %4795 = vmatpush2.bf16.msra.mxu0 %v3324
      %4796 = vmatprep.mubr.bf16.mxu0 %v2119
      %4797 = vmatmul.mubr.bf16.gmra.mxu0 %v1776
      %v4798 = vpop.f32.mrf.mxu0
      %v4799 = vadd.f32 %v4638, %v4798
      %v4800 = vpop.f32.mrf.mxu0
      %v4801 = vpop.f32.mrf.mxu0
      %v4802 = vadd.f32 %v4641, %v4801
      %v4803 = vpop.f32.mrf.mxu0
      %4804 = vmatprep.mubr.bf16.mxu0 %v2131
      %4805 = vmatmul.mubr.bf16.gmra.mxu0 %v1788
      %v4806 = vpop.f32.mrf.mxu0
      %v4807 = vadd.f32 %v4646, %v4806
      %v4808 = vpop.f32.mrf.mxu0
      %v4809 = vpop.f32.mrf.mxu0
      %v4810 = vadd.f32 %v4649, %v4809
      %v4811 = vpop.f32.mrf.mxu0
      %4812 = vmatprep.mubr.bf16.mxu0 %v2143
      %4813 = vmatmul.mubr.bf16.gmra.mxu0 %v1800
      %v4814 = vpop.f32.mrf.mxu0
      %v4815 = vadd.f32 %v4654, %v4814
      %v4816 = vpop.f32.mrf.mxu0
      %v4817 = vpop.f32.mrf.mxu0
      %v4818 = vadd.f32 %v4657, %v4817
      %v4819 = vpop.f32.mrf.mxu0
      %4820 = vmatprep.mubr.bf16.mxu0 %v2155
      %4821 = vmatmul.mubr.bf16.gmra.mxu0 %v1812
      %v4822 = vpop.f32.mrf.mxu0
      %v4823 = vadd.f32 %v4662, %v4822
      %v4824 = vpop.f32.mrf.mxu0
      %v4825 = vpop.f32.mrf.mxu0
      %v4826 = vadd.f32 %v4665, %v4825
      %v4827 = vpop.f32.mrf.mxu0
      %4828 = vmatprep.mubr.bf16.mxu0 %v2167
      %4829 = vmatmul.mubr.bf16.gmra.mxu0 %v1824
      %v4830 = vpop.f32.mrf.mxu0
      %v4831 = vadd.f32 %v4670, %v4830
      %v4832 = vpop.f32.mrf.mxu0
      %v4833 = vpop.f32.mrf.mxu0
      %v4834 = vadd.f32 %v4673, %v4833
      %v4835 = vpop.f32.mrf.mxu0
      %4836 = vmatprep.mubr.bf16.mxu0 %v2179
      %4837 = vmatmul.mubr.bf16.gmra.mxu0 %v1836
      %v4838 = vpop.f32.mrf.mxu0
      %v4839 = vadd.f32 %v4678, %v4838
      %v4840 = vpop.f32.mrf.mxu0
      %v4841 = vpop.f32.mrf.mxu0
      %v4842 = vadd.f32 %v4681, %v4841
      %v4843 = vpop.f32.mrf.mxu0
      %4844 = vmatprep.mubr.bf16.mxu0 %v2191
      %4845 = vmatmul.mubr.bf16.gmra.mxu0 %v1848
      %v4846 = vpop.f32.mrf.mxu0
      %v4847 = vadd.f32 %v4686, %v4846
      %v4848 = vpop.f32.mrf.mxu0
      %v4849 = vpop.f32.mrf.mxu0
      %v4850 = vadd.f32 %v4689, %v4849
      %v4851 = vpop.f32.mrf.mxu0
      %4852 = vmatprep.mubr.bf16.mxu0 %v2203
      %4853 = vmatmul.mubr.bf16.gmra.mxu0 %v1860
      %v4854 = vpop.f32.mrf.mxu0
      %v4855 = vadd.f32 %v4694, %v4854
      %v4856 = vpop.f32.mrf.mxu0
      %v4857 = vpop.f32.mrf.mxu0
      %v4858 = vadd.f32 %v4697, %v4857
      %v4859 = vpop.f32.mrf.mxu0
      %4860 = vmatprep.mubr.bf16.mxu0 %v2215
      %4861 = vmatmul.mubr.bf16.gmra.mxu0 %v1872
      %v4862 = vpop.f32.mrf.mxu0
      %v4863 = vadd.f32 %v4702, %v4862
      %v4864 = vpop.f32.mrf.mxu0
      %v4865 = vpop.f32.mrf.mxu0
      %v4866 = vadd.f32 %v4705, %v4865
      %v4867 = vpop.f32.mrf.mxu0
      %4868 = vmatprep.mubr.bf16.mxu0 %v2227
      %4869 = vmatmul.mubr.bf16.gmra.mxu0 %v1884
      %v4870 = vpop.f32.mrf.mxu0
      %v4871 = vadd.f32 %v4710, %v4870
      %v4872 = vpop.f32.mrf.mxu0
      %v4873 = vpop.f32.mrf.mxu0
      %v4874 = vadd.f32 %v4713, %v4873
      %v4875 = vpop.f32.mrf.mxu0
      %4876 = vmatprep.mubr.bf16.mxu0 %v2239
      %4877 = vmatmul.mubr.bf16.gmra.mxu0 %v1896
      %v4878 = vpop.f32.mrf.mxu0
      %v4879 = vadd.f32 %v4718, %v4878
      %v4880 = vpop.f32.mrf.mxu0
      %v4881 = vpop.f32.mrf.mxu0
      %v4882 = vadd.f32 %v4721, %v4881
      %v4883 = vpop.f32.mrf.mxu0
      %4884 = vmatprep.mubr.bf16.mxu0 %v2251
      %4885 = vmatmul.mubr.bf16.gmra.mxu0 %v1908
      %v4886 = vpop.f32.mrf.mxu0
      %v4887 = vadd.f32 %v4726, %v4886
      %v4888 = vpop.f32.mrf.mxu0
      %v4889 = vpop.f32.mrf.mxu0
      %v4890 = vadd.f32 %v4729, %v4889
      %v4891 = vpop.f32.mrf.mxu0
      %4892 = vmatprep.mubr.bf16.mxu0 %v2263
      %4893 = vmatmul.mubr.bf16.gmra.mxu0 %v1920
      %v4894 = vpop.f32.mrf.mxu0
      %v4895 = vadd.f32 %v4734, %v4894
      %v4896 = vpop.f32.mrf.mxu0
      %v4897 = vpop.f32.mrf.mxu0
      %v4898 = vadd.f32 %v4737, %v4897
      %v4899 = vpop.f32.mrf.mxu0
      %4900 = vmatprep.mubr.bf16.mxu0 %v2275
      %4901 = vmatmul.mubr.bf16.gmra.mxu0 %v1932
      %v4902 = vpop.f32.mrf.mxu0
      %v4903 = vadd.f32 %v4742, %v4902
      %v4904 = vpop.f32.mrf.mxu0
      %v4905 = vpop.f32.mrf.mxu0
      %v4906 = vadd.f32 %v4745, %v4905
      %v4907 = vpop.f32.mrf.mxu0
      %4908 = vmatprep.mubr.bf16.mxu0 %v2287
      %4909 = vmatmul.mubr.bf16.gmra.mxu0 %v2056
      %v4910 = vpop.f32.mrf.mxu0
      %v4911 = vadd.f32 %v4750, %v4910
      %v4912 = vpop.f32.mrf.mxu0
      %v4913 = vpop.f32.mrf.mxu0
      %v4914 = vadd.f32 %v4753, %v4913
      %v4915 = vpop.f32.mrf.mxu0
      %4916 = vmatprep.mubr.bf16.mxu0 %v2299
      %4917 = vmatmul.mubr.bf16.gmra.mxu0 %v2105
      %v4918 = vpop.f32.mrf.mxu0
      %v4919 = vadd.f32 %v4758, %v4918
      %v4920 = vpop.f32.mrf.mxu0
      %v4921 = vpop.f32.mrf.mxu0
      %v4922 = vadd.f32 %v4761, %v4921
      %v4923 = vpop.f32.mrf.mxu0
      %4924 = vdwg.mxu0
      %v4925 = vmax.f32 %v4799, 0.0
      %v4926 = vmax.f32 %v4802, 0.0
      %v4927 = vmax.f32 %v4807, 0.0
      %v4928 = vmax.f32 %v4810, 0.0
      %v4929 = vmax.f32 %v4815, 0.0
      %v4930 = vmax.f32 %v4818, 0.0
      %v4931 = vmax.f32 %v4823, 0.0
      %v4932 = vmax.f32 %v4826, 0.0
      %v4933 = vmax.f32 %v4831, 0.0
      %v4934 = vmax.f32 %v4834, 0.0
      %v4935 = vmax.f32 %v4839, 0.0
      %v4936 = vmax.f32 %v4842, 0.0
      %v4937 = vmax.f32 %v4847, 0.0
      %v4938 = vmax.f32 %v4850, 0.0
      %v4939 = vmax.f32 %v4855, 0.0
      %v4940 = vmax.f32 %v4858, 0.0
      %v4941 = vmax.f32 %v4863, 0.0
      %v4942 = vmax.f32 %v4866, 0.0
      %v4943 = vmax.f32 %v4871, 0.0
      %v4944 = vmax.f32 %v4874, 0.0
      %v4945 = vmax.f32 %v4879, 0.0
      %v4946 = vmax.f32 %v4882, 0.0
      %v4947 = vmax.f32 %v4887, 0.0
      %v4948 = vmax.f32 %v4890, 0.0
      %v4949 = vmax.f32 %v4895, 0.0
      %v4950 = vmax.f32 %v4898, 0.0
      %v4951 = vmax.f32 %v4903, 0.0
      %v4952 = vmax.f32 %v4906, 0.0
      %v4953 = vmax.f32 %v4911, 0.0
      %v4954 = vmax.f32 %v4914, 0.0
      %v4955 = vmax.f32 %v4919, 0.0
      %v4956 = vmax.f32 %v4922, 0.0
      %v4957 = vpack.c.bf16 %v4926, %v4925
      %v4958 = vpack.c.bf16 %v4928, %v4927
      %v4959 = vpack.c.bf16 %v4930, %v4929
      %v4960 = vpack.c.bf16 %v4932, %v4931
      %v4961 = vpack.c.bf16 %v4934, %v4933
      %v4962 = vpack.c.bf16 %v4936, %v4935
      %v4963 = vpack.c.bf16 %v4938, %v4937
      %v4964 = vpack.c.bf16 %v4940, %v4939
      %v4965 = vpack.c.bf16 %v4942, %v4941
      %v4966 = vpack.c.bf16 %v4944, %v4943
      %v4967 = vpack.c.bf16 %v4946, %v4945
      %v4968 = vpack.c.bf16 %v4948, %v4947
      %v4969 = vpack.c.bf16 %v4950, %v4949
      %v4970 = vpack.c.bf16 %v4952, %v4951
      %v4971 = vpack.c.bf16 %v4954, %v4953
      %v4972 = vpack.c.bf16 %v4956, %v4955
      %v4989 = vunpack.c.l.b16 %v4957
      %v4990 = vunpack.c.h.b16 %v4957
      %v4991 = vunpack.c.l.b16 %v4958
      %v4992 = vunpack.c.h.b16 %v4958
      %v4993 = vunpack.c.l.b16 %v4959
      %v4994 = vunpack.c.h.b16 %v4959
      %v4995 = vunpack.c.l.b16 %v4960
      %v4996 = vunpack.c.h.b16 %v4960
      %v4997 = vunpack.c.l.b16 %v4961
      %v4998 = vunpack.c.h.b16 %v4961
      %v4999 = vunpack.c.l.b16 %v4962
      %v5000 = vunpack.c.h.b16 %v4962
      %v5001 = vunpack.c.l.b16 %v4963
      %v5002 = vunpack.c.h.b16 %v4963
      %v5003 = vunpack.c.l.b16 %v4964
      %v5004 = vunpack.c.h.b16 %v4964
      %v5005 = vunpack.c.l.b16 %v4965
      %v5006 = vunpack.c.h.b16 %v4965
      %v5007 = vunpack.c.l.b16 %v4966
      %v5008 = vunpack.c.h.b16 %v4966
      %v5009 = vunpack.c.l.b16 %v4967
      %v5010 = vunpack.c.h.b16 %v4967
      %v5011 = vunpack.c.l.b16 %v4968
      %v5012 = vunpack.c.h.b16 %v4968
      %v5013 = vunpack.c.l.b16 %v4969
      %v5014 = vunpack.c.h.b16 %v4969
      %v5015 = vunpack.c.l.b16 %v4970
      %v5016 = vunpack.c.h.b16 %v4970
      %v5017 = vunpack.c.l.b16 %v4971
      %v5018 = vunpack.c.h.b16 %v4971
      %v5019 = vunpack.c.l.b16 %v4972
      %v5020 = vunpack.c.h.b16 %v4972
      %v5021 = vpack.c.b16 %v4989, %v4989
      %v5022 = vpack.c.b16 %v4990, %v4990
      %v5023 = vpack.c.b16 %v4991, %v4991
      %v5024 = vpack.c.b16 %v4992, %v4992
      %v5025 = vpack.c.b16 %v4993, %v4993
      %v5026 = vpack.c.b16 %v4994, %v4994
      %v5027 = vpack.c.b16 %v4995, %v4995
      %v5028 = vpack.c.b16 %v4996, %v4996
      %v5029 = vpack.c.b16 %v4997, %v4997
      %v5030 = vpack.c.b16 %v4998, %v4998
      %v5031 = vpack.c.b16 %v4999, %v4999
      %v5032 = vpack.c.b16 %v5000, %v5000
      %v5033 = vpack.c.b16 %v5001, %v5001
      %v5034 = vpack.c.b16 %v5002, %v5002
      %v5035 = vpack.c.b16 %v5003, %v5003
      %v5036 = vpack.c.b16 %v5004, %v5004
      %v5037 = vpack.c.b16 %v5005, %v5005
      %v5038 = vpack.c.b16 %v5006, %v5006
      %v5039 = vpack.c.b16 %v5007, %v5007
      %v5040 = vpack.c.b16 %v5008, %v5008
      %v5041 = vpack.c.b16 %v5009, %v5009
      %v5042 = vpack.c.b16 %v5010, %v5010
      %v5043 = vpack.c.b16 %v5011, %v5011
      %v5044 = vpack.c.b16 %v5012, %v5012
      %v5045 = vpack.c.b16 %v5013, %v5013
      %v5046 = vpack.c.b16 %v5014, %v5014
      %v5047 = vpack.c.b16 %v5015, %v5015
      %v5048 = vpack.c.b16 %v5016, %v5016
      %v5049 = vpack.c.b16 %v5017, %v5017
      %v5050 = vpack.c.b16 %v5018, %v5018
      %v5051 = vpack.c.b16 %v5019, %v5019
      %v5052 = vpack.c.b16 %v5020, %v5020
      %5085 = vst [vmem:[%s635] sm:$0xf] %v5021
      %5086 = vst [vmem:[%s635 + $0x4] sm:$0xf] %v5022
      %5087 = vst [vmem:[%s635 + $0x8] sm:$0xf] %v5023
      %5088 = vst [vmem:[%s635 + $0xc] sm:$0xf] %v5024
      %5089 = vst [vmem:[%s635 + $0x10] sm:$0xf] %v5025
      %5090 = vst [vmem:[%s635 + $0x14] sm:$0xf] %v5026
      %5091 = vst [vmem:[%s635 + $0x18] sm:$0xf] %v5027
      %5092 = vst [vmem:[%s635 + $0x1c] sm:$0xf] %v5028
      %5093 = vst [vmem:[%s635 + $0x20] sm:$0xf] %v5029
      %5094 = vst [vmem:[%s635 + $0x24] sm:$0xf] %v5030
      %5095 = vst [vmem:[%s635 + $0x28] sm:$0xf] %v5031
      %5096 = vst [vmem:[%s635 + $0x2c] sm:$0xf] %v5032
      %5097 = vst [vmem:[%s635 + $0x30] sm:$0xf] %v5033
      %5098 = vst [vmem:[%s635 + $0x34] sm:$0xf] %v5034
      %5099 = vst [vmem:[%s635 + $0x38] sm:$0xf] %v5035
      %5100 = vst [vmem:[%s635 + $0x3c] sm:$0xf] %v5036
      %5101 = vst [vmem:[%s635 + $0x40] sm:$0xf] %v5037
      %5102 = vst [vmem:[%s635 + $0x44] sm:$0xf] %v5038
      %5103 = vst [vmem:[%s635 + $0x48] sm:$0xf] %v5039
      %5104 = vst [vmem:[%s635 + $0x4c] sm:$0xf] %v5040
      %5105 = vst [vmem:[%s635 + $0x50] sm:$0xf] %v5041
      %5106 = vst [vmem:[%s635 + $0x54] sm:$0xf] %v5042
      %5107 = vst [vmem:[%s635 + $0x58] sm:$0xf] %v5043
      %5108 = vst [vmem:[%s635 + $0x5c] sm:$0xf] %v5044
      %5109 = vst [vmem:[%s635 + $0x60] sm:$0xf] %v5045
      %5110 = vst [vmem:[%s635 + $0x64] sm:$0xf] %v5046
      %5111 = vst [vmem:[%s635 + $0x68] sm:$0xf] %v5047
      %5112 = vst [vmem:[%s635 + $0x6c] sm:$0xf] %v5048
      %5113 = vst [vmem:[%s635 + $0x70] sm:$0xf] %v5049
      %5114 = vst [vmem:[%s635 + $0x74] sm:$0xf] %v5050
      %5115 = vst [vmem:[%s635 + $0x78] sm:$0xf] %v5051
      %5116 = vst [vmem:[%s635 + $0x7c] sm:$0xf] %v5052
      %s5117 = smul.u32 16, %s24
      %p5118 = scmp.lt.s32.totalorder %s23, 1
      %s5119 = scalar_select %p5118, %s23, 1
      %p5120 = scmp.lt.s32.totalorder %s5117, 15
      %s5121 = scalar_select %p5120, %s5117, 15
      %s5122 = smul.addr %s5121, 2
      %s5123 = smul.addr %s5119, 32
      %s5124 = sadd.s32 %s5122, %s5123
      %s5125 = smul.addr %s5124, 4
      %s5126 = scalar_lea.vmem %s8, %s5125
      // Predicated region
      $region53: #{upconv_forward.5} parent=51 // pred_check
        %p5127 = pneg %p293
      $region54: #{upconv_forward.5} parent=51 // pred_check_branch
        %5129 = sbr.rel (%p5127) target = $region56
      $region55: #{upconv_forward.5} parent=51 // pred_region
        %s5130 = smul.u32 16, %s24
      $region56: #{upconv_forward.5} parent=51 // pred_fallthru
        _
    $region52: #{upconv_forward.5} parent=5 // pred_fallthru
      _
    %p5131 = scmp.le.s32.totalorder 2, %s14
    // Predicated region
    $region57: #{upconv_forward.5} parent=5 // pred_check
      %p5132 = pneg %p5131
    $region58: #{upconv_forward.5} parent=5 // pred_check_branch
      %5134 = sbr.rel (%p5132) target = $region60
    $region59: #{upconv_forward.5} parent=5 // pred_region
      %s5135 = ssub.s32 %s14, 2
      // Predicated region
      $region61: #{upconv_forward.5} parent=59 // pred_check
        %p5136 = pneg %p299
      $region62: #{upconv_forward.5} parent=59 // pred_check_branch
        %5138 = sbr.rel (%p5136) target = $region64
      $region63: #{upconv_forward.5} parent=59 // pred_region
        %s5139 = smul.u32 16, %s26
        %p5140 = scmp.lt.s32.totalorder %s25, 1
        %s5141 = scalar_select %p5140, %s25, 1
        %p5142 = scmp.lt.s32.totalorder %s5139, 15
        %s5143 = scalar_select %p5142, %s5139, 15
        %s5144 = smul.addr %s5143, 2
        %s5145 = smul.addr %s5141, 32
        %s5146 = sadd.s32 %s5144, %s5145
        %s5147 = smul.addr %s5146, 4
        %s5148 = scalar_lea.vmem %s8, %s5147
      $region64: #{upconv_forward.5} parent=59 // pred_fallthru
        _
    $region60: #{upconv_forward.5} parent=5 // pred_fallthru
      _
  $region6: #{upconv_forward.5} parent=0 // loop_footer
    %s18 = sadd.s32 1, %s14
  $region7: #{upconv_forward.5} parent=0 // loop_footer_branch
    %13 = sbr.rel target = $region3
  $region8: #{upconv_forward.5} parent=0 // loop_exit
    _

</llo_original>
